<compile_context>
chip_gen: v5e
topology: v5e:2x2
jax: 0.10.0
libtpu: 0.0.40
codegen_flags: <defaults>
</compile_context>

<pallas_src>
import numpy as np
import jax
import jax.numpy as jnp
from jax import lax
from jax.experimental import pallas as pl
from jax.experimental.pallas import tpu as pltpu

NEG_SLOPE = 0.01
CP = 128          # channel padding: one full lane tile (lane-dense stores / VPU ops)


# -----------------------------------------------------------------------------
# helpers used while building / inside the fused kernel
# -----------------------------------------------------------------------------
def _pool_select_mat(H, W):
    """(Ho*Wo, H*W) 0/1 matrix picking the top-left anchor of every 2x2 window.
    Combined with the in-kernel roll+max this is an exact 2x2/stride-2 max pool
    using a single small selection matmul (was 4 dense gather matmuls before)."""
    Ho, Wo = H // 2, W // 2
    q = np.arange(Ho * Wo)
    hq, wq = q // Wo, q % Wo
    m = np.zeros((Ho * Wo, H * W), np.float32)
    m[q, (2 * hq) * W + 2 * wq] = 1.0
    return jnp.asarray(m)


def _maxpool2x2(g_ref, v, W):
    """v: (H*W, C) pixel-major conv output.  roll+max computes the 2x2 window max
    at every top-left anchor (exact, off the MXU); one 0/1 selection matmul then
    downsamples to (Ho*Wo, C).  Wrapped rows only land on odd h / odd w anchors,
    which the selection matrix never picks."""
    HW = v.shape[0]
    m = jnp.maximum(v, pltpu.roll(v, shift=HW - 1, axis=0))   # pair (h,w) with (h,w+1)
    m = jnp.maximum(m, pltpu.roll(m, shift=HW - W, axis=0))   # pair with row h+1
    return jnp.dot(g_ref[...], m, preferred_element_type=jnp.float32)


def _conv3x3_lrelu(buf_ref, w_ref, b_ref, H, W, cin, cout):
    """3x3 'same' conv + LeakyReLU from a flattened zero-halo VMEM buffer.

    buf_ref : (H*W + 2*W, cin) -- rows [W, W+H*W) hold the image (pixel-major),
              the first/last W rows are zeros.
    w_ref   : (9, cin, cout)   tap-major weights (tap = dy*3 + dx).
    b_ref   : (1, cout)
    returns : (H*W, cout) float32 value.

    Only the 3 dy-center slices are loaded (starts 0, W, 2W -- aligned for W>=8);
    the dx=-1 / dx=+1 taps come from pltpu.roll (XLU).  Rolled rows that wrap
    correspond exactly to w==0 / w==W-1 outputs, which the boolean masks zero.
    """
    HW = H * W
    col = lax.broadcasted_iota(jnp.int32, (HW, 1), 0)
    col = (col & (W - 1)) if (W & (W - 1)) == 0 else (col % W)
    not_w0 = col != 0          # dx=-1 tap invalid at w == 0
    not_wl = col != (W - 1)    # dx=+1 tap invalid at w == W-1

    acc = None
    for dy in range(3):
        center = buf_ref[pl.ds(dy * W, HW), :]                        # (HW, cin)
        left = jnp.where(not_w0, pltpu.roll(center, shift=1, axis=0), 0.0)
        right = jnp.where(not_wl, pltpu.roll(center, shift=HW - 1, axis=0), 0.0)
        for dx, tap in ((0, left), (1, center), (2, right)):
            wt = w_ref[dy * 3 + dx]                                   # (cin, cout)
            if cin == 1:
                contrib = tap * wt                                    # VPU broadcast
            else:
                contrib = jnp.dot(tap, wt, preferred_element_type=jnp.float32)
            acc = contrib if acc is None else acc + contrib
    acc = acc + b_ref[...]                                            # (1, cout)
    return jnp.where(acc >= 0.0, acc, NEG_SLOPE * acc)


# -----------------------------------------------------------------------------
# fused encoder forward
# -----------------------------------------------------------------------------
def encoder_forward(x_nchw, params):
    """Pallas forward of Encoder.forward.  Returns (flat, [input, skip1, skip2])
    with torch NCHW / flatten semantics.  (conv6 exists in the module but is unused.)"""
    (w1, b1), (w2, b2), (w3, b3), (w4, b4), (w5, b5) = params
    N, cin, H, W = x_nchw.shape
    assert H % 8 == 0 and W % 8 == 0, "need 3 rounds of 2x2 pooling"
    C = w1.shape[-1]                      # true channel count (48)

    H0, W0 = H, W                         # conv1 / conv2 resolution
    H1, W1 = H0 // 2, W0 // 2             # conv3
    H2, W2 = H1 // 2, W1 // 2             # conv4
    H3, W3 = H2 // 2, W2 // 2             # conv5

    # pixel-major / channel-minor input view; tap-major, lane-padded weights
    x_pix = jnp.transpose(x_nchw, (0, 2, 3, 1)).reshape(N, H0 * W0, cin)

    def pad_w(w, cin_p):
        ci, co = w.shape[2], w.shape[3]
        wp = jnp.zeros((3, 3, cin_p, CP), w.dtype).at[:, :, :ci, :co].set(w)
        return wp.reshape(9, cin_p, CP)

    def pad_b(b):
        return jnp.zeros((1, CP), b.dtype).at[:, : b.shape[1]].set(b)

    ws = [pad_w(w1, cin), pad_w(w2, CP), pad_w(w3, CP), pad_w(w4, CP), pad_w(w5, CP)]
    bs = [pad_b(b) for b in (b1, b2, b3, b4, b5)]
    g1 = _pool_select_mat(H0, W0)
    g2 = _pool_select_mat(H1, W1)
    g3 = _pool_select_mat(H2, W2)

    def kernel(x_ref, w1_ref, b1_ref, w2_ref, b2_ref, w3_ref, b3_ref,
               w4_ref, b4_ref, w5_ref, b5_ref, g1_ref, g2_ref, g3_ref,
               skip1_ref, skip2_ref, feat_ref,
               buf_a, buf_b, buf_c, buf_d, buf_e):
        # zero ONLY the halo rows (interior rows are fully overwritten every step
        # before any conv reads them -- invariant of the layer structure below).
        for buf, Wp in ((buf_a, W0), (buf_b, W0), (buf_c, W1), (buf_d, W2), (buf_e, W3)):
            z = jnp.zeros((Wp, buf.shape[1]), jnp.float32)
            buf[pl.ds(0, Wp), :] = z
            buf[pl.ds(buf.shape[0] - Wp, Wp), :] = z

        # conv1
        buf_a[pl.ds(W0, H0 * W0), :] = x_ref[0]
        v = _conv3x3_lrelu(buf_a, w1_ref, b1_ref, H0, W0, cin, CP)
        # conv2 + pool -> skip #1
        buf_b[pl.ds(W0, H0 * W0), :] = v
        v = _conv3x3_lrelu(buf_b, w2_ref, b2_ref, H0, W0, CP, CP)
        v = _maxpool2x2(g1_ref, v, W0)                   # (H1*W1, CP)
        skip1_ref[0] = v
        # conv3 + pool -> skip #2
        buf_c[pl.ds(W1, H1 * W1), :] = v
        v = _conv3x3_lrelu(buf_c, w3_ref, b3_ref, H1, W1, CP, CP)
        v = _maxpool2x2(g2_ref, v, W1)                   # (H2*W2, CP)
        skip2_ref[0] = v
        # conv4 + pool
        buf_d[pl.ds(W2, H2 * W2), :] = v
        v = _conv3x3_lrelu(buf_d, w4_ref, b4_ref, H2, W2, CP, CP)
        v = _maxpool2x2(g3_ref, v, W2)                   # (H3*W3, CP)
        # conv5
        buf_e[pl.ds(W3, H3 * W3), :] = v
        v = _conv3x3_lrelu(buf_e, w5_ref, b5_ref, H3, W3, CP, CP)
        feat_ref[0] = v

    def full(arr):
        shape = arr.shape
        return pl.BlockSpec(shape, lambda n, _r=len(shape): (0,) * _r)

    in_specs = [pl.BlockSpec((1, H0 * W0, cin), lambda n: (n, 0, 0))]
    for w, b in zip(ws, bs):
        in_specs += [full(w), full(b)]
    in_specs += [full(g1), full(g2), full(g3)]

    out_shapes = (jax.ShapeDtypeStruct((N, H1 * W1, CP), jnp.float32),
                  jax.ShapeDtypeStruct((N, H2 * W2, CP), jnp.float32),
                  jax.ShapeDtypeStruct((N, H3 * W3, CP), jnp.float32))
    out_specs = (pl.BlockSpec((1, H1 * W1, CP), lambda n: (n, 0, 0)),
                 pl.BlockSpec((1, H2 * W2, CP), lambda n: (n, 0, 0)),
                 pl.BlockSpec((1, H3 * W3, CP), lambda n: (n, 0, 0)))
    scratch = [pltpu.VMEM((H0 * W0 + 2 * W0, cin), jnp.float32),
               pltpu.VMEM((H0 * W0 + 2 * W0, CP), jnp.float32),
               pltpu.VMEM((H1 * W1 + 2 * W1, CP), jnp.float32),
               pltpu.VMEM((H2 * W2 + 2 * W2, CP), jnp.float32),
               pltpu.VMEM((H3 * W3 + 2 * W3, CP), jnp.float32)]

    skip1_p, skip2_p, feat_p = pl.pallas_call(
        kernel,
        out_shape=out_shapes,
        grid=(N,),
        in_specs=in_specs,
        out_specs=out_specs,
        scratch_shapes=scratch,
        compiler_params=pltpu.CompilerParams(
            dimension_semantics=("parallel",),
            vmem_limit_bytes=32 * 1024 * 1024),
    )(x_pix, ws[0], bs[0], ws[1], bs[1], ws[2], bs[2], ws[3], bs[3], ws[4], bs[4],
      g1, g2, g3)

    # back to torch NCHW / torch.flatten(x, 1) semantics (slice off the lane padding).
    skip1 = skip1_p[..., :C]
    skip2 = skip2_p[..., :C]
    feat = feat_p[..., :C]
    skips = [x_nchw,
             jnp.transpose(skip1.reshape(N, H1, W1, C), (0, 3, 1, 2)),
             jnp.transpose(skip2.reshape(N, H2, W2, C), (0, 3, 1, 2))]
    flat = jnp.transpose(feat.reshape(N, H3, W3, C), (0, 3, 1, 2)).reshape(N, -1)
    return flat, skips


# -----------------------------------------------------------------------------
# parameter init (matches the torch module's conv shapes; conv6 is unused)
# -----------------------------------------------------------------------------
def init_params(key, n_channels=1):
    shapes = [(n_channels, 48), (48, 48), (48, 48), (48, 48), (48, 48)]
    params = []
    for cin, cout in shapes:
        key, k1, k2 = jax.random.split(key, 3)
        fan_in = float(cin * 9)
        w = jax.random.normal(k1, (3, 3, cin, cout), jnp.float32) / jnp.sqrt(fan_in)
        b = 0.01 * jax.random.normal(k2, (1, cout), jnp.float32)
        params.append((w, b))
    return params


# -----------------------------------------------------------------------------
# pure-JAX reference (correctness check only)
# -----------------------------------------------------------------------------
def _ref_conv(x_nchw, w, b):
    out = lax.conv_general_dilated(
        x_nchw, w, window_strides=(1, 1), padding=((1, 1), (1, 1)),
        dimension_numbers=("NCHW", "HWIO", "NCHW"),
        precision=lax.Precision.HIGHEST)
    out = out + b.reshape(1, -1, 1, 1)
    return jnp.where(out >= 0.0, out, NEG_SLOPE * out)


def _ref_pool(x_nchw):
    return lax.reduce_window(x_nchw, -jnp.inf, lax.max,
                             (1, 1, 2, 2), (1, 1, 2, 2), "VALID")


def encoder_forward_ref(x_nchw, params):
    (w1, b1), (w2, b2), (w3, b3), (w4, b4), (w5, b5) = params
    skips = [x_nchw]
    h = _ref_conv(x_nchw, w1, b1)
    h = _ref_conv(h, w2, b2)
    h = _ref_pool(h)
    skips.append(h)
    h = _ref_conv(h, w3, b3)
    h = _ref_pool(h)
    skips.append(h)
    h = _ref_conv(h, w4, b4)
    h = _ref_pool(h)
    h = _ref_conv(h, w5, b5)
    return h.reshape(h.shape[0], -1), skips


if __name__ == "__main__":
    key = jax.random.PRNGKey(0)
    kx, kp = jax.random.split(key)
    x = jax.random.normal(kx, (2, 1, 16, 16), jnp.float32)   # NCHW, n_channels=1
    params = init_params(kp, n_channels=1)

    fwd = jax.jit(encoder_forward)
    flat, skips = fwd(x, params)
    flat = jax.block_until_ready(flat)
    skips = [jax.block_until_ready(s) for s in skips]

    # sanity check against the pure-JAX reference (tolerance allows for MXU
    # f32 pass rounding; real bugs produce O(1) errors)
    flat_ref, skips_ref = encoder_forward_ref(x, params)
    assert flat.shape == (2, 48 * 2 * 2), flat.shape
    assert jnp.allclose(flat, flat_ref, atol=1e-2, rtol=1e-2)
    for s, sr in zip(skips, skips_ref):
        assert s.shape == sr.shape, (s.shape, sr.shape)
        assert jnp.allclose(s, sr, atol=1e-2, rtol=1e-2)

    print("KERNEL_OK")
</pallas_src>

<mosaic_0001>
module attributes {stable_mosaic.version = 11 : i64} {
  func.func @kernel(%arg0: i32, %arg1: memref<1x256x1xf32, #tpu.memory_space<vmem>>, %arg2: memref<9x1x128xf32, #tpu.memory_space<vmem>>, %arg3: memref<1x128xf32, #tpu.memory_space<vmem>>, %arg4: memref<9x128x128xf32, #tpu.memory_space<vmem>>, %arg5: memref<1x128xf32, #tpu.memory_space<vmem>>, %arg6: memref<9x128x128xf32, #tpu.memory_space<vmem>>, %arg7: memref<1x128xf32, #tpu.memory_space<vmem>>, %arg8: memref<9x128x128xf32, #tpu.memory_space<vmem>>, %arg9: memref<1x128xf32, #tpu.memory_space<vmem>>, %arg10: memref<9x128x128xf32, #tpu.memory_space<vmem>>, %arg11: memref<1x128xf32, #tpu.memory_space<vmem>>, %arg12: memref<64x256xf32, #tpu.memory_space<vmem>>, %arg13: memref<16x64xf32, #tpu.memory_space<vmem>>, %arg14: memref<4x16xf32, #tpu.memory_space<vmem>>, %arg15: memref<1x64x128xf32, #tpu.memory_space<vmem>>, %arg16: memref<1x16x128xf32, #tpu.memory_space<vmem>>, %arg17: memref<1x4x128xf32, #tpu.memory_space<vmem>>, %arg18: memref<288x1xf32, #tpu.memory_space<vmem>>, %arg19: memref<288x128xf32, #tpu.memory_space<vmem>>, %arg20: memref<80x128xf32, #tpu.memory_space<vmem>>, %arg21: memref<24x128xf32, #tpu.memory_space<vmem>>, %arg22: memref<8x128xf32, #tpu.memory_space<vmem>>) attributes {dimension_semantics = [#tpu.dimension_semantics<parallel>], iteration_bounds = array<i64: 2>, scalar_prefetch = 0 : i64, scratch_operands = 5 : i64, tpu.core_type = #tpu.core_type<tc>, window_params = [{transform_indices = @transform_0, window_bounds = array<i64: 1, 256, 1>}, {pipeline_mode = #tpu.pipeline_mode<synchronous>, transform_indices = @transform_1, window_bounds = array<i64: 9, 1, 128>}, {pipeline_mode = #tpu.pipeline_mode<synchronous>, transform_indices = @transform_2, window_bounds = array<i64: 1, 128>}, {pipeline_mode = #tpu.pipeline_mode<synchronous>, transform_indices = @transform_3, window_bounds = array<i64: 9, 128, 128>}, {pipeline_mode = #tpu.pipeline_mode<synchronous>, transform_indices = @transform_4, window_bounds = array<i64: 1, 128>}, {pipeline_mode = #tpu.pipeline_mode<synchronous>, transform_indices = @transform_5, window_bounds = array<i64: 9, 128, 128>}, {pipeline_mode = #tpu.pipeline_mode<synchronous>, transform_indices = @transform_6, window_bounds = array<i64: 1, 128>}, {pipeline_mode = #tpu.pipeline_mode<synchronous>, transform_indices = @transform_7, window_bounds = array<i64: 9, 128, 128>}, {pipeline_mode = #tpu.pipeline_mode<synchronous>, transform_indices = @transform_8, window_bounds = array<i64: 1, 128>}, {pipeline_mode = #tpu.pipeline_mode<synchronous>, transform_indices = @transform_9, window_bounds = array<i64: 9, 128, 128>}, {pipeline_mode = #tpu.pipeline_mode<synchronous>, transform_indices = @transform_10, window_bounds = array<i64: 1, 128>}, {pipeline_mode = #tpu.pipeline_mode<synchronous>, transform_indices = @transform_11, window_bounds = array<i64: 64, 256>}, {pipeline_mode = #tpu.pipeline_mode<synchronous>, transform_indices = @transform_12, window_bounds = array<i64: 16, 64>}, {pipeline_mode = #tpu.pipeline_mode<synchronous>, transform_indices = @transform_13, window_bounds = array<i64: 4, 16>}, {transform_indices = @transform_14, window_bounds = array<i64: 1, 64, 128>}, {transform_indices = @transform_15, window_bounds = array<i64: 1, 16, 128>}, {transform_indices = @transform_16, window_bounds = array<i64: 1, 4, 128>}]} {
    %cst = arith.constant 0.000000e+00 : f32
    %0 = vector.broadcast %cst : f32 to vector<16x1xf32>
    %c0 = arith.constant 0 : index
    %c0_0 = arith.constant 0 : index
    %1 = vector.load %arg18[%c0, %c0_0] : memref<288x1xf32, #tpu.memory_space<vmem>>, vector<16x1xf32>
    tpu.vector_store %arg18[%c0, %c0_0], %0 {strides = array<i32>} : memref<288x1xf32, #tpu.memory_space<vmem>>, vector<16x1xf32>,
    %c272 = arith.constant 272 : index
    %c0_1 = arith.constant 0 : index
    %2 = vector.load %arg18[%c272, %c0_1] : memref<288x1xf32, #tpu.memory_space<vmem>>, vector<16x1xf32>
    tpu.vector_store %arg18[%c272, %c0_1], %0 {strides = array<i32>} : memref<288x1xf32, #tpu.memory_space<vmem>>, vector<16x1xf32>,
    %cst_2 = arith.constant 0.000000e+00 : f32
    %3 = vector.broadcast %cst_2 : f32 to vector<16x128xf32>
    %c0_3 = arith.constant 0 : index
    %c0_4 = arith.constant 0 : index
    %4 = vector.load %arg19[%c0_3, %c0_4] : memref<288x128xf32, #tpu.memory_space<vmem>>, vector<16x128xf32>
    tpu.vector_store %arg19[%c0_3, %c0_4], %3 {strides = array<i32>} : memref<288x128xf32, #tpu.memory_space<vmem>>, vector<16x128xf32>,
    %c272_5 = arith.constant 272 : index
    %c0_6 = arith.constant 0 : index
    %5 = vector.load %arg19[%c272_5, %c0_6] : memref<288x128xf32, #tpu.memory_space<vmem>>, vector<16x128xf32>
    tpu.vector_store %arg19[%c272_5, %c0_6], %3 {strides = array<i32>} : memref<288x128xf32, #tpu.memory_space<vmem>>, vector<16x128xf32>,
    %cst_7 = arith.constant 0.000000e+00 : f32
    %6 = vector.broadcast %cst_7 : f32 to vector<8x128xf32>
    %c0_8 = arith.constant 0 : index
    %c0_9 = arith.constant 0 : index
    %7 = vector.load %arg20[%c0_8, %c0_9] : memref<80x128xf32, #tpu.memory_space<vmem>>, vector<8x128xf32>
    tpu.vector_store %arg20[%c0_8, %c0_9], %6 {strides = array<i32>} : memref<80x128xf32, #tpu.memory_space<vmem>>, vector<8x128xf32>,
    %c72 = arith.constant 72 : index
    %c0_10 = arith.constant 0 : index
    %8 = vector.load %arg20[%c72, %c0_10] : memref<80x128xf32, #tpu.memory_space<vmem>>, vector<8x128xf32>
    tpu.vector_store %arg20[%c72, %c0_10], %6 {strides = array<i32>} : memref<80x128xf32, #tpu.memory_space<vmem>>, vector<8x128xf32>,
    %cst_11 = arith.constant 0.000000e+00 : f32
    %9 = vector.broadcast %cst_11 : f32 to vector<4x128xf32>
    %c0_12 = arith.constant 0 : index
    %c0_13 = arith.constant 0 : index
    %10 = vector.load %arg21[%c0_12, %c0_13] : memref<24x128xf32, #tpu.memory_space<vmem>>, vector<4x128xf32>
    tpu.vector_store %arg21[%c0_12, %c0_13], %9 {strides = array<i32>} : memref<24x128xf32, #tpu.memory_space<vmem>>, vector<4x128xf32>,
    %c20 = arith.constant 20 : index
    %c0_14 = arith.constant 0 : index
    %11 = vector.load %arg21[%c20, %c0_14] : memref<24x128xf32, #tpu.memory_space<vmem>>, vector<4x128xf32>
    tpu.vector_store %arg21[%c20, %c0_14], %9 {strides = array<i32>} : memref<24x128xf32, #tpu.memory_space<vmem>>, vector<4x128xf32>,
    %cst_15 = arith.constant 0.000000e+00 : f32
    %12 = vector.broadcast %cst_15 : f32 to vector<2x128xf32>
    %c0_16 = arith.constant 0 : index
    %c0_17 = arith.constant 0 : index
    %13 = vector.load %arg22[%c0_16, %c0_17] : memref<8x128xf32, #tpu.memory_space<vmem>>, vector<2x128xf32>
    tpu.vector_store %arg22[%c0_16, %c0_17], %12 {strides = array<i32>} : memref<8x128xf32, #tpu.memory_space<vmem>>, vector<2x128xf32>,
    %c6 = arith.constant 6 : index
    %c0_18 = arith.constant 0 : index
    %14 = vector.load %arg22[%c6, %c0_18] : memref<8x128xf32, #tpu.memory_space<vmem>>, vector<2x128xf32>
    tpu.vector_store %arg22[%c6, %c0_18], %12 {strides = array<i32>} : memref<8x128xf32, #tpu.memory_space<vmem>>, vector<2x128xf32>,
    %c0_19 = arith.constant 0 : index
    %c0_20 = arith.constant 0 : index
    %c0_21 = arith.constant 0 : index
    %15 = vector.load %arg1[%c0_19, %c0_20, %c0_21] : memref<1x256x1xf32, #tpu.memory_space<vmem>>, vector<1x256x1xf32>
    %16 = vector.shape_cast %15 : vector<1x256x1xf32> to vector<256x1xf32>
    %c16 = arith.constant 16 : index
    %c0_22 = arith.constant 0 : index
    %17 = vector.load %arg18[%c16, %c0_22] : memref<288x1xf32, #tpu.memory_space<vmem>>, vector<256x1xf32>
    tpu.vector_store %arg18[%c16, %c0_22], %16 {strides = array<i32>} : memref<288x1xf32, #tpu.memory_space<vmem>>, vector<256x1xf32>,
    %18 = tpu.iota {dimensions = array<i32: 0>} : vector<256x1xi32>
    %c15_i32 = arith.constant 15 : i32
    %19 = vector.broadcast %c15_i32 : i32 to vector<256x1xi32>
    %20 = arith.andi %18, %19 : vector<256x1xi32>
    %c0_i32 = arith.constant 0 : i32
    %21 = vector.broadcast %c0_i32 : i32 to vector<256x1xi32>
    %22 = arith.cmpi ne, %20, %21 : vector<256x1xi32>
    %c15_i32_23 = arith.constant 15 : i32
    %23 = vector.broadcast %c15_i32_23 : i32 to vector<256x1xi32>
    %24 = arith.cmpi ne, %20, %23 : vector<256x1xi32>
    %c0_24 = arith.constant 0 : index
    %c0_25 = arith.constant 0 : index
    %25 = vector.load %arg18[%c0_24, %c0_25] : memref<288x1xf32, #tpu.memory_space<vmem>>, vector<256x1xf32>
    %c1_i32 = arith.constant 1 : i32
    %26 = tpu.dynamic_rotate %25 by %c1_i32 dim 0 : vector<256x1xf32>, i32 -> vector<256x1xf32>
    %cst_26 = arith.constant 0.000000e+00 : f32
    %27 = vector.broadcast %cst_26 : f32 to vector<256x1xf32>
    %28 = arith.select %22, %26, %27 : vector<256x1xi1>, vector<256x1xf32>
    %c255_i32 = arith.constant 255 : i32
    %29 = tpu.dynamic_rotate %25 by %c255_i32 dim 0 : vector<256x1xf32>, i32 -> vector<256x1xf32>
    %cst_27 = arith.constant 0.000000e+00 : f32
    %30 = vector.broadcast %cst_27 : f32 to vector<256x1xf32>
    %31 = arith.select %24, %29, %30 : vector<256x1xi1>, vector<256x1xf32>
    %c0_28 = arith.constant 0 : index
    %c0_29 = arith.constant 0 : index
    %c0_30 = arith.constant 0 : index
    %32 = vector.load %arg2[%c0_28, %c0_29, %c0_30] : memref<9x1x128xf32, #tpu.memory_space<vmem>>, vector<1x1x128xf32>
    %33 = vector.shape_cast %32 : vector<1x1x128xf32> to vector<1x128xf32>
    %34 = vector.broadcast %28 : vector<256x1xf32> to vector<256x128xf32>
    %35 = vector.broadcast %33 : vector<1x128xf32> to vector<256x128xf32>
    %36 = arith.mulf %34, %35 : vector<256x128xf32>
    %c1 = arith.constant 1 : index
    %c0_31 = arith.constant 0 : index
    %c0_32 = arith.constant 0 : index
    %37 = vector.load %arg2[%c1, %c0_31, %c0_32] : memref<9x1x128xf32, #tpu.memory_space<vmem>>, vector<1x1x128xf32>
    %38 = vector.shape_cast %37 : vector<1x1x128xf32> to vector<1x128xf32>
    %39 = vector.broadcast %25 : vector<256x1xf32> to vector<256x128xf32>
    %40 = vector.broadcast %38 : vector<1x128xf32> to vector<256x128xf32>
    %41 = arith.mulf %39, %40 : vector<256x128xf32>
    %42 = arith.addf %36, %41 : vector<256x128xf32>
    %c2 = arith.constant 2 : index
    %c0_33 = arith.constant 0 : index
    %c0_34 = arith.constant 0 : index
    %43 = vector.load %arg2[%c2, %c0_33, %c0_34] : memref<9x1x128xf32, #tpu.memory_space<vmem>>, vector<1x1x128xf32>
    %44 = vector.shape_cast %43 : vector<1x1x128xf32> to vector<1x128xf32>
    %45 = vector.broadcast %31 : vector<256x1xf32> to vector<256x128xf32>
    %46 = vector.broadcast %44 : vector<1x128xf32> to vector<256x128xf32>
    %47 = arith.mulf %45, %46 : vector<256x128xf32>
    %48 = arith.addf %42, %47 : vector<256x128xf32>
    %c16_35 = arith.constant 16 : index
    %c0_36 = arith.constant 0 : index
    %49 = vector.load %arg18[%c16_35, %c0_36] : memref<288x1xf32, #tpu.memory_space<vmem>>, vector<256x1xf32>
    %c1_i32_37 = arith.constant 1 : i32
    %50 = tpu.dynamic_rotate %49 by %c1_i32_37 dim 0 : vector<256x1xf32>, i32 -> vector<256x1xf32>
    %cst_38 = arith.constant 0.000000e+00 : f32
    %51 = vector.broadcast %cst_38 : f32 to vector<256x1xf32>
    %52 = arith.select %22, %50, %51 : vector<256x1xi1>, vector<256x1xf32>
    %c255_i32_39 = arith.constant 255 : i32
    %53 = tpu.dynamic_rotate %49 by %c255_i32_39 dim 0 : vector<256x1xf32>, i32 -> vector<256x1xf32>
    %cst_40 = arith.constant 0.000000e+00 : f32
    %54 = vector.broadcast %cst_40 : f32 to vector<256x1xf32>
    %55 = arith.select %24, %53, %54 : vector<256x1xi1>, vector<256x1xf32>
    %c3 = arith.constant 3 : index
    %c0_41 = arith.constant 0 : index
    %c0_42 = arith.constant 0 : index
    %56 = vector.load %arg2[%c3, %c0_41, %c0_42] : memref<9x1x128xf32, #tpu.memory_space<vmem>>, vector<1x1x128xf32>
    %57 = vector.shape_cast %56 : vector<1x1x128xf32> to vector<1x128xf32>
    %58 = vector.broadcast %52 : vector<256x1xf32> to vector<256x128xf32>
    %59 = vector.broadcast %57 : vector<1x128xf32> to vector<256x128xf32>
    %60 = arith.mulf %58, %59 : vector<256x128xf32>
    %61 = arith.addf %48, %60 : vector<256x128xf32>
    %c4 = arith.constant 4 : index
    %c0_43 = arith.constant 0 : index
    %c0_44 = arith.constant 0 : index
    %62 = vector.load %arg2[%c4, %c0_43, %c0_44] : memref<9x1x128xf32, #tpu.memory_space<vmem>>, vector<1x1x128xf32>
    %63 = vector.shape_cast %62 : vector<1x1x128xf32> to vector<1x128xf32>
    %64 = vector.broadcast %49 : vector<256x1xf32> to vector<256x128xf32>
    %65 = vector.broadcast %63 : vector<1x128xf32> to vector<256x128xf32>
    %66 = arith.mulf %64, %65 : vector<256x128xf32>
    %67 = arith.addf %61, %66 : vector<256x128xf32>
    %c5 = arith.constant 5 : index
    %c0_45 = arith.constant 0 : index
    %c0_46 = arith.constant 0 : index
    %68 = vector.load %arg2[%c5, %c0_45, %c0_46] : memref<9x1x128xf32, #tpu.memory_space<vmem>>, vector<1x1x128xf32>
    %69 = vector.shape_cast %68 : vector<1x1x128xf32> to vector<1x128xf32>
    %70 = vector.broadcast %55 : vector<256x1xf32> to vector<256x128xf32>
    %71 = vector.broadcast %69 : vector<1x128xf32> to vector<256x128xf32>
    %72 = arith.mulf %70, %71 : vector<256x128xf32>
    %73 = arith.addf %67, %72 : vector<256x128xf32>
    %c32 = arith.constant 32 : index
    %c0_47 = arith.constant 0 : index
    %74 = vector.load %arg18[%c32, %c0_47] : memref<288x1xf32, #tpu.memory_space<vmem>>, vector<256x1xf32>
    %c1_i32_48 = arith.constant 1 : i32
    %75 = tpu.dynamic_rotate %74 by %c1_i32_48 dim 0 : vector<256x1xf32>, i32 -> vector<256x1xf32>
    %cst_49 = arith.constant 0.000000e+00 : f32
    %76 = vector.broadcast %cst_49 : f32 to vector<256x1xf32>
    %77 = arith.select %22, %75, %76 : vector<256x1xi1>, vector<256x1xf32>
    %c255_i32_50 = arith.constant 255 : i32
    %78 = tpu.dynamic_rotate %74 by %c255_i32_50 dim 0 : vector<256x1xf32>, i32 -> vector<256x1xf32>
    %cst_51 = arith.constant 0.000000e+00 : f32
    %79 = vector.broadcast %cst_51 : f32 to vector<256x1xf32>
    %80 = arith.select %24, %78, %79 : vector<256x1xi1>, vector<256x1xf32>
    %c6_52 = arith.constant 6 : index
    %c0_53 = arith.constant 0 : index
    %c0_54 = arith.constant 0 : index
    %81 = vector.load %arg2[%c6_52, %c0_53, %c0_54] : memref<9x1x128xf32, #tpu.memory_space<vmem>>, vector<1x1x128xf32>
    %82 = vector.shape_cast %81 : vector<1x1x128xf32> to vector<1x128xf32>
    %83 = vector.broadcast %77 : vector<256x1xf32> to vector<256x128xf32>
    %84 = vector.broadcast %82 : vector<1x128xf32> to vector<256x128xf32>
    %85 = arith.mulf %83, %84 : vector<256x128xf32>
    %86 = arith.addf %73, %85 : vector<256x128xf32>
    %c7 = arith.constant 7 : index
    %c0_55 = arith.constant 0 : index
    %c0_56 = arith.constant 0 : index
    %87 = vector.load %arg2[%c7, %c0_55, %c0_56] : memref<9x1x128xf32, #tpu.memory_space<vmem>>, vector<1x1x128xf32>
    %88 = vector.shape_cast %87 : vector<1x1x128xf32> to vector<1x128xf32>
    %89 = vector.broadcast %74 : vector<256x1xf32> to vector<256x128xf32>
    %90 = vector.broadcast %88 : vector<1x128xf32> to vector<256x128xf32>
    %91 = arith.mulf %89, %90 : vector<256x128xf32>
    %92 = arith.addf %86, %91 : vector<256x128xf32>
    %c8 = arith.constant 8 : index
    %c0_57 = arith.constant 0 : index
    %c0_58 = arith.constant 0 : index
    %93 = vector.load %arg2[%c8, %c0_57, %c0_58] : memref<9x1x128xf32, #tpu.memory_space<vmem>>, vector<1x1x128xf32>
    %94 = vector.shape_cast %93 : vector<1x1x128xf32> to vector<1x128xf32>
    %95 = vector.broadcast %80 : vector<256x1xf32> to vector<256x128xf32>
    %96 = vector.broadcast %94 : vector<1x128xf32> to vector<256x128xf32>
    %97 = arith.mulf %95, %96 : vector<256x128xf32>
    %98 = arith.addf %92, %97 : vector<256x128xf32>
    %c0_59 = arith.constant 0 : index
    %c0_60 = arith.constant 0 : index
    %99 = vector.load %arg3[%c0_59, %c0_60] : memref<1x128xf32, #tpu.memory_space<vmem>>, vector<1x128xf32>
    %100 = vector.broadcast %99 : vector<1x128xf32> to vector<256x128xf32>
    %101 = arith.addf %98, %100 : vector<256x128xf32>
    %cst_61 = arith.constant 0.000000e+00 : f32
    %102 = vector.broadcast %cst_61 : f32 to vector<256x128xf32>
    %103 = arith.cmpf oge, %101, %102 : vector<256x128xf32>
    %cst_62 = arith.constant 0.00999999977 : f32
    %104 = vector.broadcast %cst_62 : f32 to vector<256x128xf32>
    %105 = arith.mulf %104, %101 : vector<256x128xf32>
    %106 = arith.select %103, %101, %105 : vector<256x128xi1>, vector<256x128xf32>
    %c16_63 = arith.constant 16 : index
    %c0_64 = arith.constant 0 : index
    %107 = vector.load %arg19[%c16_63, %c0_64] : memref<288x128xf32, #tpu.memory_space<vmem>>, vector<256x128xf32>
    tpu.vector_store %arg19[%c16_63, %c0_64], %106 {strides = array<i32>} : memref<288x128xf32, #tpu.memory_space<vmem>>, vector<256x128xf32>,
    %108 = tpu.iota {dimensions = array<i32: 0>} : vector<256x1xi32>
    %c15_i32_65 = arith.constant 15 : i32
    %109 = vector.broadcast %c15_i32_65 : i32 to vector<256x1xi32>
    %110 = arith.andi %108, %109 : vector<256x1xi32>
    %c0_i32_66 = arith.constant 0 : i32
    %111 = vector.broadcast %c0_i32_66 : i32 to vector<256x1xi32>
    %112 = arith.cmpi ne, %110, %111 : vector<256x1xi32>
    %c15_i32_67 = arith.constant 15 : i32
    %113 = vector.broadcast %c15_i32_67 : i32 to vector<256x1xi32>
    %114 = arith.cmpi ne, %110, %113 : vector<256x1xi32>
    %c0_68 = arith.constant 0 : index
    %c0_69 = arith.constant 0 : index
    %115 = vector.load %arg19[%c0_68, %c0_69] : memref<288x128xf32, #tpu.memory_space<vmem>>, vector<256x128xf32>
    %c1_i32_70 = arith.constant 1 : i32
    %116 = tpu.dynamic_rotate %115 by %c1_i32_70 dim 0 : vector<256x128xf32>, i32 -> vector<256x128xf32>
    %cst_71 = arith.constant 0.000000e+00 : f32
    %117 = vector.shape_cast %112 : vector<256x1xi1> to vector<256x1xi1>
    %118 = vector.broadcast %117 : vector<256x1xi1> to vector<256x128xi1>
    %119 = vector.broadcast %cst_71 : f32 to vector<256x128xf32>
    %120 = arith.select %118, %116, %119 : vector<256x128xi1>, vector<256x128xf32>
    %c255_i32_72 = arith.constant 255 : i32
    %121 = tpu.dynamic_rotate %115 by %c255_i32_72 dim 0 : vector<256x128xf32>, i32 -> vector<256x128xf32>
    %cst_73 = arith.constant 0.000000e+00 : f32
    %122 = vector.shape_cast %114 : vector<256x1xi1> to vector<256x1xi1>
    %123 = vector.broadcast %122 : vector<256x1xi1> to vector<256x128xi1>
    %124 = vector.broadcast %cst_73 : f32 to vector<256x128xf32>
    %125 = arith.select %123, %121, %124 : vector<256x128xi1>, vector<256x128xf32>
    %c0_74 = arith.constant 0 : index
    %c0_75 = arith.constant 0 : index
    %c0_76 = arith.constant 0 : index
    %126 = vector.load %arg4[%c0_74, %c0_75, %c0_76] : memref<9x128x128xf32, #tpu.memory_space<vmem>>, vector<1x128x128xf32>
    %127 = vector.shape_cast %126 : vector<1x128x128xf32> to vector<128x128xf32>
    %cst_77 = arith.constant dense<0.000000e+00> : vector<256x128xf32>
    %128 = tpu.matmul %120, %127, %cst_77 {dimension_numbers = #tpu.dot_dimension_numbers<[1], [0], [0], [1], [0, 0, 1, 1], [], []>} : vector<256x128xf32>, vector<128x128xf32>, vector<256x128xf32> -> vector<256x128xf32>
    %c1_78 = arith.constant 1 : index
    %c0_79 = arith.constant 0 : index
    %c0_80 = arith.constant 0 : index
    %129 = vector.load %arg4[%c1_78, %c0_79, %c0_80] : memref<9x128x128xf32, #tpu.memory_space<vmem>>, vector<1x128x128xf32>
    %130 = vector.shape_cast %129 : vector<1x128x128xf32> to vector<128x128xf32>
    %cst_81 = arith.constant dense<0.000000e+00> : vector<256x128xf32>
    %131 = tpu.matmul %115, %130, %cst_81 {dimension_numbers = #tpu.dot_dimension_numbers<[1], [0], [0], [1], [0, 0, 1, 1], [], []>} : vector<256x128xf32>, vector<128x128xf32>, vector<256x128xf32> -> vector<256x128xf32>
    %132 = arith.addf %128, %131 : vector<256x128xf32>
    %c2_82 = arith.constant 2 : index
    %c0_83 = arith.constant 0 : index
    %c0_84 = arith.constant 0 : index
    %133 = vector.load %arg4[%c2_82, %c0_83, %c0_84] : memref<9x128x128xf32, #tpu.memory_space<vmem>>, vector<1x128x128xf32>
    %134 = vector.shape_cast %133 : vector<1x128x128xf32> to vector<128x128xf32>
    %cst_85 = arith.constant dense<0.000000e+00> : vector<256x128xf32>
    %135 = tpu.matmul %125, %134, %cst_85 {dimension_numbers = #tpu.dot_dimension_numbers<[1], [0], [0], [1], [0, 0, 1, 1], [], []>} : vector<256x128xf32>, vector<128x128xf32>, vector<256x128xf32> -> vector<256x128xf32>
    %136 = arith.addf %132, %135 : vector<256x128xf32>
    %c16_86 = arith.constant 16 : index
    %c0_87 = arith.constant 0 : index
    %137 = vector.load %arg19[%c16_86, %c0_87] : memref<288x128xf32, #tpu.memory_space<vmem>>, vector<256x128xf32>
    %c1_i32_88 = arith.constant 1 : i32
    %138 = tpu.dynamic_rotate %137 by %c1_i32_88 dim 0 : vector<256x128xf32>, i32 -> vector<256x128xf32>
    %cst_89 = arith.constant 0.000000e+00 : f32
    %139 = vector.shape_cast %112 : vector<256x1xi1> to vector<256x1xi1>
    %140 = vector.broadcast %139 : vector<256x1xi1> to vector<256x128xi1>
    %141 = vector.broadcast %cst_89 : f32 to vector<256x128xf32>
    %142 = arith.select %140, %138, %141 : vector<256x128xi1>, vector<256x128xf32>
    %c255_i32_90 = arith.constant 255 : i32
    %143 = tpu.dynamic_rotate %137 by %c255_i32_90 dim 0 : vector<256x128xf32>, i32 -> vector<256x128xf32>
    %cst_91 = arith.constant 0.000000e+00 : f32
    %144 = vector.shape_cast %114 : vector<256x1xi1> to vector<256x1xi1>
    %145 = vector.broadcast %144 : vector<256x1xi1> to vector<256x128xi1>
    %146 = vector.broadcast %cst_91 : f32 to vector<256x128xf32>
    %147 = arith.select %145, %143, %146 : vector<256x128xi1>, vector<256x128xf32>
    %c3_92 = arith.constant 3 : index
    %c0_93 = arith.constant 0 : index
    %c0_94 = arith.constant 0 : index
    %148 = vector.load %arg4[%c3_92, %c0_93, %c0_94] : memref<9x128x128xf32, #tpu.memory_space<vmem>>, vector<1x128x128xf32>
    %149 = vector.shape_cast %148 : vector<1x128x128xf32> to vector<128x128xf32>
    %cst_95 = arith.constant dense<0.000000e+00> : vector<256x128xf32>
    %150 = tpu.matmul %142, %149, %cst_95 {dimension_numbers = #tpu.dot_dimension_numbers<[1], [0], [0], [1], [0, 0, 1, 1], [], []>} : vector<256x128xf32>, vector<128x128xf32>, vector<256x128xf32> -> vector<256x128xf32>
    %151 = arith.addf %136, %150 : vector<256x128xf32>
    %c4_96 = arith.constant 4 : index
    %c0_97 = arith.constant 0 : index
    %c0_98 = arith.constant 0 : index
    %152 = vector.load %arg4[%c4_96, %c0_97, %c0_98] : memref<9x128x128xf32, #tpu.memory_space<vmem>>, vector<1x128x128xf32>
    %153 = vector.shape_cast %152 : vector<1x128x128xf32> to vector<128x128xf32>
    %cst_99 = arith.constant dense<0.000000e+00> : vector<256x128xf32>
    %154 = tpu.matmul %137, %153, %cst_99 {dimension_numbers = #tpu.dot_dimension_numbers<[1], [0], [0], [1], [0, 0, 1, 1], [], []>} : vector<256x128xf32>, vector<128x128xf32>, vector<256x128xf32> -> vector<256x128xf32>
    %155 = arith.addf %151, %154 : vector<256x128xf32>
    %c5_100 = arith.constant 5 : index
    %c0_101 = arith.constant 0 : index
    %c0_102 = arith.constant 0 : index
    %156 = vector.load %arg4[%c5_100, %c0_101, %c0_102] : memref<9x128x128xf32, #tpu.memory_space<vmem>>, vector<1x128x128xf32>
    %157 = vector.shape_cast %156 : vector<1x128x128xf32> to vector<128x128xf32>
    %cst_103 = arith.constant dense<0.000000e+00> : vector<256x128xf32>
    %158 = tpu.matmul %147, %157, %cst_103 {dimension_numbers = #tpu.dot_dimension_numbers<[1], [0], [0], [1], [0, 0, 1, 1], [], []>} : vector<256x128xf32>, vector<128x128xf32>, vector<256x128xf32> -> vector<256x128xf32>
    %159 = arith.addf %155, %158 : vector<256x128xf32>
    %c32_104 = arith.constant 32 : index
    %c0_105 = arith.constant 0 : index
    %160 = vector.load %arg19[%c32_104, %c0_105] : memref<288x128xf32, #tpu.memory_space<vmem>>, vector<256x128xf32>
    %c1_i32_106 = arith.constant 1 : i32
    %161 = tpu.dynamic_rotate %160 by %c1_i32_106 dim 0 : vector<256x128xf32>, i32 -> vector<256x128xf32>
    %cst_107 = arith.constant 0.000000e+00 : f32
    %162 = vector.shape_cast %112 : vector<256x1xi1> to vector<256x1xi1>
    %163 = vector.broadcast %162 : vector<256x1xi1> to vector<256x128xi1>
    %164 = vector.broadcast %cst_107 : f32 to vector<256x128xf32>
    %165 = arith.select %163, %161, %164 : vector<256x128xi1>, vector<256x128xf32>
    %c255_i32_108 = arith.constant 255 : i32
    %166 = tpu.dynamic_rotate %160 by %c255_i32_108 dim 0 : vector<256x128xf32>, i32 -> vector<256x128xf32>
    %cst_109 = arith.constant 0.000000e+00 : f32
    %167 = vector.shape_cast %114 : vector<256x1xi1> to vector<256x1xi1>
    %168 = vector.broadcast %167 : vector<256x1xi1> to vector<256x128xi1>
    %169 = vector.broadcast %cst_109 : f32 to vector<256x128xf32>
    %170 = arith.select %168, %166, %169 : vector<256x128xi1>, vector<256x128xf32>
    %c6_110 = arith.constant 6 : index
    %c0_111 = arith.constant 0 : index
    %c0_112 = arith.constant 0 : index
    %171 = vector.load %arg4[%c6_110, %c0_111, %c0_112] : memref<9x128x128xf32, #tpu.memory_space<vmem>>, vector<1x128x128xf32>
    %172 = vector.shape_cast %171 : vector<1x128x128xf32> to vector<128x128xf32>
    %cst_113 = arith.constant dense<0.000000e+00> : vector<256x128xf32>
    %173 = tpu.matmul %165, %172, %cst_113 {dimension_numbers = #tpu.dot_dimension_numbers<[1], [0], [0], [1], [0, 0, 1, 1], [], []>} : vector<256x128xf32>, vector<128x128xf32>, vector<256x128xf32> -> vector<256x128xf32>
    %174 = arith.addf %159, %173 : vector<256x128xf32>
    %c7_114 = arith.constant 7 : index
    %c0_115 = arith.constant 0 : index
    %c0_116 = arith.constant 0 : index
    %175 = vector.load %arg4[%c7_114, %c0_115, %c0_116] : memref<9x128x128xf32, #tpu.memory_space<vmem>>, vector<1x128x128xf32>
    %176 = vector.shape_cast %175 : vector<1x128x128xf32> to vector<128x128xf32>
    %cst_117 = arith.constant dense<0.000000e+00> : vector<256x128xf32>
    %177 = tpu.matmul %160, %176, %cst_117 {dimension_numbers = #tpu.dot_dimension_numbers<[1], [0], [0], [1], [0, 0, 1, 1], [], []>} : vector<256x128xf32>, vector<128x128xf32>, vector<256x128xf32> -> vector<256x128xf32>
    %178 = arith.addf %174, %177 : vector<256x128xf32>
    %c8_118 = arith.constant 8 : index
    %c0_119 = arith.constant 0 : index
    %c0_120 = arith.constant 0 : index
    %179 = vector.load %arg4[%c8_118, %c0_119, %c0_120] : memref<9x128x128xf32, #tpu.memory_space<vmem>>, vector<1x128x128xf32>
    %180 = vector.shape_cast %179 : vector<1x128x128xf32> to vector<128x128xf32>
    %cst_121 = arith.constant dense<0.000000e+00> : vector<256x128xf32>
    %181 = tpu.matmul %170, %180, %cst_121 {dimension_numbers = #tpu.dot_dimension_numbers<[1], [0], [0], [1], [0, 0, 1, 1], [], []>} : vector<256x128xf32>, vector<128x128xf32>, vector<256x128xf32> -> vector<256x128xf32>
    %182 = arith.addf %178, %181 : vector<256x128xf32>
    %c0_122 = arith.constant 0 : index
    %c0_123 = arith.constant 0 : index
    %183 = vector.load %arg5[%c0_122, %c0_123] : memref<1x128xf32, #tpu.memory_space<vmem>>, vector<1x128xf32>
    %184 = vector.broadcast %183 : vector<1x128xf32> to vector<256x128xf32>
    %185 = arith.addf %182, %184 : vector<256x128xf32>
    %cst_124 = arith.constant 0.000000e+00 : f32
    %186 = vector.broadcast %cst_124 : f32 to vector<256x128xf32>
    %187 = arith.cmpf oge, %185, %186 : vector<256x128xf32>
    %cst_125 = arith.constant 0.00999999977 : f32
    %188 = vector.broadcast %cst_125 : f32 to vector<256x128xf32>
    %189 = arith.mulf %188, %185 : vector<256x128xf32>
    %190 = arith.select %187, %185, %189 : vector<256x128xi1>, vector<256x128xf32>
    %c255_i32_126 = arith.constant 255 : i32
    %191 = tpu.dynamic_rotate %190 by %c255_i32_126 dim 0 : vector<256x128xf32>, i32 -> vector<256x128xf32>
    %192 = arith.maximumf %190, %191 : vector<256x128xf32>
    %c240_i32 = arith.constant 240 : i32
    %193 = tpu.dynamic_rotate %192 by %c240_i32 dim 0 : vector<256x128xf32>, i32 -> vector<256x128xf32>
    %194 = arith.maximumf %192, %193 : vector<256x128xf32>
    %c0_127 = arith.constant 0 : index
    %c0_128 = arith.constant 0 : index
    %195 = vector.load %arg12[%c0_127, %c0_128] : memref<64x256xf32, #tpu.memory_space<vmem>>, vector<64x256xf32>
    %cst_129 = arith.constant dense<0.000000e+00> : vector<64x128xf32>
    %196 = tpu.matmul %195, %194, %cst_129 {dimension_numbers = #tpu.dot_dimension_numbers<[1], [0], [0], [1], [0, 0, 1, 1], [], []>} : vector<64x256xf32>, vector<256x128xf32>, vector<64x128xf32> -> vector<64x128xf32>
    %c0_130 = arith.constant 0 : index
    %c0_131 = arith.constant 0 : index
    %c0_132 = arith.constant 0 : index
    %197 = vector.load %arg15[%c0_130, %c0_131, %c0_132] : memref<1x64x128xf32, #tpu.memory_space<vmem>>, vector<1x64x128xf32>
    %198 = vector.shape_cast %197 : vector<1x64x128xf32> to vector<64x128xf32>
    %199 = vector.shape_cast %196 : vector<64x128xf32> to vector<1x64x128xf32>
    tpu.vector_store %arg15[%c0_130, %c0_131, %c0_132], %199 {strides = array<i32>} : memref<1x64x128xf32, #tpu.memory_space<vmem>>, vector<1x64x128xf32>,
    %c8_133 = arith.constant 8 : index
    %c0_134 = arith.constant 0 : index
    %200 = vector.load %arg20[%c8_133, %c0_134] : memref<80x128xf32, #tpu.memory_space<vmem>>, vector<64x128xf32>
    tpu.vector_store %arg20[%c8_133, %c0_134], %196 {strides = array<i32>} : memref<80x128xf32, #tpu.memory_space<vmem>>, vector<64x128xf32>,
    %201 = tpu.iota {dimensions = array<i32: 0>} : vector<64x1xi32>
    %c7_i32 = arith.constant 7 : i32
    %202 = vector.broadcast %c7_i32 : i32 to vector<64x1xi32>
    %203 = arith.andi %201, %202 : vector<64x1xi32>
    %c0_i32_135 = arith.constant 0 : i32
    %204 = vector.broadcast %c0_i32_135 : i32 to vector<64x1xi32>
    %205 = arith.cmpi ne, %203, %204 : vector<64x1xi32>
    %c7_i32_136 = arith.constant 7 : i32
    %206 = vector.broadcast %c7_i32_136 : i32 to vector<64x1xi32>
    %207 = arith.cmpi ne, %203, %206 : vector<64x1xi32>
    %c0_137 = arith.constant 0 : index
    %c0_138 = arith.constant 0 : index
    %208 = vector.load %arg20[%c0_137, %c0_138] : memref<80x128xf32, #tpu.memory_space<vmem>>, vector<64x128xf32>
    %c1_i32_139 = arith.constant 1 : i32
    %209 = tpu.dynamic_rotate %208 by %c1_i32_139 dim 0 : vector<64x128xf32>, i32 -> vector<64x128xf32>
    %cst_140 = arith.constant 0.000000e+00 : f32
    %210 = vector.shape_cast %205 : vector<64x1xi1> to vector<64x1xi1>
    %211 = vector.broadcast %210 : vector<64x1xi1> to vector<64x128xi1>
    %212 = vector.broadcast %cst_140 : f32 to vector<64x128xf32>
    %213 = arith.select %211, %209, %212 : vector<64x128xi1>, vector<64x128xf32>
    %c63_i32 = arith.constant 63 : i32
    %214 = tpu.dynamic_rotate %208 by %c63_i32 dim 0 : vector<64x128xf32>, i32 -> vector<64x128xf32>
    %cst_141 = arith.constant 0.000000e+00 : f32
    %215 = vector.shape_cast %207 : vector<64x1xi1> to vector<64x1xi1>
    %216 = vector.broadcast %215 : vector<64x1xi1> to vector<64x128xi1>
    %217 = vector.broadcast %cst_141 : f32 to vector<64x128xf32>
    %218 = arith.select %216, %214, %217 : vector<64x128xi1>, vector<64x128xf32>
    %c0_142 = arith.constant 0 : index
    %c0_143 = arith.constant 0 : index
    %c0_144 = arith.constant 0 : index
    %219 = vector.load %arg6[%c0_142, %c0_143, %c0_144] : memref<9x128x128xf32, #tpu.memory_space<vmem>>, vector<1x128x128xf32>
    %220 = vector.shape_cast %219 : vector<1x128x128xf32> to vector<128x128xf32>
    %cst_145 = arith.constant dense<0.000000e+00> : vector<64x128xf32>
    %221 = tpu.matmul %213, %220, %cst_145 {dimension_numbers = #tpu.dot_dimension_numbers<[1], [0], [0], [1], [0, 0, 1, 1], [], []>} : vector<64x128xf32>, vector<128x128xf32>, vector<64x128xf32> -> vector<64x128xf32>
    %c1_146 = arith.constant 1 : index
    %c0_147 = arith.constant 0 : index
    %c0_148 = arith.constant 0 : index
    %222 = vector.load %arg6[%c1_146, %c0_147, %c0_148] : memref<9x128x128xf32, #tpu.memory_space<vmem>>, vector<1x128x128xf32>
    %223 = vector.shape_cast %222 : vector<1x128x128xf32> to vector<128x128xf32>
    %cst_149 = arith.constant dense<0.000000e+00> : vector<64x128xf32>
    %224 = tpu.matmul %208, %223, %cst_149 {dimension_numbers = #tpu.dot_dimension_numbers<[1], [0], [0], [1], [0, 0, 1, 1], [], []>} : vector<64x128xf32>, vector<128x128xf32>, vector<64x128xf32> -> vector<64x128xf32>
    %225 = arith.addf %221, %224 : vector<64x128xf32>
    %c2_150 = arith.constant 2 : index
    %c0_151 = arith.constant 0 : index
    %c0_152 = arith.constant 0 : index
    %226 = vector.load %arg6[%c2_150, %c0_151, %c0_152] : memref<9x128x128xf32, #tpu.memory_space<vmem>>, vector<1x128x128xf32>
    %227 = vector.shape_cast %226 : vector<1x128x128xf32> to vector<128x128xf32>
    %cst_153 = arith.constant dense<0.000000e+00> : vector<64x128xf32>
    %228 = tpu.matmul %218, %227, %cst_153 {dimension_numbers = #tpu.dot_dimension_numbers<[1], [0], [0], [1], [0, 0, 1, 1], [], []>} : vector<64x128xf32>, vector<128x128xf32>, vector<64x128xf32> -> vector<64x128xf32>
    %229 = arith.addf %225, %228 : vector<64x128xf32>
    %c8_154 = arith.constant 8 : index
    %c0_155 = arith.constant 0 : index
    %230 = vector.load %arg20[%c8_154, %c0_155] : memref<80x128xf32, #tpu.memory_space<vmem>>, vector<64x128xf32>
    %c1_i32_156 = arith.constant 1 : i32
    %231 = tpu.dynamic_rotate %230 by %c1_i32_156 dim 0 : vector<64x128xf32>, i32 -> vector<64x128xf32>
    %cst_157 = arith.constant 0.000000e+00 : f32
    %232 = vector.shape_cast %205 : vector<64x1xi1> to vector<64x1xi1>
    %233 = vector.broadcast %232 : vector<64x1xi1> to vector<64x128xi1>
    %234 = vector.broadcast %cst_157 : f32 to vector<64x128xf32>
    %235 = arith.select %233, %231, %234 : vector<64x128xi1>, vector<64x128xf32>
    %c63_i32_158 = arith.constant 63 : i32
    %236 = tpu.dynamic_rotate %230 by %c63_i32_158 dim 0 : vector<64x128xf32>, i32 -> vector<64x128xf32>
    %cst_159 = arith.constant 0.000000e+00 : f32
    %237 = vector.shape_cast %207 : vector<64x1xi1> to vector<64x1xi1>
    %238 = vector.broadcast %237 : vector<64x1xi1> to vector<64x128xi1>
    %239 = vector.broadcast %cst_159 : f32 to vector<64x128xf32>
    %240 = arith.select %238, %236, %239 : vector<64x128xi1>, vector<64x128xf32>
    %c3_160 = arith.constant 3 : index
    %c0_161 = arith.constant 0 : index
    %c0_162 = arith.constant 0 : index
    %241 = vector.load %arg6[%c3_160, %c0_161, %c0_162] : memref<9x128x128xf32, #tpu.memory_space<vmem>>, vector<1x128x128xf32>
    %242 = vector.shape_cast %241 : vector<1x128x128xf32> to vector<128x128xf32>
    %cst_163 = arith.constant dense<0.000000e+00> : vector<64x128xf32>
    %243 = tpu.matmul %235, %242, %cst_163 {dimension_numbers = #tpu.dot_dimension_numbers<[1], [0], [0], [1], [0, 0, 1, 1], [], []>} : vector<64x128xf32>, vector<128x128xf32>, vector<64x128xf32> -> vector<64x128xf32>
    %244 = arith.addf %229, %243 : vector<64x128xf32>
    %c4_164 = arith.constant 4 : index
    %c0_165 = arith.constant 0 : index
    %c0_166 = arith.constant 0 : index
    %245 = vector.load %arg6[%c4_164, %c0_165, %c0_166] : memref<9x128x128xf32, #tpu.memory_space<vmem>>, vector<1x128x128xf32>
    %246 = vector.shape_cast %245 : vector<1x128x128xf32> to vector<128x128xf32>
    %cst_167 = arith.constant dense<0.000000e+00> : vector<64x128xf32>
    %247 = tpu.matmul %230, %246, %cst_167 {dimension_numbers = #tpu.dot_dimension_numbers<[1], [0], [0], [1], [0, 0, 1, 1], [], []>} : vector<64x128xf32>, vector<128x128xf32>, vector<64x128xf32> -> vector<64x128xf32>
    %248 = arith.addf %244, %247 : vector<64x128xf32>
    %c5_168 = arith.constant 5 : index
    %c0_169 = arith.constant 0 : index
    %c0_170 = arith.constant 0 : index
    %249 = vector.load %arg6[%c5_168, %c0_169, %c0_170] : memref<9x128x128xf32, #tpu.memory_space<vmem>>, vector<1x128x128xf32>
    %250 = vector.shape_cast %249 : vector<1x128x128xf32> to vector<128x128xf32>
    %cst_171 = arith.constant dense<0.000000e+00> : vector<64x128xf32>
    %251 = tpu.matmul %240, %250, %cst_171 {dimension_numbers = #tpu.dot_dimension_numbers<[1], [0], [0], [1], [0, 0, 1, 1], [], []>} : vector<64x128xf32>, vector<128x128xf32>, vector<64x128xf32> -> vector<64x128xf32>
    %252 = arith.addf %248, %251 : vector<64x128xf32>
    %c16_172 = arith.constant 16 : index
    %c0_173 = arith.constant 0 : index
    %253 = vector.load %arg20[%c16_172, %c0_173] : memref<80x128xf32, #tpu.memory_space<vmem>>, vector<64x128xf32>
    %c1_i32_174 = arith.constant 1 : i32
    %254 = tpu.dynamic_rotate %253 by %c1_i32_174 dim 0 : vector<64x128xf32>, i32 -> vector<64x128xf32>
    %cst_175 = arith.constant 0.000000e+00 : f32
    %255 = vector.shape_cast %205 : vector<64x1xi1> to vector<64x1xi1>
    %256 = vector.broadcast %255 : vector<64x1xi1> to vector<64x128xi1>
    %257 = vector.broadcast %cst_175 : f32 to vector<64x128xf32>
    %258 = arith.select %256, %254, %257 : vector<64x128xi1>, vector<64x128xf32>
    %c63_i32_176 = arith.constant 63 : i32
    %259 = tpu.dynamic_rotate %253 by %c63_i32_176 dim 0 : vector<64x128xf32>, i32 -> vector<64x128xf32>
    %cst_177 = arith.constant 0.000000e+00 : f32
    %260 = vector.shape_cast %207 : vector<64x1xi1> to vector<64x1xi1>
    %261 = vector.broadcast %260 : vector<64x1xi1> to vector<64x128xi1>
    %262 = vector.broadcast %cst_177 : f32 to vector<64x128xf32>
    %263 = arith.select %261, %259, %262 : vector<64x128xi1>, vector<64x128xf32>
    %c6_178 = arith.constant 6 : index
    %c0_179 = arith.constant 0 : index
    %c0_180 = arith.constant 0 : index
    %264 = vector.load %arg6[%c6_178, %c0_179, %c0_180] : memref<9x128x128xf32, #tpu.memory_space<vmem>>, vector<1x128x128xf32>
    %265 = vector.shape_cast %264 : vector<1x128x128xf32> to vector<128x128xf32>
    %cst_181 = arith.constant dense<0.000000e+00> : vector<64x128xf32>
    %266 = tpu.matmul %258, %265, %cst_181 {dimension_numbers = #tpu.dot_dimension_numbers<[1], [0], [0], [1], [0, 0, 1, 1], [], []>} : vector<64x128xf32>, vector<128x128xf32>, vector<64x128xf32> -> vector<64x128xf32>
    %267 = arith.addf %252, %266 : vector<64x128xf32>
    %c7_182 = arith.constant 7 : index
    %c0_183 = arith.constant 0 : index
    %c0_184 = arith.constant 0 : index
    %268 = vector.load %arg6[%c7_182, %c0_183, %c0_184] : memref<9x128x128xf32, #tpu.memory_space<vmem>>, vector<1x128x128xf32>
    %269 = vector.shape_cast %268 : vector<1x128x128xf32> to vector<128x128xf32>
    %cst_185 = arith.constant dense<0.000000e+00> : vector<64x128xf32>
    %270 = tpu.matmul %253, %269, %cst_185 {dimension_numbers = #tpu.dot_dimension_numbers<[1], [0], [0], [1], [0, 0, 1, 1], [], []>} : vector<64x128xf32>, vector<128x128xf32>, vector<64x128xf32> -> vector<64x128xf32>
    %271 = arith.addf %267, %270 : vector<64x128xf32>
    %c8_186 = arith.constant 8 : index
    %c0_187 = arith.constant 0 : index
    %c0_188 = arith.constant 0 : index
    %272 = vector.load %arg6[%c8_186, %c0_187, %c0_188] : memref<9x128x128xf32, #tpu.memory_space<vmem>>, vector<1x128x128xf32>
    %273 = vector.shape_cast %272 : vector<1x128x128xf32> to vector<128x128xf32>
    %cst_189 = arith.constant dense<0.000000e+00> : vector<64x128xf32>
    %274 = tpu.matmul %263, %273, %cst_189 {dimension_numbers = #tpu.dot_dimension_numbers<[1], [0], [0], [1], [0, 0, 1, 1], [], []>} : vector<64x128xf32>, vector<128x128xf32>, vector<64x128xf32> -> vector<64x128xf32>
    %275 = arith.addf %271, %274 : vector<64x128xf32>
    %c0_190 = arith.constant 0 : index
    %c0_191 = arith.constant 0 : index
    %276 = vector.load %arg7[%c0_190, %c0_191] : memref<1x128xf32, #tpu.memory_space<vmem>>, vector<1x128xf32>
    %277 = vector.broadcast %276 : vector<1x128xf32> to vector<64x128xf32>
    %278 = arith.addf %275, %277 : vector<64x128xf32>
    %cst_192 = arith.constant 0.000000e+00 : f32
    %279 = vector.broadcast %cst_192 : f32 to vector<64x128xf32>
    %280 = arith.cmpf oge, %278, %279 : vector<64x128xf32>
    %cst_193 = arith.constant 0.00999999977 : f32
    %281 = vector.broadcast %cst_193 : f32 to vector<64x128xf32>
    %282 = arith.mulf %281, %278 : vector<64x128xf32>
    %283 = arith.select %280, %278, %282 : vector<64x128xi1>, vector<64x128xf32>
    %c63_i32_194 = arith.constant 63 : i32
    %284 = tpu.dynamic_rotate %283 by %c63_i32_194 dim 0 : vector<64x128xf32>, i32 -> vector<64x128xf32>
    %285 = arith.maximumf %283, %284 : vector<64x128xf32>
    %c56_i32 = arith.constant 56 : i32
    %286 = tpu.dynamic_rotate %285 by %c56_i32 dim 0 : vector<64x128xf32>, i32 -> vector<64x128xf32>
    %287 = arith.maximumf %285, %286 : vector<64x128xf32>
    %c0_195 = arith.constant 0 : index
    %c0_196 = arith.constant 0 : index
    %288 = vector.load %arg13[%c0_195, %c0_196] : memref<16x64xf32, #tpu.memory_space<vmem>>, vector<16x64xf32>
    %cst_197 = arith.constant dense<0.000000e+00> : vector<16x128xf32>
    %289 = tpu.matmul %288, %287, %cst_197 {dimension_numbers = #tpu.dot_dimension_numbers<[1], [0], [0], [1], [0, 0, 1, 1], [], []>} : vector<16x64xf32>, vector<64x128xf32>, vector<16x128xf32> -> vector<16x128xf32>
    %c0_198 = arith.constant 0 : index
    %c0_199 = arith.constant 0 : index
    %c0_200 = arith.constant 0 : index
    %290 = vector.load %arg16[%c0_198, %c0_199, %c0_200] : memref<1x16x128xf32, #tpu.memory_space<vmem>>, vector<1x16x128xf32>
    %291 = vector.shape_cast %290 : vector<1x16x128xf32> to vector<16x128xf32>
    %292 = vector.shape_cast %289 : vector<16x128xf32> to vector<1x16x128xf32>
    tpu.vector_store %arg16[%c0_198, %c0_199, %c0_200], %292 {strides = array<i32>} : memref<1x16x128xf32, #tpu.memory_space<vmem>>, vector<1x16x128xf32>,
    %c4_201 = arith.constant 4 : index
    %c0_202 = arith.constant 0 : index
    %293 = vector.load %arg21[%c4_201, %c0_202] : memref<24x128xf32, #tpu.memory_space<vmem>>, vector<16x128xf32>
    tpu.vector_store %arg21[%c4_201, %c0_202], %289 {strides = array<i32>} : memref<24x128xf32, #tpu.memory_space<vmem>>, vector<16x128xf32>,
    %294 = tpu.iota {dimensions = array<i32: 0>} : vector<16x1xi32>
    %c3_i32 = arith.constant 3 : i32
    %295 = vector.broadcast %c3_i32 : i32 to vector<16x1xi32>
    %296 = arith.andi %294, %295 : vector<16x1xi32>
    %c0_i32_203 = arith.constant 0 : i32
    %297 = vector.broadcast %c0_i32_203 : i32 to vector<16x1xi32>
    %298 = arith.cmpi ne, %296, %297 : vector<16x1xi32>
    %c3_i32_204 = arith.constant 3 : i32
    %299 = vector.broadcast %c3_i32_204 : i32 to vector<16x1xi32>
    %300 = arith.cmpi ne, %296, %299 : vector<16x1xi32>
    %c0_205 = arith.constant 0 : index
    %c0_206 = arith.constant 0 : index
    %301 = vector.load %arg21[%c0_205, %c0_206] : memref<24x128xf32, #tpu.memory_space<vmem>>, vector<16x128xf32>
    %c1_i32_207 = arith.constant 1 : i32
    %302 = tpu.dynamic_rotate %301 by %c1_i32_207 dim 0 : vector<16x128xf32>, i32 -> vector<16x128xf32>
    %cst_208 = arith.constant 0.000000e+00 : f32
    %303 = vector.shape_cast %298 : vector<16x1xi1> to vector<16x1xi1>
    %304 = vector.broadcast %303 : vector<16x1xi1> to vector<16x128xi1>
    %305 = vector.broadcast %cst_208 : f32 to vector<16x128xf32>
    %306 = arith.select %304, %302, %305 : vector<16x128xi1>, vector<16x128xf32>
    %c15_i32_209 = arith.constant 15 : i32
    %307 = tpu.dynamic_rotate %301 by %c15_i32_209 dim 0 : vector<16x128xf32>, i32 -> vector<16x128xf32>
    %cst_210 = arith.constant 0.000000e+00 : f32
    %308 = vector.shape_cast %300 : vector<16x1xi1> to vector<16x1xi1>
    %309 = vector.broadcast %308 : vector<16x1xi1> to vector<16x128xi1>
    %310 = vector.broadcast %cst_210 : f32 to vector<16x128xf32>
    %311 = arith.select %309, %307, %310 : vector<16x128xi1>, vector<16x128xf32>
    %c0_211 = arith.constant 0 : index
    %c0_212 = arith.constant 0 : index
    %c0_213 = arith.constant 0 : index
    %312 = vector.load %arg8[%c0_211, %c0_212, %c0_213] : memref<9x128x128xf32, #tpu.memory_space<vmem>>, vector<1x128x128xf32>
    %313 = vector.shape_cast %312 : vector<1x128x128xf32> to vector<128x128xf32>
    %cst_214 = arith.constant dense<0.000000e+00> : vector<16x128xf32>
    %314 = tpu.matmul %306, %313, %cst_214 {dimension_numbers = #tpu.dot_dimension_numbers<[1], [0], [0], [1], [0, 0, 1, 1], [], []>} : vector<16x128xf32>, vector<128x128xf32>, vector<16x128xf32> -> vector<16x128xf32>
    %c1_215 = arith.constant 1 : index
    %c0_216 = arith.constant 0 : index
    %c0_217 = arith.constant 0 : index
    %315 = vector.load %arg8[%c1_215, %c0_216, %c0_217] : memref<9x128x128xf32, #tpu.memory_space<vmem>>, vector<1x128x128xf32>
    %316 = vector.shape_cast %315 : vector<1x128x128xf32> to vector<128x128xf32>
    %cst_218 = arith.constant dense<0.000000e+00> : vector<16x128xf32>
    %317 = tpu.matmul %301, %316, %cst_218 {dimension_numbers = #tpu.dot_dimension_numbers<[1], [0], [0], [1], [0, 0, 1, 1], [], []>} : vector<16x128xf32>, vector<128x128xf32>, vector<16x128xf32> -> vector<16x128xf32>
    %318 = arith.addf %314, %317 : vector<16x128xf32>
    %c2_219 = arith.constant 2 : index
    %c0_220 = arith.constant 0 : index
    %c0_221 = arith.constant 0 : index
    %319 = vector.load %arg8[%c2_219, %c0_220, %c0_221] : memref<9x128x128xf32, #tpu.memory_space<vmem>>, vector<1x128x128xf32>
    %320 = vector.shape_cast %319 : vector<1x128x128xf32> to vector<128x128xf32>
    %cst_222 = arith.constant dense<0.000000e+00> : vector<16x128xf32>
    %321 = tpu.matmul %311, %320, %cst_222 {dimension_numbers = #tpu.dot_dimension_numbers<[1], [0], [0], [1], [0, 0, 1, 1], [], []>} : vector<16x128xf32>, vector<128x128xf32>, vector<16x128xf32> -> vector<16x128xf32>
    %322 = arith.addf %318, %321 : vector<16x128xf32>
    %c4_223 = arith.constant 4 : index
    %c0_224 = arith.constant 0 : index
    %323 = vector.load %arg21[%c4_223, %c0_224] : memref<24x128xf32, #tpu.memory_space<vmem>>, vector<16x128xf32>
    %c1_i32_225 = arith.constant 1 : i32
    %324 = tpu.dynamic_rotate %323 by %c1_i32_225 dim 0 : vector<16x128xf32>, i32 -> vector<16x128xf32>
    %cst_226 = arith.constant 0.000000e+00 : f32
    %325 = vector.shape_cast %298 : vector<16x1xi1> to vector<16x1xi1>
    %326 = vector.broadcast %325 : vector<16x1xi1> to vector<16x128xi1>
    %327 = vector.broadcast %cst_226 : f32 to vector<16x128xf32>
    %328 = arith.select %326, %324, %327 : vector<16x128xi1>, vector<16x128xf32>
    %c15_i32_227 = arith.constant 15 : i32
    %329 = tpu.dynamic_rotate %323 by %c15_i32_227 dim 0 : vector<16x128xf32>, i32 -> vector<16x128xf32>
    %cst_228 = arith.constant 0.000000e+00 : f32
    %330 = vector.shape_cast %300 : vector<16x1xi1> to vector<16x1xi1>
    %331 = vector.broadcast %330 : vector<16x1xi1> to vector<16x128xi1>
    %332 = vector.broadcast %cst_228 : f32 to vector<16x128xf32>
    %333 = arith.select %331, %329, %332 : vector<16x128xi1>, vector<16x128xf32>
    %c3_229 = arith.constant 3 : index
    %c0_230 = arith.constant 0 : index
    %c0_231 = arith.constant 0 : index
    %334 = vector.load %arg8[%c3_229, %c0_230, %c0_231] : memref<9x128x128xf32, #tpu.memory_space<vmem>>, vector<1x128x128xf32>
    %335 = vector.shape_cast %334 : vector<1x128x128xf32> to vector<128x128xf32>
    %cst_232 = arith.constant dense<0.000000e+00> : vector<16x128xf32>
    %336 = tpu.matmul %328, %335, %cst_232 {dimension_numbers = #tpu.dot_dimension_numbers<[1], [0], [0], [1], [0, 0, 1, 1], [], []>} : vector<16x128xf32>, vector<128x128xf32>, vector<16x128xf32> -> vector<16x128xf32>
    %337 = arith.addf %322, %336 : vector<16x128xf32>
    %c4_233 = arith.constant 4 : index
    %c0_234 = arith.constant 0 : index
    %c0_235 = arith.constant 0 : index
    %338 = vector.load %arg8[%c4_233, %c0_234, %c0_235] : memref<9x128x128xf32, #tpu.memory_space<vmem>>, vector<1x128x128xf32>
    %339 = vector.shape_cast %338 : vector<1x128x128xf32> to vector<128x128xf32>
    %cst_236 = arith.constant dense<0.000000e+00> : vector<16x128xf32>
    %340 = tpu.matmul %323, %339, %cst_236 {dimension_numbers = #tpu.dot_dimension_numbers<[1], [0], [0], [1], [0, 0, 1, 1], [], []>} : vector<16x128xf32>, vector<128x128xf32>, vector<16x128xf32> -> vector<16x128xf32>
    %341 = arith.addf %337, %340 : vector<16x128xf32>
    %c5_237 = arith.constant 5 : index
    %c0_238 = arith.constant 0 : index
    %c0_239 = arith.constant 0 : index
    %342 = vector.load %arg8[%c5_237, %c0_238, %c0_239] : memref<9x128x128xf32, #tpu.memory_space<vmem>>, vector<1x128x128xf32>
    %343 = vector.shape_cast %342 : vector<1x128x128xf32> to vector<128x128xf32>
    %cst_240 = arith.constant dense<0.000000e+00> : vector<16x128xf32>
    %344 = tpu.matmul %333, %343, %cst_240 {dimension_numbers = #tpu.dot_dimension_numbers<[1], [0], [0], [1], [0, 0, 1, 1], [], []>} : vector<16x128xf32>, vector<128x128xf32>, vector<16x128xf32> -> vector<16x128xf32>
    %345 = arith.addf %341, %344 : vector<16x128xf32>
    %c8_241 = arith.constant 8 : index
    %c0_242 = arith.constant 0 : index
    %346 = vector.load %arg21[%c8_241, %c0_242] : memref<24x128xf32, #tpu.memory_space<vmem>>, vector<16x128xf32>
    %c1_i32_243 = arith.constant 1 : i32
    %347 = tpu.dynamic_rotate %346 by %c1_i32_243 dim 0 : vector<16x128xf32>, i32 -> vector<16x128xf32>
    %cst_244 = arith.constant 0.000000e+00 : f32
    %348 = vector.shape_cast %298 : vector<16x1xi1> to vector<16x1xi1>
    %349 = vector.broadcast %348 : vector<16x1xi1> to vector<16x128xi1>
    %350 = vector.broadcast %cst_244 : f32 to vector<16x128xf32>
    %351 = arith.select %349, %347, %350 : vector<16x128xi1>, vector<16x128xf32>
    %c15_i32_245 = arith.constant 15 : i32
    %352 = tpu.dynamic_rotate %346 by %c15_i32_245 dim 0 : vector<16x128xf32>, i32 -> vector<16x128xf32>
    %cst_246 = arith.constant 0.000000e+00 : f32
    %353 = vector.shape_cast %300 : vector<16x1xi1> to vector<16x1xi1>
    %354 = vector.broadcast %353 : vector<16x1xi1> to vector<16x128xi1>
    %355 = vector.broadcast %cst_246 : f32 to vector<16x128xf32>
    %356 = arith.select %354, %352, %355 : vector<16x128xi1>, vector<16x128xf32>
    %c6_247 = arith.constant 6 : index
    %c0_248 = arith.constant 0 : index
    %c0_249 = arith.constant 0 : index
    %357 = vector.load %arg8[%c6_247, %c0_248, %c0_249] : memref<9x128x128xf32, #tpu.memory_space<vmem>>, vector<1x128x128xf32>
    %358 = vector.shape_cast %357 : vector<1x128x128xf32> to vector<128x128xf32>
    %cst_250 = arith.constant dense<0.000000e+00> : vector<16x128xf32>
    %359 = tpu.matmul %351, %358, %cst_250 {dimension_numbers = #tpu.dot_dimension_numbers<[1], [0], [0], [1], [0, 0, 1, 1], [], []>} : vector<16x128xf32>, vector<128x128xf32>, vector<16x128xf32> -> vector<16x128xf32>
    %360 = arith.addf %345, %359 : vector<16x128xf32>
    %c7_251 = arith.constant 7 : index
    %c0_252 = arith.constant 0 : index
    %c0_253 = arith.constant 0 : index
    %361 = vector.load %arg8[%c7_251, %c0_252, %c0_253] : memref<9x128x128xf32, #tpu.memory_space<vmem>>, vector<1x128x128xf32>
    %362 = vector.shape_cast %361 : vector<1x128x128xf32> to vector<128x128xf32>
    %cst_254 = arith.constant dense<0.000000e+00> : vector<16x128xf32>
    %363 = tpu.matmul %346, %362, %cst_254 {dimension_numbers = #tpu.dot_dimension_numbers<[1], [0], [0], [1], [0, 0, 1, 1], [], []>} : vector<16x128xf32>, vector<128x128xf32>, vector<16x128xf32> -> vector<16x128xf32>
    %364 = arith.addf %360, %363 : vector<16x128xf32>
    %c8_255 = arith.constant 8 : index
    %c0_256 = arith.constant 0 : index
    %c0_257 = arith.constant 0 : index
    %365 = vector.load %arg8[%c8_255, %c0_256, %c0_257] : memref<9x128x128xf32, #tpu.memory_space<vmem>>, vector<1x128x128xf32>
    %366 = vector.shape_cast %365 : vector<1x128x128xf32> to vector<128x128xf32>
    %cst_258 = arith.constant dense<0.000000e+00> : vector<16x128xf32>
    %367 = tpu.matmul %356, %366, %cst_258 {dimension_numbers = #tpu.dot_dimension_numbers<[1], [0], [0], [1], [0, 0, 1, 1], [], []>} : vector<16x128xf32>, vector<128x128xf32>, vector<16x128xf32> -> vector<16x128xf32>
    %368 = arith.addf %364, %367 : vector<16x128xf32>
    %c0_259 = arith.constant 0 : index
    %c0_260 = arith.constant 0 : index
    %369 = vector.load %arg9[%c0_259, %c0_260] : memref<1x128xf32, #tpu.memory_space<vmem>>, vector<1x128xf32>
    %370 = vector.broadcast %369 : vector<1x128xf32> to vector<16x128xf32>
    %371 = arith.addf %368, %370 : vector<16x128xf32>
    %cst_261 = arith.constant 0.000000e+00 : f32
    %372 = vector.broadcast %cst_261 : f32 to vector<16x128xf32>
    %373 = arith.cmpf oge, %371, %372 : vector<16x128xf32>
    %cst_262 = arith.constant 0.00999999977 : f32
    %374 = vector.broadcast %cst_262 : f32 to vector<16x128xf32>
    %375 = arith.mulf %374, %371 : vector<16x128xf32>
    %376 = arith.select %373, %371, %375 : vector<16x128xi1>, vector<16x128xf32>
    %c15_i32_263 = arith.constant 15 : i32
    %377 = tpu.dynamic_rotate %376 by %c15_i32_263 dim 0 : vector<16x128xf32>, i32 -> vector<16x128xf32>
    %378 = arith.maximumf %376, %377 : vector<16x128xf32>
    %c12_i32 = arith.constant 12 : i32
    %379 = tpu.dynamic_rotate %378 by %c12_i32 dim 0 : vector<16x128xf32>, i32 -> vector<16x128xf32>
    %380 = arith.maximumf %378, %379 : vector<16x128xf32>
    %c0_264 = arith.constant 0 : index
    %c0_265 = arith.constant 0 : index
    %381 = vector.load %arg14[%c0_264, %c0_265] : memref<4x16xf32, #tpu.memory_space<vmem>>, vector<4x16xf32>
    %cst_266 = arith.constant dense<0.000000e+00> : vector<4x128xf32>
    %382 = tpu.matmul %381, %380, %cst_266 {dimension_numbers = #tpu.dot_dimension_numbers<[1], [0], [0], [1], [0, 0, 1, 1], [], []>} : vector<4x16xf32>, vector<16x128xf32>, vector<4x128xf32> -> vector<4x128xf32>
    %c2_267 = arith.constant 2 : index
    %c0_268 = arith.constant 0 : index
    %383 = vector.load %arg22[%c2_267, %c0_268] : memref<8x128xf32, #tpu.memory_space<vmem>>, vector<4x128xf32>
    tpu.vector_store %arg22[%c2_267, %c0_268], %382 {strides = array<i32>} : memref<8x128xf32, #tpu.memory_space<vmem>>, vector<4x128xf32>,
    %384 = tpu.iota {dimensions = array<i32: 0>} : vector<4x1xi32>
    %c1_i32_269 = arith.constant 1 : i32
    %385 = vector.broadcast %c1_i32_269 : i32 to vector<4x1xi32>
    %386 = arith.andi %384, %385 : vector<4x1xi32>
    %c0_i32_270 = arith.constant 0 : i32
    %387 = vector.broadcast %c0_i32_270 : i32 to vector<4x1xi32>
    %388 = arith.cmpi ne, %386, %387 : vector<4x1xi32>
    %c1_i32_271 = arith.constant 1 : i32
    %389 = vector.broadcast %c1_i32_271 : i32 to vector<4x1xi32>
    %390 = arith.cmpi ne, %386, %389 : vector<4x1xi32>
    %c0_272 = arith.constant 0 : index
    %c0_273 = arith.constant 0 : index
    %391 = vector.load %arg22[%c0_272, %c0_273] : memref<8x128xf32, #tpu.memory_space<vmem>>, vector<4x128xf32>
    %c1_i32_274 = arith.constant 1 : i32
    %392 = tpu.dynamic_rotate %391 by %c1_i32_274 dim 0 : vector<4x128xf32>, i32 -> vector<4x128xf32>
    %cst_275 = arith.constant 0.000000e+00 : f32
    %393 = vector.shape_cast %388 : vector<4x1xi1> to vector<4x1xi1>
    %394 = vector.broadcast %393 : vector<4x1xi1> to vector<4x128xi1>
    %395 = vector.broadcast %cst_275 : f32 to vector<4x128xf32>
    %396 = arith.select %394, %392, %395 : vector<4x128xi1>, vector<4x128xf32>
    %c3_i32_276 = arith.constant 3 : i32
    %397 = tpu.dynamic_rotate %391 by %c3_i32_276 dim 0 : vector<4x128xf32>, i32 -> vector<4x128xf32>
    %cst_277 = arith.constant 0.000000e+00 : f32
    %398 = vector.shape_cast %390 : vector<4x1xi1> to vector<4x1xi1>
    %399 = vector.broadcast %398 : vector<4x1xi1> to vector<4x128xi1>
    %400 = vector.broadcast %cst_277 : f32 to vector<4x128xf32>
    %401 = arith.select %399, %397, %400 : vector<4x128xi1>, vector<4x128xf32>
    %c0_278 = arith.constant 0 : index
    %c0_279 = arith.constant 0 : index
    %c0_280 = arith.constant 0 : index
    %402 = vector.load %arg10[%c0_278, %c0_279, %c0_280] : memref<9x128x128xf32, #tpu.memory_space<vmem>>, vector<1x128x128xf32>
    %403 = vector.shape_cast %402 : vector<1x128x128xf32> to vector<128x128xf32>
    %cst_281 = arith.constant dense<0.000000e+00> : vector<4x128xf32>
    %404 = tpu.matmul %396, %403, %cst_281 {dimension_numbers = #tpu.dot_dimension_numbers<[1], [0], [0], [1], [0, 0, 1, 1], [], []>} : vector<4x128xf32>, vector<128x128xf32>, vector<4x128xf32> -> vector<4x128xf32>
    %c1_282 = arith.constant 1 : index
    %c0_283 = arith.constant 0 : index
    %c0_284 = arith.constant 0 : index
    %405 = vector.load %arg10[%c1_282, %c0_283, %c0_284] : memref<9x128x128xf32, #tpu.memory_space<vmem>>, vector<1x128x128xf32>
    %406 = vector.shape_cast %405 : vector<1x128x128xf32> to vector<128x128xf32>
    %cst_285 = arith.constant dense<0.000000e+00> : vector<4x128xf32>
    %407 = tpu.matmul %391, %406, %cst_285 {dimension_numbers = #tpu.dot_dimension_numbers<[1], [0], [0], [1], [0, 0, 1, 1], [], []>} : vector<4x128xf32>, vector<128x128xf32>, vector<4x128xf32> -> vector<4x128xf32>
    %408 = arith.addf %404, %407 : vector<4x128xf32>
    %c2_286 = arith.constant 2 : index
    %c0_287 = arith.constant 0 : index
    %c0_288 = arith.constant 0 : index
    %409 = vector.load %arg10[%c2_286, %c0_287, %c0_288] : memref<9x128x128xf32, #tpu.memory_space<vmem>>, vector<1x128x128xf32>
    %410 = vector.shape_cast %409 : vector<1x128x128xf32> to vector<128x128xf32>
    %cst_289 = arith.constant dense<0.000000e+00> : vector<4x128xf32>
    %411 = tpu.matmul %401, %410, %cst_289 {dimension_numbers = #tpu.dot_dimension_numbers<[1], [0], [0], [1], [0, 0, 1, 1], [], []>} : vector<4x128xf32>, vector<128x128xf32>, vector<4x128xf32> -> vector<4x128xf32>
    %412 = arith.addf %408, %411 : vector<4x128xf32>
    %c2_290 = arith.constant 2 : index
    %c0_291 = arith.constant 0 : index
    %413 = vector.load %arg22[%c2_290, %c0_291] : memref<8x128xf32, #tpu.memory_space<vmem>>, vector<4x128xf32>
    %c1_i32_292 = arith.constant 1 : i32
    %414 = tpu.dynamic_rotate %413 by %c1_i32_292 dim 0 : vector<4x128xf32>, i32 -> vector<4x128xf32>
    %cst_293 = arith.constant 0.000000e+00 : f32
    %415 = vector.shape_cast %388 : vector<4x1xi1> to vector<4x1xi1>
    %416 = vector.broadcast %415 : vector<4x1xi1> to vector<4x128xi1>
    %417 = vector.broadcast %cst_293 : f32 to vector<4x128xf32>
    %418 = arith.select %416, %414, %417 : vector<4x128xi1>, vector<4x128xf32>
    %c3_i32_294 = arith.constant 3 : i32
    %419 = tpu.dynamic_rotate %413 by %c3_i32_294 dim 0 : vector<4x128xf32>, i32 -> vector<4x128xf32>
    %cst_295 = arith.constant 0.000000e+00 : f32
    %420 = vector.shape_cast %390 : vector<4x1xi1> to vector<4x1xi1>
    %421 = vector.broadcast %420 : vector<4x1xi1> to vector<4x128xi1>
    %422 = vector.broadcast %cst_295 : f32 to vector<4x128xf32>
    %423 = arith.select %421, %419, %422 : vector<4x128xi1>, vector<4x128xf32>
    %c3_296 = arith.constant 3 : index
    %c0_297 = arith.constant 0 : index
    %c0_298 = arith.constant 0 : index
    %424 = vector.load %arg10[%c3_296, %c0_297, %c0_298] : memref<9x128x128xf32, #tpu.memory_space<vmem>>, vector<1x128x128xf32>
    %425 = vector.shape_cast %424 : vector<1x128x128xf32> to vector<128x128xf32>
    %cst_299 = arith.constant dense<0.000000e+00> : vector<4x128xf32>
    %426 = tpu.matmul %418, %425, %cst_299 {dimension_numbers = #tpu.dot_dimension_numbers<[1], [0], [0], [1], [0, 0, 1, 1], [], []>} : vector<4x128xf32>, vector<128x128xf32>, vector<4x128xf32> -> vector<4x128xf32>
    %427 = arith.addf %412, %426 : vector<4x128xf32>
    %c4_300 = arith.constant 4 : index
    %c0_301 = arith.constant 0 : index
    %c0_302 = arith.constant 0 : index
    %428 = vector.load %arg10[%c4_300, %c0_301, %c0_302] : memref<9x128x128xf32, #tpu.memory_space<vmem>>, vector<1x128x128xf32>
    %429 = vector.shape_cast %428 : vector<1x128x128xf32> to vector<128x128xf32>
    %cst_303 = arith.constant dense<0.000000e+00> : vector<4x128xf32>
    %430 = tpu.matmul %413, %429, %cst_303 {dimension_numbers = #tpu.dot_dimension_numbers<[1], [0], [0], [1], [0, 0, 1, 1], [], []>} : vector<4x128xf32>, vector<128x128xf32>, vector<4x128xf32> -> vector<4x128xf32>
    %431 = arith.addf %427, %430 : vector<4x128xf32>
    %c5_304 = arith.constant 5 : index
    %c0_305 = arith.constant 0 : index
    %c0_306 = arith.constant 0 : index
    %432 = vector.load %arg10[%c5_304, %c0_305, %c0_306] : memref<9x128x128xf32, #tpu.memory_space<vmem>>, vector<1x128x128xf32>
    %433 = vector.shape_cast %432 : vector<1x128x128xf32> to vector<128x128xf32>
    %cst_307 = arith.constant dense<0.000000e+00> : vector<4x128xf32>
    %434 = tpu.matmul %423, %433, %cst_307 {dimension_numbers = #tpu.dot_dimension_numbers<[1], [0], [0], [1], [0, 0, 1, 1], [], []>} : vector<4x128xf32>, vector<128x128xf32>, vector<4x128xf32> -> vector<4x128xf32>
    %435 = arith.addf %431, %434 : vector<4x128xf32>
    %c4_308 = arith.constant 4 : index
    %c0_309 = arith.constant 0 : index
    %436 = vector.load %arg22[%c4_308, %c0_309] : memref<8x128xf32, #tpu.memory_space<vmem>>, vector<4x128xf32>
    %c1_i32_310 = arith.constant 1 : i32
    %437 = tpu.dynamic_rotate %436 by %c1_i32_310 dim 0 : vector<4x128xf32>, i32 -> vector<4x128xf32>
    %cst_311 = arith.constant 0.000000e+00 : f32
    %438 = vector.shape_cast %388 : vector<4x1xi1> to vector<4x1xi1>
    %439 = vector.broadcast %438 : vector<4x1xi1> to vector<4x128xi1>
    %440 = vector.broadcast %cst_311 : f32 to vector<4x128xf32>
    %441 = arith.select %439, %437, %440 : vector<4x128xi1>, vector<4x128xf32>
    %c3_i32_312 = arith.constant 3 : i32
    %442 = tpu.dynamic_rotate %436 by %c3_i32_312 dim 0 : vector<4x128xf32>, i32 -> vector<4x128xf32>
    %cst_313 = arith.constant 0.000000e+00 : f32
    %443 = vector.shape_cast %390 : vector<4x1xi1> to vector<4x1xi1>
    %444 = vector.broadcast %443 : vector<4x1xi1> to vector<4x128xi1>
    %445 = vector.broadcast %cst_313 : f32 to vector<4x128xf32>
    %446 = arith.select %444, %442, %445 : vector<4x128xi1>, vector<4x128xf32>
    %c6_314 = arith.constant 6 : index
    %c0_315 = arith.constant 0 : index
    %c0_316 = arith.constant 0 : index
    %447 = vector.load %arg10[%c6_314, %c0_315, %c0_316] : memref<9x128x128xf32, #tpu.memory_space<vmem>>, vector<1x128x128xf32>
    %448 = vector.shape_cast %447 : vector<1x128x128xf32> to vector<128x128xf32>
    %cst_317 = arith.constant dense<0.000000e+00> : vector<4x128xf32>
    %449 = tpu.matmul %441, %448, %cst_317 {dimension_numbers = #tpu.dot_dimension_numbers<[1], [0], [0], [1], [0, 0, 1, 1], [], []>} : vector<4x128xf32>, vector<128x128xf32>, vector<4x128xf32> -> vector<4x128xf32>
    %450 = arith.addf %435, %449 : vector<4x128xf32>
    %c7_318 = arith.constant 7 : index
    %c0_319 = arith.constant 0 : index
    %c0_320 = arith.constant 0 : index
    %451 = vector.load %arg10[%c7_318, %c0_319, %c0_320] : memref<9x128x128xf32, #tpu.memory_space<vmem>>, vector<1x128x128xf32>
    %452 = vector.shape_cast %451 : vector<1x128x128xf32> to vector<128x128xf32>
    %cst_321 = arith.constant dense<0.000000e+00> : vector<4x128xf32>
    %453 = tpu.matmul %436, %452, %cst_321 {dimension_numbers = #tpu.dot_dimension_numbers<[1], [0], [0], [1], [0, 0, 1, 1], [], []>} : vector<4x128xf32>, vector<128x128xf32>, vector<4x128xf32> -> vector<4x128xf32>
    %454 = arith.addf %450, %453 : vector<4x128xf32>
    %c8_322 = arith.constant 8 : index
    %c0_323 = arith.constant 0 : index
    %c0_324 = arith.constant 0 : index
    %455 = vector.load %arg10[%c8_322, %c0_323, %c0_324] : memref<9x128x128xf32, #tpu.memory_space<vmem>>, vector<1x128x128xf32>
    %456 = vector.shape_cast %455 : vector<1x128x128xf32> to vector<128x128xf32>
    %cst_325 = arith.constant dense<0.000000e+00> : vector<4x128xf32>
    %457 = tpu.matmul %446, %456, %cst_325 {dimension_numbers = #tpu.dot_dimension_numbers<[1], [0], [0], [1], [0, 0, 1, 1], [], []>} : vector<4x128xf32>, vector<128x128xf32>, vector<4x128xf32> -> vector<4x128xf32>
    %458 = arith.addf %454, %457 : vector<4x128xf32>
    %c0_326 = arith.constant 0 : index
    %c0_327 = arith.constant 0 : index
    %459 = vector.load %arg11[%c0_326, %c0_327] : memref<1x128xf32, #tpu.memory_space<vmem>>, vector<1x128xf32>
    %460 = vector.broadcast %459 : vector<1x128xf32> to vector<4x128xf32>
    %461 = arith.addf %458, %460 : vector<4x128xf32>
    %cst_328 = arith.constant 0.000000e+00 : f32
    %462 = vector.broadcast %cst_328 : f32 to vector<4x128xf32>
    %463 = arith.cmpf oge, %461, %462 : vector<4x128xf32>
    %cst_329 = arith.constant 0.00999999977 : f32
    %464 = vector.broadcast %cst_329 : f32 to vector<4x128xf32>
    %465 = arith.mulf %464, %461 : vector<4x128xf32>
    %466 = arith.select %463, %461, %465 : vector<4x128xi1>, vector<4x128xf32>
    %c0_330 = arith.constant 0 : index
    %c0_331 = arith.constant 0 : index
    %c0_332 = arith.constant 0 : index
    %467 = vector.load %arg17[%c0_330, %c0_331, %c0_332] : memref<1x4x128xf32, #tpu.memory_space<vmem>>, vector<1x4x128xf32>
    %468 = vector.shape_cast %467 : vector<1x4x128xf32> to vector<4x128xf32>
    %469 = vector.shape_cast %466 : vector<4x128xf32> to vector<1x4x128xf32>
    tpu.vector_store %arg17[%c0_330, %c0_331, %c0_332], %469 {strides = array<i32>} : memref<1x4x128xf32, #tpu.memory_space<vmem>>, vector<1x4x128xf32>,
    return
  }
  func.func @transform_0(%arg0: i32) -> (i32, i32, i32) {
    %c0_i32 = arith.constant 0 : i32
    %c0_i32_0 = arith.constant 0 : i32
    %c0_i32_1 = arith.constant 0 : i32
    return %arg0, %c0_i32, %c0_i32_0 : i32, i32, i32
  }
  func.func @transform_1(%arg0: i32) -> (i32, i32, i32) {
    %c0_i32 = arith.constant 0 : i32
    %c0_i32_0 = arith.constant 0 : i32
    %c0_i32_1 = arith.constant 0 : i32
    %c0_i32_2 = arith.constant 0 : i32
    return %c0_i32, %c0_i32_0, %c0_i32_1 : i32, i32, i32
  }
  func.func @transform_2(%arg0: i32) -> (i32, i32) {
    %c0_i32 = arith.constant 0 : i32
    %c0_i32_0 = arith.constant 0 : i32
    %c0_i32_1 = arith.constant 0 : i32
    return %c0_i32, %c0_i32_0 : i32, i32
  }
  func.func @transform_3(%arg0: i32) -> (i32, i32, i32) {
    %c0_i32 = arith.constant 0 : i32
    %c0_i32_0 = arith.constant 0 : i32
    %c0_i32_1 = arith.constant 0 : i32
    %c0_i32_2 = arith.constant 0 : i32
    return %c0_i32, %c0_i32_0, %c0_i32_1 : i32, i32, i32
  }
  func.func @transform_4(%arg0: i32) -> (i32, i32) {
    %c0_i32 = arith.constant 0 : i32
    %c0_i32_0 = arith.constant 0 : i32
    %c0_i32_1 = arith.constant 0 : i32
    return %c0_i32, %c0_i32_0 : i32, i32
  }
  func.func @transform_5(%arg0: i32) -> (i32, i32, i32) {
    %c0_i32 = arith.constant 0 : i32
    %c0_i32_0 = arith.constant 0 : i32
    %c0_i32_1 = arith.constant 0 : i32
    %c0_i32_2 = arith.constant 0 : i32
    return %c0_i32, %c0_i32_0, %c0_i32_1 : i32, i32, i32
  }
  func.func @transform_6(%arg0: i32) -> (i32, i32) {
    %c0_i32 = arith.constant 0 : i32
    %c0_i32_0 = arith.constant 0 : i32
    %c0_i32_1 = arith.constant 0 : i32
    return %c0_i32, %c0_i32_0 : i32, i32
  }
  func.func @transform_7(%arg0: i32) -> (i32, i32, i32) {
    %c0_i32 = arith.constant 0 : i32
    %c0_i32_0 = arith.constant 0 : i32
    %c0_i32_1 = arith.constant 0 : i32
    %c0_i32_2 = arith.constant 0 : i32
    return %c0_i32, %c0_i32_0, %c0_i32_1 : i32, i32, i32
  }
  func.func @transform_8(%arg0: i32) -> (i32, i32) {
    %c0_i32 = arith.constant 0 : i32
    %c0_i32_0 = arith.constant 0 : i32
    %c0_i32_1 = arith.constant 0 : i32
    return %c0_i32, %c0_i32_0 : i32, i32
  }
  func.func @transform_9(%arg0: i32) -> (i32, i32, i32) {
    %c0_i32 = arith.constant 0 : i32
    %c0_i32_0 = arith.constant 0 : i32
    %c0_i32_1 = arith.constant 0 : i32
    %c0_i32_2 = arith.constant 0 : i32
    return %c0_i32, %c0_i32_0, %c0_i32_1 : i32, i32, i32
  }
  func.func @transform_10(%arg0: i32) -> (i32, i32) {
    %c0_i32 = arith.constant 0 : i32
    %c0_i32_0 = arith.constant 0 : i32
    %c0_i32_1 = arith.constant 0 : i32
    return %c0_i32, %c0_i32_0 : i32, i32
  }
  func.func @transform_11(%arg0: i32) -> (i32, i32) {
    %c0_i32 = arith.constant 0 : i32
    %c0_i32_0 = arith.constant 0 : i32
    %c0_i32_1 = arith.constant 0 : i32
    return %c0_i32, %c0_i32_0 : i32, i32
  }
  func.func @transform_12(%arg0: i32) -> (i32, i32) {
    %c0_i32 = arith.constant 0 : i32
    %c0_i32_0 = arith.constant 0 : i32
    %c0_i32_1 = arith.constant 0 : i32
    return %c0_i32, %c0_i32_0 : i32, i32
  }
  func.func @transform_13(%arg0: i32) -> (i32, i32) {
    %c0_i32 = arith.constant 0 : i32
    %c0_i32_0 = arith.constant 0 : i32
    %c0_i32_1 = arith.constant 0 : i32
    return %c0_i32, %c0_i32_0 : i32, i32
  }
  func.func @transform_14(%arg0: i32) -> (i32, i32, i32) {
    %c0_i32 = arith.constant 0 : i32
    %c0_i32_0 = arith.constant 0 : i32
    %c0_i32_1 = arith.constant 0 : i32
    return %arg0, %c0_i32, %c0_i32_0 : i32, i32, i32
  }
  func.func @transform_15(%arg0: i32) -> (i32, i32, i32) {
    %c0_i32 = arith.constant 0 : i32
    %c0_i32_0 = arith.constant 0 : i32
    %c0_i32_1 = arith.constant 0 : i32
    return %arg0, %c0_i32, %c0_i32_0 : i32, i32, i32
  }
  func.func @transform_16(%arg0: i32) -> (i32, i32, i32) {
    %c0_i32 = arith.constant 0 : i32
    %c0_i32_0 = arith.constant 0 : i32
    %c0_i32_1 = arith.constant 0 : i32
    return %arg0, %c0_i32, %c0_i32_0 : i32, i32, i32
  }
}

</mosaic_0001>

<llo_original>
// kernel: encoder_forward.1
$region0: #{encoder_forward.1}
  #allocation0 [shape = 'u32[]', space=smem, size = 0x4, offset = 0x4, fixed_abs, tag = 'smem constant byte address 0x4 - core index']
  #allocation1 [shape = 'u32[72,128]{1,0:T(1,128)}', space=vmem, size = 0x9000, scoped, tag = 'internal scratch']
  #allocation2 [shape = 'f32[288,1]{1,0:T(8,128)}', space=vmem, size = 0x24000, scoped, tag = 'scratch operand']
  #allocation3 [shape = 'f32[288,128]{1,0:T(8,128)}', space=vmem, size = 0x24000, scoped, tag = 'scratch operand']
  #allocation4 [shape = 'f32[80,128]{1,0:T(8,128)}', space=vmem, size = 0xa000, scoped, tag = 'scratch operand']
  #allocation5 [shape = 'f32[24,128]{1,0:T(8,128)}', space=vmem, size = 0x3000, scoped, tag = 'scratch operand']
  #allocation6 [shape = 'f32[8,128]{1,0:T(8,128)}', space=vmem, size = 0x1000, scoped, tag = 'scratch operand']
  %s0 = inlined_call_operand.vmem [shape: f32[2,256,1], index: 0, kind: input, shape index: {}]
  %s1 = inlined_call_operand.vmem [shape: f32[9,1,128], index: 1, kind: input, shape index: {}]
  %s2 = inlined_call_operand.vmem [shape: f32[1,128], index: 2, kind: input, shape index: {}]
  %s3 = inlined_call_operand.vmem [shape: f32[9,128,128], index: 3, kind: input, shape index: {}]
  %s4 = inlined_call_operand.vmem [shape: f32[1,128], index: 4, kind: input, shape index: {}]
  %s5 = inlined_call_operand.vmem [shape: f32[9,128,128], index: 5, kind: input, shape index: {}]
  %s6 = inlined_call_operand.vmem [shape: f32[1,128], index: 6, kind: input, shape index: {}]
  %s7 = inlined_call_operand.vmem [shape: f32[9,128,128], index: 7, kind: input, shape index: {}]
  %s8 = inlined_call_operand.vmem [shape: f32[1,128], index: 8, kind: input, shape index: {}]
  %s9 = inlined_call_operand.vmem [shape: f32[9,128,128], index: 9, kind: input, shape index: {}]
  %s10 = inlined_call_operand.vmem [shape: f32[1,128], index: 10, kind: input, shape index: {}]
  %s11 = inlined_call_operand.vmem [shape: f32[64,256], index: 11, kind: input, shape index: {}]
  %s12 = inlined_call_operand.vmem [shape: f32[16,64], index: 12, kind: input, shape index: {}]
  %s13 = inlined_call_operand.vmem [shape: f32[4,16], index: 13, kind: input, shape index: {}]
  %s14 = inlined_call_operand.vmem [shape: f32[2,64,128], index: 14, kind: output, shape index: {0}]
  %s15 = inlined_call_operand.hbm [shape: f32[2,16,128], index: 15, kind: output, shape index: {1}]
  %s16 = inlined_call_operand.vmem [shape: f32[2,4,128], index: 16, kind: output, shape index: {2}]
  %17 = xla_tuple %s14, %s15, %s16
  %s18 = sld [smem:[#allocation0]]
  $region105: #{encoder_forward.1} parent=0
    _
  %s20 = ssub.s32 1, %s18
  %s21 = scalar_select 0, %s20, %s18
  $region1: #{encoder_forward.1} parent=0
    #allocation7 [shape = 'u8[16384]{0}', space=vmem, size = 0x4000, scoped, tag = 'output window, operand 1']
    #allocation8 [shape = 's32[2]{0}', space=sflag, size = 0x8, scoped, tag = 'scoped memory for encoder_forward.1']
    %22 = vsyncpa [#allocation8], 0
    %s23 = scalar_lea.sflag [#allocation8], 1
    %24 = vsyncpa %s23, 0
    loop: start=0, step=1, limit=4
    $region2: #{encoder_forward.1} parent=1 // loop_pre_header
      _
    $region3: #{encoder_forward.1} parent=1 // loop_header
      %s26 = sphi 0, %s30
      %p27 = scmp.ge.s32.totalorder %s26, 4
      %s36 = sphi 0, %s38
      %s39 = sphi 0, %s36
      %s40 = sphi 0, %s39
      %s56 = sphi 0, %s40
      %s60 = sphi 0, %s60
      %s62 = sphi 0, %s60
      %s63 = sphi 0, %s62
      %s77 = sphi 0, %s63
      %s81 = sphi 0, %s81
      %s83 = sphi 0, %s81
      %s84 = sphi 0, %s83
      %s98 = sphi 0, %s84
      %s102 = sphi 0, %s102
      %s104 = sphi 0, %s102
      %s105 = sphi 0, %s104
      %s119 = sphi 0, %s105
      %s123 = sphi 0, %s123
      %s125 = sphi 0, %s123
      %s126 = sphi 0, %s125
      %s140 = sphi 0, %s126
      %s144 = sphi 0, %s144
      %s146 = sphi 0, %s144
      %s147 = sphi 0, %s146
      %s161 = sphi 0, %s147
      %s165 = sphi 0, %s165
      %s167 = sphi 0, %s165
      %s168 = sphi 0, %s167
      %s182 = sphi 0, %s168
      %s186 = sphi 0, %s186
      %s188 = sphi 0, %s186
      %s189 = sphi 0, %s188
      %s203 = sphi 0, %s189
      %s207 = sphi 0, %s207
      %s209 = sphi 0, %s207
      %s210 = sphi 0, %s209
      %s224 = sphi 0, %s210
      %s228 = sphi 0, %s228
      %s230 = sphi 0, %s228
      %s231 = sphi 0, %s230
      %s245 = sphi 0, %s231
      %s249 = sphi 0, %s249
      %s251 = sphi 0, %s249
      %s252 = sphi 0, %s251
      %s266 = sphi 0, %s252
      %s270 = sphi 0, %s270
      %s272 = sphi 0, %s270
      %s273 = sphi 0, %s272
      %s287 = sphi 0, %s273
      %s291 = sphi 0, %s291
      %s293 = sphi 0, %s291
      %s294 = sphi 0, %s293
      %s308 = sphi 0, %s294
      %s312 = sphi 0, %s312
      %s314 = sphi 0, %s312
      %s315 = sphi 0, %s314
      %s329 = sphi 0, %s315
      %s335 = sphi 0, %s337
      %s338 = sphi 0, %s335
      %s339 = sphi 0, %s338
      %s355 = sphi 0, %s339
      %s361 = sphi 0, %s363
      %s364 = sphi 0, %s361
      %s365 = sphi 0, %s364
      %s381 = sphi 0, %s365
      %s387 = sphi 0, %s389
      %s390 = sphi 0, %s387
      %s391 = sphi 0, %s390
      %s407 = sphi 0, %s391
    $region4: #{encoder_forward.1} parent=1 // loop_header_branch
      %29 = sbr.rel (%p27) target = $region8
    $region5: #{encoder_forward.1} parent=1 // loop_body
      %s31 = ssub.s32 %s26, 1
      %s32 = ssub.s32 %s26, 2
      %s33 = sadd.s32 %s26, 1
      %s34 = ssub.s32 %s26, %s33
      %p35 = scmp.eq.s32.totalorder %s34, 0
      %s37 = sadd.s32 %s36, 1
      %s38 = scalar_select %p35, %s36, %s37
      %p41 = pneg %p35
      %p42 = scmp.eq.s32.totalorder %s26, 1
      %p43 = por %p41, %p42
      %p44 = scmp.ne.s32.totalorder %s36, %s39
      %p45 = scmp.eq.s32.totalorder %s26, 0
      %p46 = por %p44, %p45
      %p47 = scmp.ne.s32.totalorder %s36, %s39
      %p48 = scmp.eq.s32.totalorder %s31, 1
      %p49 = por %p47, %p48
      %p50 = scmp.ne.s32.totalorder %s39, %s40
      %p51 = scmp.eq.s32.totalorder %s31, 0
      %p52 = por %p50, %p51
      %p53 = scmp.ne.s32.totalorder %s39, %s40
      %p54 = scmp.eq.s32.totalorder %s32, 1
      %p55 = por %p53, %p54
      %p57 = scmp.ne.s32.totalorder %s40, %s56
      %p58 = scmp.eq.s32.totalorder %s32, 0
      %p59 = por %p57, %p58
      %s61 = sadd.s32 %s60, 1
      %p64 = scmp.eq.s32.totalorder %s26, 1
      %p65 = scmp.ne.s32.totalorder %s60, %s62
      %p66 = scmp.eq.s32.totalorder %s26, 0
      %p67 = por %p65, %p66
      %p68 = scmp.ne.s32.totalorder %s60, %s62
      %p69 = scmp.eq.s32.totalorder %s31, 1
      %p70 = por %p68, %p69
      %p71 = scmp.ne.s32.totalorder %s62, %s63
      %p72 = scmp.eq.s32.totalorder %s31, 0
      %p73 = por %p71, %p72
      %p74 = scmp.ne.s32.totalorder %s62, %s63
      %p75 = scmp.eq.s32.totalorder %s32, 1
      %p76 = por %p74, %p75
      %p78 = scmp.ne.s32.totalorder %s63, %s77
      %p79 = scmp.eq.s32.totalorder %s32, 0
      %p80 = por %p78, %p79
      %s82 = sadd.s32 %s81, 1
      %p85 = scmp.eq.s32.totalorder %s26, 1
      %p86 = scmp.ne.s32.totalorder %s81, %s83
      %p87 = scmp.eq.s32.totalorder %s26, 0
      %p88 = por %p86, %p87
      %p89 = scmp.ne.s32.totalorder %s81, %s83
      %p90 = scmp.eq.s32.totalorder %s31, 1
      %p91 = por %p89, %p90
      %p92 = scmp.ne.s32.totalorder %s83, %s84
      %p93 = scmp.eq.s32.totalorder %s31, 0
      %p94 = por %p92, %p93
      %p95 = scmp.ne.s32.totalorder %s83, %s84
      %p96 = scmp.eq.s32.totalorder %s32, 1
      %p97 = por %p95, %p96
      %p99 = scmp.ne.s32.totalorder %s84, %s98
      %p100 = scmp.eq.s32.totalorder %s32, 0
      %p101 = por %p99, %p100
      %s103 = sadd.s32 %s102, 1
      %p106 = scmp.eq.s32.totalorder %s26, 1
      %p107 = scmp.ne.s32.totalorder %s102, %s104
      %p108 = scmp.eq.s32.totalorder %s26, 0
      %p109 = por %p107, %p108
      %p110 = scmp.ne.s32.totalorder %s102, %s104
      %p111 = scmp.eq.s32.totalorder %s31, 1
      %p112 = por %p110, %p111
      %p113 = scmp.ne.s32.totalorder %s104, %s105
      %p114 = scmp.eq.s32.totalorder %s31, 0
      %p115 = por %p113, %p114
      %p116 = scmp.ne.s32.totalorder %s104, %s105
      %p117 = scmp.eq.s32.totalorder %s32, 1
      %p118 = por %p116, %p117
      %p120 = scmp.ne.s32.totalorder %s105, %s119
      %p121 = scmp.eq.s32.totalorder %s32, 0
      %p122 = por %p120, %p121
      %s124 = sadd.s32 %s123, 1
      %p127 = scmp.eq.s32.totalorder %s26, 1
      %p128 = scmp.ne.s32.totalorder %s123, %s125
      %p129 = scmp.eq.s32.totalorder %s26, 0
      %p130 = por %p128, %p129
      %p131 = scmp.ne.s32.totalorder %s123, %s125
      %p132 = scmp.eq.s32.totalorder %s31, 1
      %p133 = por %p131, %p132
      %p134 = scmp.ne.s32.totalorder %s125, %s126
      %p135 = scmp.eq.s32.totalorder %s31, 0
      %p136 = por %p134, %p135
      %p137 = scmp.ne.s32.totalorder %s125, %s126
      %p138 = scmp.eq.s32.totalorder %s32, 1
      %p139 = por %p137, %p138
      %p141 = scmp.ne.s32.totalorder %s126, %s140
      %p142 = scmp.eq.s32.totalorder %s32, 0
      %p143 = por %p141, %p142
      %s145 = sadd.s32 %s144, 1
      %p148 = scmp.eq.s32.totalorder %s26, 1
      %p149 = scmp.ne.s32.totalorder %s144, %s146
      %p150 = scmp.eq.s32.totalorder %s26, 0
      %p151 = por %p149, %p150
      %p152 = scmp.ne.s32.totalorder %s144, %s146
      %p153 = scmp.eq.s32.totalorder %s31, 1
      %p154 = por %p152, %p153
      %p155 = scmp.ne.s32.totalorder %s146, %s147
      %p156 = scmp.eq.s32.totalorder %s31, 0
      %p157 = por %p155, %p156
      %p158 = scmp.ne.s32.totalorder %s146, %s147
      %p159 = scmp.eq.s32.totalorder %s32, 1
      %p160 = por %p158, %p159
      %p162 = scmp.ne.s32.totalorder %s147, %s161
      %p163 = scmp.eq.s32.totalorder %s32, 0
      %p164 = por %p162, %p163
      %s166 = sadd.s32 %s165, 1
      %p169 = scmp.eq.s32.totalorder %s26, 1
      %p170 = scmp.ne.s32.totalorder %s165, %s167
      %p171 = scmp.eq.s32.totalorder %s26, 0
      %p172 = por %p170, %p171
      %p173 = scmp.ne.s32.totalorder %s165, %s167
      %p174 = scmp.eq.s32.totalorder %s31, 1
      %p175 = por %p173, %p174
      %p176 = scmp.ne.s32.totalorder %s167, %s168
      %p177 = scmp.eq.s32.totalorder %s31, 0
      %p178 = por %p176, %p177
      %p179 = scmp.ne.s32.totalorder %s167, %s168
      %p180 = scmp.eq.s32.totalorder %s32, 1
      %p181 = por %p179, %p180
      %p183 = scmp.ne.s32.totalorder %s168, %s182
      %p184 = scmp.eq.s32.totalorder %s32, 0
      %p185 = por %p183, %p184
      %s187 = sadd.s32 %s186, 1
      %p190 = scmp.eq.s32.totalorder %s26, 1
      %p191 = scmp.ne.s32.totalorder %s186, %s188
      %p192 = scmp.eq.s32.totalorder %s26, 0
      %p193 = por %p191, %p192
      %p194 = scmp.ne.s32.totalorder %s186, %s188
      %p195 = scmp.eq.s32.totalorder %s31, 1
      %p196 = por %p194, %p195
      %p197 = scmp.ne.s32.totalorder %s188, %s189
      %p198 = scmp.eq.s32.totalorder %s31, 0
      %p199 = por %p197, %p198
      %p200 = scmp.ne.s32.totalorder %s188, %s189
      %p201 = scmp.eq.s32.totalorder %s32, 1
      %p202 = por %p200, %p201
      %p204 = scmp.ne.s32.totalorder %s189, %s203
      %p205 = scmp.eq.s32.totalorder %s32, 0
      %p206 = por %p204, %p205
      %s208 = sadd.s32 %s207, 1
      %p211 = scmp.eq.s32.totalorder %s26, 1
      %p212 = scmp.ne.s32.totalorder %s207, %s209
      %p213 = scmp.eq.s32.totalorder %s26, 0
      %p214 = por %p212, %p213
      %p215 = scmp.ne.s32.totalorder %s207, %s209
      %p216 = scmp.eq.s32.totalorder %s31, 1
      %p217 = por %p215, %p216
      %p218 = scmp.ne.s32.totalorder %s209, %s210
      %p219 = scmp.eq.s32.totalorder %s31, 0
      %p220 = por %p218, %p219
      %p221 = scmp.ne.s32.totalorder %s209, %s210
      %p222 = scmp.eq.s32.totalorder %s32, 1
      %p223 = por %p221, %p222
      %p225 = scmp.ne.s32.totalorder %s210, %s224
      %p226 = scmp.eq.s32.totalorder %s32, 0
      %p227 = por %p225, %p226
      %s229 = sadd.s32 %s228, 1
      %p232 = scmp.eq.s32.totalorder %s26, 1
      %p233 = scmp.ne.s32.totalorder %s228, %s230
      %p234 = scmp.eq.s32.totalorder %s26, 0
      %p235 = por %p233, %p234
      %p236 = scmp.ne.s32.totalorder %s228, %s230
      %p237 = scmp.eq.s32.totalorder %s31, 1
      %p238 = por %p236, %p237
      %p239 = scmp.ne.s32.totalorder %s230, %s231
      %p240 = scmp.eq.s32.totalorder %s31, 0
      %p241 = por %p239, %p240
      %p242 = scmp.ne.s32.totalorder %s230, %s231
      %p243 = scmp.eq.s32.totalorder %s32, 1
      %p244 = por %p242, %p243
      %p246 = scmp.ne.s32.totalorder %s231, %s245
      %p247 = scmp.eq.s32.totalorder %s32, 0
      %p248 = por %p246, %p247
      %s250 = sadd.s32 %s249, 1
      %p253 = scmp.eq.s32.totalorder %s26, 1
      %p254 = scmp.ne.s32.totalorder %s249, %s251
      %p255 = scmp.eq.s32.totalorder %s26, 0
      %p256 = por %p254, %p255
      %p257 = scmp.ne.s32.totalorder %s249, %s251
      %p258 = scmp.eq.s32.totalorder %s31, 1
      %p259 = por %p257, %p258
      %p260 = scmp.ne.s32.totalorder %s251, %s252
      %p261 = scmp.eq.s32.totalorder %s31, 0
      %p262 = por %p260, %p261
      %p263 = scmp.ne.s32.totalorder %s251, %s252
      %p264 = scmp.eq.s32.totalorder %s32, 1
      %p265 = por %p263, %p264
      %p267 = scmp.ne.s32.totalorder %s252, %s266
      %p268 = scmp.eq.s32.totalorder %s32, 0
      %p269 = por %p267, %p268
      %s271 = sadd.s32 %s270, 1
      %p274 = scmp.eq.s32.totalorder %s26, 1
      %p275 = scmp.ne.s32.totalorder %s270, %s272
      %p276 = scmp.eq.s32.totalorder %s26, 0
      %p277 = por %p275, %p276
      %p278 = scmp.ne.s32.totalorder %s270, %s272
      %p279 = scmp.eq.s32.totalorder %s31, 1
      %p280 = por %p278, %p279
      %p281 = scmp.ne.s32.totalorder %s272, %s273
      %p282 = scmp.eq.s32.totalorder %s31, 0
      %p283 = por %p281, %p282
      %p284 = scmp.ne.s32.totalorder %s272, %s273
      %p285 = scmp.eq.s32.totalorder %s32, 1
      %p286 = por %p284, %p285
      %p288 = scmp.ne.s32.totalorder %s273, %s287
      %p289 = scmp.eq.s32.totalorder %s32, 0
      %p290 = por %p288, %p289
      %s292 = sadd.s32 %s291, 1
      %p295 = scmp.eq.s32.totalorder %s26, 1
      %p296 = scmp.ne.s32.totalorder %s291, %s293
      %p297 = scmp.eq.s32.totalorder %s26, 0
      %p298 = por %p296, %p297
      %p299 = scmp.ne.s32.totalorder %s291, %s293
      %p300 = scmp.eq.s32.totalorder %s31, 1
      %p301 = por %p299, %p300
      %p302 = scmp.ne.s32.totalorder %s293, %s294
      %p303 = scmp.eq.s32.totalorder %s31, 0
      %p304 = por %p302, %p303
      %p305 = scmp.ne.s32.totalorder %s293, %s294
      %p306 = scmp.eq.s32.totalorder %s32, 1
      %p307 = por %p305, %p306
      %p309 = scmp.ne.s32.totalorder %s294, %s308
      %p310 = scmp.eq.s32.totalorder %s32, 0
      %p311 = por %p309, %p310
      %s313 = sadd.s32 %s312, 1
      %p316 = scmp.eq.s32.totalorder %s26, 1
      %p317 = scmp.ne.s32.totalorder %s312, %s314
      %p318 = scmp.eq.s32.totalorder %s26, 0
      %p319 = por %p317, %p318
      %p320 = scmp.ne.s32.totalorder %s312, %s314
      %p321 = scmp.eq.s32.totalorder %s31, 1
      %p322 = por %p320, %p321
      %p323 = scmp.ne.s32.totalorder %s314, %s315
      %p324 = scmp.eq.s32.totalorder %s31, 0
      %p325 = por %p323, %p324
      %p326 = scmp.ne.s32.totalorder %s314, %s315
      %p327 = scmp.eq.s32.totalorder %s32, 1
      %p328 = por %p326, %p327
      %p330 = scmp.ne.s32.totalorder %s315, %s329
      %p331 = scmp.eq.s32.totalorder %s32, 0
      %p332 = por %p330, %p331
      %s333 = ssub.s32 %s26, %s33
      %p334 = scmp.eq.s32.totalorder %s333, 0
      %s336 = sadd.s32 %s335, 1
      %s337 = scalar_select %p334, %s335, %s336
      %p340 = pneg %p334
      %p341 = scmp.eq.s32.totalorder %s26, 1
      %p342 = por %p340, %p341
      %p343 = scmp.ne.s32.totalorder %s335, %s338
      %p344 = scmp.eq.s32.totalorder %s26, 0
      %p345 = por %p343, %p344
      %p346 = scmp.ne.s32.totalorder %s335, %s338
      %p347 = scmp.eq.s32.totalorder %s31, 1
      %p348 = por %p346, %p347
      %p349 = scmp.ne.s32.totalorder %s338, %s339
      %p350 = scmp.eq.s32.totalorder %s31, 0
      %p351 = por %p349, %p350
      %p352 = scmp.ne.s32.totalorder %s338, %s339
      %p353 = scmp.eq.s32.totalorder %s32, 1
      %p354 = por %p352, %p353
      %p356 = scmp.ne.s32.totalorder %s339, %s355
      %p357 = scmp.eq.s32.totalorder %s32, 0
      %p358 = por %p356, %p357
      %s359 = ssub.s32 %s26, %s33
      %p360 = scmp.eq.s32.totalorder %s359, 0
      %s362 = sadd.s32 %s361, 1
      %s363 = scalar_select %p360, %s361, %s362
      %p366 = pneg %p360
      %p367 = scmp.eq.s32.totalorder %s26, 1
      %p368 = por %p366, %p367
      %p369 = scmp.ne.s32.totalorder %s361, %s364
      %p370 = scmp.eq.s32.totalorder %s26, 0
      %p371 = por %p369, %p370
      %p372 = scmp.ne.s32.totalorder %s361, %s364
      %p373 = scmp.eq.s32.totalorder %s31, 1
      %p374 = por %p372, %p373
      %p375 = scmp.ne.s32.totalorder %s364, %s365
      %p376 = scmp.eq.s32.totalorder %s31, 0
      %p377 = por %p375, %p376
      %p378 = scmp.ne.s32.totalorder %s364, %s365
      %p379 = scmp.eq.s32.totalorder %s32, 1
      %p380 = por %p378, %p379
      %p382 = scmp.ne.s32.totalorder %s365, %s381
      %p383 = scmp.eq.s32.totalorder %s32, 0
      %p384 = por %p382, %p383
      %s385 = ssub.s32 %s26, %s33
      %p386 = scmp.eq.s32.totalorder %s385, 0
      %s388 = sadd.s32 %s387, 1
      %s389 = scalar_select %p386, %s387, %s388
      %p392 = pneg %p386
      %p393 = scmp.eq.s32.totalorder %s26, 1
      %p394 = por %p392, %p393
      %p395 = scmp.ne.s32.totalorder %s387, %s390
      %p396 = scmp.eq.s32.totalorder %s26, 0
      %p397 = por %p395, %p396
      %p398 = scmp.ne.s32.totalorder %s387, %s390
      %p399 = scmp.eq.s32.totalorder %s31, 1
      %p400 = por %p398, %p399
      %p401 = scmp.ne.s32.totalorder %s390, %s391
      %p402 = scmp.eq.s32.totalorder %s31, 0
      %p403 = por %p401, %p402
      %p404 = scmp.ne.s32.totalorder %s390, %s391
      %p405 = scmp.eq.s32.totalorder %s32, 1
      %p406 = por %p404, %p405
      %p408 = scmp.ne.s32.totalorder %s391, %s407
      %p409 = scmp.eq.s32.totalorder %s32, 0
      %p410 = por %p408, %p409
      %p411 = scmp.le.s32.totalorder 1, %s26
      %p412 = scmp.lt.s32.totalorder %s26, 3
      %p413 = pnand %p411, %p412
      %p414 = pneg %p413
      // Predicated region
      $region9: #{encoder_forward.1} parent=5 // pred_check
        _
      $region10: #{encoder_forward.1} parent=5 // pred_check_branch
        %416 = sbr.rel (%p413) target = $region12
      $region11: #{encoder_forward.1} parent=5 // pred_region
        %s417 = ssub.s32 %s26, 1
        // Predicated region
        $region13: #{encoder_forward.1} parent=11 // pred_check
          %p418 = pneg %p73
        $region14: #{encoder_forward.1} parent=11 // pred_check_branch
          %420 = sbr.rel (%p418) target = $region16
        $region15: #{encoder_forward.1} parent=11 // pred_region
          _
        $region16: #{encoder_forward.1} parent=11 // pred_fallthru
          _
        // Predicated region
        $region17: #{encoder_forward.1} parent=11 // pred_check
          %p421 = pneg %p94
        $region18: #{encoder_forward.1} parent=11 // pred_check_branch
          %423 = sbr.rel (%p421) target = $region20
        $region19: #{encoder_forward.1} parent=11 // pred_region
          _
        $region20: #{encoder_forward.1} parent=11 // pred_fallthru
          _
        // Predicated region
        $region21: #{encoder_forward.1} parent=11 // pred_check
          %p424 = pneg %p115
        $region22: #{encoder_forward.1} parent=11 // pred_check_branch
          %426 = sbr.rel (%p424) target = $region24
        $region23: #{encoder_forward.1} parent=11 // pred_region
          _
        $region24: #{encoder_forward.1} parent=11 // pred_fallthru
          _
        // Predicated region
        $region25: #{encoder_forward.1} parent=11 // pred_check
          %p427 = pneg %p136
        $region26: #{encoder_forward.1} parent=11 // pred_check_branch
          %429 = sbr.rel (%p427) target = $region28
        $region27: #{encoder_forward.1} parent=11 // pred_region
          _
        $region28: #{encoder_forward.1} parent=11 // pred_fallthru
          _
        // Predicated region
        $region29: #{encoder_forward.1} parent=11 // pred_check
          %p430 = pneg %p157
        $region30: #{encoder_forward.1} parent=11 // pred_check_branch
          %432 = sbr.rel (%p430) target = $region32
        $region31: #{encoder_forward.1} parent=11 // pred_region
          _
        $region32: #{encoder_forward.1} parent=11 // pred_fallthru
          _
        // Predicated region
        $region33: #{encoder_forward.1} parent=11 // pred_check
          %p433 = pneg %p178
        $region34: #{encoder_forward.1} parent=11 // pred_check_branch
          %435 = sbr.rel (%p433) target = $region36
        $region35: #{encoder_forward.1} parent=11 // pred_region
          _
        $region36: #{encoder_forward.1} parent=11 // pred_fallthru
          _
        // Predicated region
        $region37: #{encoder_forward.1} parent=11 // pred_check
          %p436 = pneg %p199
        $region38: #{encoder_forward.1} parent=11 // pred_check_branch
          %438 = sbr.rel (%p436) target = $region40
        $region39: #{encoder_forward.1} parent=11 // pred_region
          _
        $region40: #{encoder_forward.1} parent=11 // pred_fallthru
          _
        // Predicated region
        $region41: #{encoder_forward.1} parent=11 // pred_check
          %p439 = pneg %p220
        $region42: #{encoder_forward.1} parent=11 // pred_check_branch
          %441 = sbr.rel (%p439) target = $region44
        $region43: #{encoder_forward.1} parent=11 // pred_region
          _
        $region44: #{encoder_forward.1} parent=11 // pred_fallthru
          _
        // Predicated region
        $region45: #{encoder_forward.1} parent=11 // pred_check
          %p442 = pneg %p241
        $region46: #{encoder_forward.1} parent=11 // pred_check_branch
          %444 = sbr.rel (%p442) target = $region48
        $region47: #{encoder_forward.1} parent=11 // pred_region
          _
        $region48: #{encoder_forward.1} parent=11 // pred_fallthru
          _
        // Predicated region
        $region49: #{encoder_forward.1} parent=11 // pred_check
          %p445 = pneg %p262
        $region50: #{encoder_forward.1} parent=11 // pred_check_branch
          %447 = sbr.rel (%p445) target = $region52
        $region51: #{encoder_forward.1} parent=11 // pred_region
          _
        $region52: #{encoder_forward.1} parent=11 // pred_fallthru
          _
        // Predicated region
        $region53: #{encoder_forward.1} parent=11 // pred_check
          %p448 = pneg %p283
        $region54: #{encoder_forward.1} parent=11 // pred_check_branch
          %450 = sbr.rel (%p448) target = $region56
        $region55: #{encoder_forward.1} parent=11 // pred_region
          _
        $region56: #{encoder_forward.1} parent=11 // pred_fallthru
          _
        // Predicated region
        $region57: #{encoder_forward.1} parent=11 // pred_check
          %p451 = pneg %p304
        $region58: #{encoder_forward.1} parent=11 // pred_check_branch
          %453 = sbr.rel (%p451) target = $region60
        $region59: #{encoder_forward.1} parent=11 // pred_region
          _
        $region60: #{encoder_forward.1} parent=11 // pred_fallthru
          _
        // Predicated region
        $region61: #{encoder_forward.1} parent=11 // pred_check
          %p454 = pneg %p325
        $region62: #{encoder_forward.1} parent=11 // pred_check_branch
          %456 = sbr.rel (%p454) target = $region64
        $region63: #{encoder_forward.1} parent=11 // pred_region
          _
        $region64: #{encoder_forward.1} parent=11 // pred_fallthru
          _
      $region12: #{encoder_forward.1} parent=5 // pred_fallthru
        _
      %p457 = scmp.lt.s32.totalorder %s26, 2
      // Predicated region
      $region65: #{encoder_forward.1} parent=5 // pred_check
        %p458 = pneg %p457
      $region66: #{encoder_forward.1} parent=5 // pred_check_branch
        %460 = sbr.rel (%p458) target = $region68
      $region67: #{encoder_forward.1} parent=5 // pred_region
        // Predicated region
        $region69: #{encoder_forward.1} parent=67 // pred_check
          %p461 = pneg %p46
        $region70: #{encoder_forward.1} parent=67 // pred_check_branch
          %463 = sbr.rel (%p461) target = $region72
        $region71: #{encoder_forward.1} parent=67 // pred_region
          %p464 = scmp.lt.s32.totalorder %s26, 1
          %s465 = scalar_select %p464, %s26, 1
          %s466 = smul.addr %s465, 32
          %s467 = smul.addr %s466, 8
          %s468 = scalar_lea.vmem %s0, %s467
        $region72: #{encoder_forward.1} parent=67 // pred_fallthru
          _
      $region68: #{encoder_forward.1} parent=5 // pred_fallthru
        _
      %p469 = scmp.le.s32.totalorder 1, %s26
      %p470 = scmp.lt.s32.totalorder %s26, 3
      %p471 = pnand %p469, %p470
      %p472 = pneg %p471
      // Predicated region
      $region73: #{encoder_forward.1} parent=5 // pred_check
        _
      $region74: #{encoder_forward.1} parent=5 // pred_check_branch
        %474 = sbr.rel (%p471) target = $region76
      $region75: #{encoder_forward.1} parent=5 // pred_region
        %s475 = ssub.s32 %s26, 1
        %p476 = scmp.lt.s32.totalorder %s31, 1
        %s477 = scalar_select %p476, %s31, 1
        %s478 = smul.addr %s477, 32
        %s479 = smul.addr %s478, 8
        %s480 = scalar_lea.vmem %s0, %s479
        %p481 = pneg %p52
        %p482 = pneg %p49
        %p483 = pneg %p73
        %p484 = pneg %p70
        %p485 = pneg %p94
        %p486 = pneg %p91
        %p487 = pneg %p115
        %p488 = pneg %p112
        %p489 = pneg %p136
        %p490 = pneg %p133
        %p491 = pneg %p157
        %p492 = pneg %p154
        %p493 = pneg %p178
        %p494 = pneg %p175
        %p495 = pneg %p199
        %p496 = pneg %p196
        %p497 = pneg %p220
        %p498 = pneg %p217
        %p499 = pneg %p241
        %p500 = pneg %p238
        %p501 = pneg %p262
        %p502 = pneg %p259
        %p503 = pneg %p283
        %p504 = pneg %p280
        %p505 = pneg %p304
        %p506 = pneg %p301
        %p507 = pneg %p325
        %p508 = pneg %p322
        %p509 = pneg %p351
        %p510 = pneg %p348
        %p511 = scmp.lt.s32.totalorder %s31, 1
        %s512 = scalar_select %p511, %s31, 1
        %s513 = smul.addr %s512, 8
        %s514 = smul.addr %s513, 8
        %s515 = scalar_lea.vmem %s14, %s514
        %p516 = pneg %p377
        %p517 = pneg %p374
        %s518 = sand.u32 %s364, 1
        %s519 = scalar_lea.sflag [#allocation8], %s518
        %s520 = sand.u32 %s364, 1
        %s521 = smul.addr %s520, 16
        %s522 = scalar_lea.vmem [#allocation7], %s521
        %p523 = pneg %p403
        %p524 = pneg %p400
        %p525 = scmp.lt.s32.totalorder %s31, 1
        %s526 = scalar_select %p525, %s31, 1
        %s527 = smul.addr %s526, 4
        %s528 = scalar_lea.vmem %s16, %s527
        %p529 = scmp.lt.s32.totalorder %s31, 1
        %s530 = scalar_select %p529, %s31, 1
        %s531 = smul.addr %s530, 32
        %s532 = smul.addr %s531, 8
        %s533 = scalar_lea.vmem %s0, %s532
        %p534 = scmp.lt.s32.totalorder %s31, 1
        %s535 = scalar_select %p534, %s31, 1
        %s536 = smul.addr %s535, 8
        %s537 = smul.addr %s536, 8
        %s538 = scalar_lea.vmem %s14, %s537
        %p539 = scmp.lt.s32.totalorder %s31, 1
        %s540 = scalar_select %p539, %s31, 1
        %s541 = smul.addr %s540, 4
        %s542 = scalar_lea.vmem %s16, %s541
        %vm543 = vcmask 7168
        %544 = vst.msk [vmem:[#allocation2] sm:$0xff] %vm543, 0.0
        %545 = vst.msk [vmem:[#allocation2 + $0x8] sm:$0xff] %vm543, 0.0
        %546 = vst.msk [vmem:[#allocation2 + $0x110] sm:$0xff] %vm543, 0.0
        %547 = vst.msk [vmem:[#allocation2 + $0x118] sm:$0xff] %vm543, 0.0
        %548 = vst [vmem:[#allocation3] sm:$0xff] 0.0
        %549 = vst [vmem:[#allocation3 + $0x8] sm:$0xff] 0.0
        %550 = vst [vmem:[#allocation3 + $0x110] sm:$0xff] 0.0
        %551 = vst [vmem:[#allocation3 + $0x118] sm:$0xff] 0.0
        %552 = vst [vmem:[#allocation4] sm:$0xff] 0.0
        %553 = vst [vmem:[#allocation4 + $0x48] sm:$0xff] 0.0
        %554 = vst [vmem:[#allocation5] sm:$0xf] 0.0
        %555 = vst [vmem:[#allocation5 + $0x14] sm:$0xf] 0.0
        %556 = vst [vmem:[#allocation6] sm:$0x3] 0.0
        %557 = vst [vmem:[#allocation6 + $0x6] sm:$0x3] 0.0
        %v558 = vld [vmem:[%s533] sm:$0xff]
        %v559 = vld [vmem:[%s533 + $0x8] sm:$0xff]
        %v560 = vld [vmem:[%s533 + $0x10] sm:$0xff]
        %v561 = vld [vmem:[%s533 + $0x18] sm:$0xff]
        %v562 = vld [vmem:[%s533 + $0x20] sm:$0xff]
        %v563 = vld [vmem:[%s533 + $0x28] sm:$0xff]
        %v564 = vld [vmem:[%s533 + $0x30] sm:$0xff]
        %v565 = vld [vmem:[%s533 + $0x38] sm:$0xff]
        %v566 = vld [vmem:[%s533 + $0x40] sm:$0xff]
        %v567 = vld [vmem:[%s533 + $0x48] sm:$0xff]
        %v568 = vld [vmem:[%s533 + $0x50] sm:$0xff]
        %v569 = vld [vmem:[%s533 + $0x58] sm:$0xff]
        %v570 = vld [vmem:[%s533 + $0x60] sm:$0xff]
        %v571 = vld [vmem:[%s533 + $0x68] sm:$0xff]
        %v572 = vld [vmem:[%s533 + $0x70] sm:$0xff]
        %v573 = vld [vmem:[%s533 + $0x78] sm:$0xff]
        %v574 = vld [vmem:[%s533 + $0x80] sm:$0xff]
        %v575 = vld [vmem:[%s533 + $0x88] sm:$0xff]
        %v576 = vld [vmem:[%s533 + $0x90] sm:$0xff]
        %v577 = vld [vmem:[%s533 + $0x98] sm:$0xff]
        %v578 = vld [vmem:[%s533 + $0xa0] sm:$0xff]
        %v579 = vld [vmem:[%s533 + $0xa8] sm:$0xff]
        %v580 = vld [vmem:[%s533 + $0xb0] sm:$0xff]
        %v581 = vld [vmem:[%s533 + $0xb8] sm:$0xff]
        %v582 = vld [vmem:[%s533 + $0xc0] sm:$0xff]
        %v583 = vld [vmem:[%s533 + $0xc8] sm:$0xff]
        %v584 = vld [vmem:[%s533 + $0xd0] sm:$0xff]
        %v585 = vld [vmem:[%s533 + $0xd8] sm:$0xff]
        %v586 = vld [vmem:[%s533 + $0xe0] sm:$0xff]
        %v587 = vld [vmem:[%s533 + $0xe8] sm:$0xff]
        %v588 = vld [vmem:[%s533 + $0xf0] sm:$0xff]
        %v589 = vld [vmem:[%s533 + $0xf8] sm:$0xff]
        %590 = vst.msk [vmem:[#allocation2 + $0x10] sm:$0xff] %vm543, %v558
        %591 = vst.msk [vmem:[#allocation2 + $0x18] sm:$0xff] %vm543, %v559
        %592 = vst.msk [vmem:[#allocation2 + $0x20] sm:$0xff] %vm543, %v560
        %593 = vst.msk [vmem:[#allocation2 + $0x28] sm:$0xff] %vm543, %v561
        %594 = vst.msk [vmem:[#allocation2 + $0x30] sm:$0xff] %vm543, %v562
        %595 = vst.msk [vmem:[#allocation2 + $0x38] sm:$0xff] %vm543, %v563
        %596 = vst.msk [vmem:[#allocation2 + $0x40] sm:$0xff] %vm543, %v564
        %597 = vst.msk [vmem:[#allocation2 + $0x48] sm:$0xff] %vm543, %v565
        %598 = vst.msk [vmem:[#allocation2 + $0x50] sm:$0xff] %vm543, %v566
        %599 = vst.msk [vmem:[#allocation2 + $0x58] sm:$0xff] %vm543, %v567
        %600 = vst.msk [vmem:[#allocation2 + $0x60] sm:$0xff] %vm543, %v568
        %601 = vst.msk [vmem:[#allocation2 + $0x68] sm:$0xff] %vm543, %v569
        %602 = vst.msk [vmem:[#allocation2 + $0x70] sm:$0xff] %vm543, %v570
        %603 = vst.msk [vmem:[#allocation2 + $0x78] sm:$0xff] %vm543, %v571
        %604 = vst.msk [vmem:[#allocation2 + $0x80] sm:$0xff] %vm543, %v572
        %605 = vst.msk [vmem:[#allocation2 + $0x88] sm:$0xff] %vm543, %v573
        %606 = vst.msk [vmem:[#allocation2 + $0x90] sm:$0xff] %vm543, %v574
        %607 = vst.msk [vmem:[#allocation2 + $0x98] sm:$0xff] %vm543, %v575
        %608 = vst.msk [vmem:[#allocation2 + $0xa0] sm:$0xff] %vm543, %v576
        %609 = vst.msk [vmem:[#allocation2 + $0xa8] sm:$0xff] %vm543, %v577
        %610 = vst.msk [vmem:[#allocation2 + $0xb0] sm:$0xff] %vm543, %v578
        %611 = vst.msk [vmem:[#allocation2 + $0xb8] sm:$0xff] %vm543, %v579
        %612 = vst.msk [vmem:[#allocation2 + $0xc0] sm:$0xff] %vm543, %v580
        %613 = vst.msk [vmem:[#allocation2 + $0xc8] sm:$0xff] %vm543, %v581
        %614 = vst.msk [vmem:[#allocation2 + $0xd0] sm:$0xff] %vm543, %v582
        %615 = vst.msk [vmem:[#allocation2 + $0xd8] sm:$0xff] %vm543, %v583
        %616 = vst.msk [vmem:[#allocation2 + $0xe0] sm:$0xff] %vm543, %v584
        %617 = vst.msk [vmem:[#allocation2 + $0xe8] sm:$0xff] %vm543, %v585
        %618 = vst.msk [vmem:[#allocation2 + $0xf0] sm:$0xff] %vm543, %v586
        %619 = vst.msk [vmem:[#allocation2 + $0xf8] sm:$0xff] %vm543, %v587
        %620 = vst.msk [vmem:[#allocation2 + $0x100] sm:$0xff] %vm543, %v588
        %621 = vst.msk [vmem:[#allocation2 + $0x108] sm:$0xff] %vm543, %v589
        %v622 = vlaneseq
        %v623 = vshrl.u32 %v622, 7
        %v624 = vadd.s32 %v623, 8
        %v625 = vadd.s32 %v623, 16
        %v626 = vadd.s32 %v623, 24
        %v627 = vadd.s32 %v623, 32
        %v628 = vadd.s32 %v623, 40
        %v629 = vadd.s32 %v623, 48
        %v630 = vadd.s32 %v623, 56
        %v631 = vadd.s32 %v623, 64
        %v632 = vadd.s32 %v623, 72
        %v633 = vadd.s32 %v623, 80
        %v634 = vadd.s32 %v623, 88
        %v635 = vadd.s32 %v623, 96
        %v636 = vadd.s32 %v623, 104
        %v637 = vadd.s32 %v623, 112
        %v638 = vadd.s32 %v623, 120
        %v639 = vadd.s32 %v623, 128
        %v640 = vadd.s32 %v623, 136
        %v641 = vadd.s32 %v623, 144
        %v642 = vadd.s32 %v623, 152
        %v643 = vadd.s32 %v623, 160
        %v644 = vadd.s32 %v623, 168
        %v645 = vadd.s32 %v623, 176
        %v646 = vadd.s32 %v623, 184
        %v647 = vadd.s32 %v623, 192
        %v648 = vadd.s32 %v623, 200
        %v649 = vadd.s32 %v623, 208
        %v650 = vadd.s32 %v623, 216
        %v651 = vadd.s32 %v623, 224
        %v652 = vadd.s32 %v623, 232
        %v653 = vadd.s32 %v623, 240
        %v654 = vadd.s32 %v623, 248
        %v655 = vand.u32 %v623, 15
        %v656 = vand.u32 %v624, 15
        %v657 = vand.u32 %v625, 15
        %v658 = vand.u32 %v626, 15
        %v659 = vand.u32 %v627, 15
        %v660 = vand.u32 %v628, 15
        %v661 = vand.u32 %v629, 15
        %v662 = vand.u32 %v630, 15
        %v663 = vand.u32 %v631, 15
        %v664 = vand.u32 %v632, 15
        %v665 = vand.u32 %v633, 15
        %v666 = vand.u32 %v634, 15
        %v667 = vand.u32 %v635, 15
        %v668 = vand.u32 %v636, 15
        %v669 = vand.u32 %v637, 15
        %v670 = vand.u32 %v638, 15
        %v671 = vand.u32 %v639, 15
        %v672 = vand.u32 %v640, 15
        %v673 = vand.u32 %v641, 15
        %v674 = vand.u32 %v642, 15
        %v675 = vand.u32 %v643, 15
        %v676 = vand.u32 %v644, 15
        %v677 = vand.u32 %v645, 15
        %v678 = vand.u32 %v646, 15
        %v679 = vand.u32 %v647, 15
        %v680 = vand.u32 %v648, 15
        %v681 = vand.u32 %v649, 15
        %v682 = vand.u32 %v650, 15
        %v683 = vand.u32 %v651, 15
        %v684 = vand.u32 %v652, 15
        %v685 = vand.u32 %v653, 15
        %v686 = vand.u32 %v654, 15
        %vm687 = vcmp.ne.s32.totalorder %v655, 0
        %vm688 = vcmp.ne.s32.totalorder %v656, 0
        %vm689 = vcmp.ne.s32.totalorder %v657, 0
        %vm690 = vcmp.ne.s32.totalorder %v658, 0
        %vm691 = vcmp.ne.s32.totalorder %v659, 0
        %vm692 = vcmp.ne.s32.totalorder %v660, 0
        %vm693 = vcmp.ne.s32.totalorder %v661, 0
        %vm694 = vcmp.ne.s32.totalorder %v662, 0
        %vm695 = vcmp.ne.s32.totalorder %v663, 0
        %vm696 = vcmp.ne.s32.totalorder %v664, 0
        %vm697 = vcmp.ne.s32.totalorder %v665, 0
        %vm698 = vcmp.ne.s32.totalorder %v666, 0
        %vm699 = vcmp.ne.s32.totalorder %v667, 0
        %vm700 = vcmp.ne.s32.totalorder %v668, 0
        %vm701 = vcmp.ne.s32.totalorder %v669, 0
        %vm702 = vcmp.ne.s32.totalorder %v670, 0
        %vm703 = vcmp.ne.s32.totalorder %v671, 0
        %vm704 = vcmp.ne.s32.totalorder %v672, 0
        %vm705 = vcmp.ne.s32.totalorder %v673, 0
        %vm706 = vcmp.ne.s32.totalorder %v674, 0
        %vm707 = vcmp.ne.s32.totalorder %v675, 0
        %vm708 = vcmp.ne.s32.totalorder %v676, 0
        %vm709 = vcmp.ne.s32.totalorder %v677, 0
        %vm710 = vcmp.ne.s32.totalorder %v678, 0
        %vm711 = vcmp.ne.s32.totalorder %v679, 0
        %vm712 = vcmp.ne.s32.totalorder %v680, 0
        %vm713 = vcmp.ne.s32.totalorder %v681, 0
        %vm714 = vcmp.ne.s32.totalorder %v682, 0
        %vm715 = vcmp.ne.s32.totalorder %v683, 0
        %vm716 = vcmp.ne.s32.totalorder %v684, 0
        %vm717 = vcmp.ne.s32.totalorder %v685, 0
        %vm718 = vcmp.ne.s32.totalorder %v686, 0
        %vm719 = vcmp.ne.s32.totalorder %v655, 15
        %vm720 = vcmp.ne.s32.totalorder %v656, 15
        %vm721 = vcmp.ne.s32.totalorder %v657, 15
        %vm722 = vcmp.ne.s32.totalorder %v658, 15
        %vm723 = vcmp.ne.s32.totalorder %v659, 15
        %vm724 = vcmp.ne.s32.totalorder %v660, 15
        %vm725 = vcmp.ne.s32.totalorder %v661, 15
        %vm726 = vcmp.ne.s32.totalorder %v662, 15
        %vm727 = vcmp.ne.s32.totalorder %v663, 15
        %vm728 = vcmp.ne.s32.totalorder %v664, 15
        %vm729 = vcmp.ne.s32.totalorder %v665, 15
        %vm730 = vcmp.ne.s32.totalorder %v666, 15
        %vm731 = vcmp.ne.s32.totalorder %v667, 15
        %vm732 = vcmp.ne.s32.totalorder %v668, 15
        %vm733 = vcmp.ne.s32.totalorder %v669, 15
        %vm734 = vcmp.ne.s32.totalorder %v670, 15
        %vm735 = vcmp.ne.s32.totalorder %v671, 15
        %vm736 = vcmp.ne.s32.totalorder %v672, 15
        %vm737 = vcmp.ne.s32.totalorder %v673, 15
        %vm738 = vcmp.ne.s32.totalorder %v674, 15
        %vm739 = vcmp.ne.s32.totalorder %v675, 15
        %vm740 = vcmp.ne.s32.totalorder %v676, 15
        %vm741 = vcmp.ne.s32.totalorder %v677, 15
        %vm742 = vcmp.ne.s32.totalorder %v678, 15
        %vm743 = vcmp.ne.s32.totalorder %v679, 15
        %vm744 = vcmp.ne.s32.totalorder %v680, 15
        %vm745 = vcmp.ne.s32.totalorder %v681, 15
        %vm746 = vcmp.ne.s32.totalorder %v682, 15
        %vm747 = vcmp.ne.s32.totalorder %v683, 15
        %vm748 = vcmp.ne.s32.totalorder %v684, 15
        %vm749 = vcmp.ne.s32.totalorder %v685, 15
        %vm750 = vcmp.ne.s32.totalorder %v686, 15
        %v751 = vld [vmem:[#allocation2] sm:$0xff]
        %v752 = vld [vmem:[#allocation2 + $0x8] sm:$0xff]
        %v753 = vld [vmem:[#allocation2 + $0x10] sm:$0xff]
        %v754 = vld [vmem:[#allocation2 + $0x18] sm:$0xff]
        %v755 = vld [vmem:[#allocation2 + $0x20] sm:$0xff]
        %v756 = vld [vmem:[#allocation2 + $0x28] sm:$0xff]
        %v757 = vld [vmem:[#allocation2 + $0x30] sm:$0xff]
        %v758 = vld [vmem:[#allocation2 + $0x38] sm:$0xff]
        %v759 = vld [vmem:[#allocation2 + $0x40] sm:$0xff]
        %v760 = vld [vmem:[#allocation2 + $0x48] sm:$0xff]
        %v761 = vld [vmem:[#allocation2 + $0x50] sm:$0xff]
        %v762 = vld [vmem:[#allocation2 + $0x58] sm:$0xff]
        %v763 = vld [vmem:[#allocation2 + $0x60] sm:$0xff]
        %v764 = vld [vmem:[#allocation2 + $0x68] sm:$0xff]
        %v765 = vld [vmem:[#allocation2 + $0x70] sm:$0xff]
        %v766 = vld [vmem:[#allocation2 + $0x78] sm:$0xff]
        %v767 = vld [vmem:[#allocation2 + $0x80] sm:$0xff]
        %v768 = vld [vmem:[#allocation2 + $0x88] sm:$0xff]
        %v769 = vld [vmem:[#allocation2 + $0x90] sm:$0xff]
        %v770 = vld [vmem:[#allocation2 + $0x98] sm:$0xff]
        %v771 = vld [vmem:[#allocation2 + $0xa0] sm:$0xff]
        %v772 = vld [vmem:[#allocation2 + $0xa8] sm:$0xff]
        %v773 = vld [vmem:[#allocation2 + $0xb0] sm:$0xff]
        %v774 = vld [vmem:[#allocation2 + $0xb8] sm:$0xff]
        %v775 = vld [vmem:[#allocation2 + $0xc0] sm:$0xff]
        %v776 = vld [vmem:[#allocation2 + $0xc8] sm:$0xff]
        %v777 = vld [vmem:[#allocation2 + $0xd0] sm:$0xff]
        %v778 = vld [vmem:[#allocation2 + $0xd8] sm:$0xff]
        %v779 = vld [vmem:[#allocation2 + $0xe0] sm:$0xff]
        %v780 = vld [vmem:[#allocation2 + $0xe8] sm:$0xff]
        %v781 = vld [vmem:[#allocation2 + $0xf0] sm:$0xff]
        %v782 = vld [vmem:[#allocation2 + $0xf8] sm:$0xff]
        %v783 = vrot.slane %v751, 7
        %v784 = vrot.slane %v752, 7
        %v785 = vrot.slane %v753, 7
        %v786 = vrot.slane %v754, 7
        %v787 = vrot.slane %v755, 7
        %v788 = vrot.slane %v756, 7
        %v789 = vrot.slane %v757, 7
        %v790 = vrot.slane %v758, 7
        %v791 = vrot.slane %v759, 7
        %v792 = vrot.slane %v760, 7
        %v793 = vrot.slane %v761, 7
        %v794 = vrot.slane %v762, 7
        %v795 = vrot.slane %v763, 7
        %v796 = vrot.slane %v764, 7
        %v797 = vrot.slane %v765, 7
        %v798 = vrot.slane %v766, 7
        %v799 = vrot.slane %v767, 7
        %v800 = vrot.slane %v768, 7
        %v801 = vrot.slane %v769, 7
        %v802 = vrot.slane %v770, 7
        %v803 = vrot.slane %v771, 7
        %v804 = vrot.slane %v772, 7
        %v805 = vrot.slane %v773, 7
        %v806 = vrot.slane %v774, 7
        %v807 = vrot.slane %v775, 7
        %v808 = vrot.slane %v776, 7
        %v809 = vrot.slane %v777, 7
        %v810 = vrot.slane %v778, 7
        %v811 = vrot.slane %v779, 7
        %v812 = vrot.slane %v780, 7
        %v813 = vrot.slane %v781, 7
        %v814 = vrot.slane %v782, 7
        %vm815 = vcmp.lt.s32.totalorder %v623, 1
        %v816 = vsel %vm815, %v813, %v814
        %v817 = vsel %vm815, %v812, %v813
        %v818 = vsel %vm815, %v811, %v812
        %v819 = vsel %vm815, %v810, %v811
        %v820 = vsel %vm815, %v809, %v810
        %v821 = vsel %vm815, %v808, %v809
        %v822 = vsel %vm815, %v807, %v808
        %v823 = vsel %vm815, %v806, %v807
        %v824 = vsel %vm815, %v805, %v806
        %v825 = vsel %vm815, %v804, %v805
        %v826 = vsel %vm815, %v803, %v804
        %v827 = vsel %vm815, %v802, %v803
        %v828 = vsel %vm815, %v801, %v802
        %v829 = vsel %vm815, %v800, %v801
        %v830 = vsel %vm815, %v799, %v800
        %v831 = vsel %vm815, %v798, %v799
        %v832 = vsel %vm815, %v797, %v798
        %v833 = vsel %vm815, %v796, %v797
        %v834 = vsel %vm815, %v795, %v796
        %v835 = vsel %vm815, %v794, %v795
        %v836 = vsel %vm815, %v793, %v794
        %v837 = vsel %vm815, %v792, %v793
        %v838 = vsel %vm815, %v791, %v792
        %v839 = vsel %vm815, %v790, %v791
        %v840 = vsel %vm815, %v789, %v790
        %v841 = vsel %vm815, %v788, %v789
        %v842 = vsel %vm815, %v787, %v788
        %v843 = vsel %vm815, %v786, %v787
        %v844 = vsel %vm815, %v785, %v786
        %v845 = vsel %vm815, %v784, %v785
        %v846 = vsel %vm815, %v783, %v784
        %v847 = vsel %vm815, %v814, %v783
        %v848 = vsel %vm687, %v847, 0.0
        %v849 = vsel %vm688, %v846, 0.0
        %v850 = vsel %vm689, %v845, 0.0
        %v851 = vsel %vm690, %v844, 0.0
        %v852 = vsel %vm691, %v843, 0.0
        %v853 = vsel %vm692, %v842, 0.0
        %v854 = vsel %vm693, %v841, 0.0
        %v855 = vsel %vm694, %v840, 0.0
        %v856 = vsel %vm695, %v839, 0.0
        %v857 = vsel %vm696, %v838, 0.0
        %v858 = vsel %vm697, %v837, 0.0
        %v859 = vsel %vm698, %v836, 0.0
        %v860 = vsel %vm699, %v835, 0.0
        %v861 = vsel %vm700, %v834, 0.0
        %v862 = vsel %vm701, %v833, 0.0
        %v863 = vsel %vm702, %v832, 0.0
        %v864 = vsel %vm703, %v831, 0.0
        %v865 = vsel %vm704, %v830, 0.0
        %v866 = vsel %vm705, %v829, 0.0
        %v867 = vsel %vm706, %v828, 0.0
        %v868 = vsel %vm707, %v827, 0.0
        %v869 = vsel %vm708, %v826, 0.0
        %v870 = vsel %vm709, %v825, 0.0
        %v871 = vsel %vm710, %v824, 0.0
        %v872 = vsel %vm711, %v823, 0.0
        %v873 = vsel %vm712, %v822, 0.0
        %v874 = vsel %vm713, %v821, 0.0
        %v875 = vsel %vm714, %v820, 0.0
        %v876 = vsel %vm715, %v819, 0.0
        %v877 = vsel %vm716, %v818, 0.0
        %v878 = vsel %vm717, %v817, 0.0
        %v879 = vsel %vm718, %v816, 0.0
        %v880 = vrot.slane %v751, 1
        %v881 = vrot.slane %v752, 1
        %v882 = vrot.slane %v753, 1
        %v883 = vrot.slane %v754, 1
        %v884 = vrot.slane %v755, 1
        %v885 = vrot.slane %v756, 1
        %v886 = vrot.slane %v757, 1
        %v887 = vrot.slane %v758, 1
        %v888 = vrot.slane %v759, 1
        %v889 = vrot.slane %v760, 1
        %v890 = vrot.slane %v761, 1
        %v891 = vrot.slane %v762, 1
        %v892 = vrot.slane %v763, 1
        %v893 = vrot.slane %v764, 1
        %v894 = vrot.slane %v765, 1
        %v895 = vrot.slane %v766, 1
        %v896 = vrot.slane %v767, 1
        %v897 = vrot.slane %v768, 1
        %v898 = vrot.slane %v769, 1
        %v899 = vrot.slane %v770, 1
        %v900 = vrot.slane %v771, 1
        %v901 = vrot.slane %v772, 1
        %v902 = vrot.slane %v773, 1
        %v903 = vrot.slane %v774, 1
        %v904 = vrot.slane %v775, 1
        %v905 = vrot.slane %v776, 1
        %v906 = vrot.slane %v777, 1
        %v907 = vrot.slane %v778, 1
        %v908 = vrot.slane %v779, 1
        %v909 = vrot.slane %v780, 1
        %v910 = vrot.slane %v781, 1
        %v911 = vrot.slane %v782, 1
        %vm912 = vcmp.lt.s32.totalorder %v623, 7
        %v913 = vsel %vm912, %v910, %v911
        %v914 = vsel %vm912, %v909, %v910
        %v915 = vsel %vm912, %v908, %v909
        %v916 = vsel %vm912, %v907, %v908
        %v917 = vsel %vm912, %v906, %v907
        %v918 = vsel %vm912, %v905, %v906
        %v919 = vsel %vm912, %v904, %v905
        %v920 = vsel %vm912, %v903, %v904
        %v921 = vsel %vm912, %v902, %v903
        %v922 = vsel %vm912, %v901, %v902
        %v923 = vsel %vm912, %v900, %v901
        %v924 = vsel %vm912, %v899, %v900
        %v925 = vsel %vm912, %v898, %v899
        %v926 = vsel %vm912, %v897, %v898
        %v927 = vsel %vm912, %v896, %v897
        %v928 = vsel %vm912, %v895, %v896
        %v929 = vsel %vm912, %v894, %v895
        %v930 = vsel %vm912, %v893, %v894
        %v931 = vsel %vm912, %v892, %v893
        %v932 = vsel %vm912, %v891, %v892
        %v933 = vsel %vm912, %v890, %v891
        %v934 = vsel %vm912, %v889, %v890
        %v935 = vsel %vm912, %v888, %v889
        %v936 = vsel %vm912, %v887, %v888
        %v937 = vsel %vm912, %v886, %v887
        %v938 = vsel %vm912, %v885, %v886
        %v939 = vsel %vm912, %v884, %v885
        %v940 = vsel %vm912, %v883, %v884
        %v941 = vsel %vm912, %v882, %v883
        %v942 = vsel %vm912, %v881, %v882
        %v943 = vsel %vm912, %v880, %v881
        %v944 = vsel %vm912, %v911, %v880
        %v945 = vsel %vm719, %v943, 0.0
        %v946 = vsel %vm720, %v942, 0.0
        %v947 = vsel %vm721, %v941, 0.0
        %v948 = vsel %vm722, %v940, 0.0
        %v949 = vsel %vm723, %v939, 0.0
        %v950 = vsel %vm724, %v938, 0.0
        %v951 = vsel %vm725, %v937, 0.0
        %v952 = vsel %vm726, %v936, 0.0
        %v953 = vsel %vm727, %v935, 0.0
        %v954 = vsel %vm728, %v934, 0.0
        %v955 = vsel %vm729, %v933, 0.0
        %v956 = vsel %vm730, %v932, 0.0
        %v957 = vsel %vm731, %v931, 0.0
        %v958 = vsel %vm732, %v930, 0.0
        %v959 = vsel %vm733, %v929, 0.0
        %v960 = vsel %vm734, %v928, 0.0
        %v961 = vsel %vm735, %v927, 0.0
        %v962 = vsel %vm736, %v926, 0.0
        %v963 = vsel %vm737, %v925, 0.0
        %v964 = vsel %vm738, %v924, 0.0
        %v965 = vsel %vm739, %v923, 0.0
        %v966 = vsel %vm740, %v922, 0.0
        %v967 = vsel %vm741, %v921, 0.0
        %v968 = vsel %vm742, %v920, 0.0
        %v969 = vsel %vm743, %v919, 0.0
        %v970 = vsel %vm744, %v918, 0.0
        %v971 = vsel %vm745, %v917, 0.0
        %v972 = vsel %vm746, %v916, 0.0
        %v973 = vsel %vm747, %v915, 0.0
        %v974 = vsel %vm748, %v914, 0.0
        %v975 = vsel %vm749, %v913, 0.0
        %v976 = vsel %vm750, %v944, 0.0
        %v977 = vld [vmem:[%s1] sm:$0x1]
        %979 = vset.pattern.permute.xlu0 0
        %980 = vperm.xlu0 %979, %v848
        %v981 = vpop.permute.xlu0 %980
        %984 = vset.pattern.permute.xlu0 0
        %985 = vperm.xlu0 %984, %v849
        %v986 = vpop.permute.xlu0 %985
        %989 = vset.pattern.permute.xlu0 0
        %990 = vperm.xlu0 %989, %v850
        %v991 = vpop.permute.xlu0 %990
        %994 = vset.pattern.permute.xlu0 0
        %995 = vperm.xlu0 %994, %v851
        %v996 = vpop.permute.xlu0 %995
        %999 = vset.pattern.permute.xlu0 0
        %1000 = vperm.xlu0 %999, %v852
        %v1001 = vpop.permute.xlu0 %1000
        %1004 = vset.pattern.permute.xlu0 0
        %1005 = vperm.xlu0 %1004, %v853
        %v1006 = vpop.permute.xlu0 %1005
        %1009 = vset.pattern.permute.xlu0 0
        %1010 = vperm.xlu0 %1009, %v854
        %v1011 = vpop.permute.xlu0 %1010
        %1014 = vset.pattern.permute.xlu0 0
        %1015 = vperm.xlu0 %1014, %v855
        %v1016 = vpop.permute.xlu0 %1015
        %1019 = vset.pattern.permute.xlu0 0
        %1020 = vperm.xlu0 %1019, %v856
        %v1021 = vpop.permute.xlu0 %1020
        %1024 = vset.pattern.permute.xlu0 0
        %1025 = vperm.xlu0 %1024, %v857
        %v1026 = vpop.permute.xlu0 %1025
        %1029 = vset.pattern.permute.xlu0 0
        %1030 = vperm.xlu0 %1029, %v858
        %v1031 = vpop.permute.xlu0 %1030
        %1034 = vset.pattern.permute.xlu0 0
        %1035 = vperm.xlu0 %1034, %v859
        %v1036 = vpop.permute.xlu0 %1035
        %1039 = vset.pattern.permute.xlu0 0
        %1040 = vperm.xlu0 %1039, %v860
        %v1041 = vpop.permute.xlu0 %1040
        %1044 = vset.pattern.permute.xlu0 0
        %1045 = vperm.xlu0 %1044, %v861
        %v1046 = vpop.permute.xlu0 %1045
        %1049 = vset.pattern.permute.xlu0 0
        %1050 = vperm.xlu0 %1049, %v862
        %v1051 = vpop.permute.xlu0 %1050
        %1054 = vset.pattern.permute.xlu0 0
        %1055 = vperm.xlu0 %1054, %v863
        %v1056 = vpop.permute.xlu0 %1055
        %1059 = vset.pattern.permute.xlu0 0
        %1060 = vperm.xlu0 %1059, %v864
        %v1061 = vpop.permute.xlu0 %1060
        %1064 = vset.pattern.permute.xlu0 0
        %1065 = vperm.xlu0 %1064, %v865
        %v1066 = vpop.permute.xlu0 %1065
        %1069 = vset.pattern.permute.xlu0 0
        %1070 = vperm.xlu0 %1069, %v866
        %v1071 = vpop.permute.xlu0 %1070
        %1074 = vset.pattern.permute.xlu0 0
        %1075 = vperm.xlu0 %1074, %v867
        %v1076 = vpop.permute.xlu0 %1075
        %1079 = vset.pattern.permute.xlu0 0
        %1080 = vperm.xlu0 %1079, %v868
        %v1081 = vpop.permute.xlu0 %1080
        %1084 = vset.pattern.permute.xlu0 0
        %1085 = vperm.xlu0 %1084, %v869
        %v1086 = vpop.permute.xlu0 %1085
        %1089 = vset.pattern.permute.xlu0 0
        %1090 = vperm.xlu0 %1089, %v870
        %v1091 = vpop.permute.xlu0 %1090
        %1094 = vset.pattern.permute.xlu0 0
        %1095 = vperm.xlu0 %1094, %v871
        %v1096 = vpop.permute.xlu0 %1095
        %1099 = vset.pattern.permute.xlu0 0
        %1100 = vperm.xlu0 %1099, %v872
        %v1101 = vpop.permute.xlu0 %1100
        %1104 = vset.pattern.permute.xlu0 0
        %1105 = vperm.xlu0 %1104, %v873
        %v1106 = vpop.permute.xlu0 %1105
        %1109 = vset.pattern.permute.xlu0 0
        %1110 = vperm.xlu0 %1109, %v874
        %v1111 = vpop.permute.xlu0 %1110
        %1114 = vset.pattern.permute.xlu0 0
        %1115 = vperm.xlu0 %1114, %v875
        %v1116 = vpop.permute.xlu0 %1115
        %1119 = vset.pattern.permute.xlu0 0
        %1120 = vperm.xlu0 %1119, %v876
        %v1121 = vpop.permute.xlu0 %1120
        %1124 = vset.pattern.permute.xlu0 0
        %1125 = vperm.xlu0 %1124, %v877
        %v1126 = vpop.permute.xlu0 %1125
        %1129 = vset.pattern.permute.xlu0 0
        %1130 = vperm.xlu0 %1129, %v878
        %v1131 = vpop.permute.xlu0 %1130
        %1134 = vset.pattern.permute.xlu0 0
        %1135 = vperm.xlu0 %1134, %v879
        %v1136 = vpop.permute.xlu0 %1135
        %v1139 = vperm.slane %v977, 0
        %v1141 = vmul.f32 %v981, %v1139
        %v1142 = vmul.f32 %v986, %v1139
        %v1143 = vmul.f32 %v991, %v1139
        %v1144 = vmul.f32 %v996, %v1139
        %v1145 = vmul.f32 %v1001, %v1139
        %v1146 = vmul.f32 %v1006, %v1139
        %v1147 = vmul.f32 %v1011, %v1139
        %v1148 = vmul.f32 %v1016, %v1139
        %v1149 = vmul.f32 %v1021, %v1139
        %v1150 = vmul.f32 %v1026, %v1139
        %v1151 = vmul.f32 %v1031, %v1139
        %v1152 = vmul.f32 %v1036, %v1139
        %v1153 = vmul.f32 %v1041, %v1139
        %v1154 = vmul.f32 %v1046, %v1139
        %v1155 = vmul.f32 %v1051, %v1139
        %v1156 = vmul.f32 %v1056, %v1139
        %v1157 = vmul.f32 %v1061, %v1139
        %v1158 = vmul.f32 %v1066, %v1139
        %v1159 = vmul.f32 %v1071, %v1139
        %v1160 = vmul.f32 %v1076, %v1139
        %v1161 = vmul.f32 %v1081, %v1139
        %v1162 = vmul.f32 %v1086, %v1139
        %v1163 = vmul.f32 %v1091, %v1139
        %v1164 = vmul.f32 %v1096, %v1139
        %v1165 = vmul.f32 %v1101, %v1139
        %v1166 = vmul.f32 %v1106, %v1139
        %v1167 = vmul.f32 %v1111, %v1139
        %v1168 = vmul.f32 %v1116, %v1139
        %v1169 = vmul.f32 %v1121, %v1139
        %v1170 = vmul.f32 %v1126, %v1139
        %v1171 = vmul.f32 %v1131, %v1139
        %v1172 = vmul.f32 %v1136, %v1139
        %s1173 = scalar_lea.vmem %s1, 1
        %v1174 = vld [vmem:[%s1173] sm:$0x1]
        %1176 = vset.pattern.permute.xlu0 0
        %1177 = vperm.xlu0 %1176, %v751
        %v1178 = vpop.permute.xlu0 %1177
        %1181 = vset.pattern.permute.xlu0 0
        %1182 = vperm.xlu0 %1181, %v752
        %v1183 = vpop.permute.xlu0 %1182
        %1186 = vset.pattern.permute.xlu0 0
        %1187 = vperm.xlu0 %1186, %v753
        %v1188 = vpop.permute.xlu0 %1187
        %1191 = vset.pattern.permute.xlu0 0
        %1192 = vperm.xlu0 %1191, %v754
        %v1193 = vpop.permute.xlu0 %1192
        %1196 = vset.pattern.permute.xlu0 0
        %1197 = vperm.xlu0 %1196, %v755
        %v1198 = vpop.permute.xlu0 %1197
        %1201 = vset.pattern.permute.xlu0 0
        %1202 = vperm.xlu0 %1201, %v756
        %v1203 = vpop.permute.xlu0 %1202
        %1206 = vset.pattern.permute.xlu0 0
        %1207 = vperm.xlu0 %1206, %v757
        %v1208 = vpop.permute.xlu0 %1207
        %1211 = vset.pattern.permute.xlu0 0
        %1212 = vperm.xlu0 %1211, %v758
        %v1213 = vpop.permute.xlu0 %1212
        %1216 = vset.pattern.permute.xlu0 0
        %1217 = vperm.xlu0 %1216, %v759
        %v1218 = vpop.permute.xlu0 %1217
        %1221 = vset.pattern.permute.xlu0 0
        %1222 = vperm.xlu0 %1221, %v760
        %v1223 = vpop.permute.xlu0 %1222
        %1226 = vset.pattern.permute.xlu0 0
        %1227 = vperm.xlu0 %1226, %v761
        %v1228 = vpop.permute.xlu0 %1227
        %1231 = vset.pattern.permute.xlu0 0
        %1232 = vperm.xlu0 %1231, %v762
        %v1233 = vpop.permute.xlu0 %1232
        %1236 = vset.pattern.permute.xlu0 0
        %1237 = vperm.xlu0 %1236, %v763
        %v1238 = vpop.permute.xlu0 %1237
        %1241 = vset.pattern.permute.xlu0 0
        %1242 = vperm.xlu0 %1241, %v764
        %v1243 = vpop.permute.xlu0 %1242
        %1246 = vset.pattern.permute.xlu0 0
        %1247 = vperm.xlu0 %1246, %v765
        %v1248 = vpop.permute.xlu0 %1247
        %1251 = vset.pattern.permute.xlu0 0
        %1252 = vperm.xlu0 %1251, %v766
        %v1253 = vpop.permute.xlu0 %1252
        %1256 = vset.pattern.permute.xlu0 0
        %1257 = vperm.xlu0 %1256, %v767
        %v1258 = vpop.permute.xlu0 %1257
        %1261 = vset.pattern.permute.xlu0 0
        %1262 = vperm.xlu0 %1261, %v768
        %v1263 = vpop.permute.xlu0 %1262
        %1266 = vset.pattern.permute.xlu0 0
        %1267 = vperm.xlu0 %1266, %v769
        %v1268 = vpop.permute.xlu0 %1267
        %1271 = vset.pattern.permute.xlu0 0
        %1272 = vperm.xlu0 %1271, %v770
        %v1273 = vpop.permute.xlu0 %1272
        %1276 = vset.pattern.permute.xlu0 0
        %1277 = vperm.xlu0 %1276, %v771
        %v1278 = vpop.permute.xlu0 %1277
        %1281 = vset.pattern.permute.xlu0 0
        %1282 = vperm.xlu0 %1281, %v772
        %v1283 = vpop.permute.xlu0 %1282
        %1286 = vset.pattern.permute.xlu0 0
        %1287 = vperm.xlu0 %1286, %v773
        %v1288 = vpop.permute.xlu0 %1287
        %1291 = vset.pattern.permute.xlu0 0
        %1292 = vperm.xlu0 %1291, %v774
        %v1293 = vpop.permute.xlu0 %1292
        %1296 = vset.pattern.permute.xlu0 0
        %1297 = vperm.xlu0 %1296, %v775
        %v1298 = vpop.permute.xlu0 %1297
        %1301 = vset.pattern.permute.xlu0 0
        %1302 = vperm.xlu0 %1301, %v776
        %v1303 = vpop.permute.xlu0 %1302
        %1306 = vset.pattern.permute.xlu0 0
        %1307 = vperm.xlu0 %1306, %v777
        %v1308 = vpop.permute.xlu0 %1307
        %1311 = vset.pattern.permute.xlu0 0
        %1312 = vperm.xlu0 %1311, %v778
        %v1313 = vpop.permute.xlu0 %1312
        %1316 = vset.pattern.permute.xlu0 0
        %1317 = vperm.xlu0 %1316, %v779
        %v1318 = vpop.permute.xlu0 %1317
        %1321 = vset.pattern.permute.xlu0 0
        %1322 = vperm.xlu0 %1321, %v780
        %v1323 = vpop.permute.xlu0 %1322
        %1326 = vset.pattern.permute.xlu0 0
        %1327 = vperm.xlu0 %1326, %v781
        %v1328 = vpop.permute.xlu0 %1327
        %1331 = vset.pattern.permute.xlu0 0
        %1332 = vperm.xlu0 %1331, %v782
        %v1333 = vpop.permute.xlu0 %1332
        %v1336 = vperm.slane %v1174, 0
        %v1338 = vmul.f32 %v1178, %v1336
        %v1339 = vmul.f32 %v1183, %v1336
        %v1340 = vmul.f32 %v1188, %v1336
        %v1341 = vmul.f32 %v1193, %v1336
        %v1342 = vmul.f32 %v1198, %v1336
        %v1343 = vmul.f32 %v1203, %v1336
        %v1344 = vmul.f32 %v1208, %v1336
        %v1345 = vmul.f32 %v1213, %v1336
        %v1346 = vmul.f32 %v1218, %v1336
        %v1347 = vmul.f32 %v1223, %v1336
        %v1348 = vmul.f32 %v1228, %v1336
        %v1349 = vmul.f32 %v1233, %v1336
        %v1350 = vmul.f32 %v1238, %v1336
        %v1351 = vmul.f32 %v1243, %v1336
        %v1352 = vmul.f32 %v1248, %v1336
        %v1353 = vmul.f32 %v1253, %v1336
        %v1354 = vmul.f32 %v1258, %v1336
        %v1355 = vmul.f32 %v1263, %v1336
        %v1356 = vmul.f32 %v1268, %v1336
        %v1357 = vmul.f32 %v1273, %v1336
        %v1358 = vmul.f32 %v1278, %v1336
        %v1359 = vmul.f32 %v1283, %v1336
        %v1360 = vmul.f32 %v1288, %v1336
        %v1361 = vmul.f32 %v1293, %v1336
        %v1362 = vmul.f32 %v1298, %v1336
        %v1363 = vmul.f32 %v1303, %v1336
        %v1364 = vmul.f32 %v1308, %v1336
        %v1365 = vmul.f32 %v1313, %v1336
        %v1366 = vmul.f32 %v1318, %v1336
        %v1367 = vmul.f32 %v1323, %v1336
        %v1368 = vmul.f32 %v1328, %v1336
        %v1369 = vmul.f32 %v1333, %v1336
        %v1370 = vadd.f32 %v1141, %v1338
        %v1371 = vadd.f32 %v1142, %v1339
        %v1372 = vadd.f32 %v1143, %v1340
        %v1373 = vadd.f32 %v1144, %v1341
        %v1374 = vadd.f32 %v1145, %v1342
        %v1375 = vadd.f32 %v1146, %v1343
        %v1376 = vadd.f32 %v1147, %v1344
        %v1377 = vadd.f32 %v1148, %v1345
        %v1378 = vadd.f32 %v1149, %v1346
        %v1379 = vadd.f32 %v1150, %v1347
        %v1380 = vadd.f32 %v1151, %v1348
        %v1381 = vadd.f32 %v1152, %v1349
        %v1382 = vadd.f32 %v1153, %v1350
        %v1383 = vadd.f32 %v1154, %v1351
        %v1384 = vadd.f32 %v1155, %v1352
        %v1385 = vadd.f32 %v1156, %v1353
        %v1386 = vadd.f32 %v1157, %v1354
        %v1387 = vadd.f32 %v1158, %v1355
        %v1388 = vadd.f32 %v1159, %v1356
        %v1389 = vadd.f32 %v1160, %v1357
        %v1390 = vadd.f32 %v1161, %v1358
        %v1391 = vadd.f32 %v1162, %v1359
        %v1392 = vadd.f32 %v1163, %v1360
        %v1393 = vadd.f32 %v1164, %v1361
        %v1394 = vadd.f32 %v1165, %v1362
        %v1395 = vadd.f32 %v1166, %v1363
        %v1396 = vadd.f32 %v1167, %v1364
        %v1397 = vadd.f32 %v1168, %v1365
        %v1398 = vadd.f32 %v1169, %v1366
        %v1399 = vadd.f32 %v1170, %v1367
        %v1400 = vadd.f32 %v1171, %v1368
        %v1401 = vadd.f32 %v1172, %v1369
        %s1402 = scalar_lea.vmem %s1, 2
        %v1403 = vld [vmem:[%s1402] sm:$0x1]
        %1405 = vset.pattern.permute.xlu0 0
        %1406 = vperm.xlu0 %1405, %v945
        %v1407 = vpop.permute.xlu0 %1406
        %1410 = vset.pattern.permute.xlu0 0
        %1411 = vperm.xlu0 %1410, %v946
        %v1412 = vpop.permute.xlu0 %1411
        %1415 = vset.pattern.permute.xlu0 0
        %1416 = vperm.xlu0 %1415, %v947
        %v1417 = vpop.permute.xlu0 %1416
        %1420 = vset.pattern.permute.xlu0 0
        %1421 = vperm.xlu0 %1420, %v948
        %v1422 = vpop.permute.xlu0 %1421
        %1425 = vset.pattern.permute.xlu0 0
        %1426 = vperm.xlu0 %1425, %v949
        %v1427 = vpop.permute.xlu0 %1426
        %1430 = vset.pattern.permute.xlu0 0
        %1431 = vperm.xlu0 %1430, %v950
        %v1432 = vpop.permute.xlu0 %1431
        %1435 = vset.pattern.permute.xlu0 0
        %1436 = vperm.xlu0 %1435, %v951
        %v1437 = vpop.permute.xlu0 %1436
        %1440 = vset.pattern.permute.xlu0 0
        %1441 = vperm.xlu0 %1440, %v952
        %v1442 = vpop.permute.xlu0 %1441
        %1445 = vset.pattern.permute.xlu0 0
        %1446 = vperm.xlu0 %1445, %v953
        %v1447 = vpop.permute.xlu0 %1446
        %1450 = vset.pattern.permute.xlu0 0
        %1451 = vperm.xlu0 %1450, %v954
        %v1452 = vpop.permute.xlu0 %1451
        %1455 = vset.pattern.permute.xlu0 0
        %1456 = vperm.xlu0 %1455, %v955
        %v1457 = vpop.permute.xlu0 %1456
        %1460 = vset.pattern.permute.xlu0 0
        %1461 = vperm.xlu0 %1460, %v956
        %v1462 = vpop.permute.xlu0 %1461
        %1465 = vset.pattern.permute.xlu0 0
        %1466 = vperm.xlu0 %1465, %v957
        %v1467 = vpop.permute.xlu0 %1466
        %1470 = vset.pattern.permute.xlu0 0
        %1471 = vperm.xlu0 %1470, %v958
        %v1472 = vpop.permute.xlu0 %1471
        %1475 = vset.pattern.permute.xlu0 0
        %1476 = vperm.xlu0 %1475, %v959
        %v1477 = vpop.permute.xlu0 %1476
        %1480 = vset.pattern.permute.xlu0 0
        %1481 = vperm.xlu0 %1480, %v960
        %v1482 = vpop.permute.xlu0 %1481
        %1485 = vset.pattern.permute.xlu0 0
        %1486 = vperm.xlu0 %1485, %v961
        %v1487 = vpop.permute.xlu0 %1486
        %1490 = vset.pattern.permute.xlu0 0
        %1491 = vperm.xlu0 %1490, %v962
        %v1492 = vpop.permute.xlu0 %1491
        %1495 = vset.pattern.permute.xlu0 0
        %1496 = vperm.xlu0 %1495, %v963
        %v1497 = vpop.permute.xlu0 %1496
        %1500 = vset.pattern.permute.xlu0 0
        %1501 = vperm.xlu0 %1500, %v964
        %v1502 = vpop.permute.xlu0 %1501
        %1505 = vset.pattern.permute.xlu0 0
        %1506 = vperm.xlu0 %1505, %v965
        %v1507 = vpop.permute.xlu0 %1506
        %1510 = vset.pattern.permute.xlu0 0
        %1511 = vperm.xlu0 %1510, %v966
        %v1512 = vpop.permute.xlu0 %1511
        %1515 = vset.pattern.permute.xlu0 0
        %1516 = vperm.xlu0 %1515, %v967
        %v1517 = vpop.permute.xlu0 %1516
        %1520 = vset.pattern.permute.xlu0 0
        %1521 = vperm.xlu0 %1520, %v968
        %v1522 = vpop.permute.xlu0 %1521
        %1525 = vset.pattern.permute.xlu0 0
        %1526 = vperm.xlu0 %1525, %v969
        %v1527 = vpop.permute.xlu0 %1526
        %1530 = vset.pattern.permute.xlu0 0
        %1531 = vperm.xlu0 %1530, %v970
        %v1532 = vpop.permute.xlu0 %1531
        %1535 = vset.pattern.permute.xlu0 0
        %1536 = vperm.xlu0 %1535, %v971
        %v1537 = vpop.permute.xlu0 %1536
        %1540 = vset.pattern.permute.xlu0 0
        %1541 = vperm.xlu0 %1540, %v972
        %v1542 = vpop.permute.xlu0 %1541
        %1545 = vset.pattern.permute.xlu0 0
        %1546 = vperm.xlu0 %1545, %v973
        %v1547 = vpop.permute.xlu0 %1546
        %1550 = vset.pattern.permute.xlu0 0
        %1551 = vperm.xlu0 %1550, %v974
        %v1552 = vpop.permute.xlu0 %1551
        %1555 = vset.pattern.permute.xlu0 0
        %1556 = vperm.xlu0 %1555, %v975
        %v1557 = vpop.permute.xlu0 %1556
        %1560 = vset.pattern.permute.xlu0 0
        %1561 = vperm.xlu0 %1560, %v976
        %v1562 = vpop.permute.xlu0 %1561
        %v1565 = vperm.slane %v1403, 0
        %v1567 = vmul.f32 %v1407, %v1565
        %v1568 = vmul.f32 %v1412, %v1565
        %v1569 = vmul.f32 %v1417, %v1565
        %v1570 = vmul.f32 %v1422, %v1565
        %v1571 = vmul.f32 %v1427, %v1565
        %v1572 = vmul.f32 %v1432, %v1565
        %v1573 = vmul.f32 %v1437, %v1565
        %v1574 = vmul.f32 %v1442, %v1565
        %v1575 = vmul.f32 %v1447, %v1565
        %v1576 = vmul.f32 %v1452, %v1565
        %v1577 = vmul.f32 %v1457, %v1565
        %v1578 = vmul.f32 %v1462, %v1565
        %v1579 = vmul.f32 %v1467, %v1565
        %v1580 = vmul.f32 %v1472, %v1565
        %v1581 = vmul.f32 %v1477, %v1565
        %v1582 = vmul.f32 %v1482, %v1565
        %v1583 = vmul.f32 %v1487, %v1565
        %v1584 = vmul.f32 %v1492, %v1565
        %v1585 = vmul.f32 %v1497, %v1565
        %v1586 = vmul.f32 %v1502, %v1565
        %v1587 = vmul.f32 %v1507, %v1565
        %v1588 = vmul.f32 %v1512, %v1565
        %v1589 = vmul.f32 %v1517, %v1565
        %v1590 = vmul.f32 %v1522, %v1565
        %v1591 = vmul.f32 %v1527, %v1565
        %v1592 = vmul.f32 %v1532, %v1565
        %v1593 = vmul.f32 %v1537, %v1565
        %v1594 = vmul.f32 %v1542, %v1565
        %v1595 = vmul.f32 %v1547, %v1565
        %v1596 = vmul.f32 %v1552, %v1565
        %v1597 = vmul.f32 %v1557, %v1565
        %v1598 = vmul.f32 %v1562, %v1565
        %v1599 = vadd.f32 %v1370, %v1567
        %v1600 = vadd.f32 %v1371, %v1568
        %v1601 = vadd.f32 %v1372, %v1569
        %v1602 = vadd.f32 %v1373, %v1570
        %v1603 = vadd.f32 %v1374, %v1571
        %v1604 = vadd.f32 %v1375, %v1572
        %v1605 = vadd.f32 %v1376, %v1573
        %v1606 = vadd.f32 %v1377, %v1574
        %v1607 = vadd.f32 %v1378, %v1575
        %v1608 = vadd.f32 %v1379, %v1576
        %v1609 = vadd.f32 %v1380, %v1577
        %v1610 = vadd.f32 %v1381, %v1578
        %v1611 = vadd.f32 %v1382, %v1579
        %v1612 = vadd.f32 %v1383, %v1580
        %v1613 = vadd.f32 %v1384, %v1581
        %v1614 = vadd.f32 %v1385, %v1582
        %v1615 = vadd.f32 %v1386, %v1583
        %v1616 = vadd.f32 %v1387, %v1584
        %v1617 = vadd.f32 %v1388, %v1585
        %v1618 = vadd.f32 %v1389, %v1586
        %v1619 = vadd.f32 %v1390, %v1587
        %v1620 = vadd.f32 %v1391, %v1588
        %v1621 = vadd.f32 %v1392, %v1589
        %v1622 = vadd.f32 %v1393, %v1590
        %v1623 = vadd.f32 %v1394, %v1591
        %v1624 = vadd.f32 %v1395, %v1592
        %v1625 = vadd.f32 %v1396, %v1593
        %v1626 = vadd.f32 %v1397, %v1594
        %v1627 = vadd.f32 %v1398, %v1595
        %v1628 = vadd.f32 %v1399, %v1596
        %v1629 = vadd.f32 %v1400, %v1597
        %v1630 = vadd.f32 %v1401, %v1598
        %v1631 = vld [vmem:[#allocation2 + $0x10] sm:$0xff]
        %v1632 = vld [vmem:[#allocation2 + $0x18] sm:$0xff]
        %v1633 = vld [vmem:[#allocation2 + $0x20] sm:$0xff]
        %v1634 = vld [vmem:[#allocation2 + $0x28] sm:$0xff]
        %v1635 = vld [vmem:[#allocation2 + $0x30] sm:$0xff]
        %v1636 = vld [vmem:[#allocation2 + $0x38] sm:$0xff]
        %v1637 = vld [vmem:[#allocation2 + $0x40] sm:$0xff]
        %v1638 = vld [vmem:[#allocation2 + $0x48] sm:$0xff]
        %v1639 = vld [vmem:[#allocation2 + $0x50] sm:$0xff]
        %v1640 = vld [vmem:[#allocation2 + $0x58] sm:$0xff]
        %v1641 = vld [vmem:[#allocation2 + $0x60] sm:$0xff]
        %v1642 = vld [vmem:[#allocation2 + $0x68] sm:$0xff]
        %v1643 = vld [vmem:[#allocation2 + $0x70] sm:$0xff]
        %v1644 = vld [vmem:[#allocation2 + $0x78] sm:$0xff]
        %v1645 = vld [vmem:[#allocation2 + $0x80] sm:$0xff]
        %v1646 = vld [vmem:[#allocation2 + $0x88] sm:$0xff]
        %v1647 = vld [vmem:[#allocation2 + $0x90] sm:$0xff]
        %v1648 = vld [vmem:[#allocation2 + $0x98] sm:$0xff]
        %v1649 = vld [vmem:[#allocation2 + $0xa0] sm:$0xff]
        %v1650 = vld [vmem:[#allocation2 + $0xa8] sm:$0xff]
        %v1651 = vld [vmem:[#allocation2 + $0xb0] sm:$0xff]
        %v1652 = vld [vmem:[#allocation2 + $0xb8] sm:$0xff]
        %v1653 = vld [vmem:[#allocation2 + $0xc0] sm:$0xff]
        %v1654 = vld [vmem:[#allocation2 + $0xc8] sm:$0xff]
        %v1655 = vld [vmem:[#allocation2 + $0xd0] sm:$0xff]
        %v1656 = vld [vmem:[#allocation2 + $0xd8] sm:$0xff]
        %v1657 = vld [vmem:[#allocation2 + $0xe0] sm:$0xff]
        %v1658 = vld [vmem:[#allocation2 + $0xe8] sm:$0xff]
        %v1659 = vld [vmem:[#allocation2 + $0xf0] sm:$0xff]
        %v1660 = vld [vmem:[#allocation2 + $0xf8] sm:$0xff]
        %v1661 = vld [vmem:[#allocation2 + $0x100] sm:$0xff]
        %v1662 = vld [vmem:[#allocation2 + $0x108] sm:$0xff]
        %v1663 = vrot.slane %v1631, 7
        %v1664 = vrot.slane %v1632, 7
        %v1665 = vrot.slane %v1633, 7
        %v1666 = vrot.slane %v1634, 7
        %v1667 = vrot.slane %v1635, 7
        %v1668 = vrot.slane %v1636, 7
        %v1669 = vrot.slane %v1637, 7
        %v1670 = vrot.slane %v1638, 7
        %v1671 = vrot.slane %v1639, 7
        %v1672 = vrot.slane %v1640, 7
        %v1673 = vrot.slane %v1641, 7
        %v1674 = vrot.slane %v1642, 7
        %v1675 = vrot.slane %v1643, 7
        %v1676 = vrot.slane %v1644, 7
        %v1677 = vrot.slane %v1645, 7
        %v1678 = vrot.slane %v1646, 7
        %v1679 = vrot.slane %v1647, 7
        %v1680 = vrot.slane %v1648, 7
        %v1681 = vrot.slane %v1649, 7
        %v1682 = vrot.slane %v1650, 7
        %v1683 = vrot.slane %v1651, 7
        %v1684 = vrot.slane %v1652, 7
        %v1685 = vrot.slane %v1653, 7
        %v1686 = vrot.slane %v1654, 7
        %v1687 = vrot.slane %v1655, 7
        %v1688 = vrot.slane %v1656, 7
        %v1689 = vrot.slane %v1657, 7
        %v1690 = vrot.slane %v1658, 7
        %v1691 = vrot.slane %v1659, 7
        %v1692 = vrot.slane %v1660, 7
        %v1693 = vrot.slane %v1661, 7
        %v1694 = vrot.slane %v1662, 7
        %v1695 = vsel %vm815, %v1693, %v1694
        %v1696 = vsel %vm815, %v1692, %v1693
        %v1697 = vsel %vm815, %v1691, %v1692
        %v1698 = vsel %vm815, %v1690, %v1691
        %v1699 = vsel %vm815, %v1689, %v1690
        %v1700 = vsel %vm815, %v1688, %v1689
        %v1701 = vsel %vm815, %v1687, %v1688
        %v1702 = vsel %vm815, %v1686, %v1687
        %v1703 = vsel %vm815, %v1685, %v1686
        %v1704 = vsel %vm815, %v1684, %v1685
        %v1705 = vsel %vm815, %v1683, %v1684
        %v1706 = vsel %vm815, %v1682, %v1683
        %v1707 = vsel %vm815, %v1681, %v1682
        %v1708 = vsel %vm815, %v1680, %v1681
        %v1709 = vsel %vm815, %v1679, %v1680
        %v1710 = vsel %vm815, %v1678, %v1679
        %v1711 = vsel %vm815, %v1677, %v1678
        %v1712 = vsel %vm815, %v1676, %v1677
        %v1713 = vsel %vm815, %v1675, %v1676
        %v1714 = vsel %vm815, %v1674, %v1675
        %v1715 = vsel %vm815, %v1673, %v1674
        %v1716 = vsel %vm815, %v1672, %v1673
        %v1717 = vsel %vm815, %v1671, %v1672
        %v1718 = vsel %vm815, %v1670, %v1671
        %v1719 = vsel %vm815, %v1669, %v1670
        %v1720 = vsel %vm815, %v1668, %v1669
        %v1721 = vsel %vm815, %v1667, %v1668
        %v1722 = vsel %vm815, %v1666, %v1667
        %v1723 = vsel %vm815, %v1665, %v1666
        %v1724 = vsel %vm815, %v1664, %v1665
        %v1725 = vsel %vm815, %v1663, %v1664
        %v1726 = vsel %vm815, %v1694, %v1663
        %v1727 = vsel %vm687, %v1726, 0.0
        %v1728 = vsel %vm688, %v1725, 0.0
        %v1729 = vsel %vm689, %v1724, 0.0
        %v1730 = vsel %vm690, %v1723, 0.0
        %v1731 = vsel %vm691, %v1722, 0.0
        %v1732 = vsel %vm692, %v1721, 0.0
        %v1733 = vsel %vm693, %v1720, 0.0
        %v1734 = vsel %vm694, %v1719, 0.0
        %v1735 = vsel %vm695, %v1718, 0.0
        %v1736 = vsel %vm696, %v1717, 0.0
        %v1737 = vsel %vm697, %v1716, 0.0
        %v1738 = vsel %vm698, %v1715, 0.0
        %v1739 = vsel %vm699, %v1714, 0.0
        %v1740 = vsel %vm700, %v1713, 0.0
        %v1741 = vsel %vm701, %v1712, 0.0
        %v1742 = vsel %vm702, %v1711, 0.0
        %v1743 = vsel %vm703, %v1710, 0.0
        %v1744 = vsel %vm704, %v1709, 0.0
        %v1745 = vsel %vm705, %v1708, 0.0
        %v1746 = vsel %vm706, %v1707, 0.0
        %v1747 = vsel %vm707, %v1706, 0.0
        %v1748 = vsel %vm708, %v1705, 0.0
        %v1749 = vsel %vm709, %v1704, 0.0
        %v1750 = vsel %vm710, %v1703, 0.0
        %v1751 = vsel %vm711, %v1702, 0.0
        %v1752 = vsel %vm712, %v1701, 0.0
        %v1753 = vsel %vm713, %v1700, 0.0
        %v1754 = vsel %vm714, %v1699, 0.0
        %v1755 = vsel %vm715, %v1698, 0.0
        %v1756 = vsel %vm716, %v1697, 0.0
        %v1757 = vsel %vm717, %v1696, 0.0
        %v1758 = vsel %vm718, %v1695, 0.0
        %v1759 = vrot.slane %v1631, 1
        %v1760 = vrot.slane %v1632, 1
        %v1761 = vrot.slane %v1633, 1
        %v1762 = vrot.slane %v1634, 1
        %v1763 = vrot.slane %v1635, 1
        %v1764 = vrot.slane %v1636, 1
        %v1765 = vrot.slane %v1637, 1
        %v1766 = vrot.slane %v1638, 1
        %v1767 = vrot.slane %v1639, 1
        %v1768 = vrot.slane %v1640, 1
        %v1769 = vrot.slane %v1641, 1
        %v1770 = vrot.slane %v1642, 1
        %v1771 = vrot.slane %v1643, 1
        %v1772 = vrot.slane %v1644, 1
        %v1773 = vrot.slane %v1645, 1
        %v1774 = vrot.slane %v1646, 1
        %v1775 = vrot.slane %v1647, 1
        %v1776 = vrot.slane %v1648, 1
        %v1777 = vrot.slane %v1649, 1
        %v1778 = vrot.slane %v1650, 1
        %v1779 = vrot.slane %v1651, 1
        %v1780 = vrot.slane %v1652, 1
        %v1781 = vrot.slane %v1653, 1
        %v1782 = vrot.slane %v1654, 1
        %v1783 = vrot.slane %v1655, 1
        %v1784 = vrot.slane %v1656, 1
        %v1785 = vrot.slane %v1657, 1
        %v1786 = vrot.slane %v1658, 1
        %v1787 = vrot.slane %v1659, 1
        %v1788 = vrot.slane %v1660, 1
        %v1789 = vrot.slane %v1661, 1
        %v1790 = vrot.slane %v1662, 1
        %v1791 = vsel %vm912, %v1789, %v1790
        %v1792 = vsel %vm912, %v1788, %v1789
        %v1793 = vsel %vm912, %v1787, %v1788
        %v1794 = vsel %vm912, %v1786, %v1787
        %v1795 = vsel %vm912, %v1785, %v1786
        %v1796 = vsel %vm912, %v1784, %v1785
        %v1797 = vsel %vm912, %v1783, %v1784
        %v1798 = vsel %vm912, %v1782, %v1783
        %v1799 = vsel %vm912, %v1781, %v1782
        %v1800 = vsel %vm912, %v1780, %v1781
        %v1801 = vsel %vm912, %v1779, %v1780
        %v1802 = vsel %vm912, %v1778, %v1779
        %v1803 = vsel %vm912, %v1777, %v1778
        %v1804 = vsel %vm912, %v1776, %v1777
        %v1805 = vsel %vm912, %v1775, %v1776
        %v1806 = vsel %vm912, %v1774, %v1775
        %v1807 = vsel %vm912, %v1773, %v1774
        %v1808 = vsel %vm912, %v1772, %v1773
        %v1809 = vsel %vm912, %v1771, %v1772
        %v1810 = vsel %vm912, %v1770, %v1771
        %v1811 = vsel %vm912, %v1769, %v1770
        %v1812 = vsel %vm912, %v1768, %v1769
        %v1813 = vsel %vm912, %v1767, %v1768
        %v1814 = vsel %vm912, %v1766, %v1767
        %v1815 = vsel %vm912, %v1765, %v1766
        %v1816 = vsel %vm912, %v1764, %v1765
        %v1817 = vsel %vm912, %v1763, %v1764
        %v1818 = vsel %vm912, %v1762, %v1763
        %v1819 = vsel %vm912, %v1761, %v1762
        %v1820 = vsel %vm912, %v1760, %v1761
        %v1821 = vsel %vm912, %v1759, %v1760
        %v1822 = vsel %vm912, %v1790, %v1759
        %v1823 = vsel %vm719, %v1821, 0.0
        %v1824 = vsel %vm720, %v1820, 0.0
        %v1825 = vsel %vm721, %v1819, 0.0
        %v1826 = vsel %vm722, %v1818, 0.0
        %v1827 = vsel %vm723, %v1817, 0.0
        %v1828 = vsel %vm724, %v1816, 0.0
        %v1829 = vsel %vm725, %v1815, 0.0
        %v1830 = vsel %vm726, %v1814, 0.0
        %v1831 = vsel %vm727, %v1813, 0.0
        %v1832 = vsel %vm728, %v1812, 0.0
        %v1833 = vsel %vm729, %v1811, 0.0
        %v1834 = vsel %vm730, %v1810, 0.0
        %v1835 = vsel %vm731, %v1809, 0.0
        %v1836 = vsel %vm732, %v1808, 0.0
        %v1837 = vsel %vm733, %v1807, 0.0
        %v1838 = vsel %vm734, %v1806, 0.0
        %v1839 = vsel %vm735, %v1805, 0.0
        %v1840 = vsel %vm736, %v1804, 0.0
        %v1841 = vsel %vm737, %v1803, 0.0
        %v1842 = vsel %vm738, %v1802, 0.0
        %v1843 = vsel %vm739, %v1801, 0.0
        %v1844 = vsel %vm740, %v1800, 0.0
        %v1845 = vsel %vm741, %v1799, 0.0
        %v1846 = vsel %vm742, %v1798, 0.0
        %v1847 = vsel %vm743, %v1797, 0.0
        %v1848 = vsel %vm744, %v1796, 0.0
        %v1849 = vsel %vm745, %v1795, 0.0
        %v1850 = vsel %vm746, %v1794, 0.0
        %v1851 = vsel %vm747, %v1793, 0.0
        %v1852 = vsel %vm748, %v1792, 0.0
        %v1853 = vsel %vm749, %v1791, 0.0
        %v1854 = vsel %vm750, %v1822, 0.0
        %s1855 = scalar_lea.vmem %s1, 3
        %v1856 = vld [vmem:[%s1855] sm:$0x1]
        %1858 = vset.pattern.permute.xlu0 0
        %1859 = vperm.xlu0 %1858, %v1727
        %v1860 = vpop.permute.xlu0 %1859
        %1863 = vset.pattern.permute.xlu0 0
        %1864 = vperm.xlu0 %1863, %v1728
        %v1865 = vpop.permute.xlu0 %1864
        %1868 = vset.pattern.permute.xlu0 0
        %1869 = vperm.xlu0 %1868, %v1729
        %v1870 = vpop.permute.xlu0 %1869
        %1873 = vset.pattern.permute.xlu0 0
        %1874 = vperm.xlu0 %1873, %v1730
        %v1875 = vpop.permute.xlu0 %1874
        %1878 = vset.pattern.permute.xlu0 0
        %1879 = vperm.xlu0 %1878, %v1731
        %v1880 = vpop.permute.xlu0 %1879
        %1883 = vset.pattern.permute.xlu0 0
        %1884 = vperm.xlu0 %1883, %v1732
        %v1885 = vpop.permute.xlu0 %1884
        %1888 = vset.pattern.permute.xlu0 0
        %1889 = vperm.xlu0 %1888, %v1733
        %v1890 = vpop.permute.xlu0 %1889
        %1893 = vset.pattern.permute.xlu0 0
        %1894 = vperm.xlu0 %1893, %v1734
        %v1895 = vpop.permute.xlu0 %1894
        %1898 = vset.pattern.permute.xlu0 0
        %1899 = vperm.xlu0 %1898, %v1735
        %v1900 = vpop.permute.xlu0 %1899
        %1903 = vset.pattern.permute.xlu0 0
        %1904 = vperm.xlu0 %1903, %v1736
        %v1905 = vpop.permute.xlu0 %1904
        %1908 = vset.pattern.permute.xlu0 0
        %1909 = vperm.xlu0 %1908, %v1737
        %v1910 = vpop.permute.xlu0 %1909
        %1913 = vset.pattern.permute.xlu0 0
        %1914 = vperm.xlu0 %1913, %v1738
        %v1915 = vpop.permute.xlu0 %1914
        %1918 = vset.pattern.permute.xlu0 0
        %1919 = vperm.xlu0 %1918, %v1739
        %v1920 = vpop.permute.xlu0 %1919
        %1923 = vset.pattern.permute.xlu0 0
        %1924 = vperm.xlu0 %1923, %v1740
        %v1925 = vpop.permute.xlu0 %1924
        %1928 = vset.pattern.permute.xlu0 0
        %1929 = vperm.xlu0 %1928, %v1741
        %v1930 = vpop.permute.xlu0 %1929
        %1933 = vset.pattern.permute.xlu0 0
        %1934 = vperm.xlu0 %1933, %v1742
        %v1935 = vpop.permute.xlu0 %1934
        %1938 = vset.pattern.permute.xlu0 0
        %1939 = vperm.xlu0 %1938, %v1743
        %v1940 = vpop.permute.xlu0 %1939
        %1943 = vset.pattern.permute.xlu0 0
        %1944 = vperm.xlu0 %1943, %v1744
        %v1945 = vpop.permute.xlu0 %1944
        %1948 = vset.pattern.permute.xlu0 0
        %1949 = vperm.xlu0 %1948, %v1745
        %v1950 = vpop.permute.xlu0 %1949
        %1953 = vset.pattern.permute.xlu0 0
        %1954 = vperm.xlu0 %1953, %v1746
        %v1955 = vpop.permute.xlu0 %1954
        %1958 = vset.pattern.permute.xlu0 0
        %1959 = vperm.xlu0 %1958, %v1747
        %v1960 = vpop.permute.xlu0 %1959
        %1963 = vset.pattern.permute.xlu0 0
        %1964 = vperm.xlu0 %1963, %v1748
        %v1965 = vpop.permute.xlu0 %1964
        %1968 = vset.pattern.permute.xlu0 0
        %1969 = vperm.xlu0 %1968, %v1749
        %v1970 = vpop.permute.xlu0 %1969
        %1973 = vset.pattern.permute.xlu0 0
        %1974 = vperm.xlu0 %1973, %v1750
        %v1975 = vpop.permute.xlu0 %1974
        %1978 = vset.pattern.permute.xlu0 0
        %1979 = vperm.xlu0 %1978, %v1751
        %v1980 = vpop.permute.xlu0 %1979
        %1983 = vset.pattern.permute.xlu0 0
        %1984 = vperm.xlu0 %1983, %v1752
        %v1985 = vpop.permute.xlu0 %1984
        %1988 = vset.pattern.permute.xlu0 0
        %1989 = vperm.xlu0 %1988, %v1753
        %v1990 = vpop.permute.xlu0 %1989
        %1993 = vset.pattern.permute.xlu0 0
        %1994 = vperm.xlu0 %1993, %v1754
        %v1995 = vpop.permute.xlu0 %1994
        %1998 = vset.pattern.permute.xlu0 0
        %1999 = vperm.xlu0 %1998, %v1755
        %v2000 = vpop.permute.xlu0 %1999
        %2003 = vset.pattern.permute.xlu0 0
        %2004 = vperm.xlu0 %2003, %v1756
        %v2005 = vpop.permute.xlu0 %2004
        %2008 = vset.pattern.permute.xlu0 0
        %2009 = vperm.xlu0 %2008, %v1757
        %v2010 = vpop.permute.xlu0 %2009
        %2013 = vset.pattern.permute.xlu0 0
        %2014 = vperm.xlu0 %2013, %v1758
        %v2015 = vpop.permute.xlu0 %2014
        %v2018 = vperm.slane %v1856, 0
        %v2020 = vmul.f32 %v1860, %v2018
        %v2021 = vmul.f32 %v1865, %v2018
        %v2022 = vmul.f32 %v1870, %v2018
        %v2023 = vmul.f32 %v1875, %v2018
        %v2024 = vmul.f32 %v1880, %v2018
        %v2025 = vmul.f32 %v1885, %v2018
        %v2026 = vmul.f32 %v1890, %v2018
        %v2027 = vmul.f32 %v1895, %v2018
        %v2028 = vmul.f32 %v1900, %v2018
        %v2029 = vmul.f32 %v1905, %v2018
        %v2030 = vmul.f32 %v1910, %v2018
        %v2031 = vmul.f32 %v1915, %v2018
        %v2032 = vmul.f32 %v1920, %v2018
        %v2033 = vmul.f32 %v1925, %v2018
        %v2034 = vmul.f32 %v1930, %v2018
        %v2035 = vmul.f32 %v1935, %v2018
        %v2036 = vmul.f32 %v1940, %v2018
        %v2037 = vmul.f32 %v1945, %v2018
        %v2038 = vmul.f32 %v1950, %v2018
        %v2039 = vmul.f32 %v1955, %v2018
        %v2040 = vmul.f32 %v1960, %v2018
        %v2041 = vmul.f32 %v1965, %v2018
        %v2042 = vmul.f32 %v1970, %v2018
        %v2043 = vmul.f32 %v1975, %v2018
        %v2044 = vmul.f32 %v1980, %v2018
        %v2045 = vmul.f32 %v1985, %v2018
        %v2046 = vmul.f32 %v1990, %v2018
        %v2047 = vmul.f32 %v1995, %v2018
        %v2048 = vmul.f32 %v2000, %v2018
        %v2049 = vmul.f32 %v2005, %v2018
        %v2050 = vmul.f32 %v2010, %v2018
        %v2051 = vmul.f32 %v2015, %v2018
        %v2052 = vadd.f32 %v1599, %v2020
        %v2053 = vadd.f32 %v1600, %v2021
        %v2054 = vadd.f32 %v1601, %v2022
        %v2055 = vadd.f32 %v1602, %v2023
        %v2056 = vadd.f32 %v1603, %v2024
        %v2057 = vadd.f32 %v1604, %v2025
        %v2058 = vadd.f32 %v1605, %v2026
        %v2059 = vadd.f32 %v1606, %v2027
        %v2060 = vadd.f32 %v1607, %v2028
        %v2061 = vadd.f32 %v1608, %v2029
        %v2062 = vadd.f32 %v1609, %v2030
        %v2063 = vadd.f32 %v1610, %v2031
        %v2064 = vadd.f32 %v1611, %v2032
        %v2065 = vadd.f32 %v1612, %v2033
        %v2066 = vadd.f32 %v1613, %v2034
        %v2067 = vadd.f32 %v1614, %v2035
        %v2068 = vadd.f32 %v1615, %v2036
        %v2069 = vadd.f32 %v1616, %v2037
        %v2070 = vadd.f32 %v1617, %v2038
        %v2071 = vadd.f32 %v1618, %v2039
        %v2072 = vadd.f32 %v1619, %v2040
        %v2073 = vadd.f32 %v1620, %v2041
        %v2074 = vadd.f32 %v1621, %v2042
        %v2075 = vadd.f32 %v1622, %v2043
        %v2076 = vadd.f32 %v1623, %v2044
        %v2077 = vadd.f32 %v1624, %v2045
        %v2078 = vadd.f32 %v1625, %v2046
        %v2079 = vadd.f32 %v1626, %v2047
        %v2080 = vadd.f32 %v1627, %v2048
        %v2081 = vadd.f32 %v1628, %v2049
        %v2082 = vadd.f32 %v1629, %v2050
        %v2083 = vadd.f32 %v1630, %v2051
        %s2084 = scalar_lea.vmem %s1, 4
        %v2085 = vld [vmem:[%s2084] sm:$0x1]
        %2087 = vset.pattern.permute.xlu0 0
        %2088 = vperm.xlu0 %2087, %v1631
        %v2089 = vpop.permute.xlu0 %2088
        %2092 = vset.pattern.permute.xlu0 0
        %2093 = vperm.xlu0 %2092, %v1632
        %v2094 = vpop.permute.xlu0 %2093
        %2097 = vset.pattern.permute.xlu0 0
        %2098 = vperm.xlu0 %2097, %v1633
        %v2099 = vpop.permute.xlu0 %2098
        %2102 = vset.pattern.permute.xlu0 0
        %2103 = vperm.xlu0 %2102, %v1634
        %v2104 = vpop.permute.xlu0 %2103
        %2107 = vset.pattern.permute.xlu0 0
        %2108 = vperm.xlu0 %2107, %v1635
        %v2109 = vpop.permute.xlu0 %2108
        %2112 = vset.pattern.permute.xlu0 0
        %2113 = vperm.xlu0 %2112, %v1636
        %v2114 = vpop.permute.xlu0 %2113
        %2117 = vset.pattern.permute.xlu0 0
        %2118 = vperm.xlu0 %2117, %v1637
        %v2119 = vpop.permute.xlu0 %2118
        %2122 = vset.pattern.permute.xlu0 0
        %2123 = vperm.xlu0 %2122, %v1638
        %v2124 = vpop.permute.xlu0 %2123
        %2127 = vset.pattern.permute.xlu0 0
        %2128 = vperm.xlu0 %2127, %v1639
        %v2129 = vpop.permute.xlu0 %2128
        %2132 = vset.pattern.permute.xlu0 0
        %2133 = vperm.xlu0 %2132, %v1640
        %v2134 = vpop.permute.xlu0 %2133
        %2137 = vset.pattern.permute.xlu0 0
        %2138 = vperm.xlu0 %2137, %v1641
        %v2139 = vpop.permute.xlu0 %2138
        %2142 = vset.pattern.permute.xlu0 0
        %2143 = vperm.xlu0 %2142, %v1642
        %v2144 = vpop.permute.xlu0 %2143
        %2147 = vset.pattern.permute.xlu0 0
        %2148 = vperm.xlu0 %2147, %v1643
        %v2149 = vpop.permute.xlu0 %2148
        %2152 = vset.pattern.permute.xlu0 0
        %2153 = vperm.xlu0 %2152, %v1644
        %v2154 = vpop.permute.xlu0 %2153
        %2157 = vset.pattern.permute.xlu0 0
        %2158 = vperm.xlu0 %2157, %v1645
        %v2159 = vpop.permute.xlu0 %2158
        %2162 = vset.pattern.permute.xlu0 0
        %2163 = vperm.xlu0 %2162, %v1646
        %v2164 = vpop.permute.xlu0 %2163
        %2167 = vset.pattern.permute.xlu0 0
        %2168 = vperm.xlu0 %2167, %v1647
        %v2169 = vpop.permute.xlu0 %2168
        %2172 = vset.pattern.permute.xlu0 0
        %2173 = vperm.xlu0 %2172, %v1648
        %v2174 = vpop.permute.xlu0 %2173
        %2177 = vset.pattern.permute.xlu0 0
        %2178 = vperm.xlu0 %2177, %v1649
        %v2179 = vpop.permute.xlu0 %2178
        %2182 = vset.pattern.permute.xlu0 0
        %2183 = vperm.xlu0 %2182, %v1650
        %v2184 = vpop.permute.xlu0 %2183
        %2187 = vset.pattern.permute.xlu0 0
        %2188 = vperm.xlu0 %2187, %v1651
        %v2189 = vpop.permute.xlu0 %2188
        %2192 = vset.pattern.permute.xlu0 0
        %2193 = vperm.xlu0 %2192, %v1652
        %v2194 = vpop.permute.xlu0 %2193
        %2197 = vset.pattern.permute.xlu0 0
        %2198 = vperm.xlu0 %2197, %v1653
        %v2199 = vpop.permute.xlu0 %2198
        %2202 = vset.pattern.permute.xlu0 0
        %2203 = vperm.xlu0 %2202, %v1654
        %v2204 = vpop.permute.xlu0 %2203
        %2207 = vset.pattern.permute.xlu0 0
        %2208 = vperm.xlu0 %2207, %v1655
        %v2209 = vpop.permute.xlu0 %2208
        %2212 = vset.pattern.permute.xlu0 0
        %2213 = vperm.xlu0 %2212, %v1656
        %v2214 = vpop.permute.xlu0 %2213
        %2217 = vset.pattern.permute.xlu0 0
        %2218 = vperm.xlu0 %2217, %v1657
        %v2219 = vpop.permute.xlu0 %2218
        %2222 = vset.pattern.permute.xlu0 0
        %2223 = vperm.xlu0 %2222, %v1658
        %v2224 = vpop.permute.xlu0 %2223
        %2227 = vset.pattern.permute.xlu0 0
        %2228 = vperm.xlu0 %2227, %v1659
        %v2229 = vpop.permute.xlu0 %2228
        %2232 = vset.pattern.permute.xlu0 0
        %2233 = vperm.xlu0 %2232, %v1660
        %v2234 = vpop.permute.xlu0 %2233
        %2237 = vset.pattern.permute.xlu0 0
        %2238 = vperm.xlu0 %2237, %v1661
        %v2239 = vpop.permute.xlu0 %2238
        %2242 = vset.pattern.permute.xlu0 0
        %2243 = vperm.xlu0 %2242, %v1662
        %v2244 = vpop.permute.xlu0 %2243
        %v2247 = vperm.slane %v2085, 0
        %v2249 = vmul.f32 %v2089, %v2247
        %v2250 = vmul.f32 %v2094, %v2247
        %v2251 = vmul.f32 %v2099, %v2247
        %v2252 = vmul.f32 %v2104, %v2247
        %v2253 = vmul.f32 %v2109, %v2247
        %v2254 = vmul.f32 %v2114, %v2247
        %v2255 = vmul.f32 %v2119, %v2247
        %v2256 = vmul.f32 %v2124, %v2247
        %v2257 = vmul.f32 %v2129, %v2247
        %v2258 = vmul.f32 %v2134, %v2247
        %v2259 = vmul.f32 %v2139, %v2247
        %v2260 = vmul.f32 %v2144, %v2247
        %v2261 = vmul.f32 %v2149, %v2247
        %v2262 = vmul.f32 %v2154, %v2247
        %v2263 = vmul.f32 %v2159, %v2247
        %v2264 = vmul.f32 %v2164, %v2247
        %v2265 = vmul.f32 %v2169, %v2247
        %v2266 = vmul.f32 %v2174, %v2247
        %v2267 = vmul.f32 %v2179, %v2247
        %v2268 = vmul.f32 %v2184, %v2247
        %v2269 = vmul.f32 %v2189, %v2247
        %v2270 = vmul.f32 %v2194, %v2247
        %v2271 = vmul.f32 %v2199, %v2247
        %v2272 = vmul.f32 %v2204, %v2247
        %v2273 = vmul.f32 %v2209, %v2247
        %v2274 = vmul.f32 %v2214, %v2247
        %v2275 = vmul.f32 %v2219, %v2247
        %v2276 = vmul.f32 %v2224, %v2247
        %v2277 = vmul.f32 %v2229, %v2247
        %v2278 = vmul.f32 %v2234, %v2247
        %v2279 = vmul.f32 %v2239, %v2247
        %v2280 = vmul.f32 %v2244, %v2247
        %v2281 = vadd.f32 %v2052, %v2249
        %v2282 = vadd.f32 %v2053, %v2250
        %v2283 = vadd.f32 %v2054, %v2251
        %v2284 = vadd.f32 %v2055, %v2252
        %v2285 = vadd.f32 %v2056, %v2253
        %v2286 = vadd.f32 %v2057, %v2254
        %v2287 = vadd.f32 %v2058, %v2255
        %v2288 = vadd.f32 %v2059, %v2256
        %v2289 = vadd.f32 %v2060, %v2257
        %v2290 = vadd.f32 %v2061, %v2258
        %v2291 = vadd.f32 %v2062, %v2259
        %v2292 = vadd.f32 %v2063, %v2260
        %v2293 = vadd.f32 %v2064, %v2261
        %v2294 = vadd.f32 %v2065, %v2262
        %v2295 = vadd.f32 %v2066, %v2263
        %v2296 = vadd.f32 %v2067, %v2264
        %v2297 = vadd.f32 %v2068, %v2265
        %v2298 = vadd.f32 %v2069, %v2266
        %v2299 = vadd.f32 %v2070, %v2267
        %v2300 = vadd.f32 %v2071, %v2268
        %v2301 = vadd.f32 %v2072, %v2269
        %v2302 = vadd.f32 %v2073, %v2270
        %v2303 = vadd.f32 %v2074, %v2271
        %v2304 = vadd.f32 %v2075, %v2272
        %v2305 = vadd.f32 %v2076, %v2273
        %v2306 = vadd.f32 %v2077, %v2274
        %v2307 = vadd.f32 %v2078, %v2275
        %v2308 = vadd.f32 %v2079, %v2276
        %v2309 = vadd.f32 %v2080, %v2277
        %v2310 = vadd.f32 %v2081, %v2278
        %v2311 = vadd.f32 %v2082, %v2279
        %v2312 = vadd.f32 %v2083, %v2280
        %s2313 = scalar_lea.vmem %s1, 5
        %v2314 = vld [vmem:[%s2313] sm:$0x1]
        %2316 = vset.pattern.permute.xlu0 0
        %2317 = vperm.xlu0 %2316, %v1823
        %v2318 = vpop.permute.xlu0 %2317
        %2321 = vset.pattern.permute.xlu0 0
        %2322 = vperm.xlu0 %2321, %v1824
        %v2323 = vpop.permute.xlu0 %2322
        %2326 = vset.pattern.permute.xlu0 0
        %2327 = vperm.xlu0 %2326, %v1825
        %v2328 = vpop.permute.xlu0 %2327
        %2331 = vset.pattern.permute.xlu0 0
        %2332 = vperm.xlu0 %2331, %v1826
        %v2333 = vpop.permute.xlu0 %2332
        %2336 = vset.pattern.permute.xlu0 0
        %2337 = vperm.xlu0 %2336, %v1827
        %v2338 = vpop.permute.xlu0 %2337
        %2341 = vset.pattern.permute.xlu0 0
        %2342 = vperm.xlu0 %2341, %v1828
        %v2343 = vpop.permute.xlu0 %2342
        %2346 = vset.pattern.permute.xlu0 0
        %2347 = vperm.xlu0 %2346, %v1829
        %v2348 = vpop.permute.xlu0 %2347
        %2351 = vset.pattern.permute.xlu0 0
        %2352 = vperm.xlu0 %2351, %v1830
        %v2353 = vpop.permute.xlu0 %2352
        %2356 = vset.pattern.permute.xlu0 0
        %2357 = vperm.xlu0 %2356, %v1831
        %v2358 = vpop.permute.xlu0 %2357
        %2361 = vset.pattern.permute.xlu0 0
        %2362 = vperm.xlu0 %2361, %v1832
        %v2363 = vpop.permute.xlu0 %2362
        %2366 = vset.pattern.permute.xlu0 0
        %2367 = vperm.xlu0 %2366, %v1833
        %v2368 = vpop.permute.xlu0 %2367
        %2371 = vset.pattern.permute.xlu0 0
        %2372 = vperm.xlu0 %2371, %v1834
        %v2373 = vpop.permute.xlu0 %2372
        %2376 = vset.pattern.permute.xlu0 0
        %2377 = vperm.xlu0 %2376, %v1835
        %v2378 = vpop.permute.xlu0 %2377
        %2381 = vset.pattern.permute.xlu0 0
        %2382 = vperm.xlu0 %2381, %v1836
        %v2383 = vpop.permute.xlu0 %2382
        %2386 = vset.pattern.permute.xlu0 0
        %2387 = vperm.xlu0 %2386, %v1837
        %v2388 = vpop.permute.xlu0 %2387
        %2391 = vset.pattern.permute.xlu0 0
        %2392 = vperm.xlu0 %2391, %v1838
        %v2393 = vpop.permute.xlu0 %2392
        %2396 = vset.pattern.permute.xlu0 0
        %2397 = vperm.xlu0 %2396, %v1839
        %v2398 = vpop.permute.xlu0 %2397
        %2401 = vset.pattern.permute.xlu0 0
        %2402 = vperm.xlu0 %2401, %v1840
        %v2403 = vpop.permute.xlu0 %2402
        %2406 = vset.pattern.permute.xlu0 0
        %2407 = vperm.xlu0 %2406, %v1841
        %v2408 = vpop.permute.xlu0 %2407
        %2411 = vset.pattern.permute.xlu0 0
        %2412 = vperm.xlu0 %2411, %v1842
        %v2413 = vpop.permute.xlu0 %2412
        %2416 = vset.pattern.permute.xlu0 0
        %2417 = vperm.xlu0 %2416, %v1843
        %v2418 = vpop.permute.xlu0 %2417
        %2421 = vset.pattern.permute.xlu0 0
        %2422 = vperm.xlu0 %2421, %v1844
        %v2423 = vpop.permute.xlu0 %2422
        %2426 = vset.pattern.permute.xlu0 0
        %2427 = vperm.xlu0 %2426, %v1845
        %v2428 = vpop.permute.xlu0 %2427
        %2431 = vset.pattern.permute.xlu0 0
        %2432 = vperm.xlu0 %2431, %v1846
        %v2433 = vpop.permute.xlu0 %2432
        %2436 = vset.pattern.permute.xlu0 0
        %2437 = vperm.xlu0 %2436, %v1847
        %v2438 = vpop.permute.xlu0 %2437
        %2441 = vset.pattern.permute.xlu0 0
        %2442 = vperm.xlu0 %2441, %v1848
        %v2443 = vpop.permute.xlu0 %2442
        %2446 = vset.pattern.permute.xlu0 0
        %2447 = vperm.xlu0 %2446, %v1849
        %v2448 = vpop.permute.xlu0 %2447
        %2451 = vset.pattern.permute.xlu0 0
        %2452 = vperm.xlu0 %2451, %v1850
        %v2453 = vpop.permute.xlu0 %2452
        %2456 = vset.pattern.permute.xlu0 0
        %2457 = vperm.xlu0 %2456, %v1851
        %v2458 = vpop.permute.xlu0 %2457
        %2461 = vset.pattern.permute.xlu0 0
        %2462 = vperm.xlu0 %2461, %v1852
        %v2463 = vpop.permute.xlu0 %2462
        %2466 = vset.pattern.permute.xlu0 0
        %2467 = vperm.xlu0 %2466, %v1853
        %v2468 = vpop.permute.xlu0 %2467
        %2471 = vset.pattern.permute.xlu0 0
        %2472 = vperm.xlu0 %2471, %v1854
        %v2473 = vpop.permute.xlu0 %2472
        %v2476 = vperm.slane %v2314, 0
        %v2478 = vmul.f32 %v2318, %v2476
        %v2479 = vmul.f32 %v2323, %v2476
        %v2480 = vmul.f32 %v2328, %v2476
        %v2481 = vmul.f32 %v2333, %v2476
        %v2482 = vmul.f32 %v2338, %v2476
        %v2483 = vmul.f32 %v2343, %v2476
        %v2484 = vmul.f32 %v2348, %v2476
        %v2485 = vmul.f32 %v2353, %v2476
        %v2486 = vmul.f32 %v2358, %v2476
        %v2487 = vmul.f32 %v2363, %v2476
        %v2488 = vmul.f32 %v2368, %v2476
        %v2489 = vmul.f32 %v2373, %v2476
        %v2490 = vmul.f32 %v2378, %v2476
        %v2491 = vmul.f32 %v2383, %v2476
        %v2492 = vmul.f32 %v2388, %v2476
        %v2493 = vmul.f32 %v2393, %v2476
        %v2494 = vmul.f32 %v2398, %v2476
        %v2495 = vmul.f32 %v2403, %v2476
        %v2496 = vmul.f32 %v2408, %v2476
        %v2497 = vmul.f32 %v2413, %v2476
        %v2498 = vmul.f32 %v2418, %v2476
        %v2499 = vmul.f32 %v2423, %v2476
        %v2500 = vmul.f32 %v2428, %v2476
        %v2501 = vmul.f32 %v2433, %v2476
        %v2502 = vmul.f32 %v2438, %v2476
        %v2503 = vmul.f32 %v2443, %v2476
        %v2504 = vmul.f32 %v2448, %v2476
        %v2505 = vmul.f32 %v2453, %v2476
        %v2506 = vmul.f32 %v2458, %v2476
        %v2507 = vmul.f32 %v2463, %v2476
        %v2508 = vmul.f32 %v2468, %v2476
        %v2509 = vmul.f32 %v2473, %v2476
        %v2510 = vadd.f32 %v2281, %v2478
        %v2511 = vadd.f32 %v2282, %v2479
        %v2512 = vadd.f32 %v2283, %v2480
        %v2513 = vadd.f32 %v2284, %v2481
        %v2514 = vadd.f32 %v2285, %v2482
        %v2515 = vadd.f32 %v2286, %v2483
        %v2516 = vadd.f32 %v2287, %v2484
        %v2517 = vadd.f32 %v2288, %v2485
        %v2518 = vadd.f32 %v2289, %v2486
        %v2519 = vadd.f32 %v2290, %v2487
        %v2520 = vadd.f32 %v2291, %v2488
        %v2521 = vadd.f32 %v2292, %v2489
        %v2522 = vadd.f32 %v2293, %v2490
        %v2523 = vadd.f32 %v2294, %v2491
        %v2524 = vadd.f32 %v2295, %v2492
        %v2525 = vadd.f32 %v2296, %v2493
        %v2526 = vadd.f32 %v2297, %v2494
        %v2527 = vadd.f32 %v2298, %v2495
        %v2528 = vadd.f32 %v2299, %v2496
        %v2529 = vadd.f32 %v2300, %v2497
        %v2530 = vadd.f32 %v2301, %v2498
        %v2531 = vadd.f32 %v2302, %v2499
        %v2532 = vadd.f32 %v2303, %v2500
        %v2533 = vadd.f32 %v2304, %v2501
        %v2534 = vadd.f32 %v2305, %v2502
        %v2535 = vadd.f32 %v2306, %v2503
        %v2536 = vadd.f32 %v2307, %v2504
        %v2537 = vadd.f32 %v2308, %v2505
        %v2538 = vadd.f32 %v2309, %v2506
        %v2539 = vadd.f32 %v2310, %v2507
        %v2540 = vadd.f32 %v2311, %v2508
        %v2541 = vadd.f32 %v2312, %v2509
        %v2542 = vld [vmem:[#allocation2 + $0x20] sm:$0xff]
        %v2543 = vld [vmem:[#allocation2 + $0x28] sm:$0xff]
        %v2544 = vld [vmem:[#allocation2 + $0x30] sm:$0xff]
        %v2545 = vld [vmem:[#allocation2 + $0x38] sm:$0xff]
        %v2546 = vld [vmem:[#allocation2 + $0x40] sm:$0xff]
        %v2547 = vld [vmem:[#allocation2 + $0x48] sm:$0xff]
        %v2548 = vld [vmem:[#allocation2 + $0x50] sm:$0xff]
        %v2549 = vld [vmem:[#allocation2 + $0x58] sm:$0xff]
        %v2550 = vld [vmem:[#allocation2 + $0x60] sm:$0xff]
        %v2551 = vld [vmem:[#allocation2 + $0x68] sm:$0xff]
        %v2552 = vld [vmem:[#allocation2 + $0x70] sm:$0xff]
        %v2553 = vld [vmem:[#allocation2 + $0x78] sm:$0xff]
        %v2554 = vld [vmem:[#allocation2 + $0x80] sm:$0xff]
        %v2555 = vld [vmem:[#allocation2 + $0x88] sm:$0xff]
        %v2556 = vld [vmem:[#allocation2 + $0x90] sm:$0xff]
        %v2557 = vld [vmem:[#allocation2 + $0x98] sm:$0xff]
        %v2558 = vld [vmem:[#allocation2 + $0xa0] sm:$0xff]
        %v2559 = vld [vmem:[#allocation2 + $0xa8] sm:$0xff]
        %v2560 = vld [vmem:[#allocation2 + $0xb0] sm:$0xff]
        %v2561 = vld [vmem:[#allocation2 + $0xb8] sm:$0xff]
        %v2562 = vld [vmem:[#allocation2 + $0xc0] sm:$0xff]
        %v2563 = vld [vmem:[#allocation2 + $0xc8] sm:$0xff]
        %v2564 = vld [vmem:[#allocation2 + $0xd0] sm:$0xff]
        %v2565 = vld [vmem:[#allocation2 + $0xd8] sm:$0xff]
        %v2566 = vld [vmem:[#allocation2 + $0xe0] sm:$0xff]
        %v2567 = vld [vmem:[#allocation2 + $0xe8] sm:$0xff]
        %v2568 = vld [vmem:[#allocation2 + $0xf0] sm:$0xff]
        %v2569 = vld [vmem:[#allocation2 + $0xf8] sm:$0xff]
        %v2570 = vld [vmem:[#allocation2 + $0x100] sm:$0xff]
        %v2571 = vld [vmem:[#allocation2 + $0x108] sm:$0xff]
        %v2572 = vld [vmem:[#allocation2 + $0x110] sm:$0xff]
        %v2573 = vld [vmem:[#allocation2 + $0x118] sm:$0xff]
        %v2574 = vrot.slane %v2542, 7
        %v2575 = vrot.slane %v2543, 7
        %v2576 = vrot.slane %v2544, 7
        %v2577 = vrot.slane %v2545, 7
        %v2578 = vrot.slane %v2546, 7
        %v2579 = vrot.slane %v2547, 7
        %v2580 = vrot.slane %v2548, 7
        %v2581 = vrot.slane %v2549, 7
        %v2582 = vrot.slane %v2550, 7
        %v2583 = vrot.slane %v2551, 7
        %v2584 = vrot.slane %v2552, 7
        %v2585 = vrot.slane %v2553, 7
        %v2586 = vrot.slane %v2554, 7
        %v2587 = vrot.slane %v2555, 7
        %v2588 = vrot.slane %v2556, 7
        %v2589 = vrot.slane %v2557, 7
        %v2590 = vrot.slane %v2558, 7
        %v2591 = vrot.slane %v2559, 7
        %v2592 = vrot.slane %v2560, 7
        %v2593 = vrot.slane %v2561, 7
        %v2594 = vrot.slane %v2562, 7
        %v2595 = vrot.slane %v2563, 7
        %v2596 = vrot.slane %v2564, 7
        %v2597 = vrot.slane %v2565, 7
        %v2598 = vrot.slane %v2566, 7
        %v2599 = vrot.slane %v2567, 7
        %v2600 = vrot.slane %v2568, 7
        %v2601 = vrot.slane %v2569, 7
        %v2602 = vrot.slane %v2570, 7
        %v2603 = vrot.slane %v2571, 7
        %v2604 = vrot.slane %v2572, 7
        %v2605 = vrot.slane %v2573, 7
        %v2606 = vsel %vm815, %v2604, %v2605
        %v2607 = vsel %vm815, %v2603, %v2604
        %v2608 = vsel %vm815, %v2602, %v2603
        %v2609 = vsel %vm815, %v2601, %v2602
        %v2610 = vsel %vm815, %v2600, %v2601
        %v2611 = vsel %vm815, %v2599, %v2600
        %v2612 = vsel %vm815, %v2598, %v2599
        %v2613 = vsel %vm815, %v2597, %v2598
        %v2614 = vsel %vm815, %v2596, %v2597
        %v2615 = vsel %vm815, %v2595, %v2596
        %v2616 = vsel %vm815, %v2594, %v2595
        %v2617 = vsel %vm815, %v2593, %v2594
        %v2618 = vsel %vm815, %v2592, %v2593
        %v2619 = vsel %vm815, %v2591, %v2592
        %v2620 = vsel %vm815, %v2590, %v2591
        %v2621 = vsel %vm815, %v2589, %v2590
        %v2622 = vsel %vm815, %v2588, %v2589
        %v2623 = vsel %vm815, %v2587, %v2588
        %v2624 = vsel %vm815, %v2586, %v2587
        %v2625 = vsel %vm815, %v2585, %v2586
        %v2626 = vsel %vm815, %v2584, %v2585
        %v2627 = vsel %vm815, %v2583, %v2584
        %v2628 = vsel %vm815, %v2582, %v2583
        %v2629 = vsel %vm815, %v2581, %v2582
        %v2630 = vsel %vm815, %v2580, %v2581
        %v2631 = vsel %vm815, %v2579, %v2580
        %v2632 = vsel %vm815, %v2578, %v2579
        %v2633 = vsel %vm815, %v2577, %v2578
        %v2634 = vsel %vm815, %v2576, %v2577
        %v2635 = vsel %vm815, %v2575, %v2576
        %v2636 = vsel %vm815, %v2574, %v2575
        %v2637 = vsel %vm815, %v2605, %v2574
        %v2638 = vsel %vm687, %v2637, 0.0
        %v2639 = vsel %vm688, %v2636, 0.0
        %v2640 = vsel %vm689, %v2635, 0.0
        %v2641 = vsel %vm690, %v2634, 0.0
        %v2642 = vsel %vm691, %v2633, 0.0
        %v2643 = vsel %vm692, %v2632, 0.0
        %v2644 = vsel %vm693, %v2631, 0.0
        %v2645 = vsel %vm694, %v2630, 0.0
        %v2646 = vsel %vm695, %v2629, 0.0
        %v2647 = vsel %vm696, %v2628, 0.0
        %v2648 = vsel %vm697, %v2627, 0.0
        %v2649 = vsel %vm698, %v2626, 0.0
        %v2650 = vsel %vm699, %v2625, 0.0
        %v2651 = vsel %vm700, %v2624, 0.0
        %v2652 = vsel %vm701, %v2623, 0.0
        %v2653 = vsel %vm702, %v2622, 0.0
        %v2654 = vsel %vm703, %v2621, 0.0
        %v2655 = vsel %vm704, %v2620, 0.0
        %v2656 = vsel %vm705, %v2619, 0.0
        %v2657 = vsel %vm706, %v2618, 0.0
        %v2658 = vsel %vm707, %v2617, 0.0
        %v2659 = vsel %vm708, %v2616, 0.0
        %v2660 = vsel %vm709, %v2615, 0.0
        %v2661 = vsel %vm710, %v2614, 0.0
        %v2662 = vsel %vm711, %v2613, 0.0
        %v2663 = vsel %vm712, %v2612, 0.0
        %v2664 = vsel %vm713, %v2611, 0.0
        %v2665 = vsel %vm714, %v2610, 0.0
        %v2666 = vsel %vm715, %v2609, 0.0
        %v2667 = vsel %vm716, %v2608, 0.0
        %v2668 = vsel %vm717, %v2607, 0.0
        %v2669 = vsel %vm718, %v2606, 0.0
        %v2670 = vrot.slane %v2542, 1
        %v2671 = vrot.slane %v2543, 1
        %v2672 = vrot.slane %v2544, 1
        %v2673 = vrot.slane %v2545, 1
        %v2674 = vrot.slane %v2546, 1
        %v2675 = vrot.slane %v2547, 1
        %v2676 = vrot.slane %v2548, 1
        %v2677 = vrot.slane %v2549, 1
        %v2678 = vrot.slane %v2550, 1
        %v2679 = vrot.slane %v2551, 1
        %v2680 = vrot.slane %v2552, 1
        %v2681 = vrot.slane %v2553, 1
        %v2682 = vrot.slane %v2554, 1
        %v2683 = vrot.slane %v2555, 1
        %v2684 = vrot.slane %v2556, 1
        %v2685 = vrot.slane %v2557, 1
        %v2686 = vrot.slane %v2558, 1
        %v2687 = vrot.slane %v2559, 1
        %v2688 = vrot.slane %v2560, 1
        %v2689 = vrot.slane %v2561, 1
        %v2690 = vrot.slane %v2562, 1
        %v2691 = vrot.slane %v2563, 1
        %v2692 = vrot.slane %v2564, 1
        %v2693 = vrot.slane %v2565, 1
        %v2694 = vrot.slane %v2566, 1
        %v2695 = vrot.slane %v2567, 1
        %v2696 = vrot.slane %v2568, 1
        %v2697 = vrot.slane %v2569, 1
        %v2698 = vrot.slane %v2570, 1
        %v2699 = vrot.slane %v2571, 1
        %v2700 = vrot.slane %v2572, 1
        %v2701 = vrot.slane %v2573, 1
        %v2702 = vsel %vm912, %v2700, %v2701
        %v2703 = vsel %vm912, %v2699, %v2700
        %v2704 = vsel %vm912, %v2698, %v2699
        %v2705 = vsel %vm912, %v2697, %v2698
        %v2706 = vsel %vm912, %v2696, %v2697
        %v2707 = vsel %vm912, %v2695, %v2696
        %v2708 = vsel %vm912, %v2694, %v2695
        %v2709 = vsel %vm912, %v2693, %v2694
        %v2710 = vsel %vm912, %v2692, %v2693
        %v2711 = vsel %vm912, %v2691, %v2692
        %v2712 = vsel %vm912, %v2690, %v2691
        %v2713 = vsel %vm912, %v2689, %v2690
        %v2714 = vsel %vm912, %v2688, %v2689
        %v2715 = vsel %vm912, %v2687, %v2688
        %v2716 = vsel %vm912, %v2686, %v2687
        %v2717 = vsel %vm912, %v2685, %v2686
        %v2718 = vsel %vm912, %v2684, %v2685
        %v2719 = vsel %vm912, %v2683, %v2684
        %v2720 = vsel %vm912, %v2682, %v2683
        %v2721 = vsel %vm912, %v2681, %v2682
        %v2722 = vsel %vm912, %v2680, %v2681
        %v2723 = vsel %vm912, %v2679, %v2680
        %v2724 = vsel %vm912, %v2678, %v2679
        %v2725 = vsel %vm912, %v2677, %v2678
        %v2726 = vsel %vm912, %v2676, %v2677
        %v2727 = vsel %vm912, %v2675, %v2676
        %v2728 = vsel %vm912, %v2674, %v2675
        %v2729 = vsel %vm912, %v2673, %v2674
        %v2730 = vsel %vm912, %v2672, %v2673
        %v2731 = vsel %vm912, %v2671, %v2672
        %v2732 = vsel %vm912, %v2670, %v2671
        %v2733 = vsel %vm912, %v2701, %v2670
        %v2734 = vsel %vm719, %v2732, 0.0
        %v2735 = vsel %vm720, %v2731, 0.0
        %v2736 = vsel %vm721, %v2730, 0.0
        %v2737 = vsel %vm722, %v2729, 0.0
        %v2738 = vsel %vm723, %v2728, 0.0
        %v2739 = vsel %vm724, %v2727, 0.0
        %v2740 = vsel %vm725, %v2726, 0.0
        %v2741 = vsel %vm726, %v2725, 0.0
        %v2742 = vsel %vm727, %v2724, 0.0
        %v2743 = vsel %vm728, %v2723, 0.0
        %v2744 = vsel %vm729, %v2722, 0.0
        %v2745 = vsel %vm730, %v2721, 0.0
        %v2746 = vsel %vm731, %v2720, 0.0
        %v2747 = vsel %vm732, %v2719, 0.0
        %v2748 = vsel %vm733, %v2718, 0.0
        %v2749 = vsel %vm734, %v2717, 0.0
        %v2750 = vsel %vm735, %v2716, 0.0
        %v2751 = vsel %vm736, %v2715, 0.0
        %v2752 = vsel %vm737, %v2714, 0.0
        %v2753 = vsel %vm738, %v2713, 0.0
        %v2754 = vsel %vm739, %v2712, 0.0
        %v2755 = vsel %vm740, %v2711, 0.0
        %v2756 = vsel %vm741, %v2710, 0.0
        %v2757 = vsel %vm742, %v2709, 0.0
        %v2758 = vsel %vm743, %v2708, 0.0
        %v2759 = vsel %vm744, %v2707, 0.0
        %v2760 = vsel %vm745, %v2706, 0.0
        %v2761 = vsel %vm746, %v2705, 0.0
        %v2762 = vsel %vm747, %v2704, 0.0
        %v2763 = vsel %vm748, %v2703, 0.0
        %v2764 = vsel %vm749, %v2702, 0.0
        %v2765 = vsel %vm750, %v2733, 0.0
        %s2766 = scalar_lea.vmem %s1, 6
        %v2767 = vld [vmem:[%s2766] sm:$0x1]
        %2769 = vset.pattern.permute.xlu0 0
        %2770 = vperm.xlu0 %2769, %v2638
        %v2771 = vpop.permute.xlu0 %2770
        %2774 = vset.pattern.permute.xlu0 0
        %2775 = vperm.xlu0 %2774, %v2639
        %v2776 = vpop.permute.xlu0 %2775
        %2779 = vset.pattern.permute.xlu0 0
        %2780 = vperm.xlu0 %2779, %v2640
        %v2781 = vpop.permute.xlu0 %2780
        %2784 = vset.pattern.permute.xlu0 0
        %2785 = vperm.xlu0 %2784, %v2641
        %v2786 = vpop.permute.xlu0 %2785
        %2789 = vset.pattern.permute.xlu0 0
        %2790 = vperm.xlu0 %2789, %v2642
        %v2791 = vpop.permute.xlu0 %2790
        %2794 = vset.pattern.permute.xlu0 0
        %2795 = vperm.xlu0 %2794, %v2643
        %v2796 = vpop.permute.xlu0 %2795
        %2799 = vset.pattern.permute.xlu0 0
        %2800 = vperm.xlu0 %2799, %v2644
        %v2801 = vpop.permute.xlu0 %2800
        %2804 = vset.pattern.permute.xlu0 0
        %2805 = vperm.xlu0 %2804, %v2645
        %v2806 = vpop.permute.xlu0 %2805
        %2809 = vset.pattern.permute.xlu0 0
        %2810 = vperm.xlu0 %2809, %v2646
        %v2811 = vpop.permute.xlu0 %2810
        %2814 = vset.pattern.permute.xlu0 0
        %2815 = vperm.xlu0 %2814, %v2647
        %v2816 = vpop.permute.xlu0 %2815
        %2819 = vset.pattern.permute.xlu0 0
        %2820 = vperm.xlu0 %2819, %v2648
        %v2821 = vpop.permute.xlu0 %2820
        %2824 = vset.pattern.permute.xlu0 0
        %2825 = vperm.xlu0 %2824, %v2649
        %v2826 = vpop.permute.xlu0 %2825
        %2829 = vset.pattern.permute.xlu0 0
        %2830 = vperm.xlu0 %2829, %v2650
        %v2831 = vpop.permute.xlu0 %2830
        %2834 = vset.pattern.permute.xlu0 0
        %2835 = vperm.xlu0 %2834, %v2651
        %v2836 = vpop.permute.xlu0 %2835
        %2839 = vset.pattern.permute.xlu0 0
        %2840 = vperm.xlu0 %2839, %v2652
        %v2841 = vpop.permute.xlu0 %2840
        %2844 = vset.pattern.permute.xlu0 0
        %2845 = vperm.xlu0 %2844, %v2653
        %v2846 = vpop.permute.xlu0 %2845
        %2849 = vset.pattern.permute.xlu0 0
        %2850 = vperm.xlu0 %2849, %v2654
        %v2851 = vpop.permute.xlu0 %2850
        %2854 = vset.pattern.permute.xlu0 0
        %2855 = vperm.xlu0 %2854, %v2655
        %v2856 = vpop.permute.xlu0 %2855
        %2859 = vset.pattern.permute.xlu0 0
        %2860 = vperm.xlu0 %2859, %v2656
        %v2861 = vpop.permute.xlu0 %2860
        %2864 = vset.pattern.permute.xlu0 0
        %2865 = vperm.xlu0 %2864, %v2657
        %v2866 = vpop.permute.xlu0 %2865
        %2869 = vset.pattern.permute.xlu0 0
        %2870 = vperm.xlu0 %2869, %v2658
        %v2871 = vpop.permute.xlu0 %2870
        %2874 = vset.pattern.permute.xlu0 0
        %2875 = vperm.xlu0 %2874, %v2659
        %v2876 = vpop.permute.xlu0 %2875
        %2879 = vset.pattern.permute.xlu0 0
        %2880 = vperm.xlu0 %2879, %v2660
        %v2881 = vpop.permute.xlu0 %2880
        %2884 = vset.pattern.permute.xlu0 0
        %2885 = vperm.xlu0 %2884, %v2661
        %v2886 = vpop.permute.xlu0 %2885
        %2889 = vset.pattern.permute.xlu0 0
        %2890 = vperm.xlu0 %2889, %v2662
        %v2891 = vpop.permute.xlu0 %2890
        %2894 = vset.pattern.permute.xlu0 0
        %2895 = vperm.xlu0 %2894, %v2663
        %v2896 = vpop.permute.xlu0 %2895
        %2899 = vset.pattern.permute.xlu0 0
        %2900 = vperm.xlu0 %2899, %v2664
        %v2901 = vpop.permute.xlu0 %2900
        %2904 = vset.pattern.permute.xlu0 0
        %2905 = vperm.xlu0 %2904, %v2665
        %v2906 = vpop.permute.xlu0 %2905
        %2909 = vset.pattern.permute.xlu0 0
        %2910 = vperm.xlu0 %2909, %v2666
        %v2911 = vpop.permute.xlu0 %2910
        %2914 = vset.pattern.permute.xlu0 0
        %2915 = vperm.xlu0 %2914, %v2667
        %v2916 = vpop.permute.xlu0 %2915
        %2919 = vset.pattern.permute.xlu0 0
        %2920 = vperm.xlu0 %2919, %v2668
        %v2921 = vpop.permute.xlu0 %2920
        %2924 = vset.pattern.permute.xlu0 0
        %2925 = vperm.xlu0 %2924, %v2669
        %v2926 = vpop.permute.xlu0 %2925
        %v2929 = vperm.slane %v2767, 0
        %v2931 = vmul.f32 %v2771, %v2929
        %v2932 = vmul.f32 %v2776, %v2929
        %v2933 = vmul.f32 %v2781, %v2929
        %v2934 = vmul.f32 %v2786, %v2929
        %v2935 = vmul.f32 %v2791, %v2929
        %v2936 = vmul.f32 %v2796, %v2929
        %v2937 = vmul.f32 %v2801, %v2929
        %v2938 = vmul.f32 %v2806, %v2929
        %v2939 = vmul.f32 %v2811, %v2929
        %v2940 = vmul.f32 %v2816, %v2929
        %v2941 = vmul.f32 %v2821, %v2929
        %v2942 = vmul.f32 %v2826, %v2929
        %v2943 = vmul.f32 %v2831, %v2929
        %v2944 = vmul.f32 %v2836, %v2929
        %v2945 = vmul.f32 %v2841, %v2929
        %v2946 = vmul.f32 %v2846, %v2929
        %v2947 = vmul.f32 %v2851, %v2929
        %v2948 = vmul.f32 %v2856, %v2929
        %v2949 = vmul.f32 %v2861, %v2929
        %v2950 = vmul.f32 %v2866, %v2929
        %v2951 = vmul.f32 %v2871, %v2929
        %v2952 = vmul.f32 %v2876, %v2929
        %v2953 = vmul.f32 %v2881, %v2929
        %v2954 = vmul.f32 %v2886, %v2929
        %v2955 = vmul.f32 %v2891, %v2929
        %v2956 = vmul.f32 %v2896, %v2929
        %v2957 = vmul.f32 %v2901, %v2929
        %v2958 = vmul.f32 %v2906, %v2929
        %v2959 = vmul.f32 %v2911, %v2929
        %v2960 = vmul.f32 %v2916, %v2929
        %v2961 = vmul.f32 %v2921, %v2929
        %v2962 = vmul.f32 %v2926, %v2929
        %v2963 = vadd.f32 %v2510, %v2931
        %v2964 = vadd.f32 %v2511, %v2932
        %v2965 = vadd.f32 %v2512, %v2933
        %v2966 = vadd.f32 %v2513, %v2934
        %v2967 = vadd.f32 %v2514, %v2935
        %v2968 = vadd.f32 %v2515, %v2936
        %v2969 = vadd.f32 %v2516, %v2937
        %v2970 = vadd.f32 %v2517, %v2938
        %v2971 = vadd.f32 %v2518, %v2939
        %v2972 = vadd.f32 %v2519, %v2940
        %v2973 = vadd.f32 %v2520, %v2941
        %v2974 = vadd.f32 %v2521, %v2942
        %v2975 = vadd.f32 %v2522, %v2943
        %v2976 = vadd.f32 %v2523, %v2944
        %v2977 = vadd.f32 %v2524, %v2945
        %v2978 = vadd.f32 %v2525, %v2946
        %v2979 = vadd.f32 %v2526, %v2947
        %v2980 = vadd.f32 %v2527, %v2948
        %v2981 = vadd.f32 %v2528, %v2949
        %v2982 = vadd.f32 %v2529, %v2950
        %v2983 = vadd.f32 %v2530, %v2951
        %v2984 = vadd.f32 %v2531, %v2952
        %v2985 = vadd.f32 %v2532, %v2953
        %v2986 = vadd.f32 %v2533, %v2954
        %v2987 = vadd.f32 %v2534, %v2955
        %v2988 = vadd.f32 %v2535, %v2956
        %v2989 = vadd.f32 %v2536, %v2957
        %v2990 = vadd.f32 %v2537, %v2958
        %v2991 = vadd.f32 %v2538, %v2959
        %v2992 = vadd.f32 %v2539, %v2960
        %v2993 = vadd.f32 %v2540, %v2961
        %v2994 = vadd.f32 %v2541, %v2962
        %s2995 = scalar_lea.vmem %s1, 7
        %v2996 = vld [vmem:[%s2995] sm:$0x1]
        %2998 = vset.pattern.permute.xlu0 0
        %2999 = vperm.xlu0 %2998, %v2542
        %v3000 = vpop.permute.xlu0 %2999
        %3003 = vset.pattern.permute.xlu0 0
        %3004 = vperm.xlu0 %3003, %v2543
        %v3005 = vpop.permute.xlu0 %3004
        %3008 = vset.pattern.permute.xlu0 0
        %3009 = vperm.xlu0 %3008, %v2544
        %v3010 = vpop.permute.xlu0 %3009
        %3013 = vset.pattern.permute.xlu0 0
        %3014 = vperm.xlu0 %3013, %v2545
        %v3015 = vpop.permute.xlu0 %3014
        %3018 = vset.pattern.permute.xlu0 0
        %3019 = vperm.xlu0 %3018, %v2546
        %v3020 = vpop.permute.xlu0 %3019
        %3023 = vset.pattern.permute.xlu0 0
        %3024 = vperm.xlu0 %3023, %v2547
        %v3025 = vpop.permute.xlu0 %3024
        %3028 = vset.pattern.permute.xlu0 0
        %3029 = vperm.xlu0 %3028, %v2548
        %v3030 = vpop.permute.xlu0 %3029
        %3033 = vset.pattern.permute.xlu0 0
        %3034 = vperm.xlu0 %3033, %v2549
        %v3035 = vpop.permute.xlu0 %3034
        %3038 = vset.pattern.permute.xlu0 0
        %3039 = vperm.xlu0 %3038, %v2550
        %v3040 = vpop.permute.xlu0 %3039
        %3043 = vset.pattern.permute.xlu0 0
        %3044 = vperm.xlu0 %3043, %v2551
        %v3045 = vpop.permute.xlu0 %3044
        %3048 = vset.pattern.permute.xlu0 0
        %3049 = vperm.xlu0 %3048, %v2552
        %v3050 = vpop.permute.xlu0 %3049
        %3053 = vset.pattern.permute.xlu0 0
        %3054 = vperm.xlu0 %3053, %v2553
        %v3055 = vpop.permute.xlu0 %3054
        %3058 = vset.pattern.permute.xlu0 0
        %3059 = vperm.xlu0 %3058, %v2554
        %v3060 = vpop.permute.xlu0 %3059
        %3063 = vset.pattern.permute.xlu0 0
        %3064 = vperm.xlu0 %3063, %v2555
        %v3065 = vpop.permute.xlu0 %3064
        %3068 = vset.pattern.permute.xlu0 0
        %3069 = vperm.xlu0 %3068, %v2556
        %v3070 = vpop.permute.xlu0 %3069
        %3073 = vset.pattern.permute.xlu0 0
        %3074 = vperm.xlu0 %3073, %v2557
        %v3075 = vpop.permute.xlu0 %3074
        %3078 = vset.pattern.permute.xlu0 0
        %3079 = vperm.xlu0 %3078, %v2558
        %v3080 = vpop.permute.xlu0 %3079
        %3083 = vset.pattern.permute.xlu0 0
        %3084 = vperm.xlu0 %3083, %v2559
        %v3085 = vpop.permute.xlu0 %3084
        %3088 = vset.pattern.permute.xlu0 0
        %3089 = vperm.xlu0 %3088, %v2560
        %v3090 = vpop.permute.xlu0 %3089
        %3093 = vset.pattern.permute.xlu0 0
        %3094 = vperm.xlu0 %3093, %v2561
        %v3095 = vpop.permute.xlu0 %3094
        %3098 = vset.pattern.permute.xlu0 0
        %3099 = vperm.xlu0 %3098, %v2562
        %v3100 = vpop.permute.xlu0 %3099
        %3103 = vset.pattern.permute.xlu0 0
        %3104 = vperm.xlu0 %3103, %v2563
        %v3105 = vpop.permute.xlu0 %3104
        %3108 = vset.pattern.permute.xlu0 0
        %3109 = vperm.xlu0 %3108, %v2564
        %v3110 = vpop.permute.xlu0 %3109
        %3113 = vset.pattern.permute.xlu0 0
        %3114 = vperm.xlu0 %3113, %v2565
        %v3115 = vpop.permute.xlu0 %3114
        %3118 = vset.pattern.permute.xlu0 0
        %3119 = vperm.xlu0 %3118, %v2566
        %v3120 = vpop.permute.xlu0 %3119
        %3123 = vset.pattern.permute.xlu0 0
        %3124 = vperm.xlu0 %3123, %v2567
        %v3125 = vpop.permute.xlu0 %3124
        %3128 = vset.pattern.permute.xlu0 0
        %3129 = vperm.xlu0 %3128, %v2568
        %v3130 = vpop.permute.xlu0 %3129
        %3133 = vset.pattern.permute.xlu0 0
        %3134 = vperm.xlu0 %3133, %v2569
        %v3135 = vpop.permute.xlu0 %3134
        %3138 = vset.pattern.permute.xlu0 0
        %3139 = vperm.xlu0 %3138, %v2570
        %v3140 = vpop.permute.xlu0 %3139
        %3143 = vset.pattern.permute.xlu0 0
        %3144 = vperm.xlu0 %3143, %v2571
        %v3145 = vpop.permute.xlu0 %3144
        %3148 = vset.pattern.permute.xlu0 0
        %3149 = vperm.xlu0 %3148, %v2572
        %v3150 = vpop.permute.xlu0 %3149
        %3153 = vset.pattern.permute.xlu0 0
        %3154 = vperm.xlu0 %3153, %v2573
        %v3155 = vpop.permute.xlu0 %3154
        %v3158 = vperm.slane %v2996, 0
        %v3160 = vmul.f32 %v3000, %v3158
        %v3161 = vmul.f32 %v3005, %v3158
        %v3162 = vmul.f32 %v3010, %v3158
        %v3163 = vmul.f32 %v3015, %v3158
        %v3164 = vmul.f32 %v3020, %v3158
        %v3165 = vmul.f32 %v3025, %v3158
        %v3166 = vmul.f32 %v3030, %v3158
        %v3167 = vmul.f32 %v3035, %v3158
        %v3168 = vmul.f32 %v3040, %v3158
        %v3169 = vmul.f32 %v3045, %v3158
        %v3170 = vmul.f32 %v3050, %v3158
        %v3171 = vmul.f32 %v3055, %v3158
        %v3172 = vmul.f32 %v3060, %v3158
        %v3173 = vmul.f32 %v3065, %v3158
        %v3174 = vmul.f32 %v3070, %v3158
        %v3175 = vmul.f32 %v3075, %v3158
        %v3176 = vmul.f32 %v3080, %v3158
        %v3177 = vmul.f32 %v3085, %v3158
        %v3178 = vmul.f32 %v3090, %v3158
        %v3179 = vmul.f32 %v3095, %v3158
        %v3180 = vmul.f32 %v3100, %v3158
        %v3181 = vmul.f32 %v3105, %v3158
        %v3182 = vmul.f32 %v3110, %v3158
        %v3183 = vmul.f32 %v3115, %v3158
        %v3184 = vmul.f32 %v3120, %v3158
        %v3185 = vmul.f32 %v3125, %v3158
        %v3186 = vmul.f32 %v3130, %v3158
        %v3187 = vmul.f32 %v3135, %v3158
        %v3188 = vmul.f32 %v3140, %v3158
        %v3189 = vmul.f32 %v3145, %v3158
        %v3190 = vmul.f32 %v3150, %v3158
        %v3191 = vmul.f32 %v3155, %v3158
        %v3192 = vadd.f32 %v2963, %v3160
        %v3193 = vadd.f32 %v2964, %v3161
        %v3194 = vadd.f32 %v2965, %v3162
        %v3195 = vadd.f32 %v2966, %v3163
        %v3196 = vadd.f32 %v2967, %v3164
        %v3197 = vadd.f32 %v2968, %v3165
        %v3198 = vadd.f32 %v2969, %v3166
        %v3199 = vadd.f32 %v2970, %v3167
        %v3200 = vadd.f32 %v2971, %v3168
        %v3201 = vadd.f32 %v2972, %v3169
        %v3202 = vadd.f32 %v2973, %v3170
        %v3203 = vadd.f32 %v2974, %v3171
        %v3204 = vadd.f32 %v2975, %v3172
        %v3205 = vadd.f32 %v2976, %v3173
        %v3206 = vadd.f32 %v2977, %v3174
        %v3207 = vadd.f32 %v2978, %v3175
        %v3208 = vadd.f32 %v2979, %v3176
        %v3209 = vadd.f32 %v2980, %v3177
        %v3210 = vadd.f32 %v2981, %v3178
        %v3211 = vadd.f32 %v2982, %v3179
        %v3212 = vadd.f32 %v2983, %v3180
        %v3213 = vadd.f32 %v2984, %v3181
        %v3214 = vadd.f32 %v2985, %v3182
        %v3215 = vadd.f32 %v2986, %v3183
        %v3216 = vadd.f32 %v2987, %v3184
        %v3217 = vadd.f32 %v2988, %v3185
        %v3218 = vadd.f32 %v2989, %v3186
        %v3219 = vadd.f32 %v2990, %v3187
        %v3220 = vadd.f32 %v2991, %v3188
        %v3221 = vadd.f32 %v2992, %v3189
        %v3222 = vadd.f32 %v2993, %v3190
        %v3223 = vadd.f32 %v2994, %v3191
        %s3224 = scalar_lea.vmem %s1, 8
        %v3225 = vld [vmem:[%s3224] sm:$0x1]
        %3227 = vset.pattern.permute.xlu0 0
        %3228 = vperm.xlu0 %3227, %v2734
        %v3229 = vpop.permute.xlu0 %3228
        %3232 = vset.pattern.permute.xlu0 0
        %3233 = vperm.xlu0 %3232, %v2735
        %v3234 = vpop.permute.xlu0 %3233
        %3237 = vset.pattern.permute.xlu0 0
        %3238 = vperm.xlu0 %3237, %v2736
        %v3239 = vpop.permute.xlu0 %3238
        %3242 = vset.pattern.permute.xlu0 0
        %3243 = vperm.xlu0 %3242, %v2737
        %v3244 = vpop.permute.xlu0 %3243
        %3247 = vset.pattern.permute.xlu0 0
        %3248 = vperm.xlu0 %3247, %v2738
        %v3249 = vpop.permute.xlu0 %3248
        %3252 = vset.pattern.permute.xlu0 0
        %3253 = vperm.xlu0 %3252, %v2739
        %v3254 = vpop.permute.xlu0 %3253
        %3257 = vset.pattern.permute.xlu0 0
        %3258 = vperm.xlu0 %3257, %v2740
        %v3259 = vpop.permute.xlu0 %3258
        %3262 = vset.pattern.permute.xlu0 0
        %3263 = vperm.xlu0 %3262, %v2741
        %v3264 = vpop.permute.xlu0 %3263
        %3267 = vset.pattern.permute.xlu0 0
        %3268 = vperm.xlu0 %3267, %v2742
        %v3269 = vpop.permute.xlu0 %3268
        %3272 = vset.pattern.permute.xlu0 0
        %3273 = vperm.xlu0 %3272, %v2743
        %v3274 = vpop.permute.xlu0 %3273
        %3277 = vset.pattern.permute.xlu0 0
        %3278 = vperm.xlu0 %3277, %v2744
        %v3279 = vpop.permute.xlu0 %3278
        %3282 = vset.pattern.permute.xlu0 0
        %3283 = vperm.xlu0 %3282, %v2745
        %v3284 = vpop.permute.xlu0 %3283
        %3287 = vset.pattern.permute.xlu0 0
        %3288 = vperm.xlu0 %3287, %v2746
        %v3289 = vpop.permute.xlu0 %3288
        %3292 = vset.pattern.permute.xlu0 0
        %3293 = vperm.xlu0 %3292, %v2747
        %v3294 = vpop.permute.xlu0 %3293
        %3297 = vset.pattern.permute.xlu0 0
        %3298 = vperm.xlu0 %3297, %v2748
        %v3299 = vpop.permute.xlu0 %3298
        %3302 = vset.pattern.permute.xlu0 0
        %3303 = vperm.xlu0 %3302, %v2749
        %v3304 = vpop.permute.xlu0 %3303
        %3307 = vset.pattern.permute.xlu0 0
        %3308 = vperm.xlu0 %3307, %v2750
        %v3309 = vpop.permute.xlu0 %3308
        %3312 = vset.pattern.permute.xlu0 0
        %3313 = vperm.xlu0 %3312, %v2751
        %v3314 = vpop.permute.xlu0 %3313
        %3317 = vset.pattern.permute.xlu0 0
        %3318 = vperm.xlu0 %3317, %v2752
        %v3319 = vpop.permute.xlu0 %3318
        %3322 = vset.pattern.permute.xlu0 0
        %3323 = vperm.xlu0 %3322, %v2753
        %v3324 = vpop.permute.xlu0 %3323
        %3327 = vset.pattern.permute.xlu0 0
        %3328 = vperm.xlu0 %3327, %v2754
        %v3329 = vpop.permute.xlu0 %3328
        %3332 = vset.pattern.permute.xlu0 0
        %3333 = vperm.xlu0 %3332, %v2755
        %v3334 = vpop.permute.xlu0 %3333
        %3337 = vset.pattern.permute.xlu0 0
        %3338 = vperm.xlu0 %3337, %v2756
        %v3339 = vpop.permute.xlu0 %3338
        %3342 = vset.pattern.permute.xlu0 0
        %3343 = vperm.xlu0 %3342, %v2757
        %v3344 = vpop.permute.xlu0 %3343
        %3347 = vset.pattern.permute.xlu0 0
        %3348 = vperm.xlu0 %3347, %v2758
        %v3349 = vpop.permute.xlu0 %3348
        %3352 = vset.pattern.permute.xlu0 0
        %3353 = vperm.xlu0 %3352, %v2759
        %v3354 = vpop.permute.xlu0 %3353
        %3357 = vset.pattern.permute.xlu0 0
        %3358 = vperm.xlu0 %3357, %v2760
        %v3359 = vpop.permute.xlu0 %3358
        %3362 = vset.pattern.permute.xlu0 0
        %3363 = vperm.xlu0 %3362, %v2761
        %v3364 = vpop.permute.xlu0 %3363
        %3367 = vset.pattern.permute.xlu0 0
        %3368 = vperm.xlu0 %3367, %v2762
        %v3369 = vpop.permute.xlu0 %3368
        %3372 = vset.pattern.permute.xlu0 0
        %3373 = vperm.xlu0 %3372, %v2763
        %v3374 = vpop.permute.xlu0 %3373
        %3377 = vset.pattern.permute.xlu0 0
        %3378 = vperm.xlu0 %3377, %v2764
        %v3379 = vpop.permute.xlu0 %3378
        %3382 = vset.pattern.permute.xlu0 0
        %3383 = vperm.xlu0 %3382, %v2765
        %v3384 = vpop.permute.xlu0 %3383
        %v3387 = vperm.slane %v3225, 0
        %v3389 = vmul.f32 %v3229, %v3387
        %v3390 = vmul.f32 %v3234, %v3387
        %v3391 = vmul.f32 %v3239, %v3387
        %v3392 = vmul.f32 %v3244, %v3387
        %v3393 = vmul.f32 %v3249, %v3387
        %v3394 = vmul.f32 %v3254, %v3387
        %v3395 = vmul.f32 %v3259, %v3387
        %v3396 = vmul.f32 %v3264, %v3387
        %v3397 = vmul.f32 %v3269, %v3387
        %v3398 = vmul.f32 %v3274, %v3387
        %v3399 = vmul.f32 %v3279, %v3387
        %v3400 = vmul.f32 %v3284, %v3387
        %v3401 = vmul.f32 %v3289, %v3387
        %v3402 = vmul.f32 %v3294, %v3387
        %v3403 = vmul.f32 %v3299, %v3387
        %v3404 = vmul.f32 %v3304, %v3387
        %v3405 = vmul.f32 %v3309, %v3387
        %v3406 = vmul.f32 %v3314, %v3387
        %v3407 = vmul.f32 %v3319, %v3387
        %v3408 = vmul.f32 %v3324, %v3387
        %v3409 = vmul.f32 %v3329, %v3387
        %v3410 = vmul.f32 %v3334, %v3387
        %v3411 = vmul.f32 %v3339, %v3387
        %v3412 = vmul.f32 %v3344, %v3387
        %v3413 = vmul.f32 %v3349, %v3387
        %v3414 = vmul.f32 %v3354, %v3387
        %v3415 = vmul.f32 %v3359, %v3387
        %v3416 = vmul.f32 %v3364, %v3387
        %v3417 = vmul.f32 %v3369, %v3387
        %v3418 = vmul.f32 %v3374, %v3387
        %v3419 = vmul.f32 %v3379, %v3387
        %v3420 = vmul.f32 %v3384, %v3387
        %v3421 = vadd.f32 %v3192, %v3389
        %v3422 = vadd.f32 %v3193, %v3390
        %v3423 = vadd.f32 %v3194, %v3391
        %v3424 = vadd.f32 %v3195, %v3392
        %v3425 = vadd.f32 %v3196, %v3393
        %v3426 = vadd.f32 %v3197, %v3394
        %v3427 = vadd.f32 %v3198, %v3395
        %v3428 = vadd.f32 %v3199, %v3396
        %v3429 = vadd.f32 %v3200, %v3397
        %v3430 = vadd.f32 %v3201, %v3398
        %v3431 = vadd.f32 %v3202, %v3399
        %v3432 = vadd.f32 %v3203, %v3400
        %v3433 = vadd.f32 %v3204, %v3401
        %v3434 = vadd.f32 %v3205, %v3402
        %v3435 = vadd.f32 %v3206, %v3403
        %v3436 = vadd.f32 %v3207, %v3404
        %v3437 = vadd.f32 %v3208, %v3405
        %v3438 = vadd.f32 %v3209, %v3406
        %v3439 = vadd.f32 %v3210, %v3407
        %v3440 = vadd.f32 %v3211, %v3408
        %v3441 = vadd.f32 %v3212, %v3409
        %v3442 = vadd.f32 %v3213, %v3410
        %v3443 = vadd.f32 %v3214, %v3411
        %v3444 = vadd.f32 %v3215, %v3412
        %v3445 = vadd.f32 %v3216, %v3413
        %v3446 = vadd.f32 %v3217, %v3414
        %v3447 = vadd.f32 %v3218, %v3415
        %v3448 = vadd.f32 %v3219, %v3416
        %v3449 = vadd.f32 %v3220, %v3417
        %v3450 = vadd.f32 %v3221, %v3418
        %v3451 = vadd.f32 %v3222, %v3419
        %v3452 = vadd.f32 %v3223, %v3420
        %v3453 = vld [vmem:[%s2] sm:$0x1]
        %v3455 = vperm.slane %v3453, 0
        %v3457 = vadd.f32 %v3421, %v3455
        %v3458 = vadd.f32 %v3422, %v3455
        %v3459 = vadd.f32 %v3423, %v3455
        %v3460 = vadd.f32 %v3424, %v3455
        %v3461 = vadd.f32 %v3425, %v3455
        %v3462 = vadd.f32 %v3426, %v3455
        %v3463 = vadd.f32 %v3427, %v3455
        %v3464 = vadd.f32 %v3428, %v3455
        %v3465 = vadd.f32 %v3429, %v3455
        %v3466 = vadd.f32 %v3430, %v3455
        %v3467 = vadd.f32 %v3431, %v3455
        %v3468 = vadd.f32 %v3432, %v3455
        %v3469 = vadd.f32 %v3433, %v3455
        %v3470 = vadd.f32 %v3434, %v3455
        %v3471 = vadd.f32 %v3435, %v3455
        %v3472 = vadd.f32 %v3436, %v3455
        %v3473 = vadd.f32 %v3437, %v3455
        %v3474 = vadd.f32 %v3438, %v3455
        %v3475 = vadd.f32 %v3439, %v3455
        %v3476 = vadd.f32 %v3440, %v3455
        %v3477 = vadd.f32 %v3441, %v3455
        %v3478 = vadd.f32 %v3442, %v3455
        %v3479 = vadd.f32 %v3443, %v3455
        %v3480 = vadd.f32 %v3444, %v3455
        %v3481 = vadd.f32 %v3445, %v3455
        %v3482 = vadd.f32 %v3446, %v3455
        %v3483 = vadd.f32 %v3447, %v3455
        %v3484 = vadd.f32 %v3448, %v3455
        %v3485 = vadd.f32 %v3449, %v3455
        %v3486 = vadd.f32 %v3450, %v3455
        %v3487 = vadd.f32 %v3451, %v3455
        %v3488 = vadd.f32 %v3452, %v3455
        %vm3489 = vcmp.ge.f32.partialorder %v3457, 0.0
        %vm3490 = vcmp.ge.f32.partialorder %v3458, 0.0
        %vm3491 = vcmp.ge.f32.partialorder %v3459, 0.0
        %vm3492 = vcmp.ge.f32.partialorder %v3460, 0.0
        %vm3493 = vcmp.ge.f32.partialorder %v3461, 0.0
        %vm3494 = vcmp.ge.f32.partialorder %v3462, 0.0
        %vm3495 = vcmp.ge.f32.partialorder %v3463, 0.0
        %vm3496 = vcmp.ge.f32.partialorder %v3464, 0.0
        %vm3497 = vcmp.ge.f32.partialorder %v3465, 0.0
        %vm3498 = vcmp.ge.f32.partialorder %v3466, 0.0
        %vm3499 = vcmp.ge.f32.partialorder %v3467, 0.0
        %vm3500 = vcmp.ge.f32.partialorder %v3468, 0.0
        %vm3501 = vcmp.ge.f32.partialorder %v3469, 0.0
        %vm3502 = vcmp.ge.f32.partialorder %v3470, 0.0
        %vm3503 = vcmp.ge.f32.partialorder %v3471, 0.0
        %vm3504 = vcmp.ge.f32.partialorder %v3472, 0.0
        %vm3505 = vcmp.ge.f32.partialorder %v3473, 0.0
        %vm3506 = vcmp.ge.f32.partialorder %v3474, 0.0
        %vm3507 = vcmp.ge.f32.partialorder %v3475, 0.0
        %vm3508 = vcmp.ge.f32.partialorder %v3476, 0.0
        %vm3509 = vcmp.ge.f32.partialorder %v3477, 0.0
        %vm3510 = vcmp.ge.f32.partialorder %v3478, 0.0
        %vm3511 = vcmp.ge.f32.partialorder %v3479, 0.0
        %vm3512 = vcmp.ge.f32.partialorder %v3480, 0.0
        %vm3513 = vcmp.ge.f32.partialorder %v3481, 0.0
        %vm3514 = vcmp.ge.f32.partialorder %v3482, 0.0
        %vm3515 = vcmp.ge.f32.partialorder %v3483, 0.0
        %vm3516 = vcmp.ge.f32.partialorder %v3484, 0.0
        %vm3517 = vcmp.ge.f32.partialorder %v3485, 0.0
        %vm3518 = vcmp.ge.f32.partialorder %v3486, 0.0
        %vm3519 = vcmp.ge.f32.partialorder %v3487, 0.0
        %vm3520 = vcmp.ge.f32.partialorder %v3488, 0.0
        %v3521 = vmul.f32 %v3457, 0.01
        %v3522 = vmul.f32 %v3458, 0.01
        %v3523 = vmul.f32 %v3459, 0.01
        %v3524 = vmul.f32 %v3460, 0.01
        %v3525 = vmul.f32 %v3461, 0.01
        %v3526 = vmul.f32 %v3462, 0.01
        %v3527 = vmul.f32 %v3463, 0.01
        %v3528 = vmul.f32 %v3464, 0.01
        %v3529 = vmul.f32 %v3465, 0.01
        %v3530 = vmul.f32 %v3466, 0.01
        %v3531 = vmul.f32 %v3467, 0.01
        %v3532 = vmul.f32 %v3468, 0.01
        %v3533 = vmul.f32 %v3469, 0.01
        %v3534 = vmul.f32 %v3470, 0.01
        %v3535 = vmul.f32 %v3471, 0.01
        %v3536 = vmul.f32 %v3472, 0.01
        %v3537 = vmul.f32 %v3473, 0.01
        %v3538 = vmul.f32 %v3474, 0.01
        %v3539 = vmul.f32 %v3475, 0.01
        %v3540 = vmul.f32 %v3476, 0.01
        %v3541 = vmul.f32 %v3477, 0.01
        %v3542 = vmul.f32 %v3478, 0.01
        %v3543 = vmul.f32 %v3479, 0.01
        %v3544 = vmul.f32 %v3480, 0.01
        %v3545 = vmul.f32 %v3481, 0.01
        %v3546 = vmul.f32 %v3482, 0.01
        %v3547 = vmul.f32 %v3483, 0.01
        %v3548 = vmul.f32 %v3484, 0.01
        %v3549 = vmul.f32 %v3485, 0.01
        %v3550 = vmul.f32 %v3486, 0.01
        %v3551 = vmul.f32 %v3487, 0.01
        %v3552 = vmul.f32 %v3488, 0.01
        %v3553 = vsel %vm3489, %v3457, %v3521
        %v3554 = vsel %vm3490, %v3458, %v3522
        %v3555 = vsel %vm3491, %v3459, %v3523
        %v3556 = vsel %vm3492, %v3460, %v3524
        %v3557 = vsel %vm3493, %v3461, %v3525
        %v3558 = vsel %vm3494, %v3462, %v3526
        %v3559 = vsel %vm3495, %v3463, %v3527
        %v3560 = vsel %vm3496, %v3464, %v3528
        %v3561 = vsel %vm3497, %v3465, %v3529
        %v3562 = vsel %vm3498, %v3466, %v3530
        %v3563 = vsel %vm3499, %v3467, %v3531
        %v3564 = vsel %vm3500, %v3468, %v3532
        %v3565 = vsel %vm3501, %v3469, %v3533
        %v3566 = vsel %vm3502, %v3470, %v3534
        %v3567 = vsel %vm3503, %v3471, %v3535
        %v3568 = vsel %vm3504, %v3472, %v3536
        %v3569 = vsel %vm3505, %v3473, %v3537
        %v3570 = vsel %vm3506, %v3474, %v3538
        %v3571 = vsel %vm3507, %v3475, %v3539
        %v3572 = vsel %vm3508, %v3476, %v3540
        %v3573 = vsel %vm3509, %v3477, %v3541
        %v3574 = vsel %vm3510, %v3478, %v3542
        %v3575 = vsel %vm3511, %v3479, %v3543
        %v3576 = vsel %vm3512, %v3480, %v3544
        %v3577 = vsel %vm3513, %v3481, %v3545
        %v3578 = vsel %vm3514, %v3482, %v3546
        %v3579 = vsel %vm3515, %v3483, %v3547
        %v3580 = vsel %vm3516, %v3484, %v3548
        %v3581 = vsel %vm3517, %v3485, %v3549
        %v3582 = vsel %vm3518, %v3486, %v3550
        %v3583 = vsel %vm3519, %v3487, %v3551
        %v3584 = vsel %vm3520, %v3488, %v3552
        %3585 = vst [vmem:[#allocation3 + $0x10] sm:$0xff] %v3553
        %3586 = vst [vmem:[#allocation3 + $0x18] sm:$0xff] %v3554
        %3587 = vst [vmem:[#allocation3 + $0x20] sm:$0xff] %v3555
        %3588 = vst [vmem:[#allocation3 + $0x28] sm:$0xff] %v3556
        %3589 = vst [vmem:[#allocation3 + $0x30] sm:$0xff] %v3557
        %3590 = vst [vmem:[#allocation3 + $0x38] sm:$0xff] %v3558
        %3591 = vst [vmem:[#allocation3 + $0x40] sm:$0xff] %v3559
        %3592 = vst [vmem:[#allocation3 + $0x48] sm:$0xff] %v3560
        %3593 = vst [vmem:[#allocation3 + $0x50] sm:$0xff] %v3561
        %3594 = vst [vmem:[#allocation3 + $0x58] sm:$0xff] %v3562
        %3595 = vst [vmem:[#allocation3 + $0x60] sm:$0xff] %v3563
        %3596 = vst [vmem:[#allocation3 + $0x68] sm:$0xff] %v3564
        %3597 = vst [vmem:[#allocation3 + $0x70] sm:$0xff] %v3565
        %3598 = vst [vmem:[#allocation3 + $0x78] sm:$0xff] %v3566
        %3599 = vst [vmem:[#allocation3 + $0x80] sm:$0xff] %v3567
        %3600 = vst [vmem:[#allocation3 + $0x88] sm:$0xff] %v3568
        %3601 = vst [vmem:[#allocation3 + $0x90] sm:$0xff] %v3569
        %3602 = vst [vmem:[#allocation3 + $0x98] sm:$0xff] %v3570
        %3603 = vst [vmem:[#allocation3 + $0xa0] sm:$0xff] %v3571
        %3604 = vst [vmem:[#allocation3 + $0xa8] sm:$0xff] %v3572
        %3605 = vst [vmem:[#allocation3 + $0xb0] sm:$0xff] %v3573
        %3606 = vst [vmem:[#allocation3 + $0xb8] sm:$0xff] %v3574
        %3607 = vst [vmem:[#allocation3 + $0xc0] sm:$0xff] %v3575
        %3608 = vst [vmem:[#allocation3 + $0xc8] sm:$0xff] %v3576
        %3609 = vst [vmem:[#allocation3 + $0xd0] sm:$0xff] %v3577
        %3610 = vst [vmem:[#allocation3 + $0xd8] sm:$0xff] %v3578
        %3611 = vst [vmem:[#allocation3 + $0xe0] sm:$0xff] %v3579
        %3612 = vst [vmem:[#allocation3 + $0xe8] sm:$0xff] %v3580
        %3613 = vst [vmem:[#allocation3 + $0xf0] sm:$0xff] %v3581
        %3614 = vst [vmem:[#allocation3 + $0xf8] sm:$0xff] %v3582
        %3615 = vst [vmem:[#allocation3 + $0x100] sm:$0xff] %v3583
        %3616 = vst [vmem:[#allocation3 + $0x108] sm:$0xff] %v3584
        %v3617 = vld [vmem:[#allocation3] sm:$0xff]
        %v3618 = vld [vmem:[#allocation3 + $0x8] sm:$0xff]
        %v3619 = vld [vmem:[#allocation3 + $0x10] sm:$0xff]
        %v3620 = vld [vmem:[#allocation3 + $0x18] sm:$0xff]
        %v3621 = vld [vmem:[#allocation3 + $0x20] sm:$0xff]
        %v3622 = vld [vmem:[#allocation3 + $0x28] sm:$0xff]
        %v3623 = vld [vmem:[#allocation3 + $0x30] sm:$0xff]
        %v3624 = vld [vmem:[#allocation3 + $0x38] sm:$0xff]
        %v3625 = vld [vmem:[#allocation3 + $0x40] sm:$0xff]
        %v3626 = vld [vmem:[#allocation3 + $0x48] sm:$0xff]
        %v3627 = vld [vmem:[#allocation3 + $0x50] sm:$0xff]
        %v3628 = vld [vmem:[#allocation3 + $0x58] sm:$0xff]
        %v3629 = vld [vmem:[#allocation3 + $0x60] sm:$0xff]
        %v3630 = vld [vmem:[#allocation3 + $0x68] sm:$0xff]
        %v3631 = vld [vmem:[#allocation3 + $0x70] sm:$0xff]
        %v3632 = vld [vmem:[#allocation3 + $0x78] sm:$0xff]
        %v3633 = vld [vmem:[#allocation3 + $0x80] sm:$0xff]
        %v3634 = vld [vmem:[#allocation3 + $0x88] sm:$0xff]
        %v3635 = vld [vmem:[#allocation3 + $0x90] sm:$0xff]
        %v3636 = vld [vmem:[#allocation3 + $0x98] sm:$0xff]
        %v3637 = vld [vmem:[#allocation3 + $0xa0] sm:$0xff]
        %v3638 = vld [vmem:[#allocation3 + $0xa8] sm:$0xff]
        %v3639 = vld [vmem:[#allocation3 + $0xb0] sm:$0xff]
        %v3640 = vld [vmem:[#allocation3 + $0xb8] sm:$0xff]
        %v3641 = vld [vmem:[#allocation3 + $0xc0] sm:$0xff]
        %v3642 = vld [vmem:[#allocation3 + $0xc8] sm:$0xff]
        %v3643 = vld [vmem:[#allocation3 + $0xd0] sm:$0xff]
        %v3644 = vld [vmem:[#allocation3 + $0xd8] sm:$0xff]
        %v3645 = vld [vmem:[#allocation3 + $0xe0] sm:$0xff]
        %v3646 = vld [vmem:[#allocation3 + $0xe8] sm:$0xff]
        %v3647 = vld [vmem:[#allocation3 + $0xf0] sm:$0xff]
        %v3648 = vld [vmem:[#allocation3 + $0xf8] sm:$0xff]
        %v3649 = vrot.slane %v3617, 7
        %v3650 = vrot.slane %v3618, 7
        %v3651 = vrot.slane %v3619, 7
        %v3652 = vrot.slane %v3620, 7
        %v3653 = vrot.slane %v3621, 7
        %v3654 = vrot.slane %v3622, 7
        %v3655 = vrot.slane %v3623, 7
        %v3656 = vrot.slane %v3624, 7
        %v3657 = vrot.slane %v3625, 7
        %v3658 = vrot.slane %v3626, 7
        %v3659 = vrot.slane %v3627, 7
        %v3660 = vrot.slane %v3628, 7
        %v3661 = vrot.slane %v3629, 7
        %v3662 = vrot.slane %v3630, 7
        %v3663 = vrot.slane %v3631, 7
        %v3664 = vrot.slane %v3632, 7
        %v3665 = vrot.slane %v3633, 7
        %v3666 = vrot.slane %v3634, 7
        %v3667 = vrot.slane %v3635, 7
        %v3668 = vrot.slane %v3636, 7
        %v3669 = vrot.slane %v3637, 7
        %v3670 = vrot.slane %v3638, 7
        %v3671 = vrot.slane %v3639, 7
        %v3672 = vrot.slane %v3640, 7
        %v3673 = vrot.slane %v3641, 7
        %v3674 = vrot.slane %v3642, 7
        %v3675 = vrot.slane %v3643, 7
        %v3676 = vrot.slane %v3644, 7
        %v3677 = vrot.slane %v3645, 7
        %v3678 = vrot.slane %v3646, 7
        %v3679 = vrot.slane %v3647, 7
        %v3680 = vrot.slane %v3648, 7
        %v3681 = vsel %vm815, %v3679, %v3680
        %v3682 = vsel %vm815, %v3678, %v3679
        %v3683 = vsel %vm815, %v3677, %v3678
        %v3684 = vsel %vm815, %v3676, %v3677
        %v3685 = vsel %vm815, %v3675, %v3676
        %v3686 = vsel %vm815, %v3674, %v3675
        %v3687 = vsel %vm815, %v3673, %v3674
        %v3688 = vsel %vm815, %v3672, %v3673
        %v3689 = vsel %vm815, %v3671, %v3672
        %v3690 = vsel %vm815, %v3670, %v3671
        %v3691 = vsel %vm815, %v3669, %v3670
        %v3692 = vsel %vm815, %v3668, %v3669
        %v3693 = vsel %vm815, %v3667, %v3668
        %v3694 = vsel %vm815, %v3666, %v3667
        %v3695 = vsel %vm815, %v3665, %v3666
        %v3696 = vsel %vm815, %v3664, %v3665
        %v3697 = vsel %vm815, %v3663, %v3664
        %v3698 = vsel %vm815, %v3662, %v3663
        %v3699 = vsel %vm815, %v3661, %v3662
        %v3700 = vsel %vm815, %v3660, %v3661
        %v3701 = vsel %vm815, %v3659, %v3660
        %v3702 = vsel %vm815, %v3658, %v3659
        %v3703 = vsel %vm815, %v3657, %v3658
        %v3704 = vsel %vm815, %v3656, %v3657
        %v3705 = vsel %vm815, %v3655, %v3656
        %v3706 = vsel %vm815, %v3654, %v3655
        %v3707 = vsel %vm815, %v3653, %v3654
        %v3708 = vsel %vm815, %v3652, %v3653
        %v3709 = vsel %vm815, %v3651, %v3652
        %v3710 = vsel %vm815, %v3650, %v3651
        %v3711 = vsel %vm815, %v3649, %v3650
        %v3712 = vsel %vm815, %v3680, %v3649
        %v3713 = vsel %vm687, 1, 0
        %v3714 = vsel %vm688, 1, 0
        %v3715 = vsel %vm689, 1, 0
        %v3716 = vsel %vm690, 1, 0
        %v3717 = vsel %vm691, 1, 0
        %v3718 = vsel %vm692, 1, 0
        %v3719 = vsel %vm693, 1, 0
        %v3720 = vsel %vm694, 1, 0
        %v3721 = vsel %vm695, 1, 0
        %v3722 = vsel %vm696, 1, 0
        %v3723 = vsel %vm697, 1, 0
        %v3724 = vsel %vm698, 1, 0
        %v3725 = vsel %vm699, 1, 0
        %v3726 = vsel %vm700, 1, 0
        %v3727 = vsel %vm701, 1, 0
        %v3728 = vsel %vm702, 1, 0
        %v3729 = vsel %vm703, 1, 0
        %v3730 = vsel %vm704, 1, 0
        %v3731 = vsel %vm705, 1, 0
        %v3732 = vsel %vm706, 1, 0
        %v3733 = vsel %vm707, 1, 0
        %v3734 = vsel %vm708, 1, 0
        %v3735 = vsel %vm709, 1, 0
        %v3736 = vsel %vm710, 1, 0
        %v3737 = vsel %vm711, 1, 0
        %v3738 = vsel %vm712, 1, 0
        %v3739 = vsel %vm713, 1, 0
        %v3740 = vsel %vm714, 1, 0
        %v3741 = vsel %vm715, 1, 0
        %v3742 = vsel %vm716, 1, 0
        %v3743 = vsel %vm717, 1, 0
        %v3744 = vsel %vm718, 1, 0
        %vm3745 = vcmp.eq.s32.totalorder %v3713, 1
        %vm3746 = vcmp.eq.s32.totalorder %v3714, 1
        %vm3747 = vcmp.eq.s32.totalorder %v3715, 1
        %vm3748 = vcmp.eq.s32.totalorder %v3716, 1
        %vm3749 = vcmp.eq.s32.totalorder %v3717, 1
        %vm3750 = vcmp.eq.s32.totalorder %v3718, 1
        %vm3751 = vcmp.eq.s32.totalorder %v3719, 1
        %vm3752 = vcmp.eq.s32.totalorder %v3720, 1
        %vm3753 = vcmp.eq.s32.totalorder %v3721, 1
        %vm3754 = vcmp.eq.s32.totalorder %v3722, 1
        %vm3755 = vcmp.eq.s32.totalorder %v3723, 1
        %vm3756 = vcmp.eq.s32.totalorder %v3724, 1
        %vm3757 = vcmp.eq.s32.totalorder %v3725, 1
        %vm3758 = vcmp.eq.s32.totalorder %v3726, 1
        %vm3759 = vcmp.eq.s32.totalorder %v3727, 1
        %vm3760 = vcmp.eq.s32.totalorder %v3728, 1
        %vm3761 = vcmp.eq.s32.totalorder %v3729, 1
        %vm3762 = vcmp.eq.s32.totalorder %v3730, 1
        %vm3763 = vcmp.eq.s32.totalorder %v3731, 1
        %vm3764 = vcmp.eq.s32.totalorder %v3732, 1
        %vm3765 = vcmp.eq.s32.totalorder %v3733, 1
        %vm3766 = vcmp.eq.s32.totalorder %v3734, 1
        %vm3767 = vcmp.eq.s32.totalorder %v3735, 1
        %vm3768 = vcmp.eq.s32.totalorder %v3736, 1
        %vm3769 = vcmp.eq.s32.totalorder %v3737, 1
        %vm3770 = vcmp.eq.s32.totalorder %v3738, 1
        %vm3771 = vcmp.eq.s32.totalorder %v3739, 1
        %vm3772 = vcmp.eq.s32.totalorder %v3740, 1
        %vm3773 = vcmp.eq.s32.totalorder %v3741, 1
        %vm3774 = vcmp.eq.s32.totalorder %v3742, 1
        %vm3775 = vcmp.eq.s32.totalorder %v3743, 1
        %vm3776 = vcmp.eq.s32.totalorder %v3744, 1
        %v3777 = vsel %vm3745, %v3712, 0.0
        %v3778 = vsel %vm3746, %v3711, 0.0
        %v3779 = vsel %vm3747, %v3710, 0.0
        %v3780 = vsel %vm3748, %v3709, 0.0
        %v3781 = vsel %vm3749, %v3708, 0.0
        %v3782 = vsel %vm3750, %v3707, 0.0
        %v3783 = vsel %vm3751, %v3706, 0.0
        %v3784 = vsel %vm3752, %v3705, 0.0
        %v3785 = vsel %vm3753, %v3704, 0.0
        %v3786 = vsel %vm3754, %v3703, 0.0
        %v3787 = vsel %vm3755, %v3702, 0.0
        %v3788 = vsel %vm3756, %v3701, 0.0
        %v3789 = vsel %vm3757, %v3700, 0.0
        %v3790 = vsel %vm3758, %v3699, 0.0
        %v3791 = vsel %vm3759, %v3698, 0.0
        %v3792 = vsel %vm3760, %v3697, 0.0
        %v3793 = vsel %vm3761, %v3696, 0.0
        %v3794 = vsel %vm3762, %v3695, 0.0
        %v3795 = vsel %vm3763, %v3694, 0.0
        %v3796 = vsel %vm3764, %v3693, 0.0
        %v3797 = vsel %vm3765, %v3692, 0.0
        %v3798 = vsel %vm3766, %v3691, 0.0
        %v3799 = vsel %vm3767, %v3690, 0.0
        %v3800 = vsel %vm3768, %v3689, 0.0
        %v3801 = vsel %vm3769, %v3688, 0.0
        %v3802 = vsel %vm3770, %v3687, 0.0
        %v3803 = vsel %vm3771, %v3686, 0.0
        %v3804 = vsel %vm3772, %v3685, 0.0
        %v3805 = vsel %vm3773, %v3684, 0.0
        %v3806 = vsel %vm3774, %v3683, 0.0
        %v3807 = vsel %vm3775, %v3682, 0.0
        %v3808 = vsel %vm3776, %v3681, 0.0
        %v3809 = vrot.slane %v3617, 1
        %v3810 = vrot.slane %v3618, 1
        %v3811 = vrot.slane %v3619, 1
        %v3812 = vrot.slane %v3620, 1
        %v3813 = vrot.slane %v3621, 1
        %v3814 = vrot.slane %v3622, 1
        %v3815 = vrot.slane %v3623, 1
        %v3816 = vrot.slane %v3624, 1
        %v3817 = vrot.slane %v3625, 1
        %v3818 = vrot.slane %v3626, 1
        %v3819 = vrot.slane %v3627, 1
        %v3820 = vrot.slane %v3628, 1
        %v3821 = vrot.slane %v3629, 1
        %v3822 = vrot.slane %v3630, 1
        %v3823 = vrot.slane %v3631, 1
        %v3824 = vrot.slane %v3632, 1
        %v3825 = vrot.slane %v3633, 1
        %v3826 = vrot.slane %v3634, 1
        %v3827 = vrot.slane %v3635, 1
        %v3828 = vrot.slane %v3636, 1
        %v3829 = vrot.slane %v3637, 1
        %v3830 = vrot.slane %v3638, 1
        %v3831 = vrot.slane %v3639, 1
        %v3832 = vrot.slane %v3640, 1
        %v3833 = vrot.slane %v3641, 1
        %v3834 = vrot.slane %v3642, 1
        %v3835 = vrot.slane %v3643, 1
        %v3836 = vrot.slane %v3644, 1
        %v3837 = vrot.slane %v3645, 1
        %v3838 = vrot.slane %v3646, 1
        %v3839 = vrot.slane %v3647, 1
        %v3840 = vrot.slane %v3648, 1
        %v3841 = vsel %vm912, %v3839, %v3840
        %v3842 = vsel %vm912, %v3838, %v3839
        %v3843 = vsel %vm912, %v3837, %v3838
        %v3844 = vsel %vm912, %v3836, %v3837
        %v3845 = vsel %vm912, %v3835, %v3836
        %v3846 = vsel %vm912, %v3834, %v3835
        %v3847 = vsel %vm912, %v3833, %v3834
        %v3848 = vsel %vm912, %v3832, %v3833
        %v3849 = vsel %vm912, %v3831, %v3832
        %v3850 = vsel %vm912, %v3830, %v3831
        %v3851 = vsel %vm912, %v3829, %v3830
        %v3852 = vsel %vm912, %v3828, %v3829
        %v3853 = vsel %vm912, %v3827, %v3828
        %v3854 = vsel %vm912, %v3826, %v3827
        %v3855 = vsel %vm912, %v3825, %v3826
        %v3856 = vsel %vm912, %v3824, %v3825
        %v3857 = vsel %vm912, %v3823, %v3824
        %v3858 = vsel %vm912, %v3822, %v3823
        %v3859 = vsel %vm912, %v3821, %v3822
        %v3860 = vsel %vm912, %v3820, %v3821
        %v3861 = vsel %vm912, %v3819, %v3820
        %v3862 = vsel %vm912, %v3818, %v3819
        %v3863 = vsel %vm912, %v3817, %v3818
        %v3864 = vsel %vm912, %v3816, %v3817
        %v3865 = vsel %vm912, %v3815, %v3816
        %v3866 = vsel %vm912, %v3814, %v3815
        %v3867 = vsel %vm912, %v3813, %v3814
        %v3868 = vsel %vm912, %v3812, %v3813
        %v3869 = vsel %vm912, %v3811, %v3812
        %v3870 = vsel %vm912, %v3810, %v3811
        %v3871 = vsel %vm912, %v3809, %v3810
        %v3872 = vsel %vm912, %v3840, %v3809
        %v3873 = vsel %vm719, 1, 0
        %v3874 = vsel %vm720, 1, 0
        %v3875 = vsel %vm721, 1, 0
        %v3876 = vsel %vm722, 1, 0
        %v3877 = vsel %vm723, 1, 0
        %v3878 = vsel %vm724, 1, 0
        %v3879 = vsel %vm725, 1, 0
        %v3880 = vsel %vm726, 1, 0
        %v3881 = vsel %vm727, 1, 0
        %v3882 = vsel %vm728, 1, 0
        %v3883 = vsel %vm729, 1, 0
        %v3884 = vsel %vm730, 1, 0
        %v3885 = vsel %vm731, 1, 0
        %v3886 = vsel %vm732, 1, 0
        %v3887 = vsel %vm733, 1, 0
        %v3888 = vsel %vm734, 1, 0
        %v3889 = vsel %vm735, 1, 0
        %v3890 = vsel %vm736, 1, 0
        %v3891 = vsel %vm737, 1, 0
        %v3892 = vsel %vm738, 1, 0
        %v3893 = vsel %vm739, 1, 0
        %v3894 = vsel %vm740, 1, 0
        %v3895 = vsel %vm741, 1, 0
        %v3896 = vsel %vm742, 1, 0
        %v3897 = vsel %vm743, 1, 0
        %v3898 = vsel %vm744, 1, 0
        %v3899 = vsel %vm745, 1, 0
        %v3900 = vsel %vm746, 1, 0
        %v3901 = vsel %vm747, 1, 0
        %v3902 = vsel %vm748, 1, 0
        %v3903 = vsel %vm749, 1, 0
        %v3904 = vsel %vm750, 1, 0
        %vm3905 = vcmp.eq.s32.totalorder %v3873, 1
        %vm3906 = vcmp.eq.s32.totalorder %v3874, 1
        %vm3907 = vcmp.eq.s32.totalorder %v3875, 1
        %vm3908 = vcmp.eq.s32.totalorder %v3876, 1
        %vm3909 = vcmp.eq.s32.totalorder %v3877, 1
        %vm3910 = vcmp.eq.s32.totalorder %v3878, 1
        %vm3911 = vcmp.eq.s32.totalorder %v3879, 1
        %vm3912 = vcmp.eq.s32.totalorder %v3880, 1
        %vm3913 = vcmp.eq.s32.totalorder %v3881, 1
        %vm3914 = vcmp.eq.s32.totalorder %v3882, 1
        %vm3915 = vcmp.eq.s32.totalorder %v3883, 1
        %vm3916 = vcmp.eq.s32.totalorder %v3884, 1
        %vm3917 = vcmp.eq.s32.totalorder %v3885, 1
        %vm3918 = vcmp.eq.s32.totalorder %v3886, 1
        %vm3919 = vcmp.eq.s32.totalorder %v3887, 1
        %vm3920 = vcmp.eq.s32.totalorder %v3888, 1
        %vm3921 = vcmp.eq.s32.totalorder %v3889, 1
        %vm3922 = vcmp.eq.s32.totalorder %v3890, 1
        %vm3923 = vcmp.eq.s32.totalorder %v3891, 1
        %vm3924 = vcmp.eq.s32.totalorder %v3892, 1
        %vm3925 = vcmp.eq.s32.totalorder %v3893, 1
        %vm3926 = vcmp.eq.s32.totalorder %v3894, 1
        %vm3927 = vcmp.eq.s32.totalorder %v3895, 1
        %vm3928 = vcmp.eq.s32.totalorder %v3896, 1
        %vm3929 = vcmp.eq.s32.totalorder %v3897, 1
        %vm3930 = vcmp.eq.s32.totalorder %v3898, 1
        %vm3931 = vcmp.eq.s32.totalorder %v3899, 1
        %vm3932 = vcmp.eq.s32.totalorder %v3900, 1
        %vm3933 = vcmp.eq.s32.totalorder %v3901, 1
        %vm3934 = vcmp.eq.s32.totalorder %v3902, 1
        %vm3935 = vcmp.eq.s32.totalorder %v3903, 1
        %vm3936 = vcmp.eq.s32.totalorder %v3904, 1
        %v3937 = vsel %vm3905, %v3871, 0.0
        %v3938 = vsel %vm3906, %v3870, 0.0
        %v3939 = vsel %vm3907, %v3869, 0.0
        %v3940 = vsel %vm3908, %v3868, 0.0
        %v3941 = vsel %vm3909, %v3867, 0.0
        %v3942 = vsel %vm3910, %v3866, 0.0
        %v3943 = vsel %vm3911, %v3865, 0.0
        %v3944 = vsel %vm3912, %v3864, 0.0
        %v3945 = vsel %vm3913, %v3863, 0.0
        %v3946 = vsel %vm3914, %v3862, 0.0
        %v3947 = vsel %vm3915, %v3861, 0.0
        %v3948 = vsel %vm3916, %v3860, 0.0
        %v3949 = vsel %vm3917, %v3859, 0.0
        %v3950 = vsel %vm3918, %v3858, 0.0
        %v3951 = vsel %vm3919, %v3857, 0.0
        %v3952 = vsel %vm3920, %v3856, 0.0
        %v3953 = vsel %vm3921, %v3855, 0.0
        %v3954 = vsel %vm3922, %v3854, 0.0
        %v3955 = vsel %vm3923, %v3853, 0.0
        %v3956 = vsel %vm3924, %v3852, 0.0
        %v3957 = vsel %vm3925, %v3851, 0.0
        %v3958 = vsel %vm3926, %v3850, 0.0
        %v3959 = vsel %vm3927, %v3849, 0.0
        %v3960 = vsel %vm3928, %v3848, 0.0
        %v3961 = vsel %vm3929, %v3847, 0.0
        %v3962 = vsel %vm3930, %v3846, 0.0
        %v3963 = vsel %vm3931, %v3845, 0.0
        %v3964 = vsel %vm3932, %v3844, 0.0
        %v3965 = vsel %vm3933, %v3843, 0.0
        %v3966 = vsel %vm3934, %v3842, 0.0
        %v3967 = vsel %vm3935, %v3841, 0.0
        %v3968 = vsel %vm3936, %v3872, 0.0
        %v3969 = vld [vmem:[%s3] sm:$0xff]
        %v3970 = vld [vmem:[%s3 + $0x8] sm:$0xff]
        %v3971 = vld [vmem:[%s3 + $0x10] sm:$0xff]
        %v3972 = vld [vmem:[%s3 + $0x18] sm:$0xff]
        %v3973 = vld [vmem:[%s3 + $0x20] sm:$0xff]
        %v3974 = vld [vmem:[%s3 + $0x28] sm:$0xff]
        %v3975 = vld [vmem:[%s3 + $0x30] sm:$0xff]
        %v3976 = vld [vmem:[%s3 + $0x38] sm:$0xff]
        %v3977 = vld [vmem:[%s3 + $0x40] sm:$0xff]
        %v3978 = vld [vmem:[%s3 + $0x48] sm:$0xff]
        %v3979 = vld [vmem:[%s3 + $0x50] sm:$0xff]
        %v3980 = vld [vmem:[%s3 + $0x58] sm:$0xff]
        %v3981 = vld [vmem:[%s3 + $0x60] sm:$0xff]
        %v3982 = vld [vmem:[%s3 + $0x68] sm:$0xff]
        %v3983 = vld [vmem:[%s3 + $0x70] sm:$0xff]
        %v3984 = vld [vmem:[%s3 + $0x78] sm:$0xff]
        %s3985 = scalar_lea.vmem %s3, 128
        %v3986 = vld [vmem:[%s3985] sm:$0xff]
        %v3987 = vld [vmem:[%s3985 + $0x8] sm:$0xff]
        %v3988 = vld [vmem:[%s3985 + $0x10] sm:$0xff]
        %v3989 = vld [vmem:[%s3985 + $0x18] sm:$0xff]
        %v3990 = vld [vmem:[%s3985 + $0x20] sm:$0xff]
        %v3991 = vld [vmem:[%s3985 + $0x28] sm:$0xff]
        %v3992 = vld [vmem:[%s3985 + $0x30] sm:$0xff]
        %v3993 = vld [vmem:[%s3985 + $0x38] sm:$0xff]
        %v3994 = vld [vmem:[%s3985 + $0x40] sm:$0xff]
        %v3995 = vld [vmem:[%s3985 + $0x48] sm:$0xff]
        %v3996 = vld [vmem:[%s3985 + $0x50] sm:$0xff]
        %v3997 = vld [vmem:[%s3985 + $0x58] sm:$0xff]
        %v3998 = vld [vmem:[%s3985 + $0x60] sm:$0xff]
        %v3999 = vld [vmem:[%s3985 + $0x68] sm:$0xff]
        %v4000 = vld [vmem:[%s3985 + $0x70] sm:$0xff]
        %v4001 = vld [vmem:[%s3985 + $0x78] sm:$0xff]
        %4002 = vmatpush.msra.mxu0 %v4001
        %4003 = vmatpush.msra.mxu0 %v4000
        %4004 = vmatpush.msra.mxu0 %v3999
        %4005 = vmatpush.msra.mxu0 %v3998
        %4006 = vmatpush.msra.mxu0 %v3997
        %4007 = vmatpush.msra.mxu0 %v3996
        %4008 = vmatpush.msra.mxu0 %v3995
        %4009 = vmatpush.msra.mxu0 %v3994
        %4010 = vmatpush.msra.mxu0 %v3993
        %4011 = vmatpush.msra.mxu0 %v3992
        %4012 = vmatpush.msra.mxu0 %v3991
        %4013 = vmatpush.msra.mxu0 %v3990
        %4014 = vmatpush.msra.mxu0 %v3989
        %4015 = vmatpush.msra.mxu0 %v3988
        %4016 = vmatpush.msra.mxu0 %v3987
        %4017 = vmatpush.msra.mxu0 %v3986
        %4018 = vmatmul.f32.gmra.mxu0 %v3617
        %v4019 = vpop.f32.mrf.mxu0
        %v4020 = vadd.f32 0.0, %v4019
        %4021 = vmatmul.f32.gmra.mxu0 %v3618
        %v4022 = vpop.f32.mrf.mxu0
        %v4023 = vadd.f32 0.0, %v4022
        %4024 = vmatmul.f32.gmra.mxu0 %v3619
        %v4025 = vpop.f32.mrf.mxu0
        %v4026 = vadd.f32 0.0, %v4025
        %4027 = vmatmul.f32.gmra.mxu0 %v3620
        %v4028 = vpop.f32.mrf.mxu0
        %v4029 = vadd.f32 0.0, %v4028
        %4030 = vmatmul.f32.gmra.mxu0 %v3621
        %v4031 = vpop.f32.mrf.mxu0
        %v4032 = vadd.f32 0.0, %v4031
        %4033 = vmatmul.f32.gmra.mxu0 %v3622
        %v4034 = vpop.f32.mrf.mxu0
        %v4035 = vadd.f32 0.0, %v4034
        %4036 = vmatmul.f32.gmra.mxu0 %v3623
        %v4037 = vpop.f32.mrf.mxu0
        %v4038 = vadd.f32 0.0, %v4037
        %4039 = vmatmul.f32.gmra.mxu0 %v3624
        %v4040 = vpop.f32.mrf.mxu0
        %v4041 = vadd.f32 0.0, %v4040
        %4042 = vmatmul.f32.gmra.mxu0 %v3625
        %v4043 = vpop.f32.mrf.mxu0
        %v4044 = vadd.f32 0.0, %v4043
        %4045 = vmatmul.f32.gmra.mxu0 %v3626
        %v4046 = vpop.f32.mrf.mxu0
        %v4047 = vadd.f32 0.0, %v4046
        %4048 = vmatmul.f32.gmra.mxu0 %v3627
        %v4049 = vpop.f32.mrf.mxu0
        %v4050 = vadd.f32 0.0, %v4049
        %4051 = vmatmul.f32.gmra.mxu0 %v3628
        %v4052 = vpop.f32.mrf.mxu0
        %v4053 = vadd.f32 0.0, %v4052
        %4054 = vmatmul.f32.gmra.mxu0 %v3629
        %v4055 = vpop.f32.mrf.mxu0
        %v4056 = vadd.f32 0.0, %v4055
        %4057 = vmatmul.f32.gmra.mxu0 %v3630
        %v4058 = vpop.f32.mrf.mxu0
        %v4059 = vadd.f32 0.0, %v4058
        %4060 = vmatmul.f32.gmra.mxu0 %v3631
        %v4061 = vpop.f32.mrf.mxu0
        %v4062 = vadd.f32 0.0, %v4061
        %4063 = vmatmul.f32.gmra.mxu0 %v3632
        %v4064 = vpop.f32.mrf.mxu0
        %v4065 = vadd.f32 0.0, %v4064
        %4066 = vmatmul.f32.gmra.mxu0 %v3633
        %v4067 = vpop.f32.mrf.mxu0
        %v4068 = vadd.f32 0.0, %v4067
        %4069 = vmatmul.f32.gmra.mxu0 %v3634
        %v4070 = vpop.f32.mrf.mxu0
        %v4071 = vadd.f32 0.0, %v4070
        %4072 = vmatmul.f32.gmra.mxu0 %v3635
        %v4073 = vpop.f32.mrf.mxu0
        %v4074 = vadd.f32 0.0, %v4073
        %4075 = vmatmul.f32.gmra.mxu0 %v3636
        %v4076 = vpop.f32.mrf.mxu0
        %v4077 = vadd.f32 0.0, %v4076
        %4078 = vmatmul.f32.gmra.mxu0 %v3637
        %v4079 = vpop.f32.mrf.mxu0
        %v4080 = vadd.f32 0.0, %v4079
        %4081 = vmatmul.f32.gmra.mxu0 %v3638
        %v4082 = vpop.f32.mrf.mxu0
        %v4083 = vadd.f32 0.0, %v4082
        %4084 = vmatmul.f32.gmra.mxu0 %v3639
        %v4085 = vpop.f32.mrf.mxu0
        %v4086 = vadd.f32 0.0, %v4085
        %4087 = vmatmul.f32.gmra.mxu0 %v3640
        %v4088 = vpop.f32.mrf.mxu0
        %v4089 = vadd.f32 0.0, %v4088
        %4090 = vmatmul.f32.gmra.mxu0 %v3641
        %v4091 = vpop.f32.mrf.mxu0
        %v4092 = vadd.f32 0.0, %v4091
        %4093 = vmatmul.f32.gmra.mxu0 %v3642
        %v4094 = vpop.f32.mrf.mxu0
        %v4095 = vadd.f32 0.0, %v4094
        %4096 = vmatmul.f32.gmra.mxu0 %v3643
        %v4097 = vpop.f32.mrf.mxu0
        %v4098 = vadd.f32 0.0, %v4097
        %4099 = vmatmul.f32.gmra.mxu0 %v3644
        %v4100 = vpop.f32.mrf.mxu0
        %v4101 = vadd.f32 0.0, %v4100
        %4102 = vmatmul.f32.gmra.mxu0 %v3645
        %v4103 = vpop.f32.mrf.mxu0
        %v4104 = vadd.f32 0.0, %v4103
        %4105 = vmatmul.f32.gmra.mxu0 %v3646
        %v4106 = vpop.f32.mrf.mxu0
        %v4107 = vadd.f32 0.0, %v4106
        %4108 = vmatmul.f32.gmra.mxu0 %v3647
        %v4109 = vpop.f32.mrf.mxu0
        %v4110 = vadd.f32 0.0, %v4109
        %4111 = vmatmul.f32.gmra.mxu0 %v3648
        %v4112 = vpop.f32.mrf.mxu0
        %v4113 = vadd.f32 0.0, %v4112
        %4114 = vdwg.mxu0
        %4115 = vmatpush.msra.mxu0 %v3984
        %4116 = vmatpush.msra.mxu0 %v3983
        %4117 = vmatpush.msra.mxu0 %v3982
        %4118 = vmatpush.msra.mxu0 %v3981
        %4119 = vmatpush.msra.mxu0 %v3980
        %4120 = vmatpush.msra.mxu0 %v3979
        %4121 = vmatpush.msra.mxu0 %v3978
        %4122 = vmatpush.msra.mxu0 %v3977
        %4123 = vmatpush.msra.mxu0 %v3976
        %4124 = vmatpush.msra.mxu0 %v3975
        %4125 = vmatpush.msra.mxu0 %v3974
        %4126 = vmatpush.msra.mxu0 %v3973
        %4127 = vmatpush.msra.mxu0 %v3972
        %4128 = vmatpush.msra.mxu0 %v3971
        %4129 = vmatpush.msra.mxu0 %v3970
        %4130 = vmatpush.msra.mxu0 %v3969
        %4131 = vmatmul.f32.gmra.mxu0 %v3777
        %v4132 = vpop.f32.mrf.mxu0
        %v4133 = vadd.f32 %v4020, %v4132
        %4134 = vmatmul.f32.gmra.mxu0 %v3778
        %v4135 = vpop.f32.mrf.mxu0
        %v4136 = vadd.f32 %v4023, %v4135
        %4137 = vmatmul.f32.gmra.mxu0 %v3779
        %v4138 = vpop.f32.mrf.mxu0
        %v4139 = vadd.f32 %v4026, %v4138
        %4140 = vmatmul.f32.gmra.mxu0 %v3780
        %v4141 = vpop.f32.mrf.mxu0
        %v4142 = vadd.f32 %v4029, %v4141
        %4143 = vmatmul.f32.gmra.mxu0 %v3781
        %v4144 = vpop.f32.mrf.mxu0
        %v4145 = vadd.f32 %v4032, %v4144
        %4146 = vmatmul.f32.gmra.mxu0 %v3782
        %v4147 = vpop.f32.mrf.mxu0
        %v4148 = vadd.f32 %v4035, %v4147
        %4149 = vmatmul.f32.gmra.mxu0 %v3783
        %v4150 = vpop.f32.mrf.mxu0
        %v4151 = vadd.f32 %v4038, %v4150
        %4152 = vmatmul.f32.gmra.mxu0 %v3784
        %v4153 = vpop.f32.mrf.mxu0
        %v4154 = vadd.f32 %v4041, %v4153
        %4155 = vmatmul.f32.gmra.mxu0 %v3785
        %v4156 = vpop.f32.mrf.mxu0
        %v4157 = vadd.f32 %v4044, %v4156
        %4158 = vmatmul.f32.gmra.mxu0 %v3786
        %v4159 = vpop.f32.mrf.mxu0
        %v4160 = vadd.f32 %v4047, %v4159
        %4161 = vmatmul.f32.gmra.mxu0 %v3787
        %v4162 = vpop.f32.mrf.mxu0
        %v4163 = vadd.f32 %v4050, %v4162
        %4164 = vmatmul.f32.gmra.mxu0 %v3788
        %v4165 = vpop.f32.mrf.mxu0
        %v4166 = vadd.f32 %v4053, %v4165
        %4167 = vmatmul.f32.gmra.mxu0 %v3789
        %v4168 = vpop.f32.mrf.mxu0
        %v4169 = vadd.f32 %v4056, %v4168
        %4170 = vmatmul.f32.gmra.mxu0 %v3790
        %v4171 = vpop.f32.mrf.mxu0
        %v4172 = vadd.f32 %v4059, %v4171
        %4173 = vmatmul.f32.gmra.mxu0 %v3791
        %v4174 = vpop.f32.mrf.mxu0
        %v4175 = vadd.f32 %v4062, %v4174
        %4176 = vmatmul.f32.gmra.mxu0 %v3792
        %v4177 = vpop.f32.mrf.mxu0
        %v4178 = vadd.f32 %v4065, %v4177
        %4179 = vmatmul.f32.gmra.mxu0 %v3793
        %v4180 = vpop.f32.mrf.mxu0
        %v4181 = vadd.f32 %v4068, %v4180
        %4182 = vmatmul.f32.gmra.mxu0 %v3794
        %v4183 = vpop.f32.mrf.mxu0
        %v4184 = vadd.f32 %v4071, %v4183
        %4185 = vmatmul.f32.gmra.mxu0 %v3795
        %v4186 = vpop.f32.mrf.mxu0
        %v4187 = vadd.f32 %v4074, %v4186
        %4188 = vmatmul.f32.gmra.mxu0 %v3796
        %v4189 = vpop.f32.mrf.mxu0
        %v4190 = vadd.f32 %v4077, %v4189
        %4191 = vmatmul.f32.gmra.mxu0 %v3797
        %v4192 = vpop.f32.mrf.mxu0
        %v4193 = vadd.f32 %v4080, %v4192
        %4194 = vmatmul.f32.gmra.mxu0 %v3798
        %v4195 = vpop.f32.mrf.mxu0
        %v4196 = vadd.f32 %v4083, %v4195
        %4197 = vmatmul.f32.gmra.mxu0 %v3799
        %v4198 = vpop.f32.mrf.mxu0
        %v4199 = vadd.f32 %v4086, %v4198
        %4200 = vmatmul.f32.gmra.mxu0 %v3800
        %v4201 = vpop.f32.mrf.mxu0
        %v4202 = vadd.f32 %v4089, %v4201
        %4203 = vmatmul.f32.gmra.mxu0 %v3801
        %v4204 = vpop.f32.mrf.mxu0
        %v4205 = vadd.f32 %v4092, %v4204
        %4206 = vmatmul.f32.gmra.mxu0 %v3802
        %v4207 = vpop.f32.mrf.mxu0
        %v4208 = vadd.f32 %v4095, %v4207
        %4209 = vmatmul.f32.gmra.mxu0 %v3803
        %v4210 = vpop.f32.mrf.mxu0
        %v4211 = vadd.f32 %v4098, %v4210
        %4212 = vmatmul.f32.gmra.mxu0 %v3804
        %v4213 = vpop.f32.mrf.mxu0
        %v4214 = vadd.f32 %v4101, %v4213
        %4215 = vmatmul.f32.gmra.mxu0 %v3805
        %v4216 = vpop.f32.mrf.mxu0
        %v4217 = vadd.f32 %v4104, %v4216
        %4218 = vmatmul.f32.gmra.mxu0 %v3806
        %v4219 = vpop.f32.mrf.mxu0
        %v4220 = vadd.f32 %v4107, %v4219
        %4221 = vmatmul.f32.gmra.mxu0 %v3807
        %v4222 = vpop.f32.mrf.mxu0
        %v4223 = vadd.f32 %v4110, %v4222
        %4224 = vmatmul.f32.gmra.mxu0 %v3808
        %v4225 = vpop.f32.mrf.mxu0
        %v4226 = vadd.f32 %v4113, %v4225
        %4227 = vdwg.mxu0
        %s4228 = scalar_lea.vmem %s3, 256
        %v4229 = vld [vmem:[%s4228] sm:$0xff]
        %v4230 = vld [vmem:[%s4228 + $0x8] sm:$0xff]
        %v4231 = vld [vmem:[%s4228 + $0x10] sm:$0xff]
        %v4232 = vld [vmem:[%s4228 + $0x18] sm:$0xff]
        %v4233 = vld [vmem:[%s4228 + $0x20] sm:$0xff]
        %v4234 = vld [vmem:[%s4228 + $0x28] sm:$0xff]
        %v4235 = vld [vmem:[%s4228 + $0x30] sm:$0xff]
        %v4236 = vld [vmem:[%s4228 + $0x38] sm:$0xff]
        %v4237 = vld [vmem:[%s4228 + $0x40] sm:$0xff]
        %v4238 = vld [vmem:[%s4228 + $0x48] sm:$0xff]
        %v4239 = vld [vmem:[%s4228 + $0x50] sm:$0xff]
        %v4240 = vld [vmem:[%s4228 + $0x58] sm:$0xff]
        %v4241 = vld [vmem:[%s4228 + $0x60] sm:$0xff]
        %v4242 = vld [vmem:[%s4228 + $0x68] sm:$0xff]
        %v4243 = vld [vmem:[%s4228 + $0x70] sm:$0xff]
        %v4244 = vld [vmem:[%s4228 + $0x78] sm:$0xff]
        %4245 = vmatpush.msra.mxu0 %v4244
        %4246 = vmatpush.msra.mxu0 %v4243
        %4247 = vmatpush.msra.mxu0 %v4242
        %4248 = vmatpush.msra.mxu0 %v4241
        %4249 = vmatpush.msra.mxu0 %v4240
        %4250 = vmatpush.msra.mxu0 %v4239
        %4251 = vmatpush.msra.mxu0 %v4238
        %4252 = vmatpush.msra.mxu0 %v4237
        %4253 = vmatpush.msra.mxu0 %v4236
        %4254 = vmatpush.msra.mxu0 %v4235
        %4255 = vmatpush.msra.mxu0 %v4234
        %4256 = vmatpush.msra.mxu0 %v4233
        %4257 = vmatpush.msra.mxu0 %v4232
        %4258 = vmatpush.msra.mxu0 %v4231
        %4259 = vmatpush.msra.mxu0 %v4230
        %4260 = vmatpush.msra.mxu0 %v4229
        %4261 = vmatmul.f32.gmra.mxu0 %v3937
        %v4262 = vpop.f32.mrf.mxu0
        %v4263 = vadd.f32 0.0, %v4262
        %4264 = vmatmul.f32.gmra.mxu0 %v3938
        %v4265 = vpop.f32.mrf.mxu0
        %v4266 = vadd.f32 0.0, %v4265
        %4267 = vmatmul.f32.gmra.mxu0 %v3939
        %v4268 = vpop.f32.mrf.mxu0
        %v4269 = vadd.f32 0.0, %v4268
        %4270 = vmatmul.f32.gmra.mxu0 %v3940
        %v4271 = vpop.f32.mrf.mxu0
        %v4272 = vadd.f32 0.0, %v4271
        %4273 = vmatmul.f32.gmra.mxu0 %v3941
        %v4274 = vpop.f32.mrf.mxu0
        %v4275 = vadd.f32 0.0, %v4274
        %4276 = vmatmul.f32.gmra.mxu0 %v3942
        %v4277 = vpop.f32.mrf.mxu0
        %v4278 = vadd.f32 0.0, %v4277
        %4279 = vmatmul.f32.gmra.mxu0 %v3943
        %v4280 = vpop.f32.mrf.mxu0
        %v4281 = vadd.f32 0.0, %v4280
        %4282 = vmatmul.f32.gmra.mxu0 %v3944
        %v4283 = vpop.f32.mrf.mxu0
        %v4284 = vadd.f32 0.0, %v4283
        %4285 = vmatmul.f32.gmra.mxu0 %v3945
        %v4286 = vpop.f32.mrf.mxu0
        %v4287 = vadd.f32 0.0, %v4286
        %4288 = vmatmul.f32.gmra.mxu0 %v3946
        %v4289 = vpop.f32.mrf.mxu0
        %v4290 = vadd.f32 0.0, %v4289
        %4291 = vmatmul.f32.gmra.mxu0 %v3947
        %v4292 = vpop.f32.mrf.mxu0
        %v4293 = vadd.f32 0.0, %v4292
        %4294 = vmatmul.f32.gmra.mxu0 %v3948
        %v4295 = vpop.f32.mrf.mxu0
        %v4296 = vadd.f32 0.0, %v4295
        %4297 = vmatmul.f32.gmra.mxu0 %v3949
        %v4298 = vpop.f32.mrf.mxu0
        %v4299 = vadd.f32 0.0, %v4298
        %4300 = vmatmul.f32.gmra.mxu0 %v3950
        %v4301 = vpop.f32.mrf.mxu0
        %v4302 = vadd.f32 0.0, %v4301
        %4303 = vmatmul.f32.gmra.mxu0 %v3951
        %v4304 = vpop.f32.mrf.mxu0
        %v4305 = vadd.f32 0.0, %v4304
        %4306 = vmatmul.f32.gmra.mxu0 %v3952
        %v4307 = vpop.f32.mrf.mxu0
        %v4308 = vadd.f32 0.0, %v4307
        %4309 = vmatmul.f32.gmra.mxu0 %v3953
        %v4310 = vpop.f32.mrf.mxu0
        %v4311 = vadd.f32 0.0, %v4310
        %4312 = vmatmul.f32.gmra.mxu0 %v3954
        %v4313 = vpop.f32.mrf.mxu0
        %v4314 = vadd.f32 0.0, %v4313
        %4315 = vmatmul.f32.gmra.mxu0 %v3955
        %v4316 = vpop.f32.mrf.mxu0
        %v4317 = vadd.f32 0.0, %v4316
        %4318 = vmatmul.f32.gmra.mxu0 %v3956
        %v4319 = vpop.f32.mrf.mxu0
        %v4320 = vadd.f32 0.0, %v4319
        %4321 = vmatmul.f32.gmra.mxu0 %v3957
        %v4322 = vpop.f32.mrf.mxu0
        %v4323 = vadd.f32 0.0, %v4322
        %4324 = vmatmul.f32.gmra.mxu0 %v3958
        %v4325 = vpop.f32.mrf.mxu0
        %v4326 = vadd.f32 0.0, %v4325
        %4327 = vmatmul.f32.gmra.mxu0 %v3959
        %v4328 = vpop.f32.mrf.mxu0
        %v4329 = vadd.f32 0.0, %v4328
        %4330 = vmatmul.f32.gmra.mxu0 %v3960
        %v4331 = vpop.f32.mrf.mxu0
        %v4332 = vadd.f32 0.0, %v4331
        %4333 = vmatmul.f32.gmra.mxu0 %v3961
        %v4334 = vpop.f32.mrf.mxu0
        %v4335 = vadd.f32 0.0, %v4334
        %4336 = vmatmul.f32.gmra.mxu0 %v3962
        %v4337 = vpop.f32.mrf.mxu0
        %v4338 = vadd.f32 0.0, %v4337
        %4339 = vmatmul.f32.gmra.mxu0 %v3963
        %v4340 = vpop.f32.mrf.mxu0
        %v4341 = vadd.f32 0.0, %v4340
        %4342 = vmatmul.f32.gmra.mxu0 %v3964
        %v4343 = vpop.f32.mrf.mxu0
        %v4344 = vadd.f32 0.0, %v4343
        %4345 = vmatmul.f32.gmra.mxu0 %v3965
        %v4346 = vpop.f32.mrf.mxu0
        %v4347 = vadd.f32 0.0, %v4346
        %4348 = vmatmul.f32.gmra.mxu0 %v3966
        %v4349 = vpop.f32.mrf.mxu0
        %v4350 = vadd.f32 0.0, %v4349
        %4351 = vmatmul.f32.gmra.mxu0 %v3967
        %v4352 = vpop.f32.mrf.mxu0
        %v4353 = vadd.f32 0.0, %v4352
        %4354 = vmatmul.f32.gmra.mxu0 %v3968
        %v4355 = vpop.f32.mrf.mxu0
        %v4356 = vadd.f32 0.0, %v4355
        %4357 = vdwg.mxu0
        %v4358 = vadd.f32 %v4133, %v4263
        %v4359 = vadd.f32 %v4136, %v4266
        %v4360 = vadd.f32 %v4139, %v4269
        %v4361 = vadd.f32 %v4142, %v4272
        %v4362 = vadd.f32 %v4145, %v4275
        %v4363 = vadd.f32 %v4148, %v4278
        %v4364 = vadd.f32 %v4151, %v4281
        %v4365 = vadd.f32 %v4154, %v4284
        %v4366 = vadd.f32 %v4157, %v4287
        %v4367 = vadd.f32 %v4160, %v4290
        %v4368 = vadd.f32 %v4163, %v4293
        %v4369 = vadd.f32 %v4166, %v4296
        %v4370 = vadd.f32 %v4169, %v4299
        %v4371 = vadd.f32 %v4172, %v4302
        %v4372 = vadd.f32 %v4175, %v4305
        %v4373 = vadd.f32 %v4178, %v4308
        %v4374 = vadd.f32 %v4181, %v4311
        %v4375 = vadd.f32 %v4184, %v4314
        %v4376 = vadd.f32 %v4187, %v4317
        %v4377 = vadd.f32 %v4190, %v4320
        %v4378 = vadd.f32 %v4193, %v4323
        %v4379 = vadd.f32 %v4196, %v4326
        %v4380 = vadd.f32 %v4199, %v4329
        %v4381 = vadd.f32 %v4202, %v4332
        %v4382 = vadd.f32 %v4205, %v4335
        %v4383 = vadd.f32 %v4208, %v4338
        %v4384 = vadd.f32 %v4211, %v4341
        %v4385 = vadd.f32 %v4214, %v4344
        %v4386 = vadd.f32 %v4217, %v4347
        %v4387 = vadd.f32 %v4220, %v4350
        %v4388 = vadd.f32 %v4223, %v4353
        %v4389 = vadd.f32 %v4226, %v4356
        %v4390 = vld [vmem:[#allocation3 + $0x10] sm:$0xff]
        %v4391 = vld [vmem:[#allocation3 + $0x18] sm:$0xff]
        %v4392 = vld [vmem:[#allocation3 + $0x20] sm:$0xff]
        %v4393 = vld [vmem:[#allocation3 + $0x28] sm:$0xff]
        %v4394 = vld [vmem:[#allocation3 + $0x30] sm:$0xff]
        %v4395 = vld [vmem:[#allocation3 + $0x38] sm:$0xff]
        %v4396 = vld [vmem:[#allocation3 + $0x40] sm:$0xff]
        %v4397 = vld [vmem:[#allocation3 + $0x48] sm:$0xff]
        %v4398 = vld [vmem:[#allocation3 + $0x50] sm:$0xff]
        %v4399 = vld [vmem:[#allocation3 + $0x58] sm:$0xff]
        %v4400 = vld [vmem:[#allocation3 + $0x60] sm:$0xff]
        %v4401 = vld [vmem:[#allocation3 + $0x68] sm:$0xff]
        %v4402 = vld [vmem:[#allocation3 + $0x70] sm:$0xff]
        %v4403 = vld [vmem:[#allocation3 + $0x78] sm:$0xff]
        %v4404 = vld [vmem:[#allocation3 + $0x80] sm:$0xff]
        %v4405 = vld [vmem:[#allocation3 + $0x88] sm:$0xff]
        %v4406 = vld [vmem:[#allocation3 + $0x90] sm:$0xff]
        %v4407 = vld [vmem:[#allocation3 + $0x98] sm:$0xff]
        %v4408 = vld [vmem:[#allocation3 + $0xa0] sm:$0xff]
        %v4409 = vld [vmem:[#allocation3 + $0xa8] sm:$0xff]
        %v4410 = vld [vmem:[#allocation3 + $0xb0] sm:$0xff]
        %v4411 = vld [vmem:[#allocation3 + $0xb8] sm:$0xff]
        %v4412 = vld [vmem:[#allocation3 + $0xc0] sm:$0xff]
        %v4413 = vld [vmem:[#allocation3 + $0xc8] sm:$0xff]
        %v4414 = vld [vmem:[#allocation3 + $0xd0] sm:$0xff]
        %v4415 = vld [vmem:[#allocation3 + $0xd8] sm:$0xff]
        %v4416 = vld [vmem:[#allocation3 + $0xe0] sm:$0xff]
        %v4417 = vld [vmem:[#allocation3 + $0xe8] sm:$0xff]
        %v4418 = vld [vmem:[#allocation3 + $0xf0] sm:$0xff]
        %v4419 = vld [vmem:[#allocation3 + $0xf8] sm:$0xff]
        %v4420 = vld [vmem:[#allocation3 + $0x100] sm:$0xff]
        %v4421 = vld [vmem:[#allocation3 + $0x108] sm:$0xff]
        %v4422 = vrot.slane %v4390, 7
        %v4423 = vrot.slane %v4391, 7
        %v4424 = vrot.slane %v4392, 7
        %v4425 = vrot.slane %v4393, 7
        %v4426 = vrot.slane %v4394, 7
        %v4427 = vrot.slane %v4395, 7
        %v4428 = vrot.slane %v4396, 7
        %v4429 = vrot.slane %v4397, 7
        %v4430 = vrot.slane %v4398, 7
        %v4431 = vrot.slane %v4399, 7
        %v4432 = vrot.slane %v4400, 7
        %v4433 = vrot.slane %v4401, 7
        %v4434 = vrot.slane %v4402, 7
        %v4435 = vrot.slane %v4403, 7
        %v4436 = vrot.slane %v4404, 7
        %v4437 = vrot.slane %v4405, 7
        %v4438 = vrot.slane %v4406, 7
        %v4439 = vrot.slane %v4407, 7
        %v4440 = vrot.slane %v4408, 7
        %v4441 = vrot.slane %v4409, 7
        %v4442 = vrot.slane %v4410, 7
        %v4443 = vrot.slane %v4411, 7
        %v4444 = vrot.slane %v4412, 7
        %v4445 = vrot.slane %v4413, 7
        %v4446 = vrot.slane %v4414, 7
        %v4447 = vrot.slane %v4415, 7
        %v4448 = vrot.slane %v4416, 7
        %v4449 = vrot.slane %v4417, 7
        %v4450 = vrot.slane %v4418, 7
        %v4451 = vrot.slane %v4419, 7
        %v4452 = vrot.slane %v4420, 7
        %v4453 = vrot.slane %v4421, 7
        %v4454 = vsel %vm815, %v4452, %v4453
        %v4455 = vsel %vm815, %v4451, %v4452
        %v4456 = vsel %vm815, %v4450, %v4451
        %v4457 = vsel %vm815, %v4449, %v4450
        %v4458 = vsel %vm815, %v4448, %v4449
        %v4459 = vsel %vm815, %v4447, %v4448
        %v4460 = vsel %vm815, %v4446, %v4447
        %v4461 = vsel %vm815, %v4445, %v4446
        %v4462 = vsel %vm815, %v4444, %v4445
        %v4463 = vsel %vm815, %v4443, %v4444
        %v4464 = vsel %vm815, %v4442, %v4443
        %v4465 = vsel %vm815, %v4441, %v4442
        %v4466 = vsel %vm815, %v4440, %v4441
        %v4467 = vsel %vm815, %v4439, %v4440
        %v4468 = vsel %vm815, %v4438, %v4439
        %v4469 = vsel %vm815, %v4437, %v4438
        %v4470 = vsel %vm815, %v4436, %v4437
        %v4471 = vsel %vm815, %v4435, %v4436
        %v4472 = vsel %vm815, %v4434, %v4435
        %v4473 = vsel %vm815, %v4433, %v4434
        %v4474 = vsel %vm815, %v4432, %v4433
        %v4475 = vsel %vm815, %v4431, %v4432
        %v4476 = vsel %vm815, %v4430, %v4431
        %v4477 = vsel %vm815, %v4429, %v4430
        %v4478 = vsel %vm815, %v4428, %v4429
        %v4479 = vsel %vm815, %v4427, %v4428
        %v4480 = vsel %vm815, %v4426, %v4427
        %v4481 = vsel %vm815, %v4425, %v4426
        %v4482 = vsel %vm815, %v4424, %v4425
        %v4483 = vsel %vm815, %v4423, %v4424
        %v4484 = vsel %vm815, %v4422, %v4423
        %v4485 = vsel %vm815, %v4453, %v4422
        %v4486 = vsel %vm3745, %v4485, 0.0
        %v4487 = vsel %vm3746, %v4484, 0.0
        %v4488 = vsel %vm3747, %v4483, 0.0
        %v4489 = vsel %vm3748, %v4482, 0.0
        %v4490 = vsel %vm3749, %v4481, 0.0
        %v4491 = vsel %vm3750, %v4480, 0.0
        %v4492 = vsel %vm3751, %v4479, 0.0
        %v4493 = vsel %vm3752, %v4478, 0.0
        %v4494 = vsel %vm3753, %v4477, 0.0
        %v4495 = vsel %vm3754, %v4476, 0.0
        %v4496 = vsel %vm3755, %v4475, 0.0
        %v4497 = vsel %vm3756, %v4474, 0.0
        %v4498 = vsel %vm3757, %v4473, 0.0
        %v4499 = vsel %vm3758, %v4472, 0.0
        %v4500 = vsel %vm3759, %v4471, 0.0
        %v4501 = vsel %vm3760, %v4470, 0.0
        %v4502 = vsel %vm3761, %v4469, 0.0
        %v4503 = vsel %vm3762, %v4468, 0.0
        %v4504 = vsel %vm3763, %v4467, 0.0
        %v4505 = vsel %vm3764, %v4466, 0.0
        %v4506 = vsel %vm3765, %v4465, 0.0
        %v4507 = vsel %vm3766, %v4464, 0.0
        %v4508 = vsel %vm3767, %v4463, 0.0
        %v4509 = vsel %vm3768, %v4462, 0.0
        %v4510 = vsel %vm3769, %v4461, 0.0
        %v4511 = vsel %vm3770, %v4460, 0.0
        %v4512 = vsel %vm3771, %v4459, 0.0
        %v4513 = vsel %vm3772, %v4458, 0.0
        %v4514 = vsel %vm3773, %v4457, 0.0
        %v4515 = vsel %vm3774, %v4456, 0.0
        %v4516 = vsel %vm3775, %v4455, 0.0
        %v4517 = vsel %vm3776, %v4454, 0.0
        %v4518 = vrot.slane %v4390, 1
        %v4519 = vrot.slane %v4391, 1
        %v4520 = vrot.slane %v4392, 1
        %v4521 = vrot.slane %v4393, 1
        %v4522 = vrot.slane %v4394, 1
        %v4523 = vrot.slane %v4395, 1
        %v4524 = vrot.slane %v4396, 1
        %v4525 = vrot.slane %v4397, 1
        %v4526 = vrot.slane %v4398, 1
        %v4527 = vrot.slane %v4399, 1
        %v4528 = vrot.slane %v4400, 1
        %v4529 = vrot.slane %v4401, 1
        %v4530 = vrot.slane %v4402, 1
        %v4531 = vrot.slane %v4403, 1
        %v4532 = vrot.slane %v4404, 1
        %v4533 = vrot.slane %v4405, 1
        %v4534 = vrot.slane %v4406, 1
        %v4535 = vrot.slane %v4407, 1
        %v4536 = vrot.slane %v4408, 1
        %v4537 = vrot.slane %v4409, 1
        %v4538 = vrot.slane %v4410, 1
        %v4539 = vrot.slane %v4411, 1
        %v4540 = vrot.slane %v4412, 1
        %v4541 = vrot.slane %v4413, 1
        %v4542 = vrot.slane %v4414, 1
        %v4543 = vrot.slane %v4415, 1
        %v4544 = vrot.slane %v4416, 1
        %v4545 = vrot.slane %v4417, 1
        %v4546 = vrot.slane %v4418, 1
        %v4547 = vrot.slane %v4419, 1
        %v4548 = vrot.slane %v4420, 1
        %v4549 = vrot.slane %v4421, 1
        %v4550 = vsel %vm912, %v4548, %v4549
        %v4551 = vsel %vm912, %v4547, %v4548
        %v4552 = vsel %vm912, %v4546, %v4547
        %v4553 = vsel %vm912, %v4545, %v4546
        %v4554 = vsel %vm912, %v4544, %v4545
        %v4555 = vsel %vm912, %v4543, %v4544
        %v4556 = vsel %vm912, %v4542, %v4543
        %v4557 = vsel %vm912, %v4541, %v4542
        %v4558 = vsel %vm912, %v4540, %v4541
        %v4559 = vsel %vm912, %v4539, %v4540
        %v4560 = vsel %vm912, %v4538, %v4539
        %v4561 = vsel %vm912, %v4537, %v4538
        %v4562 = vsel %vm912, %v4536, %v4537
        %v4563 = vsel %vm912, %v4535, %v4536
        %v4564 = vsel %vm912, %v4534, %v4535
        %v4565 = vsel %vm912, %v4533, %v4534
        %v4566 = vsel %vm912, %v4532, %v4533
        %v4567 = vsel %vm912, %v4531, %v4532
        %v4568 = vsel %vm912, %v4530, %v4531
        %v4569 = vsel %vm912, %v4529, %v4530
        %v4570 = vsel %vm912, %v4528, %v4529
        %v4571 = vsel %vm912, %v4527, %v4528
        %v4572 = vsel %vm912, %v4526, %v4527
        %v4573 = vsel %vm912, %v4525, %v4526
        %v4574 = vsel %vm912, %v4524, %v4525
        %v4575 = vsel %vm912, %v4523, %v4524
        %v4576 = vsel %vm912, %v4522, %v4523
        %v4577 = vsel %vm912, %v4521, %v4522
        %v4578 = vsel %vm912, %v4520, %v4521
        %v4579 = vsel %vm912, %v4519, %v4520
        %v4580 = vsel %vm912, %v4518, %v4519
        %v4581 = vsel %vm912, %v4549, %v4518
        %v4582 = vsel %vm3905, %v4580, 0.0
        %v4583 = vsel %vm3906, %v4579, 0.0
        %v4584 = vsel %vm3907, %v4578, 0.0
        %v4585 = vsel %vm3908, %v4577, 0.0
        %v4586 = vsel %vm3909, %v4576, 0.0
        %v4587 = vsel %vm3910, %v4575, 0.0
        %v4588 = vsel %vm3911, %v4574, 0.0
        %v4589 = vsel %vm3912, %v4573, 0.0
        %v4590 = vsel %vm3913, %v4572, 0.0
        %v4591 = vsel %vm3914, %v4571, 0.0
        %v4592 = vsel %vm3915, %v4570, 0.0
        %v4593 = vsel %vm3916, %v4569, 0.0
        %v4594 = vsel %vm3917, %v4568, 0.0
        %v4595 = vsel %vm3918, %v4567, 0.0
        %v4596 = vsel %vm3919, %v4566, 0.0
        %v4597 = vsel %vm3920, %v4565, 0.0
        %v4598 = vsel %vm3921, %v4564, 0.0
        %v4599 = vsel %vm3922, %v4563, 0.0
        %v4600 = vsel %vm3923, %v4562, 0.0
        %v4601 = vsel %vm3924, %v4561, 0.0
        %v4602 = vsel %vm3925, %v4560, 0.0
        %v4603 = vsel %vm3926, %v4559, 0.0
        %v4604 = vsel %vm3927, %v4558, 0.0
        %v4605 = vsel %vm3928, %v4557, 0.0
        %v4606 = vsel %vm3929, %v4556, 0.0
        %v4607 = vsel %vm3930, %v4555, 0.0
        %v4608 = vsel %vm3931, %v4554, 0.0
        %v4609 = vsel %vm3932, %v4553, 0.0
        %v4610 = vsel %vm3933, %v4552, 0.0
        %v4611 = vsel %vm3934, %v4551, 0.0
        %v4612 = vsel %vm3935, %v4550, 0.0
        %v4613 = vsel %vm3936, %v4581, 0.0
        %s4614 = scalar_lea.vmem %s3, 384
        %v4615 = vld [vmem:[%s4614] sm:$0xff]
        %v4616 = vld [vmem:[%s4614 + $0x8] sm:$0xff]
        %v4617 = vld [vmem:[%s4614 + $0x10] sm:$0xff]
        %v4618 = vld [vmem:[%s4614 + $0x18] sm:$0xff]
        %v4619 = vld [vmem:[%s4614 + $0x20] sm:$0xff]
        %v4620 = vld [vmem:[%s4614 + $0x28] sm:$0xff]
        %v4621 = vld [vmem:[%s4614 + $0x30] sm:$0xff]
        %v4622 = vld [vmem:[%s4614 + $0x38] sm:$0xff]
        %v4623 = vld [vmem:[%s4614 + $0x40] sm:$0xff]
        %v4624 = vld [vmem:[%s4614 + $0x48] sm:$0xff]
        %v4625 = vld [vmem:[%s4614 + $0x50] sm:$0xff]
        %v4626 = vld [vmem:[%s4614 + $0x58] sm:$0xff]
        %v4627 = vld [vmem:[%s4614 + $0x60] sm:$0xff]
        %v4628 = vld [vmem:[%s4614 + $0x68] sm:$0xff]
        %v4629 = vld [vmem:[%s4614 + $0x70] sm:$0xff]
        %v4630 = vld [vmem:[%s4614 + $0x78] sm:$0xff]
        %4631 = vmatpush.msra.mxu0 %v4630
        %4632 = vmatpush.msra.mxu0 %v4629
        %4633 = vmatpush.msra.mxu0 %v4628
        %4634 = vmatpush.msra.mxu0 %v4627
        %4635 = vmatpush.msra.mxu0 %v4626
        %4636 = vmatpush.msra.mxu0 %v4625
        %4637 = vmatpush.msra.mxu0 %v4624
        %4638 = vmatpush.msra.mxu0 %v4623
        %4639 = vmatpush.msra.mxu0 %v4622
        %4640 = vmatpush.msra.mxu0 %v4621
        %4641 = vmatpush.msra.mxu0 %v4620
        %4642 = vmatpush.msra.mxu0 %v4619
        %4643 = vmatpush.msra.mxu0 %v4618
        %4644 = vmatpush.msra.mxu0 %v4617
        %4645 = vmatpush.msra.mxu0 %v4616
        %4646 = vmatpush.msra.mxu0 %v4615
        %4647 = vmatmul.f32.gmra.mxu0 %v4486
        %v4648 = vpop.f32.mrf.mxu0
        %v4649 = vadd.f32 0.0, %v4648
        %4650 = vmatmul.f32.gmra.mxu0 %v4487
        %v4651 = vpop.f32.mrf.mxu0
        %v4652 = vadd.f32 0.0, %v4651
        %4653 = vmatmul.f32.gmra.mxu0 %v4488
        %v4654 = vpop.f32.mrf.mxu0
        %v4655 = vadd.f32 0.0, %v4654
        %4656 = vmatmul.f32.gmra.mxu0 %v4489
        %v4657 = vpop.f32.mrf.mxu0
        %v4658 = vadd.f32 0.0, %v4657
        %4659 = vmatmul.f32.gmra.mxu0 %v4490
        %v4660 = vpop.f32.mrf.mxu0
        %v4661 = vadd.f32 0.0, %v4660
        %4662 = vmatmul.f32.gmra.mxu0 %v4491
        %v4663 = vpop.f32.mrf.mxu0
        %v4664 = vadd.f32 0.0, %v4663
        %4665 = vmatmul.f32.gmra.mxu0 %v4492
        %v4666 = vpop.f32.mrf.mxu0
        %v4667 = vadd.f32 0.0, %v4666
        %4668 = vmatmul.f32.gmra.mxu0 %v4493
        %v4669 = vpop.f32.mrf.mxu0
        %v4670 = vadd.f32 0.0, %v4669
        %4671 = vmatmul.f32.gmra.mxu0 %v4494
        %v4672 = vpop.f32.mrf.mxu0
        %v4673 = vadd.f32 0.0, %v4672
        %4674 = vmatmul.f32.gmra.mxu0 %v4495
        %v4675 = vpop.f32.mrf.mxu0
        %v4676 = vadd.f32 0.0, %v4675
        %4677 = vmatmul.f32.gmra.mxu0 %v4496
        %v4678 = vpop.f32.mrf.mxu0
        %v4679 = vadd.f32 0.0, %v4678
        %4680 = vmatmul.f32.gmra.mxu0 %v4497
        %v4681 = vpop.f32.mrf.mxu0
        %v4682 = vadd.f32 0.0, %v4681
        %4683 = vmatmul.f32.gmra.mxu0 %v4498
        %v4684 = vpop.f32.mrf.mxu0
        %v4685 = vadd.f32 0.0, %v4684
        %4686 = vmatmul.f32.gmra.mxu0 %v4499
        %v4687 = vpop.f32.mrf.mxu0
        %v4688 = vadd.f32 0.0, %v4687
        %4689 = vmatmul.f32.gmra.mxu0 %v4500
        %v4690 = vpop.f32.mrf.mxu0
        %v4691 = vadd.f32 0.0, %v4690
        %4692 = vmatmul.f32.gmra.mxu0 %v4501
        %v4693 = vpop.f32.mrf.mxu0
        %v4694 = vadd.f32 0.0, %v4693
        %4695 = vmatmul.f32.gmra.mxu0 %v4502
        %v4696 = vpop.f32.mrf.mxu0
        %v4697 = vadd.f32 0.0, %v4696
        %4698 = vmatmul.f32.gmra.mxu0 %v4503
        %v4699 = vpop.f32.mrf.mxu0
        %v4700 = vadd.f32 0.0, %v4699
        %4701 = vmatmul.f32.gmra.mxu0 %v4504
        %v4702 = vpop.f32.mrf.mxu0
        %v4703 = vadd.f32 0.0, %v4702
        %4704 = vmatmul.f32.gmra.mxu0 %v4505
        %v4705 = vpop.f32.mrf.mxu0
        %v4706 = vadd.f32 0.0, %v4705
        %4707 = vmatmul.f32.gmra.mxu0 %v4506
        %v4708 = vpop.f32.mrf.mxu0
        %v4709 = vadd.f32 0.0, %v4708
        %4710 = vmatmul.f32.gmra.mxu0 %v4507
        %v4711 = vpop.f32.mrf.mxu0
        %v4712 = vadd.f32 0.0, %v4711
        %4713 = vmatmul.f32.gmra.mxu0 %v4508
        %v4714 = vpop.f32.mrf.mxu0
        %v4715 = vadd.f32 0.0, %v4714
        %4716 = vmatmul.f32.gmra.mxu0 %v4509
        %v4717 = vpop.f32.mrf.mxu0
        %v4718 = vadd.f32 0.0, %v4717
        %4719 = vmatmul.f32.gmra.mxu0 %v4510
        %v4720 = vpop.f32.mrf.mxu0
        %v4721 = vadd.f32 0.0, %v4720
        %4722 = vmatmul.f32.gmra.mxu0 %v4511
        %v4723 = vpop.f32.mrf.mxu0
        %v4724 = vadd.f32 0.0, %v4723
        %4725 = vmatmul.f32.gmra.mxu0 %v4512
        %v4726 = vpop.f32.mrf.mxu0
        %v4727 = vadd.f32 0.0, %v4726
        %4728 = vmatmul.f32.gmra.mxu0 %v4513
        %v4729 = vpop.f32.mrf.mxu0
        %v4730 = vadd.f32 0.0, %v4729
        %4731 = vmatmul.f32.gmra.mxu0 %v4514
        %v4732 = vpop.f32.mrf.mxu0
        %v4733 = vadd.f32 0.0, %v4732
        %4734 = vmatmul.f32.gmra.mxu0 %v4515
        %v4735 = vpop.f32.mrf.mxu0
        %v4736 = vadd.f32 0.0, %v4735
        %4737 = vmatmul.f32.gmra.mxu0 %v4516
        %v4738 = vpop.f32.mrf.mxu0
        %v4739 = vadd.f32 0.0, %v4738
        %4740 = vmatmul.f32.gmra.mxu0 %v4517
        %v4741 = vpop.f32.mrf.mxu0
        %v4742 = vadd.f32 0.0, %v4741
        %4743 = vdwg.mxu0
        %v4744 = vadd.f32 %v4358, %v4649
        %v4745 = vadd.f32 %v4359, %v4652
        %v4746 = vadd.f32 %v4360, %v4655
        %v4747 = vadd.f32 %v4361, %v4658
        %v4748 = vadd.f32 %v4362, %v4661
        %v4749 = vadd.f32 %v4363, %v4664
        %v4750 = vadd.f32 %v4364, %v4667
        %v4751 = vadd.f32 %v4365, %v4670
        %v4752 = vadd.f32 %v4366, %v4673
        %v4753 = vadd.f32 %v4367, %v4676
        %v4754 = vadd.f32 %v4368, %v4679
        %v4755 = vadd.f32 %v4369, %v4682
        %v4756 = vadd.f32 %v4370, %v4685
        %v4757 = vadd.f32 %v4371, %v4688
        %v4758 = vadd.f32 %v4372, %v4691
        %v4759 = vadd.f32 %v4373, %v4694
        %v4760 = vadd.f32 %v4374, %v4697
        %v4761 = vadd.f32 %v4375, %v4700
        %v4762 = vadd.f32 %v4376, %v4703
        %v4763 = vadd.f32 %v4377, %v4706
        %v4764 = vadd.f32 %v4378, %v4709
        %v4765 = vadd.f32 %v4379, %v4712
        %v4766 = vadd.f32 %v4380, %v4715
        %v4767 = vadd.f32 %v4381, %v4718
        %v4768 = vadd.f32 %v4382, %v4721
        %v4769 = vadd.f32 %v4383, %v4724
        %v4770 = vadd.f32 %v4384, %v4727
        %v4771 = vadd.f32 %v4385, %v4730
        %v4772 = vadd.f32 %v4386, %v4733
        %v4773 = vadd.f32 %v4387, %v4736
        %v4774 = vadd.f32 %v4388, %v4739
        %v4775 = vadd.f32 %v4389, %v4742
        %s4776 = scalar_lea.vmem %s3, 512
        %v4777 = vld [vmem:[%s4776] sm:$0xff]
        %v4778 = vld [vmem:[%s4776 + $0x8] sm:$0xff]
        %v4779 = vld [vmem:[%s4776 + $0x10] sm:$0xff]
        %v4780 = vld [vmem:[%s4776 + $0x18] sm:$0xff]
        %v4781 = vld [vmem:[%s4776 + $0x20] sm:$0xff]
        %v4782 = vld [vmem:[%s4776 + $0x28] sm:$0xff]
        %v4783 = vld [vmem:[%s4776 + $0x30] sm:$0xff]
        %v4784 = vld [vmem:[%s4776 + $0x38] sm:$0xff]
        %v4785 = vld [vmem:[%s4776 + $0x40] sm:$0xff]
        %v4786 = vld [vmem:[%s4776 + $0x48] sm:$0xff]
        %v4787 = vld [vmem:[%s4776 + $0x50] sm:$0xff]
        %v4788 = vld [vmem:[%s4776 + $0x58] sm:$0xff]
        %v4789 = vld [vmem:[%s4776 + $0x60] sm:$0xff]
        %v4790 = vld [vmem:[%s4776 + $0x68] sm:$0xff]
        %v4791 = vld [vmem:[%s4776 + $0x70] sm:$0xff]
        %v4792 = vld [vmem:[%s4776 + $0x78] sm:$0xff]
        %4793 = vmatpush.msra.mxu0 %v4792
        %4794 = vmatpush.msra.mxu0 %v4791
        %4795 = vmatpush.msra.mxu0 %v4790
        %4796 = vmatpush.msra.mxu0 %v4789
        %4797 = vmatpush.msra.mxu0 %v4788
        %4798 = vmatpush.msra.mxu0 %v4787
        %4799 = vmatpush.msra.mxu0 %v4786
        %4800 = vmatpush.msra.mxu0 %v4785
        %4801 = vmatpush.msra.mxu0 %v4784
        %4802 = vmatpush.msra.mxu0 %v4783
        %4803 = vmatpush.msra.mxu0 %v4782
        %4804 = vmatpush.msra.mxu0 %v4781
        %4805 = vmatpush.msra.mxu0 %v4780
        %4806 = vmatpush.msra.mxu0 %v4779
        %4807 = vmatpush.msra.mxu0 %v4778
        %4808 = vmatpush.msra.mxu0 %v4777
        %4809 = vmatmul.f32.gmra.mxu0 %v4390
        %v4810 = vpop.f32.mrf.mxu0
        %v4811 = vadd.f32 0.0, %v4810
        %4812 = vmatmul.f32.gmra.mxu0 %v4391
        %v4813 = vpop.f32.mrf.mxu0
        %v4814 = vadd.f32 0.0, %v4813
        %4815 = vmatmul.f32.gmra.mxu0 %v4392
        %v4816 = vpop.f32.mrf.mxu0
        %v4817 = vadd.f32 0.0, %v4816
        %4818 = vmatmul.f32.gmra.mxu0 %v4393
        %v4819 = vpop.f32.mrf.mxu0
        %v4820 = vadd.f32 0.0, %v4819
        %4821 = vmatmul.f32.gmra.mxu0 %v4394
        %v4822 = vpop.f32.mrf.mxu0
        %v4823 = vadd.f32 0.0, %v4822
        %4824 = vmatmul.f32.gmra.mxu0 %v4395
        %v4825 = vpop.f32.mrf.mxu0
        %v4826 = vadd.f32 0.0, %v4825
        %4827 = vmatmul.f32.gmra.mxu0 %v4396
        %v4828 = vpop.f32.mrf.mxu0
        %v4829 = vadd.f32 0.0, %v4828
        %4830 = vmatmul.f32.gmra.mxu0 %v4397
        %v4831 = vpop.f32.mrf.mxu0
        %v4832 = vadd.f32 0.0, %v4831
        %4833 = vmatmul.f32.gmra.mxu0 %v4398
        %v4834 = vpop.f32.mrf.mxu0
        %v4835 = vadd.f32 0.0, %v4834
        %4836 = vmatmul.f32.gmra.mxu0 %v4399
        %v4837 = vpop.f32.mrf.mxu0
        %v4838 = vadd.f32 0.0, %v4837
        %4839 = vmatmul.f32.gmra.mxu0 %v4400
        %v4840 = vpop.f32.mrf.mxu0
        %v4841 = vadd.f32 0.0, %v4840
        %4842 = vmatmul.f32.gmra.mxu0 %v4401
        %v4843 = vpop.f32.mrf.mxu0
        %v4844 = vadd.f32 0.0, %v4843
        %4845 = vmatmul.f32.gmra.mxu0 %v4402
        %v4846 = vpop.f32.mrf.mxu0
        %v4847 = vadd.f32 0.0, %v4846
        %4848 = vmatmul.f32.gmra.mxu0 %v4403
        %v4849 = vpop.f32.mrf.mxu0
        %v4850 = vadd.f32 0.0, %v4849
        %4851 = vmatmul.f32.gmra.mxu0 %v4404
        %v4852 = vpop.f32.mrf.mxu0
        %v4853 = vadd.f32 0.0, %v4852
        %4854 = vmatmul.f32.gmra.mxu0 %v4405
        %v4855 = vpop.f32.mrf.mxu0
        %v4856 = vadd.f32 0.0, %v4855
        %4857 = vmatmul.f32.gmra.mxu0 %v4406
        %v4858 = vpop.f32.mrf.mxu0
        %v4859 = vadd.f32 0.0, %v4858
        %4860 = vmatmul.f32.gmra.mxu0 %v4407
        %v4861 = vpop.f32.mrf.mxu0
        %v4862 = vadd.f32 0.0, %v4861
        %4863 = vmatmul.f32.gmra.mxu0 %v4408
        %v4864 = vpop.f32.mrf.mxu0
        %v4865 = vadd.f32 0.0, %v4864
        %4866 = vmatmul.f32.gmra.mxu0 %v4409
        %v4867 = vpop.f32.mrf.mxu0
        %v4868 = vadd.f32 0.0, %v4867
        %4869 = vmatmul.f32.gmra.mxu0 %v4410
        %v4870 = vpop.f32.mrf.mxu0
        %v4871 = vadd.f32 0.0, %v4870
        %4872 = vmatmul.f32.gmra.mxu0 %v4411
        %v4873 = vpop.f32.mrf.mxu0
        %v4874 = vadd.f32 0.0, %v4873
        %4875 = vmatmul.f32.gmra.mxu0 %v4412
        %v4876 = vpop.f32.mrf.mxu0
        %v4877 = vadd.f32 0.0, %v4876
        %4878 = vmatmul.f32.gmra.mxu0 %v4413
        %v4879 = vpop.f32.mrf.mxu0
        %v4880 = vadd.f32 0.0, %v4879
        %4881 = vmatmul.f32.gmra.mxu0 %v4414
        %v4882 = vpop.f32.mrf.mxu0
        %v4883 = vadd.f32 0.0, %v4882
        %4884 = vmatmul.f32.gmra.mxu0 %v4415
        %v4885 = vpop.f32.mrf.mxu0
        %v4886 = vadd.f32 0.0, %v4885
        %4887 = vmatmul.f32.gmra.mxu0 %v4416
        %v4888 = vpop.f32.mrf.mxu0
        %v4889 = vadd.f32 0.0, %v4888
        %4890 = vmatmul.f32.gmra.mxu0 %v4417
        %v4891 = vpop.f32.mrf.mxu0
        %v4892 = vadd.f32 0.0, %v4891
        %4893 = vmatmul.f32.gmra.mxu0 %v4418
        %v4894 = vpop.f32.mrf.mxu0
        %v4895 = vadd.f32 0.0, %v4894
        %4896 = vmatmul.f32.gmra.mxu0 %v4419
        %v4897 = vpop.f32.mrf.mxu0
        %v4898 = vadd.f32 0.0, %v4897
        %4899 = vmatmul.f32.gmra.mxu0 %v4420
        %v4900 = vpop.f32.mrf.mxu0
        %v4901 = vadd.f32 0.0, %v4900
        %4902 = vmatmul.f32.gmra.mxu0 %v4421
        %v4903 = vpop.f32.mrf.mxu0
        %v4904 = vadd.f32 0.0, %v4903
        %4905 = vdwg.mxu0
        %v4906 = vadd.f32 %v4744, %v4811
        %v4907 = vadd.f32 %v4745, %v4814
        %v4908 = vadd.f32 %v4746, %v4817
        %v4909 = vadd.f32 %v4747, %v4820
        %v4910 = vadd.f32 %v4748, %v4823
        %v4911 = vadd.f32 %v4749, %v4826
        %v4912 = vadd.f32 %v4750, %v4829
        %v4913 = vadd.f32 %v4751, %v4832
        %v4914 = vadd.f32 %v4752, %v4835
        %v4915 = vadd.f32 %v4753, %v4838
        %v4916 = vadd.f32 %v4754, %v4841
        %v4917 = vadd.f32 %v4755, %v4844
        %v4918 = vadd.f32 %v4756, %v4847
        %v4919 = vadd.f32 %v4757, %v4850
        %v4920 = vadd.f32 %v4758, %v4853
        %v4921 = vadd.f32 %v4759, %v4856
        %v4922 = vadd.f32 %v4760, %v4859
        %v4923 = vadd.f32 %v4761, %v4862
        %v4924 = vadd.f32 %v4762, %v4865
        %v4925 = vadd.f32 %v4763, %v4868
        %v4926 = vadd.f32 %v4764, %v4871
        %v4927 = vadd.f32 %v4765, %v4874
        %v4928 = vadd.f32 %v4766, %v4877
        %v4929 = vadd.f32 %v4767, %v4880
        %v4930 = vadd.f32 %v4768, %v4883
        %v4931 = vadd.f32 %v4769, %v4886
        %v4932 = vadd.f32 %v4770, %v4889
        %v4933 = vadd.f32 %v4771, %v4892
        %v4934 = vadd.f32 %v4772, %v4895
        %v4935 = vadd.f32 %v4773, %v4898
        %v4936 = vadd.f32 %v4774, %v4901
        %v4937 = vadd.f32 %v4775, %v4904
        %s4938 = scalar_lea.vmem %s3, 640
        %v4939 = vld [vmem:[%s4938] sm:$0xff]
        %v4940 = vld [vmem:[%s4938 + $0x8] sm:$0xff]
        %v4941 = vld [vmem:[%s4938 + $0x10] sm:$0xff]
        %v4942 = vld [vmem:[%s4938 + $0x18] sm:$0xff]
        %v4943 = vld [vmem:[%s4938 + $0x20] sm:$0xff]
        %v4944 = vld [vmem:[%s4938 + $0x28] sm:$0xff]
        %v4945 = vld [vmem:[%s4938 + $0x30] sm:$0xff]
        %v4946 = vld [vmem:[%s4938 + $0x38] sm:$0xff]
        %v4947 = vld [vmem:[%s4938 + $0x40] sm:$0xff]
        %v4948 = vld [vmem:[%s4938 + $0x48] sm:$0xff]
        %v4949 = vld [vmem:[%s4938 + $0x50] sm:$0xff]
        %v4950 = vld [vmem:[%s4938 + $0x58] sm:$0xff]
        %v4951 = vld [vmem:[%s4938 + $0x60] sm:$0xff]
        %v4952 = vld [vmem:[%s4938 + $0x68] sm:$0xff]
        %v4953 = vld [vmem:[%s4938 + $0x70] sm:$0xff]
        %v4954 = vld [vmem:[%s4938 + $0x78] sm:$0xff]
        %4955 = vmatpush.msra.mxu0 %v4954
        %4956 = vmatpush.msra.mxu0 %v4953
        %4957 = vmatpush.msra.mxu0 %v4952
        %4958 = vmatpush.msra.mxu0 %v4951
        %4959 = vmatpush.msra.mxu0 %v4950
        %4960 = vmatpush.msra.mxu0 %v4949
        %4961 = vmatpush.msra.mxu0 %v4948
        %4962 = vmatpush.msra.mxu0 %v4947
        %4963 = vmatpush.msra.mxu0 %v4946
        %4964 = vmatpush.msra.mxu0 %v4945
        %4965 = vmatpush.msra.mxu0 %v4944
        %4966 = vmatpush.msra.mxu0 %v4943
        %4967 = vmatpush.msra.mxu0 %v4942
        %4968 = vmatpush.msra.mxu0 %v4941
        %4969 = vmatpush.msra.mxu0 %v4940
        %4970 = vmatpush.msra.mxu0 %v4939
        %4971 = vmatmul.f32.gmra.mxu0 %v4582
        %v4972 = vpop.f32.mrf.mxu0
        %v4973 = vadd.f32 0.0, %v4972
        %4974 = vmatmul.f32.gmra.mxu0 %v4583
        %v4975 = vpop.f32.mrf.mxu0
        %v4976 = vadd.f32 0.0, %v4975
        %4977 = vmatmul.f32.gmra.mxu0 %v4584
        %v4978 = vpop.f32.mrf.mxu0
        %v4979 = vadd.f32 0.0, %v4978
        %4980 = vmatmul.f32.gmra.mxu0 %v4585
        %v4981 = vpop.f32.mrf.mxu0
        %v4982 = vadd.f32 0.0, %v4981
        %4983 = vmatmul.f32.gmra.mxu0 %v4586
        %v4984 = vpop.f32.mrf.mxu0
        %v4985 = vadd.f32 0.0, %v4984
        %4986 = vmatmul.f32.gmra.mxu0 %v4587
        %v4987 = vpop.f32.mrf.mxu0
        %v4988 = vadd.f32 0.0, %v4987
        %4989 = vmatmul.f32.gmra.mxu0 %v4588
        %v4990 = vpop.f32.mrf.mxu0
        %v4991 = vadd.f32 0.0, %v4990
        %4992 = vmatmul.f32.gmra.mxu0 %v4589
        %v4993 = vpop.f32.mrf.mxu0
        %v4994 = vadd.f32 0.0, %v4993
        %4995 = vmatmul.f32.gmra.mxu0 %v4590
        %v4996 = vpop.f32.mrf.mxu0
        %v4997 = vadd.f32 0.0, %v4996
        %4998 = vmatmul.f32.gmra.mxu0 %v4591
        %v4999 = vpop.f32.mrf.mxu0
        %v5000 = vadd.f32 0.0, %v4999
        %5001 = vmatmul.f32.gmra.mxu0 %v4592
        %v5002 = vpop.f32.mrf.mxu0
        %v5003 = vadd.f32 0.0, %v5002
        %5004 = vmatmul.f32.gmra.mxu0 %v4593
        %v5005 = vpop.f32.mrf.mxu0
        %v5006 = vadd.f32 0.0, %v5005
        %5007 = vmatmul.f32.gmra.mxu0 %v4594
        %v5008 = vpop.f32.mrf.mxu0
        %v5009 = vadd.f32 0.0, %v5008
        %5010 = vmatmul.f32.gmra.mxu0 %v4595
        %v5011 = vpop.f32.mrf.mxu0
        %v5012 = vadd.f32 0.0, %v5011
        %5013 = vmatmul.f32.gmra.mxu0 %v4596
        %v5014 = vpop.f32.mrf.mxu0
        %v5015 = vadd.f32 0.0, %v5014
        %5016 = vmatmul.f32.gmra.mxu0 %v4597
        %v5017 = vpop.f32.mrf.mxu0
        %v5018 = vadd.f32 0.0, %v5017
        %5019 = vmatmul.f32.gmra.mxu0 %v4598
        %v5020 = vpop.f32.mrf.mxu0
        %v5021 = vadd.f32 0.0, %v5020
        %5022 = vmatmul.f32.gmra.mxu0 %v4599
        %v5023 = vpop.f32.mrf.mxu0
        %v5024 = vadd.f32 0.0, %v5023
        %5025 = vmatmul.f32.gmra.mxu0 %v4600
        %v5026 = vpop.f32.mrf.mxu0
        %v5027 = vadd.f32 0.0, %v5026
        %5028 = vmatmul.f32.gmra.mxu0 %v4601
        %v5029 = vpop.f32.mrf.mxu0
        %v5030 = vadd.f32 0.0, %v5029
        %5031 = vmatmul.f32.gmra.mxu0 %v4602
        %v5032 = vpop.f32.mrf.mxu0
        %v5033 = vadd.f32 0.0, %v5032
        %5034 = vmatmul.f32.gmra.mxu0 %v4603
        %v5035 = vpop.f32.mrf.mxu0
        %v5036 = vadd.f32 0.0, %v5035
        %5037 = vmatmul.f32.gmra.mxu0 %v4604
        %v5038 = vpop.f32.mrf.mxu0
        %v5039 = vadd.f32 0.0, %v5038
        %5040 = vmatmul.f32.gmra.mxu0 %v4605
        %v5041 = vpop.f32.mrf.mxu0
        %v5042 = vadd.f32 0.0, %v5041
        %5043 = vmatmul.f32.gmra.mxu0 %v4606
        %v5044 = vpop.f32.mrf.mxu0
        %v5045 = vadd.f32 0.0, %v5044
        %5046 = vmatmul.f32.gmra.mxu0 %v4607
        %v5047 = vpop.f32.mrf.mxu0
        %v5048 = vadd.f32 0.0, %v5047
        %5049 = vmatmul.f32.gmra.mxu0 %v4608
        %v5050 = vpop.f32.mrf.mxu0
        %v5051 = vadd.f32 0.0, %v5050
        %5052 = vmatmul.f32.gmra.mxu0 %v4609
        %v5053 = vpop.f32.mrf.mxu0
        %v5054 = vadd.f32 0.0, %v5053
        %5055 = vmatmul.f32.gmra.mxu0 %v4610
        %v5056 = vpop.f32.mrf.mxu0
        %v5057 = vadd.f32 0.0, %v5056
        %5058 = vmatmul.f32.gmra.mxu0 %v4611
        %v5059 = vpop.f32.mrf.mxu0
        %v5060 = vadd.f32 0.0, %v5059
        %5061 = vmatmul.f32.gmra.mxu0 %v4612
        %v5062 = vpop.f32.mrf.mxu0
        %v5063 = vadd.f32 0.0, %v5062
        %5064 = vmatmul.f32.gmra.mxu0 %v4613
        %v5065 = vpop.f32.mrf.mxu0
        %v5066 = vadd.f32 0.0, %v5065
        %5067 = vdwg.mxu0
        %v5068 = vadd.f32 %v4906, %v4973
        %v5069 = vadd.f32 %v4907, %v4976
        %v5070 = vadd.f32 %v4908, %v4979
        %v5071 = vadd.f32 %v4909, %v4982
        %v5072 = vadd.f32 %v4910, %v4985
        %v5073 = vadd.f32 %v4911, %v4988
        %v5074 = vadd.f32 %v4912, %v4991
        %v5075 = vadd.f32 %v4913, %v4994
        %v5076 = vadd.f32 %v4914, %v4997
        %v5077 = vadd.f32 %v4915, %v5000
        %v5078 = vadd.f32 %v4916, %v5003
        %v5079 = vadd.f32 %v4917, %v5006
        %v5080 = vadd.f32 %v4918, %v5009
        %v5081 = vadd.f32 %v4919, %v5012
        %v5082 = vadd.f32 %v4920, %v5015
        %v5083 = vadd.f32 %v4921, %v5018
        %v5084 = vadd.f32 %v4922, %v5021
        %v5085 = vadd.f32 %v4923, %v5024
        %v5086 = vadd.f32 %v4924, %v5027
        %v5087 = vadd.f32 %v4925, %v5030
        %v5088 = vadd.f32 %v4926, %v5033
        %v5089 = vadd.f32 %v4927, %v5036
        %v5090 = vadd.f32 %v4928, %v5039
        %v5091 = vadd.f32 %v4929, %v5042
        %v5092 = vadd.f32 %v4930, %v5045
        %v5093 = vadd.f32 %v4931, %v5048
        %v5094 = vadd.f32 %v4932, %v5051
        %v5095 = vadd.f32 %v4933, %v5054
        %v5096 = vadd.f32 %v4934, %v5057
        %v5097 = vadd.f32 %v4935, %v5060
        %v5098 = vadd.f32 %v4936, %v5063
        %v5099 = vadd.f32 %v4937, %v5066
        %v5100 = vld [vmem:[#allocation3 + $0x20] sm:$0xff]
        %v5101 = vld [vmem:[#allocation3 + $0x28] sm:$0xff]
        %v5102 = vld [vmem:[#allocation3 + $0x30] sm:$0xff]
        %v5103 = vld [vmem:[#allocation3 + $0x38] sm:$0xff]
        %v5104 = vld [vmem:[#allocation3 + $0x40] sm:$0xff]
        %v5105 = vld [vmem:[#allocation3 + $0x48] sm:$0xff]
        %v5106 = vld [vmem:[#allocation3 + $0x50] sm:$0xff]
        %v5107 = vld [vmem:[#allocation3 + $0x58] sm:$0xff]
        %v5108 = vld [vmem:[#allocation3 + $0x60] sm:$0xff]
        %v5109 = vld [vmem:[#allocation3 + $0x68] sm:$0xff]
        %v5110 = vld [vmem:[#allocation3 + $0x70] sm:$0xff]
        %v5111 = vld [vmem:[#allocation3 + $0x78] sm:$0xff]
        %v5112 = vld [vmem:[#allocation3 + $0x80] sm:$0xff]
        %v5113 = vld [vmem:[#allocation3 + $0x88] sm:$0xff]
        %v5114 = vld [vmem:[#allocation3 + $0x90] sm:$0xff]
        %v5115 = vld [vmem:[#allocation3 + $0x98] sm:$0xff]
        %v5116 = vld [vmem:[#allocation3 + $0xa0] sm:$0xff]
        %v5117 = vld [vmem:[#allocation3 + $0xa8] sm:$0xff]
        %v5118 = vld [vmem:[#allocation3 + $0xb0] sm:$0xff]
        %v5119 = vld [vmem:[#allocation3 + $0xb8] sm:$0xff]
        %v5120 = vld [vmem:[#allocation3 + $0xc0] sm:$0xff]
        %v5121 = vld [vmem:[#allocation3 + $0xc8] sm:$0xff]
        %v5122 = vld [vmem:[#allocation3 + $0xd0] sm:$0xff]
        %v5123 = vld [vmem:[#allocation3 + $0xd8] sm:$0xff]
        %v5124 = vld [vmem:[#allocation3 + $0xe0] sm:$0xff]
        %v5125 = vld [vmem:[#allocation3 + $0xe8] sm:$0xff]
        %v5126 = vld [vmem:[#allocation3 + $0xf0] sm:$0xff]
        %v5127 = vld [vmem:[#allocation3 + $0xf8] sm:$0xff]
        %v5128 = vld [vmem:[#allocation3 + $0x100] sm:$0xff]
        %v5129 = vld [vmem:[#allocation3 + $0x108] sm:$0xff]
        %v5130 = vld [vmem:[#allocation3 + $0x110] sm:$0xff]
        %v5131 = vld [vmem:[#allocation3 + $0x118] sm:$0xff]
        %v5132 = vrot.slane %v5100, 7
        %v5133 = vrot.slane %v5101, 7
        %v5134 = vrot.slane %v5102, 7
        %v5135 = vrot.slane %v5103, 7
        %v5136 = vrot.slane %v5104, 7
        %v5137 = vrot.slane %v5105, 7
        %v5138 = vrot.slane %v5106, 7
        %v5139 = vrot.slane %v5107, 7
        %v5140 = vrot.slane %v5108, 7
        %v5141 = vrot.slane %v5109, 7
        %v5142 = vrot.slane %v5110, 7
        %v5143 = vrot.slane %v5111, 7
        %v5144 = vrot.slane %v5112, 7
        %v5145 = vrot.slane %v5113, 7
        %v5146 = vrot.slane %v5114, 7
        %v5147 = vrot.slane %v5115, 7
        %v5148 = vrot.slane %v5116, 7
        %v5149 = vrot.slane %v5117, 7
        %v5150 = vrot.slane %v5118, 7
        %v5151 = vrot.slane %v5119, 7
        %v5152 = vrot.slane %v5120, 7
        %v5153 = vrot.slane %v5121, 7
        %v5154 = vrot.slane %v5122, 7
        %v5155 = vrot.slane %v5123, 7
        %v5156 = vrot.slane %v5124, 7
        %v5157 = vrot.slane %v5125, 7
        %v5158 = vrot.slane %v5126, 7
        %v5159 = vrot.slane %v5127, 7
        %v5160 = vrot.slane %v5128, 7
        %v5161 = vrot.slane %v5129, 7
        %v5162 = vrot.slane %v5130, 7
        %v5163 = vrot.slane %v5131, 7
        %v5164 = vsel %vm815, %v5162, %v5163
        %v5165 = vsel %vm815, %v5161, %v5162
        %v5166 = vsel %vm815, %v5160, %v5161
        %v5167 = vsel %vm815, %v5159, %v5160
        %v5168 = vsel %vm815, %v5158, %v5159
        %v5169 = vsel %vm815, %v5157, %v5158
        %v5170 = vsel %vm815, %v5156, %v5157
        %v5171 = vsel %vm815, %v5155, %v5156
        %v5172 = vsel %vm815, %v5154, %v5155
        %v5173 = vsel %vm815, %v5153, %v5154
        %v5174 = vsel %vm815, %v5152, %v5153
        %v5175 = vsel %vm815, %v5151, %v5152
        %v5176 = vsel %vm815, %v5150, %v5151
        %v5177 = vsel %vm815, %v5149, %v5150
        %v5178 = vsel %vm815, %v5148, %v5149
        %v5179 = vsel %vm815, %v5147, %v5148
        %v5180 = vsel %vm815, %v5146, %v5147
        %v5181 = vsel %vm815, %v5145, %v5146
        %v5182 = vsel %vm815, %v5144, %v5145
        %v5183 = vsel %vm815, %v5143, %v5144
        %v5184 = vsel %vm815, %v5142, %v5143
        %v5185 = vsel %vm815, %v5141, %v5142
        %v5186 = vsel %vm815, %v5140, %v5141
        %v5187 = vsel %vm815, %v5139, %v5140
        %v5188 = vsel %vm815, %v5138, %v5139
        %v5189 = vsel %vm815, %v5137, %v5138
        %v5190 = vsel %vm815, %v5136, %v5137
        %v5191 = vsel %vm815, %v5135, %v5136
        %v5192 = vsel %vm815, %v5134, %v5135
        %v5193 = vsel %vm815, %v5133, %v5134
        %v5194 = vsel %vm815, %v5132, %v5133
        %v5195 = vsel %vm815, %v5163, %v5132
        %v5196 = vsel %vm3745, %v5195, 0.0
        %v5197 = vsel %vm3746, %v5194, 0.0
        %v5198 = vsel %vm3747, %v5193, 0.0
        %v5199 = vsel %vm3748, %v5192, 0.0
        %v5200 = vsel %vm3749, %v5191, 0.0
        %v5201 = vsel %vm3750, %v5190, 0.0
        %v5202 = vsel %vm3751, %v5189, 0.0
        %v5203 = vsel %vm3752, %v5188, 0.0
        %v5204 = vsel %vm3753, %v5187, 0.0
        %v5205 = vsel %vm3754, %v5186, 0.0
        %v5206 = vsel %vm3755, %v5185, 0.0
        %v5207 = vsel %vm3756, %v5184, 0.0
        %v5208 = vsel %vm3757, %v5183, 0.0
        %v5209 = vsel %vm3758, %v5182, 0.0
        %v5210 = vsel %vm3759, %v5181, 0.0
        %v5211 = vsel %vm3760, %v5180, 0.0
        %v5212 = vsel %vm3761, %v5179, 0.0
        %v5213 = vsel %vm3762, %v5178, 0.0
        %v5214 = vsel %vm3763, %v5177, 0.0
        %v5215 = vsel %vm3764, %v5176, 0.0
        %v5216 = vsel %vm3765, %v5175, 0.0
        %v5217 = vsel %vm3766, %v5174, 0.0
        %v5218 = vsel %vm3767, %v5173, 0.0
        %v5219 = vsel %vm3768, %v5172, 0.0
        %v5220 = vsel %vm3769, %v5171, 0.0
        %v5221 = vsel %vm3770, %v5170, 0.0
        %v5222 = vsel %vm3771, %v5169, 0.0
        %v5223 = vsel %vm3772, %v5168, 0.0
        %v5224 = vsel %vm3773, %v5167, 0.0
        %v5225 = vsel %vm3774, %v5166, 0.0
        %v5226 = vsel %vm3775, %v5165, 0.0
        %v5227 = vsel %vm3776, %v5164, 0.0
        %v5228 = vrot.slane %v5100, 1
        %v5229 = vrot.slane %v5101, 1
        %v5230 = vrot.slane %v5102, 1
        %v5231 = vrot.slane %v5103, 1
        %v5232 = vrot.slane %v5104, 1
        %v5233 = vrot.slane %v5105, 1
        %v5234 = vrot.slane %v5106, 1
        %v5235 = vrot.slane %v5107, 1
        %v5236 = vrot.slane %v5108, 1
        %v5237 = vrot.slane %v5109, 1
        %v5238 = vrot.slane %v5110, 1
        %v5239 = vrot.slane %v5111, 1
        %v5240 = vrot.slane %v5112, 1
        %v5241 = vrot.slane %v5113, 1
        %v5242 = vrot.slane %v5114, 1
        %v5243 = vrot.slane %v5115, 1
        %v5244 = vrot.slane %v5116, 1
        %v5245 = vrot.slane %v5117, 1
        %v5246 = vrot.slane %v5118, 1
        %v5247 = vrot.slane %v5119, 1
        %v5248 = vrot.slane %v5120, 1
        %v5249 = vrot.slane %v5121, 1
        %v5250 = vrot.slane %v5122, 1
        %v5251 = vrot.slane %v5123, 1
        %v5252 = vrot.slane %v5124, 1
        %v5253 = vrot.slane %v5125, 1
        %v5254 = vrot.slane %v5126, 1
        %v5255 = vrot.slane %v5127, 1
        %v5256 = vrot.slane %v5128, 1
        %v5257 = vrot.slane %v5129, 1
        %v5258 = vrot.slane %v5130, 1
        %v5259 = vrot.slane %v5131, 1
        %v5260 = vsel %vm912, %v5258, %v5259
        %v5261 = vsel %vm912, %v5257, %v5258
        %v5262 = vsel %vm912, %v5256, %v5257
        %v5263 = vsel %vm912, %v5255, %v5256
        %v5264 = vsel %vm912, %v5254, %v5255
        %v5265 = vsel %vm912, %v5253, %v5254
        %v5266 = vsel %vm912, %v5252, %v5253
        %v5267 = vsel %vm912, %v5251, %v5252
        %v5268 = vsel %vm912, %v5250, %v5251
        %v5269 = vsel %vm912, %v5249, %v5250
        %v5270 = vsel %vm912, %v5248, %v5249
        %v5271 = vsel %vm912, %v5247, %v5248
        %v5272 = vsel %vm912, %v5246, %v5247
        %v5273 = vsel %vm912, %v5245, %v5246
        %v5274 = vsel %vm912, %v5244, %v5245
        %v5275 = vsel %vm912, %v5243, %v5244
        %v5276 = vsel %vm912, %v5242, %v5243
        %v5277 = vsel %vm912, %v5241, %v5242
        %v5278 = vsel %vm912, %v5240, %v5241
        %v5279 = vsel %vm912, %v5239, %v5240
        %v5280 = vsel %vm912, %v5238, %v5239
        %v5281 = vsel %vm912, %v5237, %v5238
        %v5282 = vsel %vm912, %v5236, %v5237
        %v5283 = vsel %vm912, %v5235, %v5236
        %v5284 = vsel %vm912, %v5234, %v5235
        %v5285 = vsel %vm912, %v5233, %v5234
        %v5286 = vsel %vm912, %v5232, %v5233
        %v5287 = vsel %vm912, %v5231, %v5232
        %v5288 = vsel %vm912, %v5230, %v5231
        %v5289 = vsel %vm912, %v5229, %v5230
        %v5290 = vsel %vm912, %v5228, %v5229
        %v5291 = vsel %vm912, %v5259, %v5228
        %v5292 = vsel %vm3905, %v5290, 0.0
        %v5293 = vsel %vm3906, %v5289, 0.0
        %v5294 = vsel %vm3907, %v5288, 0.0
        %v5295 = vsel %vm3908, %v5287, 0.0
        %v5296 = vsel %vm3909, %v5286, 0.0
        %v5297 = vsel %vm3910, %v5285, 0.0
        %v5298 = vsel %vm3911, %v5284, 0.0
        %v5299 = vsel %vm3912, %v5283, 0.0
        %v5300 = vsel %vm3913, %v5282, 0.0
        %v5301 = vsel %vm3914, %v5281, 0.0
        %v5302 = vsel %vm3915, %v5280, 0.0
        %v5303 = vsel %vm3916, %v5279, 0.0
        %v5304 = vsel %vm3917, %v5278, 0.0
        %v5305 = vsel %vm3918, %v5277, 0.0
        %v5306 = vsel %vm3919, %v5276, 0.0
        %v5307 = vsel %vm3920, %v5275, 0.0
        %v5308 = vsel %vm3921, %v5274, 0.0
        %v5309 = vsel %vm3922, %v5273, 0.0
        %v5310 = vsel %vm3923, %v5272, 0.0
        %v5311 = vsel %vm3924, %v5271, 0.0
        %v5312 = vsel %vm3925, %v5270, 0.0
        %v5313 = vsel %vm3926, %v5269, 0.0
        %v5314 = vsel %vm3927, %v5268, 0.0
        %v5315 = vsel %vm3928, %v5267, 0.0
        %v5316 = vsel %vm3929, %v5266, 0.0
        %v5317 = vsel %vm3930, %v5265, 0.0
        %v5318 = vsel %vm3931, %v5264, 0.0
        %v5319 = vsel %vm3932, %v5263, 0.0
        %v5320 = vsel %vm3933, %v5262, 0.0
        %v5321 = vsel %vm3934, %v5261, 0.0
        %v5322 = vsel %vm3935, %v5260, 0.0
        %v5323 = vsel %vm3936, %v5291, 0.0
        %s5324 = scalar_lea.vmem %s3, 768
        %v5325 = vld [vmem:[%s5324] sm:$0xff]
        %v5326 = vld [vmem:[%s5324 + $0x8] sm:$0xff]
        %v5327 = vld [vmem:[%s5324 + $0x10] sm:$0xff]
        %v5328 = vld [vmem:[%s5324 + $0x18] sm:$0xff]
        %v5329 = vld [vmem:[%s5324 + $0x20] sm:$0xff]
        %v5330 = vld [vmem:[%s5324 + $0x28] sm:$0xff]
        %v5331 = vld [vmem:[%s5324 + $0x30] sm:$0xff]
        %v5332 = vld [vmem:[%s5324 + $0x38] sm:$0xff]
        %v5333 = vld [vmem:[%s5324 + $0x40] sm:$0xff]
        %v5334 = vld [vmem:[%s5324 + $0x48] sm:$0xff]
        %v5335 = vld [vmem:[%s5324 + $0x50] sm:$0xff]
        %v5336 = vld [vmem:[%s5324 + $0x58] sm:$0xff]
        %v5337 = vld [vmem:[%s5324 + $0x60] sm:$0xff]
        %v5338 = vld [vmem:[%s5324 + $0x68] sm:$0xff]
        %v5339 = vld [vmem:[%s5324 + $0x70] sm:$0xff]
        %v5340 = vld [vmem:[%s5324 + $0x78] sm:$0xff]
        %5341 = vmatpush.msra.mxu0 %v5340
        %5342 = vmatpush.msra.mxu0 %v5339
        %5343 = vmatpush.msra.mxu0 %v5338
        %5344 = vmatpush.msra.mxu0 %v5337
        %5345 = vmatpush.msra.mxu0 %v5336
        %5346 = vmatpush.msra.mxu0 %v5335
        %5347 = vmatpush.msra.mxu0 %v5334
        %5348 = vmatpush.msra.mxu0 %v5333
        %5349 = vmatpush.msra.mxu0 %v5332
        %5350 = vmatpush.msra.mxu0 %v5331
        %5351 = vmatpush.msra.mxu0 %v5330
        %5352 = vmatpush.msra.mxu0 %v5329
        %5353 = vmatpush.msra.mxu0 %v5328
        %5354 = vmatpush.msra.mxu0 %v5327
        %5355 = vmatpush.msra.mxu0 %v5326
        %5356 = vmatpush.msra.mxu0 %v5325
        %5357 = vmatmul.f32.gmra.mxu0 %v5196
        %v5358 = vpop.f32.mrf.mxu0
        %v5359 = vadd.f32 0.0, %v5358
        %5360 = vmatmul.f32.gmra.mxu0 %v5197
        %v5361 = vpop.f32.mrf.mxu0
        %v5362 = vadd.f32 0.0, %v5361
        %5363 = vmatmul.f32.gmra.mxu0 %v5198
        %v5364 = vpop.f32.mrf.mxu0
        %v5365 = vadd.f32 0.0, %v5364
        %5366 = vmatmul.f32.gmra.mxu0 %v5199
        %v5367 = vpop.f32.mrf.mxu0
        %v5368 = vadd.f32 0.0, %v5367
        %5369 = vmatmul.f32.gmra.mxu0 %v5200
        %v5370 = vpop.f32.mrf.mxu0
        %v5371 = vadd.f32 0.0, %v5370
        %5372 = vmatmul.f32.gmra.mxu0 %v5201
        %v5373 = vpop.f32.mrf.mxu0
        %v5374 = vadd.f32 0.0, %v5373
        %5375 = vmatmul.f32.gmra.mxu0 %v5202
        %v5376 = vpop.f32.mrf.mxu0
        %v5377 = vadd.f32 0.0, %v5376
        %5378 = vmatmul.f32.gmra.mxu0 %v5203
        %v5379 = vpop.f32.mrf.mxu0
        %v5380 = vadd.f32 0.0, %v5379
        %5381 = vmatmul.f32.gmra.mxu0 %v5204
        %v5382 = vpop.f32.mrf.mxu0
        %v5383 = vadd.f32 0.0, %v5382
        %5384 = vmatmul.f32.gmra.mxu0 %v5205
        %v5385 = vpop.f32.mrf.mxu0
        %v5386 = vadd.f32 0.0, %v5385
        %5387 = vmatmul.f32.gmra.mxu0 %v5206
        %v5388 = vpop.f32.mrf.mxu0
        %v5389 = vadd.f32 0.0, %v5388
        %5390 = vmatmul.f32.gmra.mxu0 %v5207
        %v5391 = vpop.f32.mrf.mxu0
        %v5392 = vadd.f32 0.0, %v5391
        %5393 = vmatmul.f32.gmra.mxu0 %v5208
        %v5394 = vpop.f32.mrf.mxu0
        %v5395 = vadd.f32 0.0, %v5394
        %5396 = vmatmul.f32.gmra.mxu0 %v5209
        %v5397 = vpop.f32.mrf.mxu0
        %v5398 = vadd.f32 0.0, %v5397
        %5399 = vmatmul.f32.gmra.mxu0 %v5210
        %v5400 = vpop.f32.mrf.mxu0
        %v5401 = vadd.f32 0.0, %v5400
        %5402 = vmatmul.f32.gmra.mxu0 %v5211
        %v5403 = vpop.f32.mrf.mxu0
        %v5404 = vadd.f32 0.0, %v5403
        %5405 = vmatmul.f32.gmra.mxu0 %v5212
        %v5406 = vpop.f32.mrf.mxu0
        %v5407 = vadd.f32 0.0, %v5406
        %5408 = vmatmul.f32.gmra.mxu0 %v5213
        %v5409 = vpop.f32.mrf.mxu0
        %v5410 = vadd.f32 0.0, %v5409
        %5411 = vmatmul.f32.gmra.mxu0 %v5214
        %v5412 = vpop.f32.mrf.mxu0
        %v5413 = vadd.f32 0.0, %v5412
        %5414 = vmatmul.f32.gmra.mxu0 %v5215
        %v5415 = vpop.f32.mrf.mxu0
        %v5416 = vadd.f32 0.0, %v5415
        %5417 = vmatmul.f32.gmra.mxu0 %v5216
        %v5418 = vpop.f32.mrf.mxu0
        %v5419 = vadd.f32 0.0, %v5418
        %5420 = vmatmul.f32.gmra.mxu0 %v5217
        %v5421 = vpop.f32.mrf.mxu0
        %v5422 = vadd.f32 0.0, %v5421
        %5423 = vmatmul.f32.gmra.mxu0 %v5218
        %v5424 = vpop.f32.mrf.mxu0
        %v5425 = vadd.f32 0.0, %v5424
        %5426 = vmatmul.f32.gmra.mxu0 %v5219
        %v5427 = vpop.f32.mrf.mxu0
        %v5428 = vadd.f32 0.0, %v5427
        %5429 = vmatmul.f32.gmra.mxu0 %v5220
        %v5430 = vpop.f32.mrf.mxu0
        %v5431 = vadd.f32 0.0, %v5430
        %5432 = vmatmul.f32.gmra.mxu0 %v5221
        %v5433 = vpop.f32.mrf.mxu0
        %v5434 = vadd.f32 0.0, %v5433
        %5435 = vmatmul.f32.gmra.mxu0 %v5222
        %v5436 = vpop.f32.mrf.mxu0
        %v5437 = vadd.f32 0.0, %v5436
        %5438 = vmatmul.f32.gmra.mxu0 %v5223
        %v5439 = vpop.f32.mrf.mxu0
        %v5440 = vadd.f32 0.0, %v5439
        %5441 = vmatmul.f32.gmra.mxu0 %v5224
        %v5442 = vpop.f32.mrf.mxu0
        %v5443 = vadd.f32 0.0, %v5442
        %5444 = vmatmul.f32.gmra.mxu0 %v5225
        %v5445 = vpop.f32.mrf.mxu0
        %v5446 = vadd.f32 0.0, %v5445
        %5447 = vmatmul.f32.gmra.mxu0 %v5226
        %v5448 = vpop.f32.mrf.mxu0
        %v5449 = vadd.f32 0.0, %v5448
        %5450 = vmatmul.f32.gmra.mxu0 %v5227
        %v5451 = vpop.f32.mrf.mxu0
        %v5452 = vadd.f32 0.0, %v5451
        %5453 = vdwg.mxu0
        %v5454 = vadd.f32 %v5068, %v5359
        %v5455 = vadd.f32 %v5069, %v5362
        %v5456 = vadd.f32 %v5070, %v5365
        %v5457 = vadd.f32 %v5071, %v5368
        %v5458 = vadd.f32 %v5072, %v5371
        %v5459 = vadd.f32 %v5073, %v5374
        %v5460 = vadd.f32 %v5074, %v5377
        %v5461 = vadd.f32 %v5075, %v5380
        %v5462 = vadd.f32 %v5076, %v5383
        %v5463 = vadd.f32 %v5077, %v5386
        %v5464 = vadd.f32 %v5078, %v5389
        %v5465 = vadd.f32 %v5079, %v5392
        %v5466 = vadd.f32 %v5080, %v5395
        %v5467 = vadd.f32 %v5081, %v5398
        %v5468 = vadd.f32 %v5082, %v5401
        %v5469 = vadd.f32 %v5083, %v5404
        %v5470 = vadd.f32 %v5084, %v5407
        %v5471 = vadd.f32 %v5085, %v5410
        %v5472 = vadd.f32 %v5086, %v5413
        %v5473 = vadd.f32 %v5087, %v5416
        %v5474 = vadd.f32 %v5088, %v5419
        %v5475 = vadd.f32 %v5089, %v5422
        %v5476 = vadd.f32 %v5090, %v5425
        %v5477 = vadd.f32 %v5091, %v5428
        %v5478 = vadd.f32 %v5092, %v5431
        %v5479 = vadd.f32 %v5093, %v5434
        %v5480 = vadd.f32 %v5094, %v5437
        %v5481 = vadd.f32 %v5095, %v5440
        %v5482 = vadd.f32 %v5096, %v5443
        %v5483 = vadd.f32 %v5097, %v5446
        %v5484 = vadd.f32 %v5098, %v5449
        %v5485 = vadd.f32 %v5099, %v5452
        %s5486 = scalar_lea.vmem %s3, 896
        %v5487 = vld [vmem:[%s5486] sm:$0xff]
        %v5488 = vld [vmem:[%s5486 + $0x8] sm:$0xff]
        %v5489 = vld [vmem:[%s5486 + $0x10] sm:$0xff]
        %v5490 = vld [vmem:[%s5486 + $0x18] sm:$0xff]
        %v5491 = vld [vmem:[%s5486 + $0x20] sm:$0xff]
        %v5492 = vld [vmem:[%s5486 + $0x28] sm:$0xff]
        %v5493 = vld [vmem:[%s5486 + $0x30] sm:$0xff]
        %v5494 = vld [vmem:[%s5486 + $0x38] sm:$0xff]
        %v5495 = vld [vmem:[%s5486 + $0x40] sm:$0xff]
        %v5496 = vld [vmem:[%s5486 + $0x48] sm:$0xff]
        %v5497 = vld [vmem:[%s5486 + $0x50] sm:$0xff]
        %v5498 = vld [vmem:[%s5486 + $0x58] sm:$0xff]
        %v5499 = vld [vmem:[%s5486 + $0x60] sm:$0xff]
        %v5500 = vld [vmem:[%s5486 + $0x68] sm:$0xff]
        %v5501 = vld [vmem:[%s5486 + $0x70] sm:$0xff]
        %v5502 = vld [vmem:[%s5486 + $0x78] sm:$0xff]
        %5503 = vmatpush.msra.mxu0 %v5502
        %5504 = vmatpush.msra.mxu0 %v5501
        %5505 = vmatpush.msra.mxu0 %v5500
        %5506 = vmatpush.msra.mxu0 %v5499
        %5507 = vmatpush.msra.mxu0 %v5498
        %5508 = vmatpush.msra.mxu0 %v5497
        %5509 = vmatpush.msra.mxu0 %v5496
        %5510 = vmatpush.msra.mxu0 %v5495
        %5511 = vmatpush.msra.mxu0 %v5494
        %5512 = vmatpush.msra.mxu0 %v5493
        %5513 = vmatpush.msra.mxu0 %v5492
        %5514 = vmatpush.msra.mxu0 %v5491
        %5515 = vmatpush.msra.mxu0 %v5490
        %5516 = vmatpush.msra.mxu0 %v5489
        %5517 = vmatpush.msra.mxu0 %v5488
        %5518 = vmatpush.msra.mxu0 %v5487
        %5519 = vmatmul.f32.gmra.mxu0 %v5100
        %v5520 = vpop.f32.mrf.mxu0
        %v5521 = vadd.f32 0.0, %v5520
        %5522 = vmatmul.f32.gmra.mxu0 %v5101
        %v5523 = vpop.f32.mrf.mxu0
        %v5524 = vadd.f32 0.0, %v5523
        %5525 = vmatmul.f32.gmra.mxu0 %v5102
        %v5526 = vpop.f32.mrf.mxu0
        %v5527 = vadd.f32 0.0, %v5526
        %5528 = vmatmul.f32.gmra.mxu0 %v5103
        %v5529 = vpop.f32.mrf.mxu0
        %v5530 = vadd.f32 0.0, %v5529
        %5531 = vmatmul.f32.gmra.mxu0 %v5104
        %v5532 = vpop.f32.mrf.mxu0
        %v5533 = vadd.f32 0.0, %v5532
        %5534 = vmatmul.f32.gmra.mxu0 %v5105
        %v5535 = vpop.f32.mrf.mxu0
        %v5536 = vadd.f32 0.0, %v5535
        %5537 = vmatmul.f32.gmra.mxu0 %v5106
        %v5538 = vpop.f32.mrf.mxu0
        %v5539 = vadd.f32 0.0, %v5538
        %5540 = vmatmul.f32.gmra.mxu0 %v5107
        %v5541 = vpop.f32.mrf.mxu0
        %v5542 = vadd.f32 0.0, %v5541
        %5543 = vmatmul.f32.gmra.mxu0 %v5108
        %v5544 = vpop.f32.mrf.mxu0
        %v5545 = vadd.f32 0.0, %v5544
        %5546 = vmatmul.f32.gmra.mxu0 %v5109
        %v5547 = vpop.f32.mrf.mxu0
        %v5548 = vadd.f32 0.0, %v5547
        %5549 = vmatmul.f32.gmra.mxu0 %v5110
        %v5550 = vpop.f32.mrf.mxu0
        %v5551 = vadd.f32 0.0, %v5550
        %5552 = vmatmul.f32.gmra.mxu0 %v5111
        %v5553 = vpop.f32.mrf.mxu0
        %v5554 = vadd.f32 0.0, %v5553
        %5555 = vmatmul.f32.gmra.mxu0 %v5112
        %v5556 = vpop.f32.mrf.mxu0
        %v5557 = vadd.f32 0.0, %v5556
        %5558 = vmatmul.f32.gmra.mxu0 %v5113
        %v5559 = vpop.f32.mrf.mxu0
        %v5560 = vadd.f32 0.0, %v5559
        %5561 = vmatmul.f32.gmra.mxu0 %v5114
        %v5562 = vpop.f32.mrf.mxu0
        %v5563 = vadd.f32 0.0, %v5562
        %5564 = vmatmul.f32.gmra.mxu0 %v5115
        %v5565 = vpop.f32.mrf.mxu0
        %v5566 = vadd.f32 0.0, %v5565
        %5567 = vmatmul.f32.gmra.mxu0 %v5116
        %v5568 = vpop.f32.mrf.mxu0
        %v5569 = vadd.f32 0.0, %v5568
        %5570 = vmatmul.f32.gmra.mxu0 %v5117
        %v5571 = vpop.f32.mrf.mxu0
        %v5572 = vadd.f32 0.0, %v5571
        %5573 = vmatmul.f32.gmra.mxu0 %v5118
        %v5574 = vpop.f32.mrf.mxu0
        %v5575 = vadd.f32 0.0, %v5574
        %5576 = vmatmul.f32.gmra.mxu0 %v5119
        %v5577 = vpop.f32.mrf.mxu0
        %v5578 = vadd.f32 0.0, %v5577
        %5579 = vmatmul.f32.gmra.mxu0 %v5120
        %v5580 = vpop.f32.mrf.mxu0
        %v5581 = vadd.f32 0.0, %v5580
        %5582 = vmatmul.f32.gmra.mxu0 %v5121
        %v5583 = vpop.f32.mrf.mxu0
        %v5584 = vadd.f32 0.0, %v5583
        %5585 = vmatmul.f32.gmra.mxu0 %v5122
        %v5586 = vpop.f32.mrf.mxu0
        %v5587 = vadd.f32 0.0, %v5586
        %5588 = vmatmul.f32.gmra.mxu0 %v5123
        %v5589 = vpop.f32.mrf.mxu0
        %v5590 = vadd.f32 0.0, %v5589
        %5591 = vmatmul.f32.gmra.mxu0 %v5124
        %v5592 = vpop.f32.mrf.mxu0
        %v5593 = vadd.f32 0.0, %v5592
        %5594 = vmatmul.f32.gmra.mxu0 %v5125
        %v5595 = vpop.f32.mrf.mxu0
        %v5596 = vadd.f32 0.0, %v5595
        %5597 = vmatmul.f32.gmra.mxu0 %v5126
        %v5598 = vpop.f32.mrf.mxu0
        %v5599 = vadd.f32 0.0, %v5598
        %5600 = vmatmul.f32.gmra.mxu0 %v5127
        %v5601 = vpop.f32.mrf.mxu0
        %v5602 = vadd.f32 0.0, %v5601
        %5603 = vmatmul.f32.gmra.mxu0 %v5128
        %v5604 = vpop.f32.mrf.mxu0
        %v5605 = vadd.f32 0.0, %v5604
        %5606 = vmatmul.f32.gmra.mxu0 %v5129
        %v5607 = vpop.f32.mrf.mxu0
        %v5608 = vadd.f32 0.0, %v5607
        %5609 = vmatmul.f32.gmra.mxu0 %v5130
        %v5610 = vpop.f32.mrf.mxu0
        %v5611 = vadd.f32 0.0, %v5610
        %5612 = vmatmul.f32.gmra.mxu0 %v5131
        %v5613 = vpop.f32.mrf.mxu0
        %v5614 = vadd.f32 0.0, %v5613
        %5615 = vdwg.mxu0
        %v5616 = vadd.f32 %v5454, %v5521
        %v5617 = vadd.f32 %v5455, %v5524
        %v5618 = vadd.f32 %v5456, %v5527
        %v5619 = vadd.f32 %v5457, %v5530
        %v5620 = vadd.f32 %v5458, %v5533
        %v5621 = vadd.f32 %v5459, %v5536
        %v5622 = vadd.f32 %v5460, %v5539
        %v5623 = vadd.f32 %v5461, %v5542
        %v5624 = vadd.f32 %v5462, %v5545
        %v5625 = vadd.f32 %v5463, %v5548
        %v5626 = vadd.f32 %v5464, %v5551
        %v5627 = vadd.f32 %v5465, %v5554
        %v5628 = vadd.f32 %v5466, %v5557
        %v5629 = vadd.f32 %v5467, %v5560
        %v5630 = vadd.f32 %v5468, %v5563
        %v5631 = vadd.f32 %v5469, %v5566
        %v5632 = vadd.f32 %v5470, %v5569
        %v5633 = vadd.f32 %v5471, %v5572
        %v5634 = vadd.f32 %v5472, %v5575
        %v5635 = vadd.f32 %v5473, %v5578
        %v5636 = vadd.f32 %v5474, %v5581
        %v5637 = vadd.f32 %v5475, %v5584
        %v5638 = vadd.f32 %v5476, %v5587
        %v5639 = vadd.f32 %v5477, %v5590
        %v5640 = vadd.f32 %v5478, %v5593
        %v5641 = vadd.f32 %v5479, %v5596
        %v5642 = vadd.f32 %v5480, %v5599
        %v5643 = vadd.f32 %v5481, %v5602
        %v5644 = vadd.f32 %v5482, %v5605
        %v5645 = vadd.f32 %v5483, %v5608
        %v5646 = vadd.f32 %v5484, %v5611
        %v5647 = vadd.f32 %v5485, %v5614
        %s5648 = scalar_lea.vmem %s3, 1024
        %v5649 = vld [vmem:[%s5648] sm:$0xff]
        %v5650 = vld [vmem:[%s5648 + $0x8] sm:$0xff]
        %v5651 = vld [vmem:[%s5648 + $0x10] sm:$0xff]
        %v5652 = vld [vmem:[%s5648 + $0x18] sm:$0xff]
        %v5653 = vld [vmem:[%s5648 + $0x20] sm:$0xff]
        %v5654 = vld [vmem:[%s5648 + $0x28] sm:$0xff]
        %v5655 = vld [vmem:[%s5648 + $0x30] sm:$0xff]
        %v5656 = vld [vmem:[%s5648 + $0x38] sm:$0xff]
        %v5657 = vld [vmem:[%s5648 + $0x40] sm:$0xff]
        %v5658 = vld [vmem:[%s5648 + $0x48] sm:$0xff]
        %v5659 = vld [vmem:[%s5648 + $0x50] sm:$0xff]
        %v5660 = vld [vmem:[%s5648 + $0x58] sm:$0xff]
        %v5661 = vld [vmem:[%s5648 + $0x60] sm:$0xff]
        %v5662 = vld [vmem:[%s5648 + $0x68] sm:$0xff]
        %v5663 = vld [vmem:[%s5648 + $0x70] sm:$0xff]
        %v5664 = vld [vmem:[%s5648 + $0x78] sm:$0xff]
        %5665 = vmatpush.msra.mxu0 %v5664
        %5666 = vmatpush.msra.mxu0 %v5663
        %5667 = vmatpush.msra.mxu0 %v5662
        %5668 = vmatpush.msra.mxu0 %v5661
        %5669 = vmatpush.msra.mxu0 %v5660
        %5670 = vmatpush.msra.mxu0 %v5659
        %5671 = vmatpush.msra.mxu0 %v5658
        %5672 = vmatpush.msra.mxu0 %v5657
        %5673 = vmatpush.msra.mxu0 %v5656
        %5674 = vmatpush.msra.mxu0 %v5655
        %5675 = vmatpush.msra.mxu0 %v5654
        %5676 = vmatpush.msra.mxu0 %v5653
        %5677 = vmatpush.msra.mxu0 %v5652
        %5678 = vmatpush.msra.mxu0 %v5651
        %5679 = vmatpush.msra.mxu0 %v5650
        %5680 = vmatpush.msra.mxu0 %v5649
        %5681 = vmatmul.f32.gmra.mxu0 %v5292
        %v5682 = vpop.f32.mrf.mxu0
        %v5683 = vadd.f32 0.0, %v5682
        %5684 = vmatmul.f32.gmra.mxu0 %v5293
        %v5685 = vpop.f32.mrf.mxu0
        %v5686 = vadd.f32 0.0, %v5685
        %5687 = vmatmul.f32.gmra.mxu0 %v5294
        %v5688 = vpop.f32.mrf.mxu0
        %v5689 = vadd.f32 0.0, %v5688
        %5690 = vmatmul.f32.gmra.mxu0 %v5295
        %v5691 = vpop.f32.mrf.mxu0
        %v5692 = vadd.f32 0.0, %v5691
        %5693 = vmatmul.f32.gmra.mxu0 %v5296
        %v5694 = vpop.f32.mrf.mxu0
        %v5695 = vadd.f32 0.0, %v5694
        %5696 = vmatmul.f32.gmra.mxu0 %v5297
        %v5697 = vpop.f32.mrf.mxu0
        %v5698 = vadd.f32 0.0, %v5697
        %5699 = vmatmul.f32.gmra.mxu0 %v5298
        %v5700 = vpop.f32.mrf.mxu0
        %v5701 = vadd.f32 0.0, %v5700
        %5702 = vmatmul.f32.gmra.mxu0 %v5299
        %v5703 = vpop.f32.mrf.mxu0
        %v5704 = vadd.f32 0.0, %v5703
        %5705 = vmatmul.f32.gmra.mxu0 %v5300
        %v5706 = vpop.f32.mrf.mxu0
        %v5707 = vadd.f32 0.0, %v5706
        %5708 = vmatmul.f32.gmra.mxu0 %v5301
        %v5709 = vpop.f32.mrf.mxu0
        %v5710 = vadd.f32 0.0, %v5709
        %5711 = vmatmul.f32.gmra.mxu0 %v5302
        %v5712 = vpop.f32.mrf.mxu0
        %v5713 = vadd.f32 0.0, %v5712
        %5714 = vmatmul.f32.gmra.mxu0 %v5303
        %v5715 = vpop.f32.mrf.mxu0
        %v5716 = vadd.f32 0.0, %v5715
        %5717 = vmatmul.f32.gmra.mxu0 %v5304
        %v5718 = vpop.f32.mrf.mxu0
        %v5719 = vadd.f32 0.0, %v5718
        %5720 = vmatmul.f32.gmra.mxu0 %v5305
        %v5721 = vpop.f32.mrf.mxu0
        %v5722 = vadd.f32 0.0, %v5721
        %5723 = vmatmul.f32.gmra.mxu0 %v5306
        %v5724 = vpop.f32.mrf.mxu0
        %v5725 = vadd.f32 0.0, %v5724
        %5726 = vmatmul.f32.gmra.mxu0 %v5307
        %v5727 = vpop.f32.mrf.mxu0
        %v5728 = vadd.f32 0.0, %v5727
        %5729 = vmatmul.f32.gmra.mxu0 %v5308
        %v5730 = vpop.f32.mrf.mxu0
        %v5731 = vadd.f32 0.0, %v5730
        %5732 = vmatmul.f32.gmra.mxu0 %v5309
        %v5733 = vpop.f32.mrf.mxu0
        %v5734 = vadd.f32 0.0, %v5733
        %5735 = vmatmul.f32.gmra.mxu0 %v5310
        %v5736 = vpop.f32.mrf.mxu0
        %v5737 = vadd.f32 0.0, %v5736
        %5738 = vmatmul.f32.gmra.mxu0 %v5311
        %v5739 = vpop.f32.mrf.mxu0
        %v5740 = vadd.f32 0.0, %v5739
        %5741 = vmatmul.f32.gmra.mxu0 %v5312
        %v5742 = vpop.f32.mrf.mxu0
        %v5743 = vadd.f32 0.0, %v5742
        %5744 = vmatmul.f32.gmra.mxu0 %v5313
        %v5745 = vpop.f32.mrf.mxu0
        %v5746 = vadd.f32 0.0, %v5745
        %5747 = vmatmul.f32.gmra.mxu0 %v5314
        %v5748 = vpop.f32.mrf.mxu0
        %v5749 = vadd.f32 0.0, %v5748
        %5750 = vmatmul.f32.gmra.mxu0 %v5315
        %v5751 = vpop.f32.mrf.mxu0
        %v5752 = vadd.f32 0.0, %v5751
        %5753 = vmatmul.f32.gmra.mxu0 %v5316
        %v5754 = vpop.f32.mrf.mxu0
        %v5755 = vadd.f32 0.0, %v5754
        %5756 = vmatmul.f32.gmra.mxu0 %v5317
        %v5757 = vpop.f32.mrf.mxu0
        %v5758 = vadd.f32 0.0, %v5757
        %5759 = vmatmul.f32.gmra.mxu0 %v5318
        %v5760 = vpop.f32.mrf.mxu0
        %v5761 = vadd.f32 0.0, %v5760
        %5762 = vmatmul.f32.gmra.mxu0 %v5319
        %v5763 = vpop.f32.mrf.mxu0
        %v5764 = vadd.f32 0.0, %v5763
        %5765 = vmatmul.f32.gmra.mxu0 %v5320
        %v5766 = vpop.f32.mrf.mxu0
        %v5767 = vadd.f32 0.0, %v5766
        %5768 = vmatmul.f32.gmra.mxu0 %v5321
        %v5769 = vpop.f32.mrf.mxu0
        %v5770 = vadd.f32 0.0, %v5769
        %5771 = vmatmul.f32.gmra.mxu0 %v5322
        %v5772 = vpop.f32.mrf.mxu0
        %v5773 = vadd.f32 0.0, %v5772
        %5774 = vmatmul.f32.gmra.mxu0 %v5323
        %v5775 = vpop.f32.mrf.mxu0
        %v5776 = vadd.f32 0.0, %v5775
        %5777 = vdwg.mxu0
        %v5778 = vadd.f32 %v5616, %v5683
        %v5779 = vadd.f32 %v5617, %v5686
        %v5780 = vadd.f32 %v5618, %v5689
        %v5781 = vadd.f32 %v5619, %v5692
        %v5782 = vadd.f32 %v5620, %v5695
        %v5783 = vadd.f32 %v5621, %v5698
        %v5784 = vadd.f32 %v5622, %v5701
        %v5785 = vadd.f32 %v5623, %v5704
        %v5786 = vadd.f32 %v5624, %v5707
        %v5787 = vadd.f32 %v5625, %v5710
        %v5788 = vadd.f32 %v5626, %v5713
        %v5789 = vadd.f32 %v5627, %v5716
        %v5790 = vadd.f32 %v5628, %v5719
        %v5791 = vadd.f32 %v5629, %v5722
        %v5792 = vadd.f32 %v5630, %v5725
        %v5793 = vadd.f32 %v5631, %v5728
        %v5794 = vadd.f32 %v5632, %v5731
        %v5795 = vadd.f32 %v5633, %v5734
        %v5796 = vadd.f32 %v5634, %v5737
        %v5797 = vadd.f32 %v5635, %v5740
        %v5798 = vadd.f32 %v5636, %v5743
        %v5799 = vadd.f32 %v5637, %v5746
        %v5800 = vadd.f32 %v5638, %v5749
        %v5801 = vadd.f32 %v5639, %v5752
        %v5802 = vadd.f32 %v5640, %v5755
        %v5803 = vadd.f32 %v5641, %v5758
        %v5804 = vadd.f32 %v5642, %v5761
        %v5805 = vadd.f32 %v5643, %v5764
        %v5806 = vadd.f32 %v5644, %v5767
        %v5807 = vadd.f32 %v5645, %v5770
        %v5808 = vadd.f32 %v5646, %v5773
        %v5809 = vadd.f32 %v5647, %v5776
        %v5810 = vld [vmem:[%s4] sm:$0x1]
        %v5812 = vperm.slane %v5810, 0
        %v5814 = vadd.f32 %v5778, %v5812
        %v5815 = vadd.f32 %v5779, %v5812
        %v5816 = vadd.f32 %v5780, %v5812
        %v5817 = vadd.f32 %v5781, %v5812
        %v5818 = vadd.f32 %v5782, %v5812
        %v5819 = vadd.f32 %v5783, %v5812
        %v5820 = vadd.f32 %v5784, %v5812
        %v5821 = vadd.f32 %v5785, %v5812
        %v5822 = vadd.f32 %v5786, %v5812
        %v5823 = vadd.f32 %v5787, %v5812
        %v5824 = vadd.f32 %v5788, %v5812
        %v5825 = vadd.f32 %v5789, %v5812
        %v5826 = vadd.f32 %v5790, %v5812
        %v5827 = vadd.f32 %v5791, %v5812
        %v5828 = vadd.f32 %v5792, %v5812
        %v5829 = vadd.f32 %v5793, %v5812
        %v5830 = vadd.f32 %v5794, %v5812
        %v5831 = vadd.f32 %v5795, %v5812
        %v5832 = vadd.f32 %v5796, %v5812
        %v5833 = vadd.f32 %v5797, %v5812
        %v5834 = vadd.f32 %v5798, %v5812
        %v5835 = vadd.f32 %v5799, %v5812
        %v5836 = vadd.f32 %v5800, %v5812
        %v5837 = vadd.f32 %v5801, %v5812
        %v5838 = vadd.f32 %v5802, %v5812
        %v5839 = vadd.f32 %v5803, %v5812
        %v5840 = vadd.f32 %v5804, %v5812
        %v5841 = vadd.f32 %v5805, %v5812
        %v5842 = vadd.f32 %v5806, %v5812
        %v5843 = vadd.f32 %v5807, %v5812
        %v5844 = vadd.f32 %v5808, %v5812
        %v5845 = vadd.f32 %v5809, %v5812
        %vm5846 = vcmp.ge.f32.partialorder %v5814, 0.0
        %vm5847 = vcmp.ge.f32.partialorder %v5815, 0.0
        %vm5848 = vcmp.ge.f32.partialorder %v5816, 0.0
        %vm5849 = vcmp.ge.f32.partialorder %v5817, 0.0
        %vm5850 = vcmp.ge.f32.partialorder %v5818, 0.0
        %vm5851 = vcmp.ge.f32.partialorder %v5819, 0.0
        %vm5852 = vcmp.ge.f32.partialorder %v5820, 0.0
        %vm5853 = vcmp.ge.f32.partialorder %v5821, 0.0
        %vm5854 = vcmp.ge.f32.partialorder %v5822, 0.0
        %vm5855 = vcmp.ge.f32.partialorder %v5823, 0.0
        %vm5856 = vcmp.ge.f32.partialorder %v5824, 0.0
        %vm5857 = vcmp.ge.f32.partialorder %v5825, 0.0
        %vm5858 = vcmp.ge.f32.partialorder %v5826, 0.0
        %vm5859 = vcmp.ge.f32.partialorder %v5827, 0.0
        %vm5860 = vcmp.ge.f32.partialorder %v5828, 0.0
        %vm5861 = vcmp.ge.f32.partialorder %v5829, 0.0
        %vm5862 = vcmp.ge.f32.partialorder %v5830, 0.0
        %vm5863 = vcmp.ge.f32.partialorder %v5831, 0.0
        %vm5864 = vcmp.ge.f32.partialorder %v5832, 0.0
        %vm5865 = vcmp.ge.f32.partialorder %v5833, 0.0
        %vm5866 = vcmp.ge.f32.partialorder %v5834, 0.0
        %vm5867 = vcmp.ge.f32.partialorder %v5835, 0.0
        %vm5868 = vcmp.ge.f32.partialorder %v5836, 0.0
        %vm5869 = vcmp.ge.f32.partialorder %v5837, 0.0
        %vm5870 = vcmp.ge.f32.partialorder %v5838, 0.0
        %vm5871 = vcmp.ge.f32.partialorder %v5839, 0.0
        %vm5872 = vcmp.ge.f32.partialorder %v5840, 0.0
        %vm5873 = vcmp.ge.f32.partialorder %v5841, 0.0
        %vm5874 = vcmp.ge.f32.partialorder %v5842, 0.0
        %vm5875 = vcmp.ge.f32.partialorder %v5843, 0.0
        %vm5876 = vcmp.ge.f32.partialorder %v5844, 0.0
        %vm5877 = vcmp.ge.f32.partialorder %v5845, 0.0
        %v5878 = vmul.f32 %v5814, 0.01
        %v5879 = vmul.f32 %v5815, 0.01
        %v5880 = vmul.f32 %v5816, 0.01
        %v5881 = vmul.f32 %v5817, 0.01
        %v5882 = vmul.f32 %v5818, 0.01
        %v5883 = vmul.f32 %v5819, 0.01
        %v5884 = vmul.f32 %v5820, 0.01
        %v5885 = vmul.f32 %v5821, 0.01
        %v5886 = vmul.f32 %v5822, 0.01
        %v5887 = vmul.f32 %v5823, 0.01
        %v5888 = vmul.f32 %v5824, 0.01
        %v5889 = vmul.f32 %v5825, 0.01
        %v5890 = vmul.f32 %v5826, 0.01
        %v5891 = vmul.f32 %v5827, 0.01
        %v5892 = vmul.f32 %v5828, 0.01
        %v5893 = vmul.f32 %v5829, 0.01
        %v5894 = vmul.f32 %v5830, 0.01
        %v5895 = vmul.f32 %v5831, 0.01
        %v5896 = vmul.f32 %v5832, 0.01
        %v5897 = vmul.f32 %v5833, 0.01
        %v5898 = vmul.f32 %v5834, 0.01
        %v5899 = vmul.f32 %v5835, 0.01
        %v5900 = vmul.f32 %v5836, 0.01
        %v5901 = vmul.f32 %v5837, 0.01
        %v5902 = vmul.f32 %v5838, 0.01
        %v5903 = vmul.f32 %v5839, 0.01
        %v5904 = vmul.f32 %v5840, 0.01
        %v5905 = vmul.f32 %v5841, 0.01
        %v5906 = vmul.f32 %v5842, 0.01
        %v5907 = vmul.f32 %v5843, 0.01
        %v5908 = vmul.f32 %v5844, 0.01
        %v5909 = vmul.f32 %v5845, 0.01
        %v5910 = vsel %vm5846, %v5814, %v5878
        %v5911 = vsel %vm5847, %v5815, %v5879
        %v5912 = vsel %vm5848, %v5816, %v5880
        %v5913 = vsel %vm5849, %v5817, %v5881
        %v5914 = vsel %vm5850, %v5818, %v5882
        %v5915 = vsel %vm5851, %v5819, %v5883
        %v5916 = vsel %vm5852, %v5820, %v5884
        %v5917 = vsel %vm5853, %v5821, %v5885
        %v5918 = vsel %vm5854, %v5822, %v5886
        %v5919 = vsel %vm5855, %v5823, %v5887
        %v5920 = vsel %vm5856, %v5824, %v5888
        %v5921 = vsel %vm5857, %v5825, %v5889
        %v5922 = vsel %vm5858, %v5826, %v5890
        %v5923 = vsel %vm5859, %v5827, %v5891
        %v5924 = vsel %vm5860, %v5828, %v5892
        %v5925 = vsel %vm5861, %v5829, %v5893
        %v5926 = vsel %vm5862, %v5830, %v5894
        %v5927 = vsel %vm5863, %v5831, %v5895
        %v5928 = vsel %vm5864, %v5832, %v5896
        %v5929 = vsel %vm5865, %v5833, %v5897
        %v5930 = vsel %vm5866, %v5834, %v5898
        %v5931 = vsel %vm5867, %v5835, %v5899
        %v5932 = vsel %vm5868, %v5836, %v5900
        %v5933 = vsel %vm5869, %v5837, %v5901
        %v5934 = vsel %vm5870, %v5838, %v5902
        %v5935 = vsel %vm5871, %v5839, %v5903
        %v5936 = vsel %vm5872, %v5840, %v5904
        %v5937 = vsel %vm5873, %v5841, %v5905
        %v5938 = vsel %vm5874, %v5842, %v5906
        %v5939 = vsel %vm5875, %v5843, %v5907
        %v5940 = vsel %vm5876, %v5844, %v5908
        %v5941 = vsel %vm5877, %v5845, %v5909
        %v5942 = vrot.slane %v5910, 1
        %v5943 = vrot.slane %v5911, 1
        %v5944 = vrot.slane %v5912, 1
        %v5945 = vrot.slane %v5913, 1
        %v5946 = vrot.slane %v5914, 1
        %v5947 = vrot.slane %v5915, 1
        %v5948 = vrot.slane %v5916, 1
        %v5949 = vrot.slane %v5917, 1
        %v5950 = vrot.slane %v5918, 1
        %v5951 = vrot.slane %v5919, 1
        %v5952 = vrot.slane %v5920, 1
        %v5953 = vrot.slane %v5921, 1
        %v5954 = vrot.slane %v5922, 1
        %v5955 = vrot.slane %v5923, 1
        %v5956 = vrot.slane %v5924, 1
        %v5957 = vrot.slane %v5925, 1
        %v5958 = vrot.slane %v5926, 1
        %v5959 = vrot.slane %v5927, 1
        %v5960 = vrot.slane %v5928, 1
        %v5961 = vrot.slane %v5929, 1
        %v5962 = vrot.slane %v5930, 1
        %v5963 = vrot.slane %v5931, 1
        %v5964 = vrot.slane %v5932, 1
        %v5965 = vrot.slane %v5933, 1
        %v5966 = vrot.slane %v5934, 1
        %v5967 = vrot.slane %v5935, 1
        %v5968 = vrot.slane %v5936, 1
        %v5969 = vrot.slane %v5937, 1
        %v5970 = vrot.slane %v5938, 1
        %v5971 = vrot.slane %v5939, 1
        %v5972 = vrot.slane %v5940, 1
        %v5973 = vrot.slane %v5941, 1
        %v5974 = vsel %vm912, %v5972, %v5973
        %v5975 = vsel %vm912, %v5971, %v5972
        %v5976 = vsel %vm912, %v5970, %v5971
        %v5977 = vsel %vm912, %v5969, %v5970
        %v5978 = vsel %vm912, %v5968, %v5969
        %v5979 = vsel %vm912, %v5967, %v5968
        %v5980 = vsel %vm912, %v5966, %v5967
        %v5981 = vsel %vm912, %v5965, %v5966
        %v5982 = vsel %vm912, %v5964, %v5965
        %v5983 = vsel %vm912, %v5963, %v5964
        %v5984 = vsel %vm912, %v5962, %v5963
        %v5985 = vsel %vm912, %v5961, %v5962
        %v5986 = vsel %vm912, %v5960, %v5961
        %v5987 = vsel %vm912, %v5959, %v5960
        %v5988 = vsel %vm912, %v5958, %v5959
        %v5989 = vsel %vm912, %v5957, %v5958
        %v5990 = vsel %vm912, %v5956, %v5957
        %v5991 = vsel %vm912, %v5955, %v5956
        %v5992 = vsel %vm912, %v5954, %v5955
        %v5993 = vsel %vm912, %v5953, %v5954
        %v5994 = vsel %vm912, %v5952, %v5953
        %v5995 = vsel %vm912, %v5951, %v5952
        %v5996 = vsel %vm912, %v5950, %v5951
        %v5997 = vsel %vm912, %v5949, %v5950
        %v5998 = vsel %vm912, %v5948, %v5949
        %v5999 = vsel %vm912, %v5947, %v5948
        %v6000 = vsel %vm912, %v5946, %v5947
        %v6001 = vsel %vm912, %v5945, %v5946
        %v6002 = vsel %vm912, %v5944, %v5945
        %v6003 = vsel %vm912, %v5943, %v5944
        %v6004 = vsel %vm912, %v5942, %v5943
        %v6005 = vsel %vm912, %v5973, %v5942
        %v6006 = vmax.f32 %v5910, %v6004
        %v6007 = vmax.f32 %v5911, %v6003
        %v6008 = vmax.f32 %v5912, %v6002
        %v6009 = vmax.f32 %v5913, %v6001
        %v6010 = vmax.f32 %v5914, %v6000
        %v6011 = vmax.f32 %v5915, %v5999
        %v6012 = vmax.f32 %v5916, %v5998
        %v6013 = vmax.f32 %v5917, %v5997
        %v6014 = vmax.f32 %v5918, %v5996
        %v6015 = vmax.f32 %v5919, %v5995
        %v6016 = vmax.f32 %v5920, %v5994
        %v6017 = vmax.f32 %v5921, %v5993
        %v6018 = vmax.f32 %v5922, %v5992
        %v6019 = vmax.f32 %v5923, %v5991
        %v6020 = vmax.f32 %v5924, %v5990
        %v6021 = vmax.f32 %v5925, %v5989
        %v6022 = vmax.f32 %v5926, %v5988
        %v6023 = vmax.f32 %v5927, %v5987
        %v6024 = vmax.f32 %v5928, %v5986
        %v6025 = vmax.f32 %v5929, %v5985
        %v6026 = vmax.f32 %v5930, %v5984
        %v6027 = vmax.f32 %v5931, %v5983
        %v6028 = vmax.f32 %v5932, %v5982
        %v6029 = vmax.f32 %v5933, %v5981
        %v6030 = vmax.f32 %v5934, %v5980
        %v6031 = vmax.f32 %v5935, %v5979
        %v6032 = vmax.f32 %v5936, %v5978
        %v6033 = vmax.f32 %v5937, %v5977
        %v6034 = vmax.f32 %v5938, %v5976
        %v6035 = vmax.f32 %v5939, %v5975
        %v6036 = vmax.f32 %v5940, %v5974
        %v6037 = vmax.f32 %v5941, %v6005
        %v6038 = vmax.f32 %v6006, %v6008
        %v6039 = vmax.f32 %v6007, %v6009
        %v6040 = vmax.f32 %v6008, %v6010
        %v6041 = vmax.f32 %v6009, %v6011
        %v6042 = vmax.f32 %v6010, %v6012
        %v6043 = vmax.f32 %v6011, %v6013
        %v6044 = vmax.f32 %v6012, %v6014
        %v6045 = vmax.f32 %v6013, %v6015
        %v6046 = vmax.f32 %v6014, %v6016
        %v6047 = vmax.f32 %v6015, %v6017
        %v6048 = vmax.f32 %v6016, %v6018
        %v6049 = vmax.f32 %v6017, %v6019
        %v6050 = vmax.f32 %v6018, %v6020
        %v6051 = vmax.f32 %v6019, %v6021
        %v6052 = vmax.f32 %v6020, %v6022
        %v6053 = vmax.f32 %v6021, %v6023
        %v6054 = vmax.f32 %v6022, %v6024
        %v6055 = vmax.f32 %v6023, %v6025
        %v6056 = vmax.f32 %v6024, %v6026
        %v6057 = vmax.f32 %v6025, %v6027
        %v6058 = vmax.f32 %v6026, %v6028
        %v6059 = vmax.f32 %v6027, %v6029
        %v6060 = vmax.f32 %v6028, %v6030
        %v6061 = vmax.f32 %v6029, %v6031
        %v6062 = vmax.f32 %v6030, %v6032
        %v6063 = vmax.f32 %v6031, %v6033
        %v6064 = vmax.f32 %v6032, %v6034
        %v6065 = vmax.f32 %v6033, %v6035
        %v6066 = vmax.f32 %v6034, %v6036
        %v6067 = vmax.f32 %v6035, %v6037
        %v6068 = vmax.f32 %v6036, %v6006
        %v6069 = vmax.f32 %v6037, %v6007
        %v6070 = vld [vmem:[%s11] sm:$0xff]
        %v6071 = vld [vmem:[%s11 + $0x8] sm:$0xff]
        %v6072 = vld [vmem:[%s11 + $0x10] sm:$0xff]
        %v6073 = vld [vmem:[%s11 + $0x18] sm:$0xff]
        %v6074 = vld [vmem:[%s11 + $0x20] sm:$0xff]
        %v6075 = vld [vmem:[%s11 + $0x28] sm:$0xff]
        %v6076 = vld [vmem:[%s11 + $0x30] sm:$0xff]
        %v6077 = vld [vmem:[%s11 + $0x38] sm:$0xff]
        %v6078 = vld [vmem:[%s11 + $0x40] sm:$0xff]
        %v6079 = vld [vmem:[%s11 + $0x48] sm:$0xff]
        %v6080 = vld [vmem:[%s11 + $0x50] sm:$0xff]
        %v6081 = vld [vmem:[%s11 + $0x58] sm:$0xff]
        %v6082 = vld [vmem:[%s11 + $0x60] sm:$0xff]
        %v6083 = vld [vmem:[%s11 + $0x68] sm:$0xff]
        %v6084 = vld [vmem:[%s11 + $0x70] sm:$0xff]
        %v6085 = vld [vmem:[%s11 + $0x78] sm:$0xff]
        %6086 = vmatpush.msra.mxu0 %v6053
        %6087 = vmatpush.msra.mxu0 %v6052
        %6088 = vmatpush.msra.mxu0 %v6051
        %6089 = vmatpush.msra.mxu0 %v6050
        %6090 = vmatpush.msra.mxu0 %v6049
        %6091 = vmatpush.msra.mxu0 %v6048
        %6092 = vmatpush.msra.mxu0 %v6047
        %6093 = vmatpush.msra.mxu0 %v6046
        %6094 = vmatpush.msra.mxu0 %v6045
        %6095 = vmatpush.msra.mxu0 %v6044
        %6096 = vmatpush.msra.mxu0 %v6043
        %6097 = vmatpush.msra.mxu0 %v6042
        %6098 = vmatpush.msra.mxu0 %v6041
        %6099 = vmatpush.msra.mxu0 %v6040
        %6100 = vmatpush.msra.mxu0 %v6039
        %6101 = vmatpush.msra.mxu0 %v6038
        %6102 = vmatmul.f32.gmra.mxu0 %v6070
        %v6103 = vpop.f32.mrf.mxu0
        %v6104 = vadd.f32 0.0, %v6103
        %6105 = vmatmul.f32.gmra.mxu0 %v6072
        %v6106 = vpop.f32.mrf.mxu0
        %v6107 = vadd.f32 0.0, %v6106
        %6108 = vmatmul.f32.gmra.mxu0 %v6074
        %v6109 = vpop.f32.mrf.mxu0
        %v6110 = vadd.f32 0.0, %v6109
        %6111 = vmatmul.f32.gmra.mxu0 %v6076
        %v6112 = vpop.f32.mrf.mxu0
        %v6113 = vadd.f32 0.0, %v6112
        %6114 = vmatmul.f32.gmra.mxu0 %v6078
        %v6115 = vpop.f32.mrf.mxu0
        %v6116 = vadd.f32 0.0, %v6115
        %6117 = vmatmul.f32.gmra.mxu0 %v6080
        %v6118 = vpop.f32.mrf.mxu0
        %v6119 = vadd.f32 0.0, %v6118
        %6120 = vmatmul.f32.gmra.mxu0 %v6082
        %v6121 = vpop.f32.mrf.mxu0
        %v6122 = vadd.f32 0.0, %v6121
        %6123 = vmatmul.f32.gmra.mxu0 %v6084
        %v6124 = vpop.f32.mrf.mxu0
        %v6125 = vadd.f32 0.0, %v6124
        %6126 = vdwg.mxu0
        %6127 = vmatpush.msra.mxu0 %v6069
        %6128 = vmatpush.msra.mxu0 %v6068
        %6129 = vmatpush.msra.mxu0 %v6067
        %6130 = vmatpush.msra.mxu0 %v6066
        %6131 = vmatpush.msra.mxu0 %v6065
        %6132 = vmatpush.msra.mxu0 %v6064
        %6133 = vmatpush.msra.mxu0 %v6063
        %6134 = vmatpush.msra.mxu0 %v6062
        %6135 = vmatpush.msra.mxu0 %v6061
        %6136 = vmatpush.msra.mxu0 %v6060
        %6137 = vmatpush.msra.mxu0 %v6059
        %6138 = vmatpush.msra.mxu0 %v6058
        %6139 = vmatpush.msra.mxu0 %v6057
        %6140 = vmatpush.msra.mxu0 %v6056
        %6141 = vmatpush.msra.mxu0 %v6055
        %6142 = vmatpush.msra.mxu0 %v6054
        %6143 = vmatmul.f32.gmra.mxu0 %v6071
        %v6144 = vpop.f32.mrf.mxu0
        %v6145 = vadd.f32 %v6104, %v6144
        %6146 = vmatmul.f32.gmra.mxu0 %v6073
        %v6147 = vpop.f32.mrf.mxu0
        %v6148 = vadd.f32 %v6107, %v6147
        %6149 = vmatmul.f32.gmra.mxu0 %v6075
        %v6150 = vpop.f32.mrf.mxu0
        %v6151 = vadd.f32 %v6110, %v6150
        %6152 = vmatmul.f32.gmra.mxu0 %v6077
        %v6153 = vpop.f32.mrf.mxu0
        %v6154 = vadd.f32 %v6113, %v6153
        %6155 = vmatmul.f32.gmra.mxu0 %v6079
        %v6156 = vpop.f32.mrf.mxu0
        %v6157 = vadd.f32 %v6116, %v6156
        %6158 = vmatmul.f32.gmra.mxu0 %v6081
        %v6159 = vpop.f32.mrf.mxu0
        %v6160 = vadd.f32 %v6119, %v6159
        %6161 = vmatmul.f32.gmra.mxu0 %v6083
        %v6162 = vpop.f32.mrf.mxu0
        %v6163 = vadd.f32 %v6122, %v6162
        %6164 = vmatmul.f32.gmra.mxu0 %v6085
        %v6165 = vpop.f32.mrf.mxu0
        %v6166 = vadd.f32 %v6125, %v6165
        %6167 = vdwg.mxu0
        %6168 = vst [vmem:[%s538] sm:$0xff] %v6145
        %6169 = vst [vmem:[%s538 + $0x8] sm:$0xff] %v6148
        %6170 = vst [vmem:[%s538 + $0x10] sm:$0xff] %v6151
        %6171 = vst [vmem:[%s538 + $0x18] sm:$0xff] %v6154
        %6172 = vst [vmem:[%s538 + $0x20] sm:$0xff] %v6157
        %6173 = vst [vmem:[%s538 + $0x28] sm:$0xff] %v6160
        %6174 = vst [vmem:[%s538 + $0x30] sm:$0xff] %v6163
        %6175 = vst [vmem:[%s538 + $0x38] sm:$0xff] %v6166
        %6176 = vst [vmem:[#allocation4 + $0x8] sm:$0xff] %v6145
        %6177 = vst [vmem:[#allocation4 + $0x10] sm:$0xff] %v6148
        %6178 = vst [vmem:[#allocation4 + $0x18] sm:$0xff] %v6151
        %6179 = vst [vmem:[#allocation4 + $0x20] sm:$0xff] %v6154
        %6180 = vst [vmem:[#allocation4 + $0x28] sm:$0xff] %v6157
        %6181 = vst [vmem:[#allocation4 + $0x30] sm:$0xff] %v6160
        %6182 = vst [vmem:[#allocation4 + $0x38] sm:$0xff] %v6163
        %6183 = vst [vmem:[#allocation4 + $0x40] sm:$0xff] %v6166
        %v6184 = vand.u32 %v623, 7
        %v6185 = vand.u32 %v624, 7
        %v6186 = vand.u32 %v625, 7
        %v6187 = vand.u32 %v626, 7
        %v6188 = vand.u32 %v627, 7
        %v6189 = vand.u32 %v628, 7
        %v6190 = vand.u32 %v629, 7
        %v6191 = vand.u32 %v630, 7
        %vm6192 = vcmp.ne.s32.totalorder %v6184, 0
        %vm6193 = vcmp.ne.s32.totalorder %v6185, 0
        %vm6194 = vcmp.ne.s32.totalorder %v6186, 0
        %vm6195 = vcmp.ne.s32.totalorder %v6187, 0
        %vm6196 = vcmp.ne.s32.totalorder %v6188, 0
        %vm6197 = vcmp.ne.s32.totalorder %v6189, 0
        %vm6198 = vcmp.ne.s32.totalorder %v6190, 0
        %vm6199 = vcmp.ne.s32.totalorder %v6191, 0
        %vm6200 = vcmp.ne.s32.totalorder %v6184, 7
        %vm6201 = vcmp.ne.s32.totalorder %v6185, 7
        %vm6202 = vcmp.ne.s32.totalorder %v6186, 7
        %vm6203 = vcmp.ne.s32.totalorder %v6187, 7
        %vm6204 = vcmp.ne.s32.totalorder %v6188, 7
        %vm6205 = vcmp.ne.s32.totalorder %v6189, 7
        %vm6206 = vcmp.ne.s32.totalorder %v6190, 7
        %vm6207 = vcmp.ne.s32.totalorder %v6191, 7
        %v6208 = vld [vmem:[#allocation4] sm:$0xff]
        %v6209 = vld [vmem:[#allocation4 + $0x8] sm:$0xff]
        %v6210 = vld [vmem:[#allocation4 + $0x10] sm:$0xff]
        %v6211 = vld [vmem:[#allocation4 + $0x18] sm:$0xff]
        %v6212 = vld [vmem:[#allocation4 + $0x20] sm:$0xff]
        %v6213 = vld [vmem:[#allocation4 + $0x28] sm:$0xff]
        %v6214 = vld [vmem:[#allocation4 + $0x30] sm:$0xff]
        %v6215 = vld [vmem:[#allocation4 + $0x38] sm:$0xff]
        %v6216 = vrot.slane %v6208, 7
        %v6217 = vrot.slane %v6209, 7
        %v6218 = vrot.slane %v6210, 7
        %v6219 = vrot.slane %v6211, 7
        %v6220 = vrot.slane %v6212, 7
        %v6221 = vrot.slane %v6213, 7
        %v6222 = vrot.slane %v6214, 7
        %v6223 = vrot.slane %v6215, 7
        %v6224 = vsel %vm815, %v6222, %v6223
        %v6225 = vsel %vm815, %v6221, %v6222
        %v6226 = vsel %vm815, %v6220, %v6221
        %v6227 = vsel %vm815, %v6219, %v6220
        %v6228 = vsel %vm815, %v6218, %v6219
        %v6229 = vsel %vm815, %v6217, %v6218
        %v6230 = vsel %vm815, %v6216, %v6217
        %v6231 = vsel %vm815, %v6223, %v6216
        %v6232 = vsel %vm6192, 1, 0
        %v6233 = vsel %vm6193, 1, 0
        %v6234 = vsel %vm6194, 1, 0
        %v6235 = vsel %vm6195, 1, 0
        %v6236 = vsel %vm6196, 1, 0
        %v6237 = vsel %vm6197, 1, 0
        %v6238 = vsel %vm6198, 1, 0
        %v6239 = vsel %vm6199, 1, 0
        %vm6240 = vcmp.eq.s32.totalorder %v6232, 1
        %vm6241 = vcmp.eq.s32.totalorder %v6233, 1
        %vm6242 = vcmp.eq.s32.totalorder %v6234, 1
        %vm6243 = vcmp.eq.s32.totalorder %v6235, 1
        %vm6244 = vcmp.eq.s32.totalorder %v6236, 1
        %vm6245 = vcmp.eq.s32.totalorder %v6237, 1
        %vm6246 = vcmp.eq.s32.totalorder %v6238, 1
        %vm6247 = vcmp.eq.s32.totalorder %v6239, 1
        %v6248 = vsel %vm6240, %v6231, 0.0
        %v6249 = vsel %vm6241, %v6230, 0.0
        %v6250 = vsel %vm6242, %v6229, 0.0
        %v6251 = vsel %vm6243, %v6228, 0.0
        %v6252 = vsel %vm6244, %v6227, 0.0
        %v6253 = vsel %vm6245, %v6226, 0.0
        %v6254 = vsel %vm6246, %v6225, 0.0
        %v6255 = vsel %vm6247, %v6224, 0.0
        %v6256 = vrot.slane %v6208, 1
        %v6257 = vrot.slane %v6209, 1
        %v6258 = vrot.slane %v6210, 1
        %v6259 = vrot.slane %v6211, 1
        %v6260 = vrot.slane %v6212, 1
        %v6261 = vrot.slane %v6213, 1
        %v6262 = vrot.slane %v6214, 1
        %v6263 = vrot.slane %v6215, 1
        %v6264 = vsel %vm912, %v6262, %v6263
        %v6265 = vsel %vm912, %v6261, %v6262
        %v6266 = vsel %vm912, %v6260, %v6261
        %v6267 = vsel %vm912, %v6259, %v6260
        %v6268 = vsel %vm912, %v6258, %v6259
        %v6269 = vsel %vm912, %v6257, %v6258
        %v6270 = vsel %vm912, %v6256, %v6257
        %v6271 = vsel %vm912, %v6263, %v6256
        %v6272 = vsel %vm6200, 1, 0
        %v6273 = vsel %vm6201, 1, 0
        %v6274 = vsel %vm6202, 1, 0
        %v6275 = vsel %vm6203, 1, 0
        %v6276 = vsel %vm6204, 1, 0
        %v6277 = vsel %vm6205, 1, 0
        %v6278 = vsel %vm6206, 1, 0
        %v6279 = vsel %vm6207, 1, 0
        %vm6280 = vcmp.eq.s32.totalorder %v6272, 1
        %vm6281 = vcmp.eq.s32.totalorder %v6273, 1
        %vm6282 = vcmp.eq.s32.totalorder %v6274, 1
        %vm6283 = vcmp.eq.s32.totalorder %v6275, 1
        %vm6284 = vcmp.eq.s32.totalorder %v6276, 1
        %vm6285 = vcmp.eq.s32.totalorder %v6277, 1
        %vm6286 = vcmp.eq.s32.totalorder %v6278, 1
        %vm6287 = vcmp.eq.s32.totalorder %v6279, 1
        %v6288 = vsel %vm6280, %v6270, 0.0
        %v6289 = vsel %vm6281, %v6269, 0.0
        %v6290 = vsel %vm6282, %v6268, 0.0
        %v6291 = vsel %vm6283, %v6267, 0.0
        %v6292 = vsel %vm6284, %v6266, 0.0
        %v6293 = vsel %vm6285, %v6265, 0.0
        %v6294 = vsel %vm6286, %v6264, 0.0
        %v6295 = vsel %vm6287, %v6271, 0.0
        %v6296 = vld [vmem:[%s5] sm:$0xff]
        %v6297 = vld [vmem:[%s5 + $0x8] sm:$0xff]
        %v6298 = vld [vmem:[%s5 + $0x10] sm:$0xff]
        %v6299 = vld [vmem:[%s5 + $0x18] sm:$0xff]
        %v6300 = vld [vmem:[%s5 + $0x20] sm:$0xff]
        %v6301 = vld [vmem:[%s5 + $0x28] sm:$0xff]
        %v6302 = vld [vmem:[%s5 + $0x30] sm:$0xff]
        %v6303 = vld [vmem:[%s5 + $0x38] sm:$0xff]
        %v6304 = vld [vmem:[%s5 + $0x40] sm:$0xff]
        %v6305 = vld [vmem:[%s5 + $0x48] sm:$0xff]
        %v6306 = vld [vmem:[%s5 + $0x50] sm:$0xff]
        %v6307 = vld [vmem:[%s5 + $0x58] sm:$0xff]
        %v6308 = vld [vmem:[%s5 + $0x60] sm:$0xff]
        %v6309 = vld [vmem:[%s5 + $0x68] sm:$0xff]
        %v6310 = vld [vmem:[%s5 + $0x70] sm:$0xff]
        %v6311 = vld [vmem:[%s5 + $0x78] sm:$0xff]
        %s6312 = scalar_lea.vmem %s5, 128
        %v6313 = vld [vmem:[%s6312] sm:$0xff]
        %v6314 = vld [vmem:[%s6312 + $0x8] sm:$0xff]
        %v6315 = vld [vmem:[%s6312 + $0x10] sm:$0xff]
        %v6316 = vld [vmem:[%s6312 + $0x18] sm:$0xff]
        %v6317 = vld [vmem:[%s6312 + $0x20] sm:$0xff]
        %v6318 = vld [vmem:[%s6312 + $0x28] sm:$0xff]
        %v6319 = vld [vmem:[%s6312 + $0x30] sm:$0xff]
        %v6320 = vld [vmem:[%s6312 + $0x38] sm:$0xff]
        %v6321 = vld [vmem:[%s6312 + $0x40] sm:$0xff]
        %v6322 = vld [vmem:[%s6312 + $0x48] sm:$0xff]
        %v6323 = vld [vmem:[%s6312 + $0x50] sm:$0xff]
        %v6324 = vld [vmem:[%s6312 + $0x58] sm:$0xff]
        %v6325 = vld [vmem:[%s6312 + $0x60] sm:$0xff]
        %v6326 = vld [vmem:[%s6312 + $0x68] sm:$0xff]
        %v6327 = vld [vmem:[%s6312 + $0x70] sm:$0xff]
        %v6328 = vld [vmem:[%s6312 + $0x78] sm:$0xff]
        %6329 = vmatpush.msra.mxu0 %v6328
        %6330 = vmatpush.msra.mxu0 %v6327
        %6331 = vmatpush.msra.mxu0 %v6326
        %6332 = vmatpush.msra.mxu0 %v6325
        %6333 = vmatpush.msra.mxu0 %v6324
        %6334 = vmatpush.msra.mxu0 %v6323
        %6335 = vmatpush.msra.mxu0 %v6322
        %6336 = vmatpush.msra.mxu0 %v6321
        %6337 = vmatpush.msra.mxu0 %v6320
        %6338 = vmatpush.msra.mxu0 %v6319
        %6339 = vmatpush.msra.mxu0 %v6318
        %6340 = vmatpush.msra.mxu0 %v6317
        %6341 = vmatpush.msra.mxu0 %v6316
        %6342 = vmatpush.msra.mxu0 %v6315
        %6343 = vmatpush.msra.mxu0 %v6314
        %6344 = vmatpush.msra.mxu0 %v6313
        %6345 = vmatmul.f32.gmra.mxu0 %v6208
        %v6346 = vpop.f32.mrf.mxu0
        %v6347 = vadd.f32 0.0, %v6346
        %6348 = vmatmul.f32.gmra.mxu0 %v6209
        %v6349 = vpop.f32.mrf.mxu0
        %v6350 = vadd.f32 0.0, %v6349
        %6351 = vmatmul.f32.gmra.mxu0 %v6210
        %v6352 = vpop.f32.mrf.mxu0
        %v6353 = vadd.f32 0.0, %v6352
        %6354 = vmatmul.f32.gmra.mxu0 %v6211
        %v6355 = vpop.f32.mrf.mxu0
        %v6356 = vadd.f32 0.0, %v6355
        %6357 = vmatmul.f32.gmra.mxu0 %v6212
        %v6358 = vpop.f32.mrf.mxu0
        %v6359 = vadd.f32 0.0, %v6358
        %6360 = vmatmul.f32.gmra.mxu0 %v6213
        %v6361 = vpop.f32.mrf.mxu0
        %v6362 = vadd.f32 0.0, %v6361
        %6363 = vmatmul.f32.gmra.mxu0 %v6214
        %v6364 = vpop.f32.mrf.mxu0
        %v6365 = vadd.f32 0.0, %v6364
        %6366 = vmatmul.f32.gmra.mxu0 %v6215
        %v6367 = vpop.f32.mrf.mxu0
        %v6368 = vadd.f32 0.0, %v6367
        %6369 = vdwg.mxu0
        %6370 = vmatpush.msra.mxu0 %v6311
        %6371 = vmatpush.msra.mxu0 %v6310
        %6372 = vmatpush.msra.mxu0 %v6309
        %6373 = vmatpush.msra.mxu0 %v6308
        %6374 = vmatpush.msra.mxu0 %v6307
        %6375 = vmatpush.msra.mxu0 %v6306
        %6376 = vmatpush.msra.mxu0 %v6305
        %6377 = vmatpush.msra.mxu0 %v6304
        %6378 = vmatpush.msra.mxu0 %v6303
        %6379 = vmatpush.msra.mxu0 %v6302
        %6380 = vmatpush.msra.mxu0 %v6301
        %6381 = vmatpush.msra.mxu0 %v6300
        %6382 = vmatpush.msra.mxu0 %v6299
        %6383 = vmatpush.msra.mxu0 %v6298
        %6384 = vmatpush.msra.mxu0 %v6297
        %6385 = vmatpush.msra.mxu0 %v6296
        %6386 = vmatmul.f32.gmra.mxu0 %v6248
        %v6387 = vpop.f32.mrf.mxu0
        %v6388 = vadd.f32 %v6347, %v6387
        %6389 = vmatmul.f32.gmra.mxu0 %v6249
        %v6390 = vpop.f32.mrf.mxu0
        %v6391 = vadd.f32 %v6350, %v6390
        %6392 = vmatmul.f32.gmra.mxu0 %v6250
        %v6393 = vpop.f32.mrf.mxu0
        %v6394 = vadd.f32 %v6353, %v6393
        %6395 = vmatmul.f32.gmra.mxu0 %v6251
        %v6396 = vpop.f32.mrf.mxu0
        %v6397 = vadd.f32 %v6356, %v6396
        %6398 = vmatmul.f32.gmra.mxu0 %v6252
        %v6399 = vpop.f32.mrf.mxu0
        %v6400 = vadd.f32 %v6359, %v6399
        %6401 = vmatmul.f32.gmra.mxu0 %v6253
        %v6402 = vpop.f32.mrf.mxu0
        %v6403 = vadd.f32 %v6362, %v6402
        %6404 = vmatmul.f32.gmra.mxu0 %v6254
        %v6405 = vpop.f32.mrf.mxu0
        %v6406 = vadd.f32 %v6365, %v6405
        %6407 = vmatmul.f32.gmra.mxu0 %v6255
        %v6408 = vpop.f32.mrf.mxu0
        %v6409 = vadd.f32 %v6368, %v6408
        %6410 = vdwg.mxu0
        %s6411 = scalar_lea.vmem %s5, 256
        %v6412 = vld [vmem:[%s6411] sm:$0xff]
        %v6413 = vld [vmem:[%s6411 + $0x8] sm:$0xff]
        %v6414 = vld [vmem:[%s6411 + $0x10] sm:$0xff]
        %v6415 = vld [vmem:[%s6411 + $0x18] sm:$0xff]
        %v6416 = vld [vmem:[%s6411 + $0x20] sm:$0xff]
        %v6417 = vld [vmem:[%s6411 + $0x28] sm:$0xff]
        %v6418 = vld [vmem:[%s6411 + $0x30] sm:$0xff]
        %v6419 = vld [vmem:[%s6411 + $0x38] sm:$0xff]
        %v6420 = vld [vmem:[%s6411 + $0x40] sm:$0xff]
        %v6421 = vld [vmem:[%s6411 + $0x48] sm:$0xff]
        %v6422 = vld [vmem:[%s6411 + $0x50] sm:$0xff]
        %v6423 = vld [vmem:[%s6411 + $0x58] sm:$0xff]
        %v6424 = vld [vmem:[%s6411 + $0x60] sm:$0xff]
        %v6425 = vld [vmem:[%s6411 + $0x68] sm:$0xff]
        %v6426 = vld [vmem:[%s6411 + $0x70] sm:$0xff]
        %v6427 = vld [vmem:[%s6411 + $0x78] sm:$0xff]
        %6428 = vmatpush.msra.mxu0 %v6427
        %6429 = vmatpush.msra.mxu0 %v6426
        %6430 = vmatpush.msra.mxu0 %v6425
        %6431 = vmatpush.msra.mxu0 %v6424
        %6432 = vmatpush.msra.mxu0 %v6423
        %6433 = vmatpush.msra.mxu0 %v6422
        %6434 = vmatpush.msra.mxu0 %v6421
        %6435 = vmatpush.msra.mxu0 %v6420
        %6436 = vmatpush.msra.mxu0 %v6419
        %6437 = vmatpush.msra.mxu0 %v6418
        %6438 = vmatpush.msra.mxu0 %v6417
        %6439 = vmatpush.msra.mxu0 %v6416
        %6440 = vmatpush.msra.mxu0 %v6415
        %6441 = vmatpush.msra.mxu0 %v6414
        %6442 = vmatpush.msra.mxu0 %v6413
        %6443 = vmatpush.msra.mxu0 %v6412
        %6444 = vmatmul.f32.gmra.mxu0 %v6288
        %v6445 = vpop.f32.mrf.mxu0
        %v6446 = vadd.f32 0.0, %v6445
        %6447 = vmatmul.f32.gmra.mxu0 %v6289
        %v6448 = vpop.f32.mrf.mxu0
        %v6449 = vadd.f32 0.0, %v6448
        %6450 = vmatmul.f32.gmra.mxu0 %v6290
        %v6451 = vpop.f32.mrf.mxu0
        %v6452 = vadd.f32 0.0, %v6451
        %6453 = vmatmul.f32.gmra.mxu0 %v6291
        %v6454 = vpop.f32.mrf.mxu0
        %v6455 = vadd.f32 0.0, %v6454
        %6456 = vmatmul.f32.gmra.mxu0 %v6292
        %v6457 = vpop.f32.mrf.mxu0
        %v6458 = vadd.f32 0.0, %v6457
        %6459 = vmatmul.f32.gmra.mxu0 %v6293
        %v6460 = vpop.f32.mrf.mxu0
        %v6461 = vadd.f32 0.0, %v6460
        %6462 = vmatmul.f32.gmra.mxu0 %v6294
        %v6463 = vpop.f32.mrf.mxu0
        %v6464 = vadd.f32 0.0, %v6463
        %6465 = vmatmul.f32.gmra.mxu0 %v6295
        %v6466 = vpop.f32.mrf.mxu0
        %v6467 = vadd.f32 0.0, %v6466
        %6468 = vdwg.mxu0
        %v6469 = vadd.f32 %v6388, %v6446
        %v6470 = vadd.f32 %v6391, %v6449
        %v6471 = vadd.f32 %v6394, %v6452
        %v6472 = vadd.f32 %v6397, %v6455
        %v6473 = vadd.f32 %v6400, %v6458
        %v6474 = vadd.f32 %v6403, %v6461
        %v6475 = vadd.f32 %v6406, %v6464
        %v6476 = vadd.f32 %v6409, %v6467
        %v6477 = vld [vmem:[#allocation4 + $0x8] sm:$0xff]
        %v6478 = vld [vmem:[#allocation4 + $0x10] sm:$0xff]
        %v6479 = vld [vmem:[#allocation4 + $0x18] sm:$0xff]
        %v6480 = vld [vmem:[#allocation4 + $0x20] sm:$0xff]
        %v6481 = vld [vmem:[#allocation4 + $0x28] sm:$0xff]
        %v6482 = vld [vmem:[#allocation4 + $0x30] sm:$0xff]
        %v6483 = vld [vmem:[#allocation4 + $0x38] sm:$0xff]
        %v6484 = vld [vmem:[#allocation4 + $0x40] sm:$0xff]
        %v6485 = vrot.slane %v6477, 7
        %v6486 = vrot.slane %v6478, 7
        %v6487 = vrot.slane %v6479, 7
        %v6488 = vrot.slane %v6480, 7
        %v6489 = vrot.slane %v6481, 7
        %v6490 = vrot.slane %v6482, 7
        %v6491 = vrot.slane %v6483, 7
        %v6492 = vrot.slane %v6484, 7
        %v6493 = vsel %vm815, %v6491, %v6492
        %v6494 = vsel %vm815, %v6490, %v6491
        %v6495 = vsel %vm815, %v6489, %v6490
        %v6496 = vsel %vm815, %v6488, %v6489
        %v6497 = vsel %vm815, %v6487, %v6488
        %v6498 = vsel %vm815, %v6486, %v6487
        %v6499 = vsel %vm815, %v6485, %v6486
        %v6500 = vsel %vm815, %v6492, %v6485
        %v6501 = vsel %vm6240, %v6500, 0.0
        %v6502 = vsel %vm6241, %v6499, 0.0
        %v6503 = vsel %vm6242, %v6498, 0.0
        %v6504 = vsel %vm6243, %v6497, 0.0
        %v6505 = vsel %vm6244, %v6496, 0.0
        %v6506 = vsel %vm6245, %v6495, 0.0
        %v6507 = vsel %vm6246, %v6494, 0.0
        %v6508 = vsel %vm6247, %v6493, 0.0
        %v6509 = vrot.slane %v6477, 1
        %v6510 = vrot.slane %v6478, 1
        %v6511 = vrot.slane %v6479, 1
        %v6512 = vrot.slane %v6480, 1
        %v6513 = vrot.slane %v6481, 1
        %v6514 = vrot.slane %v6482, 1
        %v6515 = vrot.slane %v6483, 1
        %v6516 = vrot.slane %v6484, 1
        %v6517 = vsel %vm912, %v6515, %v6516
        %v6518 = vsel %vm912, %v6514, %v6515
        %v6519 = vsel %vm912, %v6513, %v6514
        %v6520 = vsel %vm912, %v6512, %v6513
        %v6521 = vsel %vm912, %v6511, %v6512
        %v6522 = vsel %vm912, %v6510, %v6511
        %v6523 = vsel %vm912, %v6509, %v6510
        %v6524 = vsel %vm912, %v6516, %v6509
        %v6525 = vsel %vm6280, %v6523, 0.0
        %v6526 = vsel %vm6281, %v6522, 0.0
        %v6527 = vsel %vm6282, %v6521, 0.0
        %v6528 = vsel %vm6283, %v6520, 0.0
        %v6529 = vsel %vm6284, %v6519, 0.0
        %v6530 = vsel %vm6285, %v6518, 0.0
        %v6531 = vsel %vm6286, %v6517, 0.0
        %v6532 = vsel %vm6287, %v6524, 0.0
        %s6533 = scalar_lea.vmem %s5, 384
        %v6534 = vld [vmem:[%s6533] sm:$0xff]
        %v6535 = vld [vmem:[%s6533 + $0x8] sm:$0xff]
        %v6536 = vld [vmem:[%s6533 + $0x10] sm:$0xff]
        %v6537 = vld [vmem:[%s6533 + $0x18] sm:$0xff]
        %v6538 = vld [vmem:[%s6533 + $0x20] sm:$0xff]
        %v6539 = vld [vmem:[%s6533 + $0x28] sm:$0xff]
        %v6540 = vld [vmem:[%s6533 + $0x30] sm:$0xff]
        %v6541 = vld [vmem:[%s6533 + $0x38] sm:$0xff]
        %v6542 = vld [vmem:[%s6533 + $0x40] sm:$0xff]
        %v6543 = vld [vmem:[%s6533 + $0x48] sm:$0xff]
        %v6544 = vld [vmem:[%s6533 + $0x50] sm:$0xff]
        %v6545 = vld [vmem:[%s6533 + $0x58] sm:$0xff]
        %v6546 = vld [vmem:[%s6533 + $0x60] sm:$0xff]
        %v6547 = vld [vmem:[%s6533 + $0x68] sm:$0xff]
        %v6548 = vld [vmem:[%s6533 + $0x70] sm:$0xff]
        %v6549 = vld [vmem:[%s6533 + $0x78] sm:$0xff]
        %6550 = vmatpush.msra.mxu0 %v6549
        %6551 = vmatpush.msra.mxu0 %v6548
        %6552 = vmatpush.msra.mxu0 %v6547
        %6553 = vmatpush.msra.mxu0 %v6546
        %6554 = vmatpush.msra.mxu0 %v6545
        %6555 = vmatpush.msra.mxu0 %v6544
        %6556 = vmatpush.msra.mxu0 %v6543
        %6557 = vmatpush.msra.mxu0 %v6542
        %6558 = vmatpush.msra.mxu0 %v6541
        %6559 = vmatpush.msra.mxu0 %v6540
        %6560 = vmatpush.msra.mxu0 %v6539
        %6561 = vmatpush.msra.mxu0 %v6538
        %6562 = vmatpush.msra.mxu0 %v6537
        %6563 = vmatpush.msra.mxu0 %v6536
        %6564 = vmatpush.msra.mxu0 %v6535
        %6565 = vmatpush.msra.mxu0 %v6534
        %6566 = vmatmul.f32.gmra.mxu0 %v6501
        %v6567 = vpop.f32.mrf.mxu0
        %v6568 = vadd.f32 0.0, %v6567
        %6569 = vmatmul.f32.gmra.mxu0 %v6502
        %v6570 = vpop.f32.mrf.mxu0
        %v6571 = vadd.f32 0.0, %v6570
        %6572 = vmatmul.f32.gmra.mxu0 %v6503
        %v6573 = vpop.f32.mrf.mxu0
        %v6574 = vadd.f32 0.0, %v6573
        %6575 = vmatmul.f32.gmra.mxu0 %v6504
        %v6576 = vpop.f32.mrf.mxu0
        %v6577 = vadd.f32 0.0, %v6576
        %6578 = vmatmul.f32.gmra.mxu0 %v6505
        %v6579 = vpop.f32.mrf.mxu0
        %v6580 = vadd.f32 0.0, %v6579
        %6581 = vmatmul.f32.gmra.mxu0 %v6506
        %v6582 = vpop.f32.mrf.mxu0
        %v6583 = vadd.f32 0.0, %v6582
        %6584 = vmatmul.f32.gmra.mxu0 %v6507
        %v6585 = vpop.f32.mrf.mxu0
        %v6586 = vadd.f32 0.0, %v6585
        %6587 = vmatmul.f32.gmra.mxu0 %v6508
        %v6588 = vpop.f32.mrf.mxu0
        %v6589 = vadd.f32 0.0, %v6588
        %6590 = vdwg.mxu0
        %v6591 = vadd.f32 %v6469, %v6568
        %v6592 = vadd.f32 %v6470, %v6571
        %v6593 = vadd.f32 %v6471, %v6574
        %v6594 = vadd.f32 %v6472, %v6577
        %v6595 = vadd.f32 %v6473, %v6580
        %v6596 = vadd.f32 %v6474, %v6583
        %v6597 = vadd.f32 %v6475, %v6586
        %v6598 = vadd.f32 %v6476, %v6589
        %s6599 = scalar_lea.vmem %s5, 512
        %v6600 = vld [vmem:[%s6599] sm:$0xff]
        %v6601 = vld [vmem:[%s6599 + $0x8] sm:$0xff]
        %v6602 = vld [vmem:[%s6599 + $0x10] sm:$0xff]
        %v6603 = vld [vmem:[%s6599 + $0x18] sm:$0xff]
        %v6604 = vld [vmem:[%s6599 + $0x20] sm:$0xff]
        %v6605 = vld [vmem:[%s6599 + $0x28] sm:$0xff]
        %v6606 = vld [vmem:[%s6599 + $0x30] sm:$0xff]
        %v6607 = vld [vmem:[%s6599 + $0x38] sm:$0xff]
        %v6608 = vld [vmem:[%s6599 + $0x40] sm:$0xff]
        %v6609 = vld [vmem:[%s6599 + $0x48] sm:$0xff]
        %v6610 = vld [vmem:[%s6599 + $0x50] sm:$0xff]
        %v6611 = vld [vmem:[%s6599 + $0x58] sm:$0xff]
        %v6612 = vld [vmem:[%s6599 + $0x60] sm:$0xff]
        %v6613 = vld [vmem:[%s6599 + $0x68] sm:$0xff]
        %v6614 = vld [vmem:[%s6599 + $0x70] sm:$0xff]
        %v6615 = vld [vmem:[%s6599 + $0x78] sm:$0xff]
        %6616 = vmatpush.msra.mxu0 %v6615
        %6617 = vmatpush.msra.mxu0 %v6614
        %6618 = vmatpush.msra.mxu0 %v6613
        %6619 = vmatpush.msra.mxu0 %v6612
        %6620 = vmatpush.msra.mxu0 %v6611
        %6621 = vmatpush.msra.mxu0 %v6610
        %6622 = vmatpush.msra.mxu0 %v6609
        %6623 = vmatpush.msra.mxu0 %v6608
        %6624 = vmatpush.msra.mxu0 %v6607
        %6625 = vmatpush.msra.mxu0 %v6606
        %6626 = vmatpush.msra.mxu0 %v6605
        %6627 = vmatpush.msra.mxu0 %v6604
        %6628 = vmatpush.msra.mxu0 %v6603
        %6629 = vmatpush.msra.mxu0 %v6602
        %6630 = vmatpush.msra.mxu0 %v6601
        %6631 = vmatpush.msra.mxu0 %v6600
        %6632 = vmatmul.f32.gmra.mxu0 %v6477
        %v6633 = vpop.f32.mrf.mxu0
        %v6634 = vadd.f32 0.0, %v6633
        %6635 = vmatmul.f32.gmra.mxu0 %v6478
        %v6636 = vpop.f32.mrf.mxu0
        %v6637 = vadd.f32 0.0, %v6636
        %6638 = vmatmul.f32.gmra.mxu0 %v6479
        %v6639 = vpop.f32.mrf.mxu0
        %v6640 = vadd.f32 0.0, %v6639
        %6641 = vmatmul.f32.gmra.mxu0 %v6480
        %v6642 = vpop.f32.mrf.mxu0
        %v6643 = vadd.f32 0.0, %v6642
        %6644 = vmatmul.f32.gmra.mxu0 %v6481
        %v6645 = vpop.f32.mrf.mxu0
        %v6646 = vadd.f32 0.0, %v6645
        %6647 = vmatmul.f32.gmra.mxu0 %v6482
        %v6648 = vpop.f32.mrf.mxu0
        %v6649 = vadd.f32 0.0, %v6648
        %6650 = vmatmul.f32.gmra.mxu0 %v6483
        %v6651 = vpop.f32.mrf.mxu0
        %v6652 = vadd.f32 0.0, %v6651
        %6653 = vmatmul.f32.gmra.mxu0 %v6484
        %v6654 = vpop.f32.mrf.mxu0
        %v6655 = vadd.f32 0.0, %v6654
        %6656 = vdwg.mxu0
        %v6657 = vadd.f32 %v6591, %v6634
        %v6658 = vadd.f32 %v6592, %v6637
        %v6659 = vadd.f32 %v6593, %v6640
        %v6660 = vadd.f32 %v6594, %v6643
        %v6661 = vadd.f32 %v6595, %v6646
        %v6662 = vadd.f32 %v6596, %v6649
        %v6663 = vadd.f32 %v6597, %v6652
        %v6664 = vadd.f32 %v6598, %v6655
        %s6665 = scalar_lea.vmem %s5, 640
        %v6666 = vld [vmem:[%s6665] sm:$0xff]
        %v6667 = vld [vmem:[%s6665 + $0x8] sm:$0xff]
        %v6668 = vld [vmem:[%s6665 + $0x10] sm:$0xff]
        %v6669 = vld [vmem:[%s6665 + $0x18] sm:$0xff]
        %v6670 = vld [vmem:[%s6665 + $0x20] sm:$0xff]
        %v6671 = vld [vmem:[%s6665 + $0x28] sm:$0xff]
        %v6672 = vld [vmem:[%s6665 + $0x30] sm:$0xff]
        %v6673 = vld [vmem:[%s6665 + $0x38] sm:$0xff]
        %v6674 = vld [vmem:[%s6665 + $0x40] sm:$0xff]
        %v6675 = vld [vmem:[%s6665 + $0x48] sm:$0xff]
        %v6676 = vld [vmem:[%s6665 + $0x50] sm:$0xff]
        %v6677 = vld [vmem:[%s6665 + $0x58] sm:$0xff]
        %v6678 = vld [vmem:[%s6665 + $0x60] sm:$0xff]
        %v6679 = vld [vmem:[%s6665 + $0x68] sm:$0xff]
        %v6680 = vld [vmem:[%s6665 + $0x70] sm:$0xff]
        %v6681 = vld [vmem:[%s6665 + $0x78] sm:$0xff]
        %6682 = vmatpush.msra.mxu0 %v6681
        %6683 = vmatpush.msra.mxu0 %v6680
        %6684 = vmatpush.msra.mxu0 %v6679
        %6685 = vmatpush.msra.mxu0 %v6678
        %6686 = vmatpush.msra.mxu0 %v6677
        %6687 = vmatpush.msra.mxu0 %v6676
        %6688 = vmatpush.msra.mxu0 %v6675
        %6689 = vmatpush.msra.mxu0 %v6674
        %6690 = vmatpush.msra.mxu0 %v6673
        %6691 = vmatpush.msra.mxu0 %v6672
        %6692 = vmatpush.msra.mxu0 %v6671
        %6693 = vmatpush.msra.mxu0 %v6670
        %6694 = vmatpush.msra.mxu0 %v6669
        %6695 = vmatpush.msra.mxu0 %v6668
        %6696 = vmatpush.msra.mxu0 %v6667
        %6697 = vmatpush.msra.mxu0 %v6666
        %6698 = vmatmul.f32.gmra.mxu0 %v6525
        %v6699 = vpop.f32.mrf.mxu0
        %v6700 = vadd.f32 0.0, %v6699
        %6701 = vmatmul.f32.gmra.mxu0 %v6526
        %v6702 = vpop.f32.mrf.mxu0
        %v6703 = vadd.f32 0.0, %v6702
        %6704 = vmatmul.f32.gmra.mxu0 %v6527
        %v6705 = vpop.f32.mrf.mxu0
        %v6706 = vadd.f32 0.0, %v6705
        %6707 = vmatmul.f32.gmra.mxu0 %v6528
        %v6708 = vpop.f32.mrf.mxu0
        %v6709 = vadd.f32 0.0, %v6708
        %6710 = vmatmul.f32.gmra.mxu0 %v6529
        %v6711 = vpop.f32.mrf.mxu0
        %v6712 = vadd.f32 0.0, %v6711
        %6713 = vmatmul.f32.gmra.mxu0 %v6530
        %v6714 = vpop.f32.mrf.mxu0
        %v6715 = vadd.f32 0.0, %v6714
        %6716 = vmatmul.f32.gmra.mxu0 %v6531
        %v6717 = vpop.f32.mrf.mxu0
        %v6718 = vadd.f32 0.0, %v6717
        %6719 = vmatmul.f32.gmra.mxu0 %v6532
        %v6720 = vpop.f32.mrf.mxu0
        %v6721 = vadd.f32 0.0, %v6720
        %6722 = vdwg.mxu0
        %v6723 = vadd.f32 %v6657, %v6700
        %v6724 = vadd.f32 %v6658, %v6703
        %v6725 = vadd.f32 %v6659, %v6706
        %v6726 = vadd.f32 %v6660, %v6709
        %v6727 = vadd.f32 %v6661, %v6712
        %v6728 = vadd.f32 %v6662, %v6715
        %v6729 = vadd.f32 %v6663, %v6718
        %v6730 = vadd.f32 %v6664, %v6721
        %v6731 = vld [vmem:[#allocation4 + $0x10] sm:$0xff]
        %v6732 = vld [vmem:[#allocation4 + $0x18] sm:$0xff]
        %v6733 = vld [vmem:[#allocation4 + $0x20] sm:$0xff]
        %v6734 = vld [vmem:[#allocation4 + $0x28] sm:$0xff]
        %v6735 = vld [vmem:[#allocation4 + $0x30] sm:$0xff]
        %v6736 = vld [vmem:[#allocation4 + $0x38] sm:$0xff]
        %v6737 = vld [vmem:[#allocation4 + $0x40] sm:$0xff]
        %v6738 = vld [vmem:[#allocation4 + $0x48] sm:$0xff]
        %v6739 = vrot.slane %v6731, 7
        %v6740 = vrot.slane %v6732, 7
        %v6741 = vrot.slane %v6733, 7
        %v6742 = vrot.slane %v6734, 7
        %v6743 = vrot.slane %v6735, 7
        %v6744 = vrot.slane %v6736, 7
        %v6745 = vrot.slane %v6737, 7
        %v6746 = vrot.slane %v6738, 7
        %v6747 = vsel %vm815, %v6745, %v6746
        %v6748 = vsel %vm815, %v6744, %v6745
        %v6749 = vsel %vm815, %v6743, %v6744
        %v6750 = vsel %vm815, %v6742, %v6743
        %v6751 = vsel %vm815, %v6741, %v6742
        %v6752 = vsel %vm815, %v6740, %v6741
        %v6753 = vsel %vm815, %v6739, %v6740
        %v6754 = vsel %vm815, %v6746, %v6739
        %v6755 = vsel %vm6240, %v6754, 0.0
        %v6756 = vsel %vm6241, %v6753, 0.0
        %v6757 = vsel %vm6242, %v6752, 0.0
        %v6758 = vsel %vm6243, %v6751, 0.0
        %v6759 = vsel %vm6244, %v6750, 0.0
        %v6760 = vsel %vm6245, %v6749, 0.0
        %v6761 = vsel %vm6246, %v6748, 0.0
        %v6762 = vsel %vm6247, %v6747, 0.0
        %v6763 = vrot.slane %v6731, 1
        %v6764 = vrot.slane %v6732, 1
        %v6765 = vrot.slane %v6733, 1
        %v6766 = vrot.slane %v6734, 1
        %v6767 = vrot.slane %v6735, 1
        %v6768 = vrot.slane %v6736, 1
        %v6769 = vrot.slane %v6737, 1
        %v6770 = vrot.slane %v6738, 1
        %v6771 = vsel %vm912, %v6769, %v6770
        %v6772 = vsel %vm912, %v6768, %v6769
        %v6773 = vsel %vm912, %v6767, %v6768
        %v6774 = vsel %vm912, %v6766, %v6767
        %v6775 = vsel %vm912, %v6765, %v6766
        %v6776 = vsel %vm912, %v6764, %v6765
        %v6777 = vsel %vm912, %v6763, %v6764
        %v6778 = vsel %vm912, %v6770, %v6763
        %v6779 = vsel %vm6280, %v6777, 0.0
        %v6780 = vsel %vm6281, %v6776, 0.0
        %v6781 = vsel %vm6282, %v6775, 0.0
        %v6782 = vsel %vm6283, %v6774, 0.0
        %v6783 = vsel %vm6284, %v6773, 0.0
        %v6784 = vsel %vm6285, %v6772, 0.0
        %v6785 = vsel %vm6286, %v6771, 0.0
        %v6786 = vsel %vm6287, %v6778, 0.0
        %s6787 = scalar_lea.vmem %s5, 768
        %v6788 = vld [vmem:[%s6787] sm:$0xff]
        %v6789 = vld [vmem:[%s6787 + $0x8] sm:$0xff]
        %v6790 = vld [vmem:[%s6787 + $0x10] sm:$0xff]
        %v6791 = vld [vmem:[%s6787 + $0x18] sm:$0xff]
        %v6792 = vld [vmem:[%s6787 + $0x20] sm:$0xff]
        %v6793 = vld [vmem:[%s6787 + $0x28] sm:$0xff]
        %v6794 = vld [vmem:[%s6787 + $0x30] sm:$0xff]
        %v6795 = vld [vmem:[%s6787 + $0x38] sm:$0xff]
        %v6796 = vld [vmem:[%s6787 + $0x40] sm:$0xff]
        %v6797 = vld [vmem:[%s6787 + $0x48] sm:$0xff]
        %v6798 = vld [vmem:[%s6787 + $0x50] sm:$0xff]
        %v6799 = vld [vmem:[%s6787 + $0x58] sm:$0xff]
        %v6800 = vld [vmem:[%s6787 + $0x60] sm:$0xff]
        %v6801 = vld [vmem:[%s6787 + $0x68] sm:$0xff]
        %v6802 = vld [vmem:[%s6787 + $0x70] sm:$0xff]
        %v6803 = vld [vmem:[%s6787 + $0x78] sm:$0xff]
        %6804 = vmatpush.msra.mxu0 %v6803
        %6805 = vmatpush.msra.mxu0 %v6802
        %6806 = vmatpush.msra.mxu0 %v6801
        %6807 = vmatpush.msra.mxu0 %v6800
        %6808 = vmatpush.msra.mxu0 %v6799
        %6809 = vmatpush.msra.mxu0 %v6798
        %6810 = vmatpush.msra.mxu0 %v6797
        %6811 = vmatpush.msra.mxu0 %v6796
        %6812 = vmatpush.msra.mxu0 %v6795
        %6813 = vmatpush.msra.mxu0 %v6794
        %6814 = vmatpush.msra.mxu0 %v6793
        %6815 = vmatpush.msra.mxu0 %v6792
        %6816 = vmatpush.msra.mxu0 %v6791
        %6817 = vmatpush.msra.mxu0 %v6790
        %6818 = vmatpush.msra.mxu0 %v6789
        %6819 = vmatpush.msra.mxu0 %v6788
        %6820 = vmatmul.f32.gmra.mxu0 %v6755
        %v6821 = vpop.f32.mrf.mxu0
        %v6822 = vadd.f32 0.0, %v6821
        %6823 = vmatmul.f32.gmra.mxu0 %v6756
        %v6824 = vpop.f32.mrf.mxu0
        %v6825 = vadd.f32 0.0, %v6824
        %6826 = vmatmul.f32.gmra.mxu0 %v6757
        %v6827 = vpop.f32.mrf.mxu0
        %v6828 = vadd.f32 0.0, %v6827
        %6829 = vmatmul.f32.gmra.mxu0 %v6758
        %v6830 = vpop.f32.mrf.mxu0
        %v6831 = vadd.f32 0.0, %v6830
        %6832 = vmatmul.f32.gmra.mxu0 %v6759
        %v6833 = vpop.f32.mrf.mxu0
        %v6834 = vadd.f32 0.0, %v6833
        %6835 = vmatmul.f32.gmra.mxu0 %v6760
        %v6836 = vpop.f32.mrf.mxu0
        %v6837 = vadd.f32 0.0, %v6836
        %6838 = vmatmul.f32.gmra.mxu0 %v6761
        %v6839 = vpop.f32.mrf.mxu0
        %v6840 = vadd.f32 0.0, %v6839
        %6841 = vmatmul.f32.gmra.mxu0 %v6762
        %v6842 = vpop.f32.mrf.mxu0
        %v6843 = vadd.f32 0.0, %v6842
        %6844 = vdwg.mxu0
        %v6845 = vadd.f32 %v6723, %v6822
        %v6846 = vadd.f32 %v6724, %v6825
        %v6847 = vadd.f32 %v6725, %v6828
        %v6848 = vadd.f32 %v6726, %v6831
        %v6849 = vadd.f32 %v6727, %v6834
        %v6850 = vadd.f32 %v6728, %v6837
        %v6851 = vadd.f32 %v6729, %v6840
        %v6852 = vadd.f32 %v6730, %v6843
        %s6853 = scalar_lea.vmem %s5, 896
        %v6854 = vld [vmem:[%s6853] sm:$0xff]
        %v6855 = vld [vmem:[%s6853 + $0x8] sm:$0xff]
        %v6856 = vld [vmem:[%s6853 + $0x10] sm:$0xff]
        %v6857 = vld [vmem:[%s6853 + $0x18] sm:$0xff]
        %v6858 = vld [vmem:[%s6853 + $0x20] sm:$0xff]
        %v6859 = vld [vmem:[%s6853 + $0x28] sm:$0xff]
        %v6860 = vld [vmem:[%s6853 + $0x30] sm:$0xff]
        %v6861 = vld [vmem:[%s6853 + $0x38] sm:$0xff]
        %v6862 = vld [vmem:[%s6853 + $0x40] sm:$0xff]
        %v6863 = vld [vmem:[%s6853 + $0x48] sm:$0xff]
        %v6864 = vld [vmem:[%s6853 + $0x50] sm:$0xff]
        %v6865 = vld [vmem:[%s6853 + $0x58] sm:$0xff]
        %v6866 = vld [vmem:[%s6853 + $0x60] sm:$0xff]
        %v6867 = vld [vmem:[%s6853 + $0x68] sm:$0xff]
        %v6868 = vld [vmem:[%s6853 + $0x70] sm:$0xff]
        %v6869 = vld [vmem:[%s6853 + $0x78] sm:$0xff]
        %6870 = vmatpush.msra.mxu0 %v6869
        %6871 = vmatpush.msra.mxu0 %v6868
        %6872 = vmatpush.msra.mxu0 %v6867
        %6873 = vmatpush.msra.mxu0 %v6866
        %6874 = vmatpush.msra.mxu0 %v6865
        %6875 = vmatpush.msra.mxu0 %v6864
        %6876 = vmatpush.msra.mxu0 %v6863
        %6877 = vmatpush.msra.mxu0 %v6862
        %6878 = vmatpush.msra.mxu0 %v6861
        %6879 = vmatpush.msra.mxu0 %v6860
        %6880 = vmatpush.msra.mxu0 %v6859
        %6881 = vmatpush.msra.mxu0 %v6858
        %6882 = vmatpush.msra.mxu0 %v6857
        %6883 = vmatpush.msra.mxu0 %v6856
        %6884 = vmatpush.msra.mxu0 %v6855
        %6885 = vmatpush.msra.mxu0 %v6854
        %6886 = vmatmul.f32.gmra.mxu0 %v6731
        %v6887 = vpop.f32.mrf.mxu0
        %v6888 = vadd.f32 0.0, %v6887
        %6889 = vmatmul.f32.gmra.mxu0 %v6732
        %v6890 = vpop.f32.mrf.mxu0
        %v6891 = vadd.f32 0.0, %v6890
        %6892 = vmatmul.f32.gmra.mxu0 %v6733
        %v6893 = vpop.f32.mrf.mxu0
        %v6894 = vadd.f32 0.0, %v6893
        %6895 = vmatmul.f32.gmra.mxu0 %v6734
        %v6896 = vpop.f32.mrf.mxu0
        %v6897 = vadd.f32 0.0, %v6896
        %6898 = vmatmul.f32.gmra.mxu0 %v6735
        %v6899 = vpop.f32.mrf.mxu0
        %v6900 = vadd.f32 0.0, %v6899
        %6901 = vmatmul.f32.gmra.mxu0 %v6736
        %v6902 = vpop.f32.mrf.mxu0
        %v6903 = vadd.f32 0.0, %v6902
        %6904 = vmatmul.f32.gmra.mxu0 %v6737
        %v6905 = vpop.f32.mrf.mxu0
        %v6906 = vadd.f32 0.0, %v6905
        %6907 = vmatmul.f32.gmra.mxu0 %v6738
        %v6908 = vpop.f32.mrf.mxu0
        %v6909 = vadd.f32 0.0, %v6908
        %6910 = vdwg.mxu0
        %v6911 = vadd.f32 %v6845, %v6888
        %v6912 = vadd.f32 %v6846, %v6891
        %v6913 = vadd.f32 %v6847, %v6894
        %v6914 = vadd.f32 %v6848, %v6897
        %v6915 = vadd.f32 %v6849, %v6900
        %v6916 = vadd.f32 %v6850, %v6903
        %v6917 = vadd.f32 %v6851, %v6906
        %v6918 = vadd.f32 %v6852, %v6909
        %s6919 = scalar_lea.vmem %s5, 1024
        %v6920 = vld [vmem:[%s6919] sm:$0xff]
        %v6921 = vld [vmem:[%s6919 + $0x8] sm:$0xff]
        %v6922 = vld [vmem:[%s6919 + $0x10] sm:$0xff]
        %v6923 = vld [vmem:[%s6919 + $0x18] sm:$0xff]
        %v6924 = vld [vmem:[%s6919 + $0x20] sm:$0xff]
        %v6925 = vld [vmem:[%s6919 + $0x28] sm:$0xff]
        %v6926 = vld [vmem:[%s6919 + $0x30] sm:$0xff]
        %v6927 = vld [vmem:[%s6919 + $0x38] sm:$0xff]
        %v6928 = vld [vmem:[%s6919 + $0x40] sm:$0xff]
        %v6929 = vld [vmem:[%s6919 + $0x48] sm:$0xff]
        %v6930 = vld [vmem:[%s6919 + $0x50] sm:$0xff]
        %v6931 = vld [vmem:[%s6919 + $0x58] sm:$0xff]
        %v6932 = vld [vmem:[%s6919 + $0x60] sm:$0xff]
        %v6933 = vld [vmem:[%s6919 + $0x68] sm:$0xff]
        %v6934 = vld [vmem:[%s6919 + $0x70] sm:$0xff]
        %v6935 = vld [vmem:[%s6919 + $0x78] sm:$0xff]
        %6936 = vmatpush.msra.mxu0 %v6935
        %6937 = vmatpush.msra.mxu0 %v6934
        %6938 = vmatpush.msra.mxu0 %v6933
        %6939 = vmatpush.msra.mxu0 %v6932
        %6940 = vmatpush.msra.mxu0 %v6931
        %6941 = vmatpush.msra.mxu0 %v6930
        %6942 = vmatpush.msra.mxu0 %v6929
        %6943 = vmatpush.msra.mxu0 %v6928
        %6944 = vmatpush.msra.mxu0 %v6927
        %6945 = vmatpush.msra.mxu0 %v6926
        %6946 = vmatpush.msra.mxu0 %v6925
        %6947 = vmatpush.msra.mxu0 %v6924
        %6948 = vmatpush.msra.mxu0 %v6923
        %6949 = vmatpush.msra.mxu0 %v6922
        %6950 = vmatpush.msra.mxu0 %v6921
        %6951 = vmatpush.msra.mxu0 %v6920
        %6952 = vmatmul.f32.gmra.mxu0 %v6779
        %v6953 = vpop.f32.mrf.mxu0
        %v6954 = vadd.f32 0.0, %v6953
        %6955 = vmatmul.f32.gmra.mxu0 %v6780
        %v6956 = vpop.f32.mrf.mxu0
        %v6957 = vadd.f32 0.0, %v6956
        %6958 = vmatmul.f32.gmra.mxu0 %v6781
        %v6959 = vpop.f32.mrf.mxu0
        %v6960 = vadd.f32 0.0, %v6959
        %6961 = vmatmul.f32.gmra.mxu0 %v6782
        %v6962 = vpop.f32.mrf.mxu0
        %v6963 = vadd.f32 0.0, %v6962
        %6964 = vmatmul.f32.gmra.mxu0 %v6783
        %v6965 = vpop.f32.mrf.mxu0
        %v6966 = vadd.f32 0.0, %v6965
        %6967 = vmatmul.f32.gmra.mxu0 %v6784
        %v6968 = vpop.f32.mrf.mxu0
        %v6969 = vadd.f32 0.0, %v6968
        %6970 = vmatmul.f32.gmra.mxu0 %v6785
        %v6971 = vpop.f32.mrf.mxu0
        %v6972 = vadd.f32 0.0, %v6971
        %6973 = vmatmul.f32.gmra.mxu0 %v6786
        %v6974 = vpop.f32.mrf.mxu0
        %v6975 = vadd.f32 0.0, %v6974
        %6976 = vdwg.mxu0
        %v6977 = vadd.f32 %v6911, %v6954
        %v6978 = vadd.f32 %v6912, %v6957
        %v6979 = vadd.f32 %v6913, %v6960
        %v6980 = vadd.f32 %v6914, %v6963
        %v6981 = vadd.f32 %v6915, %v6966
        %v6982 = vadd.f32 %v6916, %v6969
        %v6983 = vadd.f32 %v6917, %v6972
        %v6984 = vadd.f32 %v6918, %v6975
        %v6985 = vld [vmem:[%s6] sm:$0x1]
        %v6987 = vperm.slane %v6985, 0
        %v6989 = vadd.f32 %v6977, %v6987
        %v6990 = vadd.f32 %v6978, %v6987
        %v6991 = vadd.f32 %v6979, %v6987
        %v6992 = vadd.f32 %v6980, %v6987
        %v6993 = vadd.f32 %v6981, %v6987
        %v6994 = vadd.f32 %v6982, %v6987
        %v6995 = vadd.f32 %v6983, %v6987
        %v6996 = vadd.f32 %v6984, %v6987
        %vm6997 = vcmp.ge.f32.partialorder %v6989, 0.0
        %vm6998 = vcmp.ge.f32.partialorder %v6990, 0.0
        %vm6999 = vcmp.ge.f32.partialorder %v6991, 0.0
        %vm7000 = vcmp.ge.f32.partialorder %v6992, 0.0
        %vm7001 = vcmp.ge.f32.partialorder %v6993, 0.0
        %vm7002 = vcmp.ge.f32.partialorder %v6994, 0.0
        %vm7003 = vcmp.ge.f32.partialorder %v6995, 0.0
        %vm7004 = vcmp.ge.f32.partialorder %v6996, 0.0
        %v7005 = vmul.f32 %v6989, 0.01
        %v7006 = vmul.f32 %v6990, 0.01
        %v7007 = vmul.f32 %v6991, 0.01
        %v7008 = vmul.f32 %v6992, 0.01
        %v7009 = vmul.f32 %v6993, 0.01
        %v7010 = vmul.f32 %v6994, 0.01
        %v7011 = vmul.f32 %v6995, 0.01
        %v7012 = vmul.f32 %v6996, 0.01
        %v7013 = vsel %vm6997, %v6989, %v7005
        %v7014 = vsel %vm6998, %v6990, %v7006
        %v7015 = vsel %vm6999, %v6991, %v7007
        %v7016 = vsel %vm7000, %v6992, %v7008
        %v7017 = vsel %vm7001, %v6993, %v7009
        %v7018 = vsel %vm7002, %v6994, %v7010
        %v7019 = vsel %vm7003, %v6995, %v7011
        %v7020 = vsel %vm7004, %v6996, %v7012
        %v7021 = vrot.slane %v7013, 1
        %v7022 = vrot.slane %v7014, 1
        %v7023 = vrot.slane %v7015, 1
        %v7024 = vrot.slane %v7016, 1
        %v7025 = vrot.slane %v7017, 1
        %v7026 = vrot.slane %v7018, 1
        %v7027 = vrot.slane %v7019, 1
        %v7028 = vrot.slane %v7020, 1
        %v7029 = vsel %vm912, %v7027, %v7028
        %v7030 = vsel %vm912, %v7026, %v7027
        %v7031 = vsel %vm912, %v7025, %v7026
        %v7032 = vsel %vm912, %v7024, %v7025
        %v7033 = vsel %vm912, %v7023, %v7024
        %v7034 = vsel %vm912, %v7022, %v7023
        %v7035 = vsel %vm912, %v7021, %v7022
        %v7036 = vsel %vm912, %v7028, %v7021
        %v7037 = vmax.f32 %v7013, %v7035
        %v7038 = vmax.f32 %v7014, %v7034
        %v7039 = vmax.f32 %v7015, %v7033
        %v7040 = vmax.f32 %v7016, %v7032
        %v7041 = vmax.f32 %v7017, %v7031
        %v7042 = vmax.f32 %v7018, %v7030
        %v7043 = vmax.f32 %v7019, %v7029
        %v7044 = vmax.f32 %v7020, %v7036
        %v7045 = vmax.f32 %v7037, %v7038
        %v7046 = vmax.f32 %v7038, %v7039
        %v7047 = vmax.f32 %v7039, %v7040
        %v7048 = vmax.f32 %v7040, %v7041
        %v7049 = vmax.f32 %v7041, %v7042
        %v7050 = vmax.f32 %v7042, %v7043
        %v7051 = vmax.f32 %v7043, %v7044
        %v7052 = vmax.f32 %v7044, %v7037
        %v7053 = vld [vmem:[%s12] sm:$0xff]
        %v7054 = vld [vmem:[%s12 + $0x8] sm:$0xff]
        %vm7055 = vcmask 523264
        %v7057 = vsel %vm7055, %v7053, 0
        %v7060 = vsel %vm7055, %v7054, 0
        %7062 = vmatpush.msra.mxu0 0.0
        %7063 = vmatpush.msra.mxu0 0.0
        %7064 = vmatpush.msra.mxu0 0.0
        %7065 = vmatpush.msra.mxu0 0.0
        %7066 = vmatpush.msra.mxu0 0.0
        %7067 = vmatpush.msra.mxu0 0.0
        %7068 = vmatpush.msra.mxu0 0.0
        %7069 = vmatpush.msra.mxu0 0.0
        %7070 = vmatpush.msra.mxu0 %v7052
        %7071 = vmatpush.msra.mxu0 %v7051
        %7072 = vmatpush.msra.mxu0 %v7050
        %7073 = vmatpush.msra.mxu0 %v7049
        %7074 = vmatpush.msra.mxu0 %v7048
        %7075 = vmatpush.msra.mxu0 %v7047
        %7076 = vmatpush.msra.mxu0 %v7046
        %7077 = vmatpush.msra.mxu0 %v7045
        %7078 = vmatmul.f32.gmra.mxu0 %v7057
        %v7079 = vpop.f32.mrf.mxu0
        %v7080 = vadd.f32 0.0, %v7079
        %7081 = vmatmul.f32.gmra.mxu0 %v7060
        %v7082 = vpop.f32.mrf.mxu0
        %v7083 = vadd.f32 0.0, %v7082
        %7084 = vdwg.mxu0
        %7085 = vst [vmem:[%s522] sm:$0xff] %v7080
        %7086 = vst [vmem:[%s522 + $0x8] sm:$0xff] %v7083
        %7087 = vst [vmem:[#allocation5 + $0x4] sm:$0xff] %v7080
        %7088 = vst [vmem:[#allocation5 + $0xc] sm:$0xff] %v7083
        %v7089 = vand.u32 %v623, 3
        %v7090 = vand.u32 %v624, 3
        %vm7091 = vcmp.ne.s32.totalorder %v7089, 0
        %vm7092 = vcmp.ne.s32.totalorder %v7090, 0
        %vm7093 = vcmp.ne.s32.totalorder %v7089, 3
        %vm7094 = vcmp.ne.s32.totalorder %v7090, 3
        %v7095 = vld [vmem:[#allocation5] sm:$0xff]
        %v7096 = vld [vmem:[#allocation5 + $0x8] sm:$0xff]
        %v7097 = vrot.slane %v7095, 7
        %v7098 = vrot.slane %v7096, 7
        %v7099 = vsel %vm815, %v7097, %v7098
        %v7100 = vsel %vm815, %v7098, %v7097
        %v7101 = vsel %vm7091, 1, 0
        %v7102 = vsel %vm7092, 1, 0
        %vm7103 = vcmp.eq.s32.totalorder %v7101, 1
        %vm7104 = vcmp.eq.s32.totalorder %v7102, 1
        %v7105 = vsel %vm7103, %v7100, 0.0
        %v7106 = vsel %vm7104, %v7099, 0.0
        %v7107 = vrot.slane %v7095, 1
        %v7108 = vrot.slane %v7096, 1
        %v7109 = vsel %vm912, %v7107, %v7108
        %v7110 = vsel %vm912, %v7108, %v7107
        %v7111 = vsel %vm7093, 1, 0
        %v7112 = vsel %vm7094, 1, 0
        %vm7113 = vcmp.eq.s32.totalorder %v7111, 1
        %vm7114 = vcmp.eq.s32.totalorder %v7112, 1
        %v7115 = vsel %vm7113, %v7109, 0.0
        %v7116 = vsel %vm7114, %v7110, 0.0
        %v7117 = vld [vmem:[%s7] sm:$0xff]
        %v7118 = vld [vmem:[%s7 + $0x8] sm:$0xff]
        %v7119 = vld [vmem:[%s7 + $0x10] sm:$0xff]
        %v7120 = vld [vmem:[%s7 + $0x18] sm:$0xff]
        %v7121 = vld [vmem:[%s7 + $0x20] sm:$0xff]
        %v7122 = vld [vmem:[%s7 + $0x28] sm:$0xff]
        %v7123 = vld [vmem:[%s7 + $0x30] sm:$0xff]
        %v7124 = vld [vmem:[%s7 + $0x38] sm:$0xff]
        %v7125 = vld [vmem:[%s7 + $0x40] sm:$0xff]
        %v7126 = vld [vmem:[%s7 + $0x48] sm:$0xff]
        %v7127 = vld [vmem:[%s7 + $0x50] sm:$0xff]
        %v7128 = vld [vmem:[%s7 + $0x58] sm:$0xff]
        %v7129 = vld [vmem:[%s7 + $0x60] sm:$0xff]
        %v7130 = vld [vmem:[%s7 + $0x68] sm:$0xff]
        %v7131 = vld [vmem:[%s7 + $0x70] sm:$0xff]
        %v7132 = vld [vmem:[%s7 + $0x78] sm:$0xff]
        %s7133 = scalar_lea.vmem %s7, 128
        %v7134 = vld [vmem:[%s7133] sm:$0xff]
        %v7135 = vld [vmem:[%s7133 + $0x8] sm:$0xff]
        %v7136 = vld [vmem:[%s7133 + $0x10] sm:$0xff]
        %v7137 = vld [vmem:[%s7133 + $0x18] sm:$0xff]
        %v7138 = vld [vmem:[%s7133 + $0x20] sm:$0xff]
        %v7139 = vld [vmem:[%s7133 + $0x28] sm:$0xff]
        %v7140 = vld [vmem:[%s7133 + $0x30] sm:$0xff]
        %v7141 = vld [vmem:[%s7133 + $0x38] sm:$0xff]
        %v7142 = vld [vmem:[%s7133 + $0x40] sm:$0xff]
        %v7143 = vld [vmem:[%s7133 + $0x48] sm:$0xff]
        %v7144 = vld [vmem:[%s7133 + $0x50] sm:$0xff]
        %v7145 = vld [vmem:[%s7133 + $0x58] sm:$0xff]
        %v7146 = vld [vmem:[%s7133 + $0x60] sm:$0xff]
        %v7147 = vld [vmem:[%s7133 + $0x68] sm:$0xff]
        %v7148 = vld [vmem:[%s7133 + $0x70] sm:$0xff]
        %v7149 = vld [vmem:[%s7133 + $0x78] sm:$0xff]
        %7150 = vmatpush.msra.mxu0 %v7149
        %7151 = vmatpush.msra.mxu0 %v7148
        %7152 = vmatpush.msra.mxu0 %v7147
        %7153 = vmatpush.msra.mxu0 %v7146
        %7154 = vmatpush.msra.mxu0 %v7145
        %7155 = vmatpush.msra.mxu0 %v7144
        %7156 = vmatpush.msra.mxu0 %v7143
        %7157 = vmatpush.msra.mxu0 %v7142
        %7158 = vmatpush.msra.mxu0 %v7141
        %7159 = vmatpush.msra.mxu0 %v7140
        %7160 = vmatpush.msra.mxu0 %v7139
        %7161 = vmatpush.msra.mxu0 %v7138
        %7162 = vmatpush.msra.mxu0 %v7137
        %7163 = vmatpush.msra.mxu0 %v7136
        %7164 = vmatpush.msra.mxu0 %v7135
        %7165 = vmatpush.msra.mxu0 %v7134
        %7166 = vmatmul.f32.gmra.mxu0 %v7095
        %v7167 = vpop.f32.mrf.mxu0
        %v7168 = vadd.f32 0.0, %v7167
        %7169 = vmatmul.f32.gmra.mxu0 %v7096
        %v7170 = vpop.f32.mrf.mxu0
        %v7171 = vadd.f32 0.0, %v7170
        %7172 = vdwg.mxu0
        %7173 = vmatpush.msra.mxu0 %v7132
        %7174 = vmatpush.msra.mxu0 %v7131
        %7175 = vmatpush.msra.mxu0 %v7130
        %7176 = vmatpush.msra.mxu0 %v7129
        %7177 = vmatpush.msra.mxu0 %v7128
        %7178 = vmatpush.msra.mxu0 %v7127
        %7179 = vmatpush.msra.mxu0 %v7126
        %7180 = vmatpush.msra.mxu0 %v7125
        %7181 = vmatpush.msra.mxu0 %v7124
        %7182 = vmatpush.msra.mxu0 %v7123
        %7183 = vmatpush.msra.mxu0 %v7122
        %7184 = vmatpush.msra.mxu0 %v7121
        %7185 = vmatpush.msra.mxu0 %v7120
        %7186 = vmatpush.msra.mxu0 %v7119
        %7187 = vmatpush.msra.mxu0 %v7118
        %7188 = vmatpush.msra.mxu0 %v7117
        %7189 = vmatmul.f32.gmra.mxu0 %v7105
        %v7190 = vpop.f32.mrf.mxu0
        %v7191 = vadd.f32 %v7168, %v7190
        %7192 = vmatmul.f32.gmra.mxu0 %v7106
        %v7193 = vpop.f32.mrf.mxu0
        %v7194 = vadd.f32 %v7171, %v7193
        %7195 = vdwg.mxu0
        %s7196 = scalar_lea.vmem %s7, 256
        %v7197 = vld [vmem:[%s7196] sm:$0xff]
        %v7198 = vld [vmem:[%s7196 + $0x8] sm:$0xff]
        %v7199 = vld [vmem:[%s7196 + $0x10] sm:$0xff]
        %v7200 = vld [vmem:[%s7196 + $0x18] sm:$0xff]
        %v7201 = vld [vmem:[%s7196 + $0x20] sm:$0xff]
        %v7202 = vld [vmem:[%s7196 + $0x28] sm:$0xff]
        %v7203 = vld [vmem:[%s7196 + $0x30] sm:$0xff]
        %v7204 = vld [vmem:[%s7196 + $0x38] sm:$0xff]
        %v7205 = vld [vmem:[%s7196 + $0x40] sm:$0xff]
        %v7206 = vld [vmem:[%s7196 + $0x48] sm:$0xff]
        %v7207 = vld [vmem:[%s7196 + $0x50] sm:$0xff]
        %v7208 = vld [vmem:[%s7196 + $0x58] sm:$0xff]
        %v7209 = vld [vmem:[%s7196 + $0x60] sm:$0xff]
        %v7210 = vld [vmem:[%s7196 + $0x68] sm:$0xff]
        %v7211 = vld [vmem:[%s7196 + $0x70] sm:$0xff]
        %v7212 = vld [vmem:[%s7196 + $0x78] sm:$0xff]
        %7213 = vmatpush.msra.mxu0 %v7212
        %7214 = vmatpush.msra.mxu0 %v7211
        %7215 = vmatpush.msra.mxu0 %v7210
        %7216 = vmatpush.msra.mxu0 %v7209
        %7217 = vmatpush.msra.mxu0 %v7208
        %7218 = vmatpush.msra.mxu0 %v7207
        %7219 = vmatpush.msra.mxu0 %v7206
        %7220 = vmatpush.msra.mxu0 %v7205
        %7221 = vmatpush.msra.mxu0 %v7204
        %7222 = vmatpush.msra.mxu0 %v7203
        %7223 = vmatpush.msra.mxu0 %v7202
        %7224 = vmatpush.msra.mxu0 %v7201
        %7225 = vmatpush.msra.mxu0 %v7200
        %7226 = vmatpush.msra.mxu0 %v7199
        %7227 = vmatpush.msra.mxu0 %v7198
        %7228 = vmatpush.msra.mxu0 %v7197
        %7229 = vmatmul.f32.gmra.mxu0 %v7115
        %v7230 = vpop.f32.mrf.mxu0
        %v7231 = vadd.f32 0.0, %v7230
        %7232 = vmatmul.f32.gmra.mxu0 %v7116
        %v7233 = vpop.f32.mrf.mxu0
        %v7234 = vadd.f32 0.0, %v7233
        %7235 = vdwg.mxu0
        %v7236 = vadd.f32 %v7191, %v7231
        %v7237 = vadd.f32 %v7194, %v7234
        %v7238 = vld [vmem:[#allocation5 + $0x4] sm:$0xff]
        %v7239 = vld [vmem:[#allocation5 + $0xc] sm:$0xff]
        %v7240 = vrot.slane %v7238, 7
        %v7241 = vrot.slane %v7239, 7
        %v7242 = vsel %vm815, %v7240, %v7241
        %v7243 = vsel %vm815, %v7241, %v7240
        %v7244 = vsel %vm7103, %v7243, 0.0
        %v7245 = vsel %vm7104, %v7242, 0.0
        %v7246 = vrot.slane %v7238, 1
        %v7247 = vrot.slane %v7239, 1
        %v7248 = vsel %vm912, %v7246, %v7247
        %v7249 = vsel %vm912, %v7247, %v7246
        %v7250 = vsel %vm7113, %v7248, 0.0
        %v7251 = vsel %vm7114, %v7249, 0.0
        %s7252 = scalar_lea.vmem %s7, 384
        %v7253 = vld [vmem:[%s7252] sm:$0xff]
        %v7254 = vld [vmem:[%s7252 + $0x8] sm:$0xff]
        %v7255 = vld [vmem:[%s7252 + $0x10] sm:$0xff]
        %v7256 = vld [vmem:[%s7252 + $0x18] sm:$0xff]
        %v7257 = vld [vmem:[%s7252 + $0x20] sm:$0xff]
        %v7258 = vld [vmem:[%s7252 + $0x28] sm:$0xff]
        %v7259 = vld [vmem:[%s7252 + $0x30] sm:$0xff]
        %v7260 = vld [vmem:[%s7252 + $0x38] sm:$0xff]
        %v7261 = vld [vmem:[%s7252 + $0x40] sm:$0xff]
        %v7262 = vld [vmem:[%s7252 + $0x48] sm:$0xff]
        %v7263 = vld [vmem:[%s7252 + $0x50] sm:$0xff]
        %v7264 = vld [vmem:[%s7252 + $0x58] sm:$0xff]
        %v7265 = vld [vmem:[%s7252 + $0x60] sm:$0xff]
        %v7266 = vld [vmem:[%s7252 + $0x68] sm:$0xff]
        %v7267 = vld [vmem:[%s7252 + $0x70] sm:$0xff]
        %v7268 = vld [vmem:[%s7252 + $0x78] sm:$0xff]
        %7269 = vmatpush.msra.mxu0 %v7268
        %7270 = vmatpush.msra.mxu0 %v7267
        %7271 = vmatpush.msra.mxu0 %v7266
        %7272 = vmatpush.msra.mxu0 %v7265
        %7273 = vmatpush.msra.mxu0 %v7264
        %7274 = vmatpush.msra.mxu0 %v7263
        %7275 = vmatpush.msra.mxu0 %v7262
        %7276 = vmatpush.msra.mxu0 %v7261
        %7277 = vmatpush.msra.mxu0 %v7260
        %7278 = vmatpush.msra.mxu0 %v7259
        %7279 = vmatpush.msra.mxu0 %v7258
        %7280 = vmatpush.msra.mxu0 %v7257
        %7281 = vmatpush.msra.mxu0 %v7256
        %7282 = vmatpush.msra.mxu0 %v7255
        %7283 = vmatpush.msra.mxu0 %v7254
        %7284 = vmatpush.msra.mxu0 %v7253
        %7285 = vmatmul.f32.gmra.mxu0 %v7244
        %v7286 = vpop.f32.mrf.mxu0
        %v7287 = vadd.f32 0.0, %v7286
        %7288 = vmatmul.f32.gmra.mxu0 %v7245
        %v7289 = vpop.f32.mrf.mxu0
        %v7290 = vadd.f32 0.0, %v7289
        %7291 = vdwg.mxu0
        %v7292 = vadd.f32 %v7236, %v7287
        %v7293 = vadd.f32 %v7237, %v7290
        %s7294 = scalar_lea.vmem %s7, 512
        %v7295 = vld [vmem:[%s7294] sm:$0xff]
        %v7296 = vld [vmem:[%s7294 + $0x8] sm:$0xff]
        %v7297 = vld [vmem:[%s7294 + $0x10] sm:$0xff]
        %v7298 = vld [vmem:[%s7294 + $0x18] sm:$0xff]
        %v7299 = vld [vmem:[%s7294 + $0x20] sm:$0xff]
        %v7300 = vld [vmem:[%s7294 + $0x28] sm:$0xff]
        %v7301 = vld [vmem:[%s7294 + $0x30] sm:$0xff]
        %v7302 = vld [vmem:[%s7294 + $0x38] sm:$0xff]
        %v7303 = vld [vmem:[%s7294 + $0x40] sm:$0xff]
        %v7304 = vld [vmem:[%s7294 + $0x48] sm:$0xff]
        %v7305 = vld [vmem:[%s7294 + $0x50] sm:$0xff]
        %v7306 = vld [vmem:[%s7294 + $0x58] sm:$0xff]
        %v7307 = vld [vmem:[%s7294 + $0x60] sm:$0xff]
        %v7308 = vld [vmem:[%s7294 + $0x68] sm:$0xff]
        %v7309 = vld [vmem:[%s7294 + $0x70] sm:$0xff]
        %v7310 = vld [vmem:[%s7294 + $0x78] sm:$0xff]
        %7311 = vmatpush.msra.mxu0 %v7310
        %7312 = vmatpush.msra.mxu0 %v7309
        %7313 = vmatpush.msra.mxu0 %v7308
        %7314 = vmatpush.msra.mxu0 %v7307
        %7315 = vmatpush.msra.mxu0 %v7306
        %7316 = vmatpush.msra.mxu0 %v7305
        %7317 = vmatpush.msra.mxu0 %v7304
        %7318 = vmatpush.msra.mxu0 %v7303
        %7319 = vmatpush.msra.mxu0 %v7302
        %7320 = vmatpush.msra.mxu0 %v7301
        %7321 = vmatpush.msra.mxu0 %v7300
        %7322 = vmatpush.msra.mxu0 %v7299
        %7323 = vmatpush.msra.mxu0 %v7298
        %7324 = vmatpush.msra.mxu0 %v7297
        %7325 = vmatpush.msra.mxu0 %v7296
        %7326 = vmatpush.msra.mxu0 %v7295
        %7327 = vmatmul.f32.gmra.mxu0 %v7238
        %v7328 = vpop.f32.mrf.mxu0
        %v7329 = vadd.f32 0.0, %v7328
        %7330 = vmatmul.f32.gmra.mxu0 %v7239
        %v7331 = vpop.f32.mrf.mxu0
        %v7332 = vadd.f32 0.0, %v7331
        %7333 = vdwg.mxu0
        %v7334 = vadd.f32 %v7292, %v7329
        %v7335 = vadd.f32 %v7293, %v7332
        %s7336 = scalar_lea.vmem %s7, 640
        %v7337 = vld [vmem:[%s7336] sm:$0xff]
        %v7338 = vld [vmem:[%s7336 + $0x8] sm:$0xff]
        %v7339 = vld [vmem:[%s7336 + $0x10] sm:$0xff]
        %v7340 = vld [vmem:[%s7336 + $0x18] sm:$0xff]
        %v7341 = vld [vmem:[%s7336 + $0x20] sm:$0xff]
        %v7342 = vld [vmem:[%s7336 + $0x28] sm:$0xff]
        %v7343 = vld [vmem:[%s7336 + $0x30] sm:$0xff]
        %v7344 = vld [vmem:[%s7336 + $0x38] sm:$0xff]
        %v7345 = vld [vmem:[%s7336 + $0x40] sm:$0xff]
        %v7346 = vld [vmem:[%s7336 + $0x48] sm:$0xff]
        %v7347 = vld [vmem:[%s7336 + $0x50] sm:$0xff]
        %v7348 = vld [vmem:[%s7336 + $0x58] sm:$0xff]
        %v7349 = vld [vmem:[%s7336 + $0x60] sm:$0xff]
        %v7350 = vld [vmem:[%s7336 + $0x68] sm:$0xff]
        %v7351 = vld [vmem:[%s7336 + $0x70] sm:$0xff]
        %v7352 = vld [vmem:[%s7336 + $0x78] sm:$0xff]
        %7353 = vmatpush.msra.mxu0 %v7352
        %7354 = vmatpush.msra.mxu0 %v7351
        %7355 = vmatpush.msra.mxu0 %v7350
        %7356 = vmatpush.msra.mxu0 %v7349
        %7357 = vmatpush.msra.mxu0 %v7348
        %7358 = vmatpush.msra.mxu0 %v7347
        %7359 = vmatpush.msra.mxu0 %v7346
        %7360 = vmatpush.msra.mxu0 %v7345
        %7361 = vmatpush.msra.mxu0 %v7344
        %7362 = vmatpush.msra.mxu0 %v7343
        %7363 = vmatpush.msra.mxu0 %v7342
        %7364 = vmatpush.msra.mxu0 %v7341
        %7365 = vmatpush.msra.mxu0 %v7340
        %7366 = vmatpush.msra.mxu0 %v7339
        %7367 = vmatpush.msra.mxu0 %v7338
        %7368 = vmatpush.msra.mxu0 %v7337
        %7369 = vmatmul.f32.gmra.mxu0 %v7250
        %v7370 = vpop.f32.mrf.mxu0
        %v7371 = vadd.f32 0.0, %v7370
        %7372 = vmatmul.f32.gmra.mxu0 %v7251
        %v7373 = vpop.f32.mrf.mxu0
        %v7374 = vadd.f32 0.0, %v7373
        %7375 = vdwg.mxu0
        %v7376 = vadd.f32 %v7334, %v7371
        %v7377 = vadd.f32 %v7335, %v7374
        %v7378 = vld [vmem:[#allocation5 + $0x8] sm:$0xff]
        %v7379 = vld [vmem:[#allocation5 + $0x10] sm:$0xff]
        %v7380 = vrot.slane %v7378, 7
        %v7381 = vrot.slane %v7379, 7
        %v7382 = vsel %vm815, %v7380, %v7381
        %v7383 = vsel %vm815, %v7381, %v7380
        %v7384 = vsel %vm7103, %v7383, 0.0
        %v7385 = vsel %vm7104, %v7382, 0.0
        %v7386 = vrot.slane %v7378, 1
        %v7387 = vrot.slane %v7379, 1
        %v7388 = vsel %vm912, %v7386, %v7387
        %v7389 = vsel %vm912, %v7387, %v7386
        %v7390 = vsel %vm7113, %v7388, 0.0
        %v7391 = vsel %vm7114, %v7389, 0.0
        %s7392 = scalar_lea.vmem %s7, 768
        %v7393 = vld [vmem:[%s7392] sm:$0xff]
        %v7394 = vld [vmem:[%s7392 + $0x8] sm:$0xff]
        %v7395 = vld [vmem:[%s7392 + $0x10] sm:$0xff]
        %v7396 = vld [vmem:[%s7392 + $0x18] sm:$0xff]
        %v7397 = vld [vmem:[%s7392 + $0x20] sm:$0xff]
        %v7398 = vld [vmem:[%s7392 + $0x28] sm:$0xff]
        %v7399 = vld [vmem:[%s7392 + $0x30] sm:$0xff]
        %v7400 = vld [vmem:[%s7392 + $0x38] sm:$0xff]
        %v7401 = vld [vmem:[%s7392 + $0x40] sm:$0xff]
        %v7402 = vld [vmem:[%s7392 + $0x48] sm:$0xff]
        %v7403 = vld [vmem:[%s7392 + $0x50] sm:$0xff]
        %v7404 = vld [vmem:[%s7392 + $0x58] sm:$0xff]
        %v7405 = vld [vmem:[%s7392 + $0x60] sm:$0xff]
        %v7406 = vld [vmem:[%s7392 + $0x68] sm:$0xff]
        %v7407 = vld [vmem:[%s7392 + $0x70] sm:$0xff]
        %v7408 = vld [vmem:[%s7392 + $0x78] sm:$0xff]
        %7409 = vmatpush.msra.mxu0 %v7408
        %7410 = vmatpush.msra.mxu0 %v7407
        %7411 = vmatpush.msra.mxu0 %v7406
        %7412 = vmatpush.msra.mxu0 %v7405
        %7413 = vmatpush.msra.mxu0 %v7404
        %7414 = vmatpush.msra.mxu0 %v7403
        %7415 = vmatpush.msra.mxu0 %v7402
        %7416 = vmatpush.msra.mxu0 %v7401
        %7417 = vmatpush.msra.mxu0 %v7400
        %7418 = vmatpush.msra.mxu0 %v7399
        %7419 = vmatpush.msra.mxu0 %v7398
        %7420 = vmatpush.msra.mxu0 %v7397
        %7421 = vmatpush.msra.mxu0 %v7396
        %7422 = vmatpush.msra.mxu0 %v7395
        %7423 = vmatpush.msra.mxu0 %v7394
        %7424 = vmatpush.msra.mxu0 %v7393
        %7425 = vmatmul.f32.gmra.mxu0 %v7384
        %v7426 = vpop.f32.mrf.mxu0
        %v7427 = vadd.f32 0.0, %v7426
        %7428 = vmatmul.f32.gmra.mxu0 %v7385
        %v7429 = vpop.f32.mrf.mxu0
        %v7430 = vadd.f32 0.0, %v7429
        %7431 = vdwg.mxu0
        %v7432 = vadd.f32 %v7376, %v7427
        %v7433 = vadd.f32 %v7377, %v7430
        %s7434 = scalar_lea.vmem %s7, 896
        %v7435 = vld [vmem:[%s7434] sm:$0xff]
        %v7436 = vld [vmem:[%s7434 + $0x8] sm:$0xff]
        %v7437 = vld [vmem:[%s7434 + $0x10] sm:$0xff]
        %v7438 = vld [vmem:[%s7434 + $0x18] sm:$0xff]
        %v7439 = vld [vmem:[%s7434 + $0x20] sm:$0xff]
        %v7440 = vld [vmem:[%s7434 + $0x28] sm:$0xff]
        %v7441 = vld [vmem:[%s7434 + $0x30] sm:$0xff]
        %v7442 = vld [vmem:[%s7434 + $0x38] sm:$0xff]
        %v7443 = vld [vmem:[%s7434 + $0x40] sm:$0xff]
        %v7444 = vld [vmem:[%s7434 + $0x48] sm:$0xff]
        %v7445 = vld [vmem:[%s7434 + $0x50] sm:$0xff]
        %v7446 = vld [vmem:[%s7434 + $0x58] sm:$0xff]
        %v7447 = vld [vmem:[%s7434 + $0x60] sm:$0xff]
        %v7448 = vld [vmem:[%s7434 + $0x68] sm:$0xff]
        %v7449 = vld [vmem:[%s7434 + $0x70] sm:$0xff]
        %v7450 = vld [vmem:[%s7434 + $0x78] sm:$0xff]
        %7451 = vmatpush.msra.mxu0 %v7450
        %7452 = vmatpush.msra.mxu0 %v7449
        %7453 = vmatpush.msra.mxu0 %v7448
        %7454 = vmatpush.msra.mxu0 %v7447
        %7455 = vmatpush.msra.mxu0 %v7446
        %7456 = vmatpush.msra.mxu0 %v7445
        %7457 = vmatpush.msra.mxu0 %v7444
        %7458 = vmatpush.msra.mxu0 %v7443
        %7459 = vmatpush.msra.mxu0 %v7442
        %7460 = vmatpush.msra.mxu0 %v7441
        %7461 = vmatpush.msra.mxu0 %v7440
        %7462 = vmatpush.msra.mxu0 %v7439
        %7463 = vmatpush.msra.mxu0 %v7438
        %7464 = vmatpush.msra.mxu0 %v7437
        %7465 = vmatpush.msra.mxu0 %v7436
        %7466 = vmatpush.msra.mxu0 %v7435
        %7467 = vmatmul.f32.gmra.mxu0 %v7378
        %v7468 = vpop.f32.mrf.mxu0
        %v7469 = vadd.f32 0.0, %v7468
        %7470 = vmatmul.f32.gmra.mxu0 %v7379
        %v7471 = vpop.f32.mrf.mxu0
        %v7472 = vadd.f32 0.0, %v7471
        %7473 = vdwg.mxu0
        %v7474 = vadd.f32 %v7432, %v7469
        %v7475 = vadd.f32 %v7433, %v7472
        %s7476 = scalar_lea.vmem %s7, 1024
        %v7477 = vld [vmem:[%s7476] sm:$0xff]
        %v7478 = vld [vmem:[%s7476 + $0x8] sm:$0xff]
        %v7479 = vld [vmem:[%s7476 + $0x10] sm:$0xff]
        %v7480 = vld [vmem:[%s7476 + $0x18] sm:$0xff]
        %v7481 = vld [vmem:[%s7476 + $0x20] sm:$0xff]
        %v7482 = vld [vmem:[%s7476 + $0x28] sm:$0xff]
        %v7483 = vld [vmem:[%s7476 + $0x30] sm:$0xff]
        %v7484 = vld [vmem:[%s7476 + $0x38] sm:$0xff]
        %v7485 = vld [vmem:[%s7476 + $0x40] sm:$0xff]
        %v7486 = vld [vmem:[%s7476 + $0x48] sm:$0xff]
        %v7487 = vld [vmem:[%s7476 + $0x50] sm:$0xff]
        %v7488 = vld [vmem:[%s7476 + $0x58] sm:$0xff]
        %v7489 = vld [vmem:[%s7476 + $0x60] sm:$0xff]
        %v7490 = vld [vmem:[%s7476 + $0x68] sm:$0xff]
        %v7491 = vld [vmem:[%s7476 + $0x70] sm:$0xff]
        %v7492 = vld [vmem:[%s7476 + $0x78] sm:$0xff]
        %7493 = vmatpush.msra.mxu0 %v7492
        %7494 = vmatpush.msra.mxu0 %v7491
        %7495 = vmatpush.msra.mxu0 %v7490
        %7496 = vmatpush.msra.mxu0 %v7489
        %7497 = vmatpush.msra.mxu0 %v7488
        %7498 = vmatpush.msra.mxu0 %v7487
        %7499 = vmatpush.msra.mxu0 %v7486
        %7500 = vmatpush.msra.mxu0 %v7485
        %7501 = vmatpush.msra.mxu0 %v7484
        %7502 = vmatpush.msra.mxu0 %v7483
        %7503 = vmatpush.msra.mxu0 %v7482
        %7504 = vmatpush.msra.mxu0 %v7481
        %7505 = vmatpush.msra.mxu0 %v7480
        %7506 = vmatpush.msra.mxu0 %v7479
        %7507 = vmatpush.msra.mxu0 %v7478
        %7508 = vmatpush.msra.mxu0 %v7477
        %7509 = vmatmul.f32.gmra.mxu0 %v7390
        %v7510 = vpop.f32.mrf.mxu0
        %v7511 = vadd.f32 0.0, %v7510
        %7512 = vmatmul.f32.gmra.mxu0 %v7391
        %v7513 = vpop.f32.mrf.mxu0
        %v7514 = vadd.f32 0.0, %v7513
        %7515 = vdwg.mxu0
        %v7516 = vadd.f32 %v7474, %v7511
        %v7517 = vadd.f32 %v7475, %v7514
        %v7518 = vld [vmem:[%s8] sm:$0x1]
        %v7520 = vperm.slane %v7518, 0
        %v7522 = vadd.f32 %v7516, %v7520
        %v7523 = vadd.f32 %v7517, %v7520
        %vm7524 = vcmp.ge.f32.partialorder %v7522, 0.0
        %vm7525 = vcmp.ge.f32.partialorder %v7523, 0.0
        %v7526 = vmul.f32 %v7522, 0.01
        %v7527 = vmul.f32 %v7523, 0.01
        %v7528 = vsel %vm7524, %v7522, %v7526
        %v7529 = vsel %vm7525, %v7523, %v7527
        %v7530 = vrot.slane %v7528, 1
        %v7531 = vrot.slane %v7529, 1
        %v7532 = vsel %vm912, %v7530, %v7531
        %v7533 = vsel %vm912, %v7531, %v7530
        %v7534 = vmax.f32 %v7528, %v7532
        %v7535 = vmax.f32 %v7529, %v7533
        %v7536 = vrot.slane %v7534, 4
        %v7537 = vrot.slane %v7535, 4
        %vm7538 = vcmp.lt.s32.totalorder %v623, 4
        %v7539 = vsel %vm7538, %v7536, %v7537
        %v7540 = vsel %vm7538, %v7537, %v7536
        %v7541 = vmax.f32 %v7534, %v7539
        %v7542 = vmax.f32 %v7535, %v7540
        %v7543 = vld [vmem:[%s13] sm:$0xf]
        %vm7544 = vcmask 130048
        %v7546 = vsel %vm7544, %v7543, 0
        %7548 = vmatpush.msra.mxu0 0.0
        %7549 = vmatpush.msra.mxu0 0.0
        %7550 = vmatpush.msra.mxu0 0.0
        %7551 = vmatpush.msra.mxu0 0.0
        %7552 = vmatpush.msra.mxu0 0.0
        %7553 = vmatpush.msra.mxu0 0.0
        %7554 = vmatpush.msra.mxu0 0.0
        %7555 = vmatpush.msra.mxu0 0.0
        %7556 = vmatpush.msra.mxu0 0.0
        %7557 = vmatpush.msra.mxu0 0.0
        %7558 = vmatpush.msra.mxu0 0.0
        %7559 = vmatpush.msra.mxu0 0.0
        %7560 = vmatpush.msra.mxu0 0.0
        %7561 = vmatpush.msra.mxu0 0.0
        %7562 = vmatpush.msra.mxu0 %v7542
        %7563 = vmatpush.msra.mxu0 %v7541
        %7564 = vmatmul.f32.gmra.mxu0 %v7546
        %v7565 = vpop.f32.mrf.mxu0
        %v7566 = vadd.f32 0.0, %v7565
        %7567 = vdwg.mxu0
        %7568 = vst [vmem:[#allocation6 + $0x2] sm:$0xf] %v7566
        %v7569 = vand.u32 %v623, 1
        %vm7570 = vcmp.ne.s32.totalorder %v7569, 0
        %vm7571 = vcmp.ne.s32.totalorder %v7569, 1
        %v7572 = vld [vmem:[#allocation6] sm:$0xf]
        %vm7573 = vcmask 1047556
        %v7574 = vrot.slane %v7572, 4
        %v7575 = vsel %vm7573, %v7574, %v7572
        %v7576 = vrot.slane %v7575, 4
        %v7577 = vsel %vm7573, %v7576, %v7572
        %v7578 = vsel %vm7570, 1, 0
        %vm7579 = vcmp.eq.s32.totalorder %v7578, 1
        %v7581 = vrot.slane %v7577, 3
        %v7583 = vsel %vm7579, %v7581, 0.0
        %v7584 = vsel %vm7571, 1, 0
        %vm7585 = vcmp.eq.s32.totalorder %v7584, 1
        %v7586 = vrot.slane %v7577, 1
        %v7588 = vsel %vm7585, %v7586, 0.0
        %v7589 = vld [vmem:[%s9] sm:$0xff]
        %v7590 = vld [vmem:[%s9 + $0x8] sm:$0xff]
        %v7591 = vld [vmem:[%s9 + $0x10] sm:$0xff]
        %v7592 = vld [vmem:[%s9 + $0x18] sm:$0xff]
        %v7593 = vld [vmem:[%s9 + $0x20] sm:$0xff]
        %v7594 = vld [vmem:[%s9 + $0x28] sm:$0xff]
        %v7595 = vld [vmem:[%s9 + $0x30] sm:$0xff]
        %v7596 = vld [vmem:[%s9 + $0x38] sm:$0xff]
        %v7597 = vld [vmem:[%s9 + $0x40] sm:$0xff]
        %v7598 = vld [vmem:[%s9 + $0x48] sm:$0xff]
        %v7599 = vld [vmem:[%s9 + $0x50] sm:$0xff]
        %v7600 = vld [vmem:[%s9 + $0x58] sm:$0xff]
        %v7601 = vld [vmem:[%s9 + $0x60] sm:$0xff]
        %v7602 = vld [vmem:[%s9 + $0x68] sm:$0xff]
        %v7603 = vld [vmem:[%s9 + $0x70] sm:$0xff]
        %v7604 = vld [vmem:[%s9 + $0x78] sm:$0xff]
        %s7605 = scalar_lea.vmem %s9, 128
        %v7606 = vld [vmem:[%s7605] sm:$0xff]
        %v7607 = vld [vmem:[%s7605 + $0x8] sm:$0xff]
        %v7608 = vld [vmem:[%s7605 + $0x10] sm:$0xff]
        %v7609 = vld [vmem:[%s7605 + $0x18] sm:$0xff]
        %v7610 = vld [vmem:[%s7605 + $0x20] sm:$0xff]
        %v7611 = vld [vmem:[%s7605 + $0x28] sm:$0xff]
        %v7612 = vld [vmem:[%s7605 + $0x30] sm:$0xff]
        %v7613 = vld [vmem:[%s7605 + $0x38] sm:$0xff]
        %v7614 = vld [vmem:[%s7605 + $0x40] sm:$0xff]
        %v7615 = vld [vmem:[%s7605 + $0x48] sm:$0xff]
        %v7616 = vld [vmem:[%s7605 + $0x50] sm:$0xff]
        %v7617 = vld [vmem:[%s7605 + $0x58] sm:$0xff]
        %v7618 = vld [vmem:[%s7605 + $0x60] sm:$0xff]
        %v7619 = vld [vmem:[%s7605 + $0x68] sm:$0xff]
        %v7620 = vld [vmem:[%s7605 + $0x70] sm:$0xff]
        %v7621 = vld [vmem:[%s7605 + $0x78] sm:$0xff]
        %7622 = vmatpush.msra.mxu0 %v7621
        %7623 = vmatpush.msra.mxu0 %v7620
        %7624 = vmatpush.msra.mxu0 %v7619
        %7625 = vmatpush.msra.mxu0 %v7618
        %7626 = vmatpush.msra.mxu0 %v7617
        %7627 = vmatpush.msra.mxu0 %v7616
        %7628 = vmatpush.msra.mxu0 %v7615
        %7629 = vmatpush.msra.mxu0 %v7614
        %7630 = vmatpush.msra.mxu0 %v7613
        %7631 = vmatpush.msra.mxu0 %v7612
        %7632 = vmatpush.msra.mxu0 %v7611
        %7633 = vmatpush.msra.mxu0 %v7610
        %7634 = vmatpush.msra.mxu0 %v7609
        %7635 = vmatpush.msra.mxu0 %v7608
        %7636 = vmatpush.msra.mxu0 %v7607
        %7637 = vmatpush.msra.mxu0 %v7606
        %7638 = vmatmul.f32.gmra.mxu0 %v7572
        %v7639 = vpop.f32.mrf.mxu0
        %v7640 = vadd.f32 0.0, %v7639
        %7641 = vdwg.mxu0
        %7642 = vmatpush.msra.mxu0 %v7604
        %7643 = vmatpush.msra.mxu0 %v7603
        %7644 = vmatpush.msra.mxu0 %v7602
        %7645 = vmatpush.msra.mxu0 %v7601
        %7646 = vmatpush.msra.mxu0 %v7600
        %7647 = vmatpush.msra.mxu0 %v7599
        %7648 = vmatpush.msra.mxu0 %v7598
        %7649 = vmatpush.msra.mxu0 %v7597
        %7650 = vmatpush.msra.mxu0 %v7596
        %7651 = vmatpush.msra.mxu0 %v7595
        %7652 = vmatpush.msra.mxu0 %v7594
        %7653 = vmatpush.msra.mxu0 %v7593
        %7654 = vmatpush.msra.mxu0 %v7592
        %7655 = vmatpush.msra.mxu0 %v7591
        %7656 = vmatpush.msra.mxu0 %v7590
        %7657 = vmatpush.msra.mxu0 %v7589
        %7658 = vmatmul.f32.gmra.mxu0 %v7583
        %v7659 = vpop.f32.mrf.mxu0
        %v7660 = vadd.f32 %v7640, %v7659
        %7661 = vdwg.mxu0
        %s7662 = scalar_lea.vmem %s9, 256
        %v7663 = vld [vmem:[%s7662] sm:$0xff]
        %v7664 = vld [vmem:[%s7662 + $0x8] sm:$0xff]
        %v7665 = vld [vmem:[%s7662 + $0x10] sm:$0xff]
        %v7666 = vld [vmem:[%s7662 + $0x18] sm:$0xff]
        %v7667 = vld [vmem:[%s7662 + $0x20] sm:$0xff]
        %v7668 = vld [vmem:[%s7662 + $0x28] sm:$0xff]
        %v7669 = vld [vmem:[%s7662 + $0x30] sm:$0xff]
        %v7670 = vld [vmem:[%s7662 + $0x38] sm:$0xff]
        %v7671 = vld [vmem:[%s7662 + $0x40] sm:$0xff]
        %v7672 = vld [vmem:[%s7662 + $0x48] sm:$0xff]
        %v7673 = vld [vmem:[%s7662 + $0x50] sm:$0xff]
        %v7674 = vld [vmem:[%s7662 + $0x58] sm:$0xff]
        %v7675 = vld [vmem:[%s7662 + $0x60] sm:$0xff]
        %v7676 = vld [vmem:[%s7662 + $0x68] sm:$0xff]
        %v7677 = vld [vmem:[%s7662 + $0x70] sm:$0xff]
        %v7678 = vld [vmem:[%s7662 + $0x78] sm:$0xff]
        %7679 = vmatpush.msra.mxu0 %v7678
        %7680 = vmatpush.msra.mxu0 %v7677
        %7681 = vmatpush.msra.mxu0 %v7676
        %7682 = vmatpush.msra.mxu0 %v7675
        %7683 = vmatpush.msra.mxu0 %v7674
        %7684 = vmatpush.msra.mxu0 %v7673
        %7685 = vmatpush.msra.mxu0 %v7672
        %7686 = vmatpush.msra.mxu0 %v7671
        %7687 = vmatpush.msra.mxu0 %v7670
        %7688 = vmatpush.msra.mxu0 %v7669
        %7689 = vmatpush.msra.mxu0 %v7668
        %7690 = vmatpush.msra.mxu0 %v7667
        %7691 = vmatpush.msra.mxu0 %v7666
        %7692 = vmatpush.msra.mxu0 %v7665
        %7693 = vmatpush.msra.mxu0 %v7664
        %7694 = vmatpush.msra.mxu0 %v7663
        %7695 = vmatmul.f32.gmra.mxu0 %v7588
        %v7696 = vpop.f32.mrf.mxu0
        %v7697 = vadd.f32 0.0, %v7696
        %7698 = vdwg.mxu0
        %v7699 = vadd.f32 %v7660, %v7697
        %v7700 = vld [vmem:[#allocation6 + $0x2] sm:$0xf]
        %v7701 = vrot.slane %v7700, 4
        %v7702 = vsel %vm7573, %v7701, %v7700
        %v7703 = vrot.slane %v7702, 4
        %v7704 = vsel %vm7573, %v7703, %v7700
        %v7706 = vrot.slane %v7704, 3
        %v7708 = vsel %vm7579, %v7706, 0.0
        %v7709 = vrot.slane %v7704, 1
        %v7711 = vsel %vm7585, %v7709, 0.0
        %s7712 = scalar_lea.vmem %s9, 384
        %v7713 = vld [vmem:[%s7712] sm:$0xff]
        %v7714 = vld [vmem:[%s7712 + $0x8] sm:$0xff]
        %v7715 = vld [vmem:[%s7712 + $0x10] sm:$0xff]
        %v7716 = vld [vmem:[%s7712 + $0x18] sm:$0xff]
        %v7717 = vld [vmem:[%s7712 + $0x20] sm:$0xff]
        %v7718 = vld [vmem:[%s7712 + $0x28] sm:$0xff]
        %v7719 = vld [vmem:[%s7712 + $0x30] sm:$0xff]
        %v7720 = vld [vmem:[%s7712 + $0x38] sm:$0xff]
        %v7721 = vld [vmem:[%s7712 + $0x40] sm:$0xff]
        %v7722 = vld [vmem:[%s7712 + $0x48] sm:$0xff]
        %v7723 = vld [vmem:[%s7712 + $0x50] sm:$0xff]
        %v7724 = vld [vmem:[%s7712 + $0x58] sm:$0xff]
        %v7725 = vld [vmem:[%s7712 + $0x60] sm:$0xff]
        %v7726 = vld [vmem:[%s7712 + $0x68] sm:$0xff]
        %v7727 = vld [vmem:[%s7712 + $0x70] sm:$0xff]
        %v7728 = vld [vmem:[%s7712 + $0x78] sm:$0xff]
        %7729 = vmatpush.msra.mxu0 %v7728
        %7730 = vmatpush.msra.mxu0 %v7727
        %7731 = vmatpush.msra.mxu0 %v7726
        %7732 = vmatpush.msra.mxu0 %v7725
        %7733 = vmatpush.msra.mxu0 %v7724
        %7734 = vmatpush.msra.mxu0 %v7723
        %7735 = vmatpush.msra.mxu0 %v7722
        %7736 = vmatpush.msra.mxu0 %v7721
        %7737 = vmatpush.msra.mxu0 %v7720
        %7738 = vmatpush.msra.mxu0 %v7719
        %7739 = vmatpush.msra.mxu0 %v7718
        %7740 = vmatpush.msra.mxu0 %v7717
        %7741 = vmatpush.msra.mxu0 %v7716
        %7742 = vmatpush.msra.mxu0 %v7715
        %7743 = vmatpush.msra.mxu0 %v7714
        %7744 = vmatpush.msra.mxu0 %v7713
        %7745 = vmatmul.f32.gmra.mxu0 %v7708
        %v7746 = vpop.f32.mrf.mxu0
        %v7747 = vadd.f32 0.0, %v7746
        %7748 = vdwg.mxu0
        %v7749 = vadd.f32 %v7699, %v7747
        %s7750 = scalar_lea.vmem %s9, 512
        %v7751 = vld [vmem:[%s7750] sm:$0xff]
        %v7752 = vld [vmem:[%s7750 + $0x8] sm:$0xff]
        %v7753 = vld [vmem:[%s7750 + $0x10] sm:$0xff]
        %v7754 = vld [vmem:[%s7750 + $0x18] sm:$0xff]
        %v7755 = vld [vmem:[%s7750 + $0x20] sm:$0xff]
        %v7756 = vld [vmem:[%s7750 + $0x28] sm:$0xff]
        %v7757 = vld [vmem:[%s7750 + $0x30] sm:$0xff]
        %v7758 = vld [vmem:[%s7750 + $0x38] sm:$0xff]
        %v7759 = vld [vmem:[%s7750 + $0x40] sm:$0xff]
        %v7760 = vld [vmem:[%s7750 + $0x48] sm:$0xff]
        %v7761 = vld [vmem:[%s7750 + $0x50] sm:$0xff]
        %v7762 = vld [vmem:[%s7750 + $0x58] sm:$0xff]
        %v7763 = vld [vmem:[%s7750 + $0x60] sm:$0xff]
        %v7764 = vld [vmem:[%s7750 + $0x68] sm:$0xff]
        %v7765 = vld [vmem:[%s7750 + $0x70] sm:$0xff]
        %v7766 = vld [vmem:[%s7750 + $0x78] sm:$0xff]
        %7767 = vmatpush.msra.mxu0 %v7766
        %7768 = vmatpush.msra.mxu0 %v7765
        %7769 = vmatpush.msra.mxu0 %v7764
        %7770 = vmatpush.msra.mxu0 %v7763
        %7771 = vmatpush.msra.mxu0 %v7762
        %7772 = vmatpush.msra.mxu0 %v7761
        %7773 = vmatpush.msra.mxu0 %v7760
        %7774 = vmatpush.msra.mxu0 %v7759
        %7775 = vmatpush.msra.mxu0 %v7758
        %7776 = vmatpush.msra.mxu0 %v7757
        %7777 = vmatpush.msra.mxu0 %v7756
        %7778 = vmatpush.msra.mxu0 %v7755
        %7779 = vmatpush.msra.mxu0 %v7754
        %7780 = vmatpush.msra.mxu0 %v7753
        %7781 = vmatpush.msra.mxu0 %v7752
        %7782 = vmatpush.msra.mxu0 %v7751
        %7783 = vmatmul.f32.gmra.mxu0 %v7700
        %v7784 = vpop.f32.mrf.mxu0
        %v7785 = vadd.f32 0.0, %v7784
        %7786 = vdwg.mxu0
        %v7787 = vadd.f32 %v7749, %v7785
        %s7788 = scalar_lea.vmem %s9, 640
        %v7789 = vld [vmem:[%s7788] sm:$0xff]
        %v7790 = vld [vmem:[%s7788 + $0x8] sm:$0xff]
        %v7791 = vld [vmem:[%s7788 + $0x10] sm:$0xff]
        %v7792 = vld [vmem:[%s7788 + $0x18] sm:$0xff]
        %v7793 = vld [vmem:[%s7788 + $0x20] sm:$0xff]
        %v7794 = vld [vmem:[%s7788 + $0x28] sm:$0xff]
        %v7795 = vld [vmem:[%s7788 + $0x30] sm:$0xff]
        %v7796 = vld [vmem:[%s7788 + $0x38] sm:$0xff]
        %v7797 = vld [vmem:[%s7788 + $0x40] sm:$0xff]
        %v7798 = vld [vmem:[%s7788 + $0x48] sm:$0xff]
        %v7799 = vld [vmem:[%s7788 + $0x50] sm:$0xff]
        %v7800 = vld [vmem:[%s7788 + $0x58] sm:$0xff]
        %v7801 = vld [vmem:[%s7788 + $0x60] sm:$0xff]
        %v7802 = vld [vmem:[%s7788 + $0x68] sm:$0xff]
        %v7803 = vld [vmem:[%s7788 + $0x70] sm:$0xff]
        %v7804 = vld [vmem:[%s7788 + $0x78] sm:$0xff]
        %7805 = vmatpush.msra.mxu0 %v7804
        %7806 = vmatpush.msra.mxu0 %v7803
        %7807 = vmatpush.msra.mxu0 %v7802
        %7808 = vmatpush.msra.mxu0 %v7801
        %7809 = vmatpush.msra.mxu0 %v7800
        %7810 = vmatpush.msra.mxu0 %v7799
        %7811 = vmatpush.msra.mxu0 %v7798
        %7812 = vmatpush.msra.mxu0 %v7797
        %7813 = vmatpush.msra.mxu0 %v7796
        %7814 = vmatpush.msra.mxu0 %v7795
        %7815 = vmatpush.msra.mxu0 %v7794
        %7816 = vmatpush.msra.mxu0 %v7793
        %7817 = vmatpush.msra.mxu0 %v7792
        %7818 = vmatpush.msra.mxu0 %v7791
        %7819 = vmatpush.msra.mxu0 %v7790
        %7820 = vmatpush.msra.mxu0 %v7789
        %7821 = vmatmul.f32.gmra.mxu0 %v7711
        %v7822 = vpop.f32.mrf.mxu0
        %v7823 = vadd.f32 0.0, %v7822
        %7824 = vdwg.mxu0
        %v7825 = vadd.f32 %v7787, %v7823
        %v7826 = vld [vmem:[#allocation6 + $0x4] sm:$0xf]
        %v7827 = vrot.slane %v7826, 4
        %v7828 = vsel %vm7573, %v7827, %v7826
        %v7829 = vrot.slane %v7828, 4
        %v7830 = vsel %vm7573, %v7829, %v7826
        %v7832 = vrot.slane %v7830, 3
        %v7834 = vsel %vm7579, %v7832, 0.0
        %v7835 = vrot.slane %v7830, 1
        %v7837 = vsel %vm7585, %v7835, 0.0
        %s7838 = scalar_lea.vmem %s9, 768
        %v7839 = vld [vmem:[%s7838] sm:$0xff]
        %v7840 = vld [vmem:[%s7838 + $0x8] sm:$0xff]
        %v7841 = vld [vmem:[%s7838 + $0x10] sm:$0xff]
        %v7842 = vld [vmem:[%s7838 + $0x18] sm:$0xff]
        %v7843 = vld [vmem:[%s7838 + $0x20] sm:$0xff]
        %v7844 = vld [vmem:[%s7838 + $0x28] sm:$0xff]
        %v7845 = vld [vmem:[%s7838 + $0x30] sm:$0xff]
        %v7846 = vld [vmem:[%s7838 + $0x38] sm:$0xff]
        %v7847 = vld [vmem:[%s7838 + $0x40] sm:$0xff]
        %v7848 = vld [vmem:[%s7838 + $0x48] sm:$0xff]
        %v7849 = vld [vmem:[%s7838 + $0x50] sm:$0xff]
        %v7850 = vld [vmem:[%s7838 + $0x58] sm:$0xff]
        %v7851 = vld [vmem:[%s7838 + $0x60] sm:$0xff]
        %v7852 = vld [vmem:[%s7838 + $0x68] sm:$0xff]
        %v7853 = vld [vmem:[%s7838 + $0x70] sm:$0xff]
        %v7854 = vld [vmem:[%s7838 + $0x78] sm:$0xff]
        %7855 = vmatpush.msra.mxu0 %v7854
        %7856 = vmatpush.msra.mxu0 %v7853
        %7857 = vmatpush.msra.mxu0 %v7852
        %7858 = vmatpush.msra.mxu0 %v7851
        %7859 = vmatpush.msra.mxu0 %v7850
        %7860 = vmatpush.msra.mxu0 %v7849
        %7861 = vmatpush.msra.mxu0 %v7848
        %7862 = vmatpush.msra.mxu0 %v7847
        %7863 = vmatpush.msra.mxu0 %v7846
        %7864 = vmatpush.msra.mxu0 %v7845
        %7865 = vmatpush.msra.mxu0 %v7844
        %7866 = vmatpush.msra.mxu0 %v7843
        %7867 = vmatpush.msra.mxu0 %v7842
        %7868 = vmatpush.msra.mxu0 %v7841
        %7869 = vmatpush.msra.mxu0 %v7840
        %7870 = vmatpush.msra.mxu0 %v7839
        %7871 = vmatmul.f32.gmra.mxu0 %v7834
        %v7872 = vpop.f32.mrf.mxu0
        %v7873 = vadd.f32 0.0, %v7872
        %7874 = vdwg.mxu0
        %v7875 = vadd.f32 %v7825, %v7873
        %s7876 = scalar_lea.vmem %s9, 896
        %v7877 = vld [vmem:[%s7876] sm:$0xff]
        %v7878 = vld [vmem:[%s7876 + $0x8] sm:$0xff]
        %v7879 = vld [vmem:[%s7876 + $0x10] sm:$0xff]
        %v7880 = vld [vmem:[%s7876 + $0x18] sm:$0xff]
        %v7881 = vld [vmem:[%s7876 + $0x20] sm:$0xff]
        %v7882 = vld [vmem:[%s7876 + $0x28] sm:$0xff]
        %v7883 = vld [vmem:[%s7876 + $0x30] sm:$0xff]
        %v7884 = vld [vmem:[%s7876 + $0x38] sm:$0xff]
        %v7885 = vld [vmem:[%s7876 + $0x40] sm:$0xff]
        %v7886 = vld [vmem:[%s7876 + $0x48] sm:$0xff]
        %v7887 = vld [vmem:[%s7876 + $0x50] sm:$0xff]
        %v7888 = vld [vmem:[%s7876 + $0x58] sm:$0xff]
        %v7889 = vld [vmem:[%s7876 + $0x60] sm:$0xff]
        %v7890 = vld [vmem:[%s7876 + $0x68] sm:$0xff]
        %v7891 = vld [vmem:[%s7876 + $0x70] sm:$0xff]
        %v7892 = vld [vmem:[%s7876 + $0x78] sm:$0xff]
        %7893 = vmatpush.msra.mxu0 %v7892
        %7894 = vmatpush.msra.mxu0 %v7891
        %7895 = vmatpush.msra.mxu0 %v7890
        %7896 = vmatpush.msra.mxu0 %v7889
        %7897 = vmatpush.msra.mxu0 %v7888
        %7898 = vmatpush.msra.mxu0 %v7887
        %7899 = vmatpush.msra.mxu0 %v7886
        %7900 = vmatpush.msra.mxu0 %v7885
        %7901 = vmatpush.msra.mxu0 %v7884
        %7902 = vmatpush.msra.mxu0 %v7883
        %7903 = vmatpush.msra.mxu0 %v7882
        %7904 = vmatpush.msra.mxu0 %v7881
        %7905 = vmatpush.msra.mxu0 %v7880
        %7906 = vmatpush.msra.mxu0 %v7879
        %7907 = vmatpush.msra.mxu0 %v7878
        %7908 = vmatpush.msra.mxu0 %v7877
        %7909 = vmatmul.f32.gmra.mxu0 %v7826
        %v7910 = vpop.f32.mrf.mxu0
        %v7911 = vadd.f32 0.0, %v7910
        %7912 = vdwg.mxu0
        %v7913 = vadd.f32 %v7875, %v7911
        %s7914 = scalar_lea.vmem %s9, 1024
        %v7915 = vld [vmem:[%s7914] sm:$0xff]
        %v7916 = vld [vmem:[%s7914 + $0x8] sm:$0xff]
        %v7917 = vld [vmem:[%s7914 + $0x10] sm:$0xff]
        %v7918 = vld [vmem:[%s7914 + $0x18] sm:$0xff]
        %v7919 = vld [vmem:[%s7914 + $0x20] sm:$0xff]
        %v7920 = vld [vmem:[%s7914 + $0x28] sm:$0xff]
        %v7921 = vld [vmem:[%s7914 + $0x30] sm:$0xff]
        %v7922 = vld [vmem:[%s7914 + $0x38] sm:$0xff]
        %v7923 = vld [vmem:[%s7914 + $0x40] sm:$0xff]
        %v7924 = vld [vmem:[%s7914 + $0x48] sm:$0xff]
        %v7925 = vld [vmem:[%s7914 + $0x50] sm:$0xff]
        %v7926 = vld [vmem:[%s7914 + $0x58] sm:$0xff]
        %v7927 = vld [vmem:[%s7914 + $0x60] sm:$0xff]
        %v7928 = vld [vmem:[%s7914 + $0x68] sm:$0xff]
        %v7929 = vld [vmem:[%s7914 + $0x70] sm:$0xff]
        %v7930 = vld [vmem:[%s7914 + $0x78] sm:$0xff]
        %7931 = vmatpush.msra.mxu0 %v7930
        %7932 = vmatpush.msra.mxu0 %v7929
        %7933 = vmatpush.msra.mxu0 %v7928
        %7934 = vmatpush.msra.mxu0 %v7927
        %7935 = vmatpush.msra.mxu0 %v7926
        %7936 = vmatpush.msra.mxu0 %v7925
        %7937 = vmatpush.msra.mxu0 %v7924
        %7938 = vmatpush.msra.mxu0 %v7923
        %7939 = vmatpush.msra.mxu0 %v7922
        %7940 = vmatpush.msra.mxu0 %v7921
        %7941 = vmatpush.msra.mxu0 %v7920
        %7942 = vmatpush.msra.mxu0 %v7919
        %7943 = vmatpush.msra.mxu0 %v7918
        %7944 = vmatpush.msra.mxu0 %v7917
        %7945 = vmatpush.msra.mxu0 %v7916
        %7946 = vmatpush.msra.mxu0 %v7915
        %7947 = vmatmul.f32.gmra.mxu0 %v7837
        %v7948 = vpop.f32.mrf.mxu0
        %v7949 = vadd.f32 0.0, %v7948
        %7950 = vdwg.mxu0
        %v7951 = vadd.f32 %v7913, %v7949
        %v7952 = vld [vmem:[%s10] sm:$0x1]
        %v7954 = vperm.slane %v7952, 0
        %v7956 = vadd.f32 %v7951, %v7954
        %vm7957 = vcmp.ge.f32.partialorder %v7956, 0.0
        %v7958 = vmul.f32 %v7956, 0.01
        %v7959 = vsel %vm7957, %v7956, %v7958
        %7960 = vst [vmem:[%s542] sm:$0xf] %v7959
        %p7961 = scmp.lt.s32.totalorder %s31, 1
        %s7962 = scalar_select %p7961, %s31, 1
        %s7963 = smul.addr %s7962, 8
        %s7964 = smul.addr %s7963, 8
        %s7965 = scalar_lea.vmem %s14, %s7964
        %s7966 = sand.u32 %s364, 1
        %s7967 = scalar_lea.sflag [#allocation8], %s7966
        %s7968 = sand.u32 %s364, 1
        %s7969 = smul.addr %s7968, 16
        %s7970 = scalar_lea.vmem [#allocation7], %s7969
        %p7971 = scmp.lt.s32.totalorder %s31, 1
        %s7972 = scalar_select %p7971, %s31, 1
        %s7973 = smul.addr %s7972, 4
        %s7974 = scalar_lea.vmem %s16, %s7973
        // Predicated region
        $region77: #{encoder_forward.1} parent=75 // pred_check
          %p7975 = pneg %p348
        $region78: #{encoder_forward.1} parent=75 // pred_check_branch
          %7977 = sbr.rel (%p7975) target = $region80
        $region79: #{encoder_forward.1} parent=75 // pred_region
          _
        $region80: #{encoder_forward.1} parent=75 // pred_fallthru
          _
        // Predicated region
        $region81: #{encoder_forward.1} parent=75 // pred_check
          %p7978 = pneg %p374
        $region82: #{encoder_forward.1} parent=75 // pred_check_branch
          %7980 = sbr.rel (%p7978) target = $region84
        $region83: #{encoder_forward.1} parent=75 // pred_region
          %7982 = vsyncadd %s7967, 0
          %s7983 = smul.addr %s31, 2
          %s7984 = smul.addr %s7983, 8
          %s7985 = scalar_lea.hbm %s15, %s7984
          %s7986 = sshll.u32 %s7970, 4
          %s7987 = int_to_ptr.vmem [resolvable:$true] %s7986
          %s7988 = sshll.u32 %s7985, 4
          %s7989 = int_to_ptr.hbm [resolvable:$true] %s7988
          %7994 = dma.vmem_to_hbm [thread:$0]  %s7987, 256, %s7989, %s7967, 128, 128, 8
        $region84: #{encoder_forward.1} parent=75 // pred_fallthru
          _
        // Predicated region
        $region85: #{encoder_forward.1} parent=75 // pred_check
          %p7995 = pneg %p400
        $region86: #{encoder_forward.1} parent=75 // pred_check_branch
          %7997 = sbr.rel (%p7995) target = $region88
        $region87: #{encoder_forward.1} parent=75 // pred_region
          _
        $region88: #{encoder_forward.1} parent=75 // pred_fallthru
          _
      $region76: #{encoder_forward.1} parent=5 // pred_fallthru
        _
      %p7998 = scmp.le.s32.totalorder 2, %s26
      // Predicated region
      $region89: #{encoder_forward.1} parent=5 // pred_check
        %p7999 = pneg %p7998
      $region90: #{encoder_forward.1} parent=5 // pred_check_branch
        %8001 = sbr.rel (%p7999) target = $region92
      $region91: #{encoder_forward.1} parent=5 // pred_region
        %s8002 = ssub.s32 %s26, 2
        // Predicated region
        $region93: #{encoder_forward.1} parent=91 // pred_check
          %p8003 = pneg %p354
        $region94: #{encoder_forward.1} parent=91 // pred_check_branch
          %8005 = sbr.rel (%p8003) target = $region96
        $region95: #{encoder_forward.1} parent=91 // pred_region
          %p8006 = scmp.lt.s32.totalorder %s32, 1
          %s8007 = scalar_select %p8006, %s32, 1
          %s8008 = smul.addr %s8007, 8
          %s8009 = smul.addr %s8008, 8
          %s8010 = scalar_lea.vmem %s14, %s8009
        $region96: #{encoder_forward.1} parent=91 // pred_fallthru
          _
        // Predicated region
        $region97: #{encoder_forward.1} parent=91 // pred_check
          %p8011 = pneg %p380
        $region98: #{encoder_forward.1} parent=91 // pred_check_branch
          %8013 = sbr.rel (%p8011) target = $region100
        $region99: #{encoder_forward.1} parent=91 // pred_region
          %s8014 = sand.u32 %s365, 1
          %s8015 = scalar_lea.sflag [#allocation8], %s8014
          %s8016 = sand.u32 %s365, 1
          %s8017 = smul.addr %s8016, 16
          %s8018 = scalar_lea.vmem [#allocation7], %s8017
          %8020 = dma.done %s8015, 256
        $region100: #{encoder_forward.1} parent=91 // pred_fallthru
          _
        // Predicated region
        $region101: #{encoder_forward.1} parent=91 // pred_check
          %p8021 = pneg %p406
        $region102: #{encoder_forward.1} parent=91 // pred_check_branch
          %8023 = sbr.rel (%p8021) target = $region104
        $region103: #{encoder_forward.1} parent=91 // pred_region
          %p8024 = scmp.lt.s32.totalorder %s32, 1
          %s8025 = scalar_select %p8024, %s32, 1
          %s8026 = smul.addr %s8025, 4
          %s8027 = scalar_lea.vmem %s16, %s8026
        $region104: #{encoder_forward.1} parent=91 // pred_fallthru
          _
      $region92: #{encoder_forward.1} parent=5 // pred_fallthru
        _
    $region6: #{encoder_forward.1} parent=1 // loop_footer
      %s30 = sadd.s32 1, %s26
    $region7: #{encoder_forward.1} parent=1 // loop_footer_branch
      %25 = sbr.rel target = $region3
    $region8: #{encoder_forward.1} parent=1 // loop_exit
      _
    %8028 = vsyncpa [#allocation8], 1
    %s8029 = scalar_lea.sflag [#allocation8], 1
    %8030 = vsyncpa %s8029, 1

</llo_original>
